<compile_context>
chip_gen: v5e
topology: v5e:2x2
jax: 0.10.0
libtpu: 0.0.40
codegen_flags: <defaults>
</compile_context>

<pallas_src>
import math
from functools import partial

import numpy as np
import jax
import jax.numpy as jnp
from jax.experimental import pallas as pl
from jax.experimental.pallas import tpu as pltpu


# ----------------------------- Pallas kernels ------------------------------

def _sps_stage_kernel(x_ref, w_ref, s_ref, b_ref, ph_ref, pw_ref, o_ref):
    """Fused conv3x3 + BN + multi-step LIF + avgpool(3,2,1) for one batch element.

    x_ref : (T, H+2, (W+2)*Ci)   zero-padded input, lane dim = (W+2)*Ci
    w_ref : (3, (W+2)*Ci, W*Co)  banded conv weights (one matrix per kernel row dh)
    s_ref : (1, W*Co)            folded BN scale   (tiled over w)
    b_ref : (1, W*Co)            folded BN shift   (tiled over w)
    ph_ref: (H//2, H)            row-pooling matrix (includes the 1/9 factor)
    pw_ref: (W*Co, (W//2)*Co)    col-pooling matrix (per-channel identity blocks)
    o_ref : (T, H//2, (W//2)*Co) pooled spikes
    """
    T = x_ref.shape[0]
    H = ph_ref.shape[1]
    WCo = s_ref.shape[1]
    v = jnp.zeros((H, WCo), jnp.float32)                 # LIF membrane, lives in VMEM/vregs
    for t in range(T):                                    # T small & static -> unrolled
        xt = x_ref[t]                                     # (H+2, (W+2)*Ci)
        conv = jnp.dot(xt[0:H, :], w_ref[0], preferred_element_type=jnp.float32)
        conv = conv + jnp.dot(xt[1:H + 1, :], w_ref[1], preferred_element_type=jnp.float32)
        conv = conv + jnp.dot(xt[2:H + 2, :], w_ref[2], preferred_element_type=jnp.float32)
        y = conv * s_ref[...] + b_ref[...]                # folded BatchNorm2d (eval)
        v = v + (y - v) * 0.5                             # LIF: tau=2, decay_input=True
        spike = (v >= 1.0).astype(jnp.float32)            # heaviside fire, v_th = 1.0
        v = v * (1.0 - spike)                             # hard reset to 0
        pooled = jnp.dot(ph_ref[...], spike, preferred_element_type=jnp.float32)
        pooled = jnp.dot(pooled, pw_ref[...], preferred_element_type=jnp.float32)
        o_ref[t] = pooled                                 # AvgPool2d(3, s2, p1), /9 in ph


def _sps_rpe_kernel(x_ref, xf_ref, w_ref, s_ref, b_ref, o_ref):
    """Fused rpe conv + BN + LIF + residual + time accumulation (sum over T).

    x_ref : (T, H+2, (W+2)*C)  padded stage-3 feature
    xf_ref: (T, H, W*C)        unpadded stage-3 feature (residual branch)
    o_ref : (H, W*C)           sum_t (rpe_lif_spike_t + feature_t)
    """
    T = x_ref.shape[0]
    H = o_ref.shape[0]
    WC = o_ref.shape[1]
    v = jnp.zeros((H, WC), jnp.float32)
    acc = jnp.zeros((H, WC), jnp.float32)
    for t in range(T):
        xt = x_ref[t]
        conv = jnp.dot(xt[0:H, :], w_ref[0], preferred_element_type=jnp.float32)
        conv = conv + jnp.dot(xt[1:H + 1, :], w_ref[1], preferred_element_type=jnp.float32)
        conv = conv + jnp.dot(xt[2:H + 2, :], w_ref[2], preferred_element_type=jnp.float32)
        y = conv * s_ref[...] + b_ref[...]
        v = v + (y - v) * 0.5
        spike = (v >= 1.0).astype(jnp.float32)
        v = v * (1.0 - spike)
        acc = acc + spike + xf_ref[t]                     # x_1 + x_feat, summed over time
    o_ref[...] = acc


def _block_kernel(x_ref, wqkv_ref, sqkv_ref, bqkv_ref,
                  wp_ref, sp_ref, bp_ref,
                  wh_ref, sh_ref, bh_ref,
                  wo_ref, so_ref, bo_ref,
                  o_ref):
    """One full transformer Block (Spiking_AFT_Simple + Spiking_GFNN + residuals)
    for one batch element, time looped in-kernel.

    x_ref : (T, N, C)
    wqkv  : (C, 3*seg)  Q/K/V packed into 128-lane-aligned segments (zero-padded)
    wp    : (seg, C)    projection weight (zero-padded rows)
    wh    : (C, 2*segg) gfnn to_hidden (v | gate) packed into 128-aligned segments
    wo    : (segg, C)   gfnn output weight (zero-padded rows)
    s*/b* : folded bias + eval-mode BatchNorm1d scale/shift per output column.
    """
    T, N, C = x_ref.shape
    seg = wp_ref.shape[0]                                 # padded attention hidden (x128)
    segg = wo_ref.shape[0]                                # padded gfnn hidden (x128)
    f32 = jnp.float32
    # LIF membranes (zero-padded columns stay exactly zero -> never fire).
    vq = jnp.zeros((N, seg), f32)
    vk = jnp.zeros((N, seg), f32)
    vp = jnp.zeros((N, C), f32)
    vh = jnp.zeros((N, segg), f32)
    vo = jnp.zeros((N, C), f32)
    for t in range(T):                                    # T = 1 after the SPS time sum
        xt = x_ref[t]                                     # (N, C)
        # -------- Spiking_AFT_Simple --------
        qkv = jnp.dot(xt, wqkv_ref[...], preferred_element_type=f32)
        qkv = qkv * sqkv_ref[...] + bqkv_ref[...]         # fused bias + BN1d (Q/K only)
        q = qkv[:, 0:seg]                                 # tile-aligned lane slices
        k = qkv[:, seg:2 * seg]
        vproj = qkv[:, 2 * seg:3 * seg]
        # Multi_Threshold_Acc(times=1): 0.5-threshold LIF fire blocks.
        vk = vk + (k - vk) * 0.5
        fk = (vk >= 0.5).astype(f32)
        vk = vk * (1.0 - fk)
        vq = vq + (q - vq) * 0.5
        fq = (vq >= 0.5).astype(f32)
        vq = vq * (1.0 - fq)
        wgt = jnp.sum(fk * vproj, axis=0, keepdims=True)  # sum over tokens N -> (1, seg)
        yt = fq * wgt                                     # (N, seg)
        proj = jnp.dot(yt, wp_ref[...], preferred_element_type=f32)
        proj = proj * sp_ref[...] + bp_ref[...]
        vp = vp + (proj - vp) * 0.5
        fa = (vp >= 0.5).astype(f32)                      # project fire block (0.5 thr)
        vp = vp * (1.0 - fa)
        x1 = xt + fa                                      # residual: x + attn(x)
        # -------- Spiking_GFNN --------
        hid = jnp.dot(x1, wh_ref[...], preferred_element_type=f32)
        hid = hid * sh_ref[...] + bh_ref[...]             # (N, 2*segg)
        hv = hid[:, 0:segg]
        gate = hid[:, segg:2 * segg]
        vh = vh + (hv - vh) * 0.5
        fv = (vh >= 1.0).astype(f32)                      # to_hidden_v_lif, v_th = 1.0
        vh = vh * (1.0 - fv)
        gated = gate * fv                                 # gate multiply fused here
        out = jnp.dot(gated, wo_ref[...], preferred_element_type=f32)
        out = out * so_ref[...] + bo_ref[...]
        vo = vo + (out - vo) * 0.5
        fo = (vo >= 1.0).astype(f32)                      # to_lif, v_th = 1.0
        vo = vo * (1.0 - fo)
        o_ref[t] = x1 + fo                                # residual: x + sgfnn(x)


def _head_kernel(x_ref, w_ref, b_ref, o_ref):
    """Mean over tokens & time, then the Linear head.

    x_ref: (T*N, B, C)  ->  o_ref: (B, num_classes)
    """
    TN = x_ref.shape[0]
    acc = jnp.zeros(x_ref.shape[1:], jnp.float32)
    for i in range(TN):
        acc = acc + x_ref[i]
    feat = acc * (1.0 / TN)
    o_ref[...] = jnp.dot(feat, w_ref[...], preferred_element_type=jnp.float32) + b_ref[...]


# ------------------------------- wrappers -----------------------------------

def _full_spec(arr):
    nd = arr.ndim
    return pl.BlockSpec(arr.shape, lambda *_: (0,) * nd)


def sps_stage_apply(h5, stp):
    """h5: (B, T, H, W, Ci) -> (B, T, H//2, W//2, Co); one fused pallas_call."""
    B, T, H, W, Ci = h5.shape
    Hout = stp['ph'].shape[0]
    Wout = W // 2
    WoutCo = stp['pw'].shape[1]
    Co = WoutCo // Wout
    hp = jnp.pad(h5, ((0, 0), (0, 0), (1, 1), (1, 1), (0, 0)))
    hp = hp.reshape(B, T, H + 2, (W + 2) * Ci)            # lane dim = (W+2)*Ci
    wargs = [stp['wrow'], stp['scale'], stp['shift'], stp['ph'], stp['pw']]
    out = pl.pallas_call(
        _sps_stage_kernel,
        out_shape=jax.ShapeDtypeStruct((B, T, Hout, WoutCo), jnp.float32),
        grid=(B,),
        in_specs=[pl.BlockSpec((None, T, H + 2, (W + 2) * Ci), lambda b: (b, 0, 0, 0))]
                 + [_full_spec(a) for a in wargs],
        out_specs=pl.BlockSpec((None, T, Hout, WoutCo), lambda b: (b, 0, 0, 0)),
        compiler_params=pltpu.CompilerParams(dimension_semantics=("parallel",)),
    )(hp, *wargs)
    return out.reshape(B, T, Hout, Wout, Co)


def sps_rpe_apply(h5, rp):
    """h5: (B, T, H, W, C) -> tokens (B, 1, H*W, C) accumulated over time."""
    B, T, H, W, C = h5.shape
    hp = jnp.pad(h5, ((0, 0), (0, 0), (1, 1), (1, 1), (0, 0))).reshape(B, T, H + 2, (W + 2) * C)
    hf = h5.reshape(B, T, H, W * C)
    wargs = [rp['wrow'], rp['scale'], rp['shift']]
    out = pl.pallas_call(
        _sps_rpe_kernel,
        out_shape=jax.ShapeDtypeStruct((B, H, W * C), jnp.float32),
        grid=(B,),
        in_specs=[pl.BlockSpec((None, T, H + 2, (W + 2) * C), lambda b: (b, 0, 0, 0)),
                  pl.BlockSpec((None, T, H, W * C), lambda b: (b, 0, 0, 0))]
                 + [_full_spec(a) for a in wargs],
        out_specs=pl.BlockSpec((None, H, W * C), lambda b: (b, 0, 0)),
        compiler_params=pltpu.CompilerParams(dimension_semantics=("parallel",)),
    )(hp, hf, *wargs)
    return out.reshape(B, H, W, C).reshape(B, 1, H * W, C)


def block_apply(xs, bp):
    """xs: (B, T, N, C) -> (B, T, N, C); one fused pallas_call per Block."""
    B, T, N, C = xs.shape
    wargs = [bp['wqkv'], bp['sqkv'], bp['bqkv'],
             bp['wp'], bp['sp'], bp['bp'],
             bp['wh'], bp['sh'], bp['bh'],
             bp['wo'], bp['so'], bp['bo']]
    return pl.pallas_call(
        _block_kernel,
        out_shape=jax.ShapeDtypeStruct((B, T, N, C), jnp.float32),
        grid=(B,),
        in_specs=[pl.BlockSpec((None, T, N, C), lambda b: (b, 0, 0, 0))]
                 + [_full_spec(a) for a in wargs],
        out_specs=pl.BlockSpec((None, T, N, C), lambda b: (b, 0, 0, 0)),
        compiler_params=pltpu.CompilerParams(dimension_semantics=("parallel",)),
    )(xs, *wargs)


def head_apply(xs, hp):
    """xs: (B, T, N, C) -> logits (B, num_classes)."""
    B, T, N, C = xs.shape
    ncls = hp['w'].shape[1]
    xflat = jnp.transpose(xs, (1, 2, 0, 3)).reshape(T * N, B, C)
    return pl.pallas_call(
        _head_kernel,
        out_shape=jax.ShapeDtypeStruct((B, ncls), jnp.float32),
        grid=(1,),
        in_specs=[pl.BlockSpec((T * N, B, C), lambda i: (0, 0, 0)),
                  pl.BlockSpec(hp['w'].shape, lambda i: (0, 0)),
                  pl.BlockSpec(hp['b'].shape, lambda i: (0, 0))],
        out_specs=pl.BlockSpec((B, ncls), lambda i: (0, 0)),
        compiler_params=pltpu.CompilerParams(dimension_semantics=("arbitrary",)),
    )(xflat, hp['w'], hp['b'])


# ----------------------------- model forward --------------------------------

def spikformer_forward(x_btchw, params):
    """x: (B, T, Cin, H, W) like the PyTorch input before its permute(1,0,2,3,4).

    The torch model moves time to the front and flattens (T*B); here every kernel
    loops over T internally for one batch element (the LIF state is per-sample and
    sequential only in time), which is mathematically identical.
    """
    x = jnp.transpose(x_btchw, (0, 1, 3, 4, 2)).astype(jnp.float32)   # (B,T,H,W,Cin)
    h = x
    for stp in params['sps']:
        h = sps_stage_apply(h, stp)                       # conv+BN+LIF+pool fused
    xs = sps_rpe_apply(h, params['rpe'])                  # rpe+residual+time-sum -> (B,1,N,C)
    # NOTE: pos_embed exists in the PyTorch module but is never used in its forward.
    for bp in params['blocks']:
        xs = block_apply(xs, bp)                          # residuals fused inside
    return head_apply(xs, params['head'])                 # token/time mean + Linear head


# --------------------------- parameter packing -------------------------------
# Packing (banded conv weights, pooling matrices, fused/padded QKV & GFNN weights,
# folded eval-mode BatchNorm) is done once in numpy, outside the jitted forward.

def _banded_conv_weight(w_hwio, W):
    """(3,3,Ci,Co) conv kernel -> (3, (W+2)*Ci, W*Co) banded matrices (one per dh)."""
    _, _, Ci, Co = w_hwio.shape
    out = np.zeros((3, (W + 2) * Ci, W * Co), np.float32)
    for dh in range(3):
        for dw in range(3):
            for w in range(W):
                out[dh, (w + dw) * Ci:(w + dw + 1) * Ci, w * Co:(w + 1) * Co] = w_hwio[dh, dw]
    return out


def _pool_mats(H, W, Co):
    """AvgPool2d(3, s2, p1, count_include_pad=True) as two matmul operands."""
    Hout, Wout = H // 2, W // 2
    ph = np.zeros((Hout, H), np.float32)
    for oh in range(Hout):
        for d in range(3):
            h = 2 * oh - 1 + d
            if 0 <= h < H:
                ph[oh, h] = 1.0 / 9.0                      # 1/9 folded here
    pw = np.zeros((W * Co, Wout * Co), np.float32)
    eye = np.eye(Co, dtype=np.float32)
    for ow in range(Wout):
        for d in range(3):
            w = 2 * ow - 1 + d
            if 0 <= w < W:
                pw[w * Co:(w + 1) * Co, ow * Co:(ow + 1) * Co] = eye
    return ph, pw


def init_packed_params(key, *, in_ch=2, img=32, embed=32, depths=2,
                       attn_hidden=64, mlp_ratio=4, num_classes=11, eps=1e-5):
    keys = iter(jax.random.split(key, 256))

    def rnd(shape, std):
        return (np.asarray(jax.random.normal(next(keys), shape, jnp.float32)) * std
                ).astype(np.float32)

    def bn_fold(c):
        # eval-mode BatchNorm (running_mean=0, running_var=1) folded to scale/shift.
        gamma = (1.0 + 0.1 * rnd((c,), 1.0)).astype(np.float32)
        beta = (0.1 * rnd((c,), 1.0)).astype(np.float32)
        rm = np.zeros((c,), np.float32)
        rv = np.ones((c,), np.float32)
        s = (gamma / np.sqrt(rv + eps)).astype(np.float32)
        return s, (beta - rm * s).astype(np.float32)

    # ---- SPS: 4 conv stages + rpe ----
    chans = [in_ch, embed // 8, embed // 4, embed // 2, embed]
    sps = []
    Hc = img
    for i in range(4):
        Ci, Co = chans[i], chans[i + 1]
        w_hwio = rnd((3, 3, Ci, Co), 1.0 / math.sqrt(9 * Ci))
        s, sh = bn_fold(Co)
        ph, pw = _pool_mats(Hc, Hc, Co)
        sps.append(dict(wrow=jnp.asarray(_banded_conv_weight(w_hwio, Hc)),
                        scale=jnp.asarray(np.tile(s, Hc)[None, :]),
                        shift=jnp.asarray(np.tile(sh, Hc)[None, :]),
                        ph=jnp.asarray(ph), pw=jnp.asarray(pw)))
        Hc //= 2
    w_hwio = rnd((3, 3, embed, embed), 1.0 / math.sqrt(9 * embed))
    s, sh = bn_fold(embed)
    rpe = dict(wrow=jnp.asarray(_banded_conv_weight(w_hwio, Hc)),
               scale=jnp.asarray(np.tile(s, Hc)[None, :]),
               shift=jnp.asarray(np.tile(sh, Hc)[None, :]))

    # ---- transformer blocks ----
    C = embed
    hd = attn_hidden
    g = embed * mlp_ratio
    seg = ((hd + 127) // 128) * 128                        # 128-lane aligned segments
    segg = ((g + 127) // 128) * 128
    blocks = []
    for _ in range(depths):
        wq, wk, wv = rnd((C, hd), 0.2), rnd((C, hd), 0.2), rnd((C, hd), 0.2)
        bq = np.zeros((hd,), np.float32)
        bk = np.zeros((hd,), np.float32)
        bv = np.zeros((hd,), np.float32)
        sq, shq = bn_fold(hd)
        sk, shk = bn_fold(hd)
        wqkv = np.zeros((C, 3 * seg), np.float32)
        sqkv = np.ones((1, 3 * seg), np.float32)
        bqkv = np.zeros((1, 3 * seg), np.float32)
        wqkv[:, 0:hd] = wq
        sqkv[0, 0:hd] = sq
        bqkv[0, 0:hd] = bq * sq + shq
        wqkv[:, seg:seg + hd] = wk
        sqkv[0, seg:seg + hd] = sk
        bqkv[0, seg:seg + hd] = bk * sk + shk
        wqkv[:, 2 * seg:2 * seg + hd] = wv                 # V: bias only, no BN
        bqkv[0, 2 * seg:2 * seg + hd] = bv
        wp_raw = rnd((hd, C), 0.2)
        bp_raw = np.zeros((C,), np.float32)
        sp, shp = bn_fold(C)
        wp = np.zeros((seg, C), np.float32)
        wp[0:hd, :] = wp_raw
        # GFNN: single to_hidden_linear(dim -> 2*g), chunk -> (v, gate).
        whid = rnd((C, 2 * g), 0.2)
        bhid = np.zeros((2 * g,), np.float32)
        sv, shv = bn_fold(g)
        wh = np.zeros((C, 2 * segg), np.float32)
        shl = np.ones((1, 2 * segg), np.float32)
        bhl = np.zeros((1, 2 * segg), np.float32)
        wh[:, 0:g] = whid[:, 0:g]
        shl[0, 0:g] = sv
        bhl[0, 0:g] = bhid[0:g] * sv + shv
        wh[:, segg:segg + g] = whid[:, g:2 * g]            # gate half: bias only, no BN
        bhl[0, segg:segg + g] = bhid[g:2 * g]
        wo_raw = rnd((g, C), 0.2)
        bo_raw = np.zeros((C,), np.float32)
        so, sho = bn_fold(C)
        wo = np.zeros((segg, C), np.float32)
        wo[0:g, :] = wo_raw
        blocks.append(dict(
            wqkv=jnp.asarray(wqkv), sqkv=jnp.asarray(sqkv), bqkv=jnp.asarray(bqkv),
            wp=jnp.asarray(wp), sp=jnp.asarray(sp[None, :]),
            bp=jnp.asarray((bp_raw * sp + shp)[None, :]),
            wh=jnp.asarray(wh), sh=jnp.asarray(shl), bh=jnp.asarray(bhl),
            wo=jnp.asarray(wo), so=jnp.asarray(so[None, :]),
            bo=jnp.asarray((bo_raw * so + sho)[None, :])))

    head = dict(w=jnp.asarray(rnd((C, num_classes), 0.2)),
                b=jnp.asarray(np.zeros((1, num_classes), np.float32)))
    return dict(sps=sps, rpe=rpe, blocks=blocks, head=head)


# ----------------------------------- main ------------------------------------

if __name__ == "__main__":
    key = jax.random.PRNGKey(0)
    kx, kp = jax.random.split(key)

    # Small shapes consistent with the module: B=2, T=4, in_channels=2, img 32x32,
    # embed_dims=32 (patch_size effectively 16 via the 4 pooling stages -> N=4 tokens),
    # attn hidden 64, mlp_ratio 4, depths=2, num_classes=11.
    B, T, Cin, H, W = 2, 4, 2, 32, 32
    x = jax.random.uniform(kx, (B, T, Cin, H, W), jnp.float32)
    params = init_packed_params(kp, in_ch=Cin, img=H, embed=32, depths=2,
                                attn_hidden=64, mlp_ratio=4, num_classes=11)

    logits = jax.jit(spikformer_forward)(x, params)
    logits = jax.block_until_ready(logits)
    assert logits.shape == (B, 11), logits.shape
    print("KERNEL_OK")
</pallas_src>

<mosaic_0001>
module attributes {stable_mosaic.version = 11 : i64} {
  func.func @_sps_stage_kernel(%arg0: i32, %arg1: memref<1x4x34x68xf32, #tpu.memory_space<vmem>>, %arg2: memref<3x68x128xf32, #tpu.memory_space<vmem>>, %arg3: memref<1x128xf32, #tpu.memory_space<vmem>>, %arg4: memref<1x128xf32, #tpu.memory_space<vmem>>, %arg5: memref<16x32xf32, #tpu.memory_space<vmem>>, %arg6: memref<128x64xf32, #tpu.memory_space<vmem>>, %arg7: memref<1x4x16x64xf32, #tpu.memory_space<vmem>>) attributes {dimension_semantics = [#tpu.dimension_semantics<parallel>], iteration_bounds = array<i64: 2>, scalar_prefetch = 0 : i64, scratch_operands = 0 : i64, tpu.core_type = #tpu.core_type<tc>, window_params = [{transform_indices = @transform_0, window_bounds = array<i64: 1, 4, 34, 68>}, {pipeline_mode = #tpu.pipeline_mode<synchronous>, transform_indices = @transform_1, window_bounds = array<i64: 3, 68, 128>}, {pipeline_mode = #tpu.pipeline_mode<synchronous>, transform_indices = @transform_2, window_bounds = array<i64: 1, 128>}, {pipeline_mode = #tpu.pipeline_mode<synchronous>, transform_indices = @transform_3, window_bounds = array<i64: 1, 128>}, {pipeline_mode = #tpu.pipeline_mode<synchronous>, transform_indices = @transform_4, window_bounds = array<i64: 16, 32>}, {pipeline_mode = #tpu.pipeline_mode<synchronous>, transform_indices = @transform_5, window_bounds = array<i64: 128, 64>}, {transform_indices = @transform_6, window_bounds = array<i64: 1, 4, 16, 64>}]} {
    %cst = arith.constant 0.000000e+00 : f32
    %0 = vector.broadcast %cst : f32 to vector<32x128xf32>
    %c0 = arith.constant 0 : index
    %c0_0 = arith.constant 0 : index
    %c0_1 = arith.constant 0 : index
    %c0_2 = arith.constant 0 : index
    %1 = vector.load %arg1[%c0, %c0_0, %c0_1, %c0_2] : memref<1x4x34x68xf32, #tpu.memory_space<vmem>>, vector<1x1x34x68xf32>
    %2 = vector.shape_cast %1 : vector<1x1x34x68xf32> to vector<34x68xf32>
    %3 = vector.extract_strided_slice %2 {offsets = [0, 0], sizes = [32, 68], strides = [1, 1]} : vector<34x68xf32> to vector<32x68xf32>
    %c0_3 = arith.constant 0 : index
    %c0_4 = arith.constant 0 : index
    %c0_5 = arith.constant 0 : index
    %4 = vector.load %arg2[%c0_3, %c0_4, %c0_5] : memref<3x68x128xf32, #tpu.memory_space<vmem>>, vector<1x68x128xf32>
    %5 = vector.shape_cast %4 : vector<1x68x128xf32> to vector<68x128xf32>
    %cst_6 = arith.constant dense<0.000000e+00> : vector<32x128xf32>
    %6 = tpu.matmul %3, %5, %cst_6 {dimension_numbers = #tpu.dot_dimension_numbers<[1], [0], [0], [1], [0, 0, 1, 1], [], []>} : vector<32x68xf32>, vector<68x128xf32>, vector<32x128xf32> -> vector<32x128xf32>
    %7 = vector.extract_strided_slice %2 {offsets = [1, 0], sizes = [32, 68], strides = [1, 1]} : vector<34x68xf32> to vector<32x68xf32>
    %c1 = arith.constant 1 : index
    %c0_7 = arith.constant 0 : index
    %c0_8 = arith.constant 0 : index
    %8 = vector.load %arg2[%c1, %c0_7, %c0_8] : memref<3x68x128xf32, #tpu.memory_space<vmem>>, vector<1x68x128xf32>
    %9 = vector.shape_cast %8 : vector<1x68x128xf32> to vector<68x128xf32>
    %cst_9 = arith.constant dense<0.000000e+00> : vector<32x128xf32>
    %10 = tpu.matmul %7, %9, %cst_9 {dimension_numbers = #tpu.dot_dimension_numbers<[1], [0], [0], [1], [0, 0, 1, 1], [], []>} : vector<32x68xf32>, vector<68x128xf32>, vector<32x128xf32> -> vector<32x128xf32>
    %11 = arith.addf %6, %10 : vector<32x128xf32>
    %12 = vector.extract_strided_slice %2 {offsets = [2, 0], sizes = [32, 68], strides = [1, 1]} : vector<34x68xf32> to vector<32x68xf32>
    %c2 = arith.constant 2 : index
    %c0_10 = arith.constant 0 : index
    %c0_11 = arith.constant 0 : index
    %13 = vector.load %arg2[%c2, %c0_10, %c0_11] : memref<3x68x128xf32, #tpu.memory_space<vmem>>, vector<1x68x128xf32>
    %14 = vector.shape_cast %13 : vector<1x68x128xf32> to vector<68x128xf32>
    %cst_12 = arith.constant dense<0.000000e+00> : vector<32x128xf32>
    %15 = tpu.matmul %12, %14, %cst_12 {dimension_numbers = #tpu.dot_dimension_numbers<[1], [0], [0], [1], [0, 0, 1, 1], [], []>} : vector<32x68xf32>, vector<68x128xf32>, vector<32x128xf32> -> vector<32x128xf32>
    %16 = arith.addf %11, %15 : vector<32x128xf32>
    %c0_13 = arith.constant 0 : index
    %c0_14 = arith.constant 0 : index
    %17 = vector.load %arg3[%c0_13, %c0_14] : memref<1x128xf32, #tpu.memory_space<vmem>>, vector<1x128xf32>
    %18 = vector.broadcast %17 : vector<1x128xf32> to vector<32x128xf32>
    %19 = arith.mulf %16, %18 : vector<32x128xf32>
    %c0_15 = arith.constant 0 : index
    %c0_16 = arith.constant 0 : index
    %20 = vector.load %arg4[%c0_15, %c0_16] : memref<1x128xf32, #tpu.memory_space<vmem>>, vector<1x128xf32>
    %21 = vector.broadcast %20 : vector<1x128xf32> to vector<32x128xf32>
    %22 = arith.addf %19, %21 : vector<32x128xf32>
    %23 = arith.subf %22, %0 : vector<32x128xf32>
    %cst_17 = arith.constant 5.000000e-01 : f32
    %24 = vector.broadcast %cst_17 : f32 to vector<32x128xf32>
    %25 = arith.mulf %23, %24 : vector<32x128xf32>
    %26 = arith.addf %0, %25 : vector<32x128xf32>
    %cst_18 = arith.constant 1.000000e+00 : f32
    %27 = vector.broadcast %cst_18 : f32 to vector<32x128xf32>
    %28 = arith.cmpf oge, %26, %27 : vector<32x128xf32>
    %29 = arith.extui %28 : vector<32x128xi1> to vector<32x128xi32>
    %30 = arith.sitofp %29 : vector<32x128xi32> to vector<32x128xf32>
    %cst_19 = arith.constant 1.000000e+00 : f32
    %31 = vector.broadcast %cst_19 : f32 to vector<32x128xf32>
    %32 = arith.subf %31, %30 : vector<32x128xf32>
    %33 = arith.mulf %26, %32 : vector<32x128xf32>
    %c0_20 = arith.constant 0 : index
    %c0_21 = arith.constant 0 : index
    %34 = vector.load %arg5[%c0_20, %c0_21] : memref<16x32xf32, #tpu.memory_space<vmem>>, vector<16x32xf32>
    %cst_22 = arith.constant dense<0.000000e+00> : vector<16x128xf32>
    %35 = tpu.matmul %34, %30, %cst_22 {dimension_numbers = #tpu.dot_dimension_numbers<[1], [0], [0], [1], [0, 0, 1, 1], [], []>} : vector<16x32xf32>, vector<32x128xf32>, vector<16x128xf32> -> vector<16x128xf32>
    %c0_23 = arith.constant 0 : index
    %c0_24 = arith.constant 0 : index
    %36 = vector.load %arg6[%c0_23, %c0_24] : memref<128x64xf32, #tpu.memory_space<vmem>>, vector<128x64xf32>
    %cst_25 = arith.constant dense<0.000000e+00> : vector<16x64xf32>
    %37 = tpu.matmul %35, %36, %cst_25 {dimension_numbers = #tpu.dot_dimension_numbers<[1], [0], [0], [1], [0, 0, 1, 1], [], []>} : vector<16x128xf32>, vector<128x64xf32>, vector<16x64xf32> -> vector<16x64xf32>
    %c0_26 = arith.constant 0 : index
    %c0_27 = arith.constant 0 : index
    %c0_28 = arith.constant 0 : index
    %c0_29 = arith.constant 0 : index
    %38 = vector.load %arg7[%c0_26, %c0_27, %c0_28, %c0_29] : memref<1x4x16x64xf32, #tpu.memory_space<vmem>>, vector<1x1x16x64xf32>
    %39 = vector.shape_cast %38 : vector<1x1x16x64xf32> to vector<16x64xf32>
    %40 = vector.shape_cast %37 : vector<16x64xf32> to vector<1x1x16x64xf32>
    tpu.vector_store %arg7[%c0_26, %c0_27, %c0_28, %c0_29], %40 {strides = array<i32>} : memref<1x4x16x64xf32, #tpu.memory_space<vmem>>, vector<1x1x16x64xf32>,
    %c0_30 = arith.constant 0 : index
    %c1_31 = arith.constant 1 : index
    %c0_32 = arith.constant 0 : index
    %c0_33 = arith.constant 0 : index
    %41 = vector.load %arg1[%c0_30, %c1_31, %c0_32, %c0_33] : memref<1x4x34x68xf32, #tpu.memory_space<vmem>>, vector<1x1x34x68xf32>
    %42 = vector.shape_cast %41 : vector<1x1x34x68xf32> to vector<34x68xf32>
    %43 = vector.extract_strided_slice %42 {offsets = [0, 0], sizes = [32, 68], strides = [1, 1]} : vector<34x68xf32> to vector<32x68xf32>
    %c0_34 = arith.constant 0 : index
    %c0_35 = arith.constant 0 : index
    %c0_36 = arith.constant 0 : index
    %44 = vector.load %arg2[%c0_34, %c0_35, %c0_36] : memref<3x68x128xf32, #tpu.memory_space<vmem>>, vector<1x68x128xf32>
    %45 = vector.shape_cast %44 : vector<1x68x128xf32> to vector<68x128xf32>
    %cst_37 = arith.constant dense<0.000000e+00> : vector<32x128xf32>
    %46 = tpu.matmul %43, %45, %cst_37 {dimension_numbers = #tpu.dot_dimension_numbers<[1], [0], [0], [1], [0, 0, 1, 1], [], []>} : vector<32x68xf32>, vector<68x128xf32>, vector<32x128xf32> -> vector<32x128xf32>
    %47 = vector.extract_strided_slice %42 {offsets = [1, 0], sizes = [32, 68], strides = [1, 1]} : vector<34x68xf32> to vector<32x68xf32>
    %c1_38 = arith.constant 1 : index
    %c0_39 = arith.constant 0 : index
    %c0_40 = arith.constant 0 : index
    %48 = vector.load %arg2[%c1_38, %c0_39, %c0_40] : memref<3x68x128xf32, #tpu.memory_space<vmem>>, vector<1x68x128xf32>
    %49 = vector.shape_cast %48 : vector<1x68x128xf32> to vector<68x128xf32>
    %cst_41 = arith.constant dense<0.000000e+00> : vector<32x128xf32>
    %50 = tpu.matmul %47, %49, %cst_41 {dimension_numbers = #tpu.dot_dimension_numbers<[1], [0], [0], [1], [0, 0, 1, 1], [], []>} : vector<32x68xf32>, vector<68x128xf32>, vector<32x128xf32> -> vector<32x128xf32>
    %51 = arith.addf %46, %50 : vector<32x128xf32>
    %52 = vector.extract_strided_slice %42 {offsets = [2, 0], sizes = [32, 68], strides = [1, 1]} : vector<34x68xf32> to vector<32x68xf32>
    %c2_42 = arith.constant 2 : index
    %c0_43 = arith.constant 0 : index
    %c0_44 = arith.constant 0 : index
    %53 = vector.load %arg2[%c2_42, %c0_43, %c0_44] : memref<3x68x128xf32, #tpu.memory_space<vmem>>, vector<1x68x128xf32>
    %54 = vector.shape_cast %53 : vector<1x68x128xf32> to vector<68x128xf32>
    %cst_45 = arith.constant dense<0.000000e+00> : vector<32x128xf32>
    %55 = tpu.matmul %52, %54, %cst_45 {dimension_numbers = #tpu.dot_dimension_numbers<[1], [0], [0], [1], [0, 0, 1, 1], [], []>} : vector<32x68xf32>, vector<68x128xf32>, vector<32x128xf32> -> vector<32x128xf32>
    %56 = arith.addf %51, %55 : vector<32x128xf32>
    %c0_46 = arith.constant 0 : index
    %c0_47 = arith.constant 0 : index
    %57 = vector.load %arg3[%c0_46, %c0_47] : memref<1x128xf32, #tpu.memory_space<vmem>>, vector<1x128xf32>
    %58 = vector.broadcast %57 : vector<1x128xf32> to vector<32x128xf32>
    %59 = arith.mulf %56, %58 : vector<32x128xf32>
    %c0_48 = arith.constant 0 : index
    %c0_49 = arith.constant 0 : index
    %60 = vector.load %arg4[%c0_48, %c0_49] : memref<1x128xf32, #tpu.memory_space<vmem>>, vector<1x128xf32>
    %61 = vector.broadcast %60 : vector<1x128xf32> to vector<32x128xf32>
    %62 = arith.addf %59, %61 : vector<32x128xf32>
    %63 = arith.subf %62, %33 : vector<32x128xf32>
    %cst_50 = arith.constant 5.000000e-01 : f32
    %64 = vector.broadcast %cst_50 : f32 to vector<32x128xf32>
    %65 = arith.mulf %63, %64 : vector<32x128xf32>
    %66 = arith.addf %33, %65 : vector<32x128xf32>
    %cst_51 = arith.constant 1.000000e+00 : f32
    %67 = vector.broadcast %cst_51 : f32 to vector<32x128xf32>
    %68 = arith.cmpf oge, %66, %67 : vector<32x128xf32>
    %69 = arith.extui %68 : vector<32x128xi1> to vector<32x128xi32>
    %70 = arith.sitofp %69 : vector<32x128xi32> to vector<32x128xf32>
    %cst_52 = arith.constant 1.000000e+00 : f32
    %71 = vector.broadcast %cst_52 : f32 to vector<32x128xf32>
    %72 = arith.subf %71, %70 : vector<32x128xf32>
    %73 = arith.mulf %66, %72 : vector<32x128xf32>
    %c0_53 = arith.constant 0 : index
    %c0_54 = arith.constant 0 : index
    %74 = vector.load %arg5[%c0_53, %c0_54] : memref<16x32xf32, #tpu.memory_space<vmem>>, vector<16x32xf32>
    %cst_55 = arith.constant dense<0.000000e+00> : vector<16x128xf32>
    %75 = tpu.matmul %74, %70, %cst_55 {dimension_numbers = #tpu.dot_dimension_numbers<[1], [0], [0], [1], [0, 0, 1, 1], [], []>} : vector<16x32xf32>, vector<32x128xf32>, vector<16x128xf32> -> vector<16x128xf32>
    %c0_56 = arith.constant 0 : index
    %c0_57 = arith.constant 0 : index
    %76 = vector.load %arg6[%c0_56, %c0_57] : memref<128x64xf32, #tpu.memory_space<vmem>>, vector<128x64xf32>
    %cst_58 = arith.constant dense<0.000000e+00> : vector<16x64xf32>
    %77 = tpu.matmul %75, %76, %cst_58 {dimension_numbers = #tpu.dot_dimension_numbers<[1], [0], [0], [1], [0, 0, 1, 1], [], []>} : vector<16x128xf32>, vector<128x64xf32>, vector<16x64xf32> -> vector<16x64xf32>
    %c0_59 = arith.constant 0 : index
    %c1_60 = arith.constant 1 : index
    %c0_61 = arith.constant 0 : index
    %c0_62 = arith.constant 0 : index
    %78 = vector.load %arg7[%c0_59, %c1_60, %c0_61, %c0_62] : memref<1x4x16x64xf32, #tpu.memory_space<vmem>>, vector<1x1x16x64xf32>
    %79 = vector.shape_cast %78 : vector<1x1x16x64xf32> to vector<16x64xf32>
    %80 = vector.shape_cast %77 : vector<16x64xf32> to vector<1x1x16x64xf32>
    tpu.vector_store %arg7[%c0_59, %c1_60, %c0_61, %c0_62], %80 {strides = array<i32>} : memref<1x4x16x64xf32, #tpu.memory_space<vmem>>, vector<1x1x16x64xf32>,
    %c0_63 = arith.constant 0 : index
    %c2_64 = arith.constant 2 : index
    %c0_65 = arith.constant 0 : index
    %c0_66 = arith.constant 0 : index
    %81 = vector.load %arg1[%c0_63, %c2_64, %c0_65, %c0_66] : memref<1x4x34x68xf32, #tpu.memory_space<vmem>>, vector<1x1x34x68xf32>
    %82 = vector.shape_cast %81 : vector<1x1x34x68xf32> to vector<34x68xf32>
    %83 = vector.extract_strided_slice %82 {offsets = [0, 0], sizes = [32, 68], strides = [1, 1]} : vector<34x68xf32> to vector<32x68xf32>
    %c0_67 = arith.constant 0 : index
    %c0_68 = arith.constant 0 : index
    %c0_69 = arith.constant 0 : index
    %84 = vector.load %arg2[%c0_67, %c0_68, %c0_69] : memref<3x68x128xf32, #tpu.memory_space<vmem>>, vector<1x68x128xf32>
    %85 = vector.shape_cast %84 : vector<1x68x128xf32> to vector<68x128xf32>
    %cst_70 = arith.constant dense<0.000000e+00> : vector<32x128xf32>
    %86 = tpu.matmul %83, %85, %cst_70 {dimension_numbers = #tpu.dot_dimension_numbers<[1], [0], [0], [1], [0, 0, 1, 1], [], []>} : vector<32x68xf32>, vector<68x128xf32>, vector<32x128xf32> -> vector<32x128xf32>
    %87 = vector.extract_strided_slice %82 {offsets = [1, 0], sizes = [32, 68], strides = [1, 1]} : vector<34x68xf32> to vector<32x68xf32>
    %c1_71 = arith.constant 1 : index
    %c0_72 = arith.constant 0 : index
    %c0_73 = arith.constant 0 : index
    %88 = vector.load %arg2[%c1_71, %c0_72, %c0_73] : memref<3x68x128xf32, #tpu.memory_space<vmem>>, vector<1x68x128xf32>
    %89 = vector.shape_cast %88 : vector<1x68x128xf32> to vector<68x128xf32>
    %cst_74 = arith.constant dense<0.000000e+00> : vector<32x128xf32>
    %90 = tpu.matmul %87, %89, %cst_74 {dimension_numbers = #tpu.dot_dimension_numbers<[1], [0], [0], [1], [0, 0, 1, 1], [], []>} : vector<32x68xf32>, vector<68x128xf32>, vector<32x128xf32> -> vector<32x128xf32>
    %91 = arith.addf %86, %90 : vector<32x128xf32>
    %92 = vector.extract_strided_slice %82 {offsets = [2, 0], sizes = [32, 68], strides = [1, 1]} : vector<34x68xf32> to vector<32x68xf32>
    %c2_75 = arith.constant 2 : index
    %c0_76 = arith.constant 0 : index
    %c0_77 = arith.constant 0 : index
    %93 = vector.load %arg2[%c2_75, %c0_76, %c0_77] : memref<3x68x128xf32, #tpu.memory_space<vmem>>, vector<1x68x128xf32>
    %94 = vector.shape_cast %93 : vector<1x68x128xf32> to vector<68x128xf32>
    %cst_78 = arith.constant dense<0.000000e+00> : vector<32x128xf32>
    %95 = tpu.matmul %92, %94, %cst_78 {dimension_numbers = #tpu.dot_dimension_numbers<[1], [0], [0], [1], [0, 0, 1, 1], [], []>} : vector<32x68xf32>, vector<68x128xf32>, vector<32x128xf32> -> vector<32x128xf32>
    %96 = arith.addf %91, %95 : vector<32x128xf32>
    %c0_79 = arith.constant 0 : index
    %c0_80 = arith.constant 0 : index
    %97 = vector.load %arg3[%c0_79, %c0_80] : memref<1x128xf32, #tpu.memory_space<vmem>>, vector<1x128xf32>
    %98 = vector.broadcast %97 : vector<1x128xf32> to vector<32x128xf32>
    %99 = arith.mulf %96, %98 : vector<32x128xf32>
    %c0_81 = arith.constant 0 : index
    %c0_82 = arith.constant 0 : index
    %100 = vector.load %arg4[%c0_81, %c0_82] : memref<1x128xf32, #tpu.memory_space<vmem>>, vector<1x128xf32>
    %101 = vector.broadcast %100 : vector<1x128xf32> to vector<32x128xf32>
    %102 = arith.addf %99, %101 : vector<32x128xf32>
    %103 = arith.subf %102, %73 : vector<32x128xf32>
    %cst_83 = arith.constant 5.000000e-01 : f32
    %104 = vector.broadcast %cst_83 : f32 to vector<32x128xf32>
    %105 = arith.mulf %103, %104 : vector<32x128xf32>
    %106 = arith.addf %73, %105 : vector<32x128xf32>
    %cst_84 = arith.constant 1.000000e+00 : f32
    %107 = vector.broadcast %cst_84 : f32 to vector<32x128xf32>
    %108 = arith.cmpf oge, %106, %107 : vector<32x128xf32>
    %109 = arith.extui %108 : vector<32x128xi1> to vector<32x128xi32>
    %110 = arith.sitofp %109 : vector<32x128xi32> to vector<32x128xf32>
    %cst_85 = arith.constant 1.000000e+00 : f32
    %111 = vector.broadcast %cst_85 : f32 to vector<32x128xf32>
    %112 = arith.subf %111, %110 : vector<32x128xf32>
    %113 = arith.mulf %106, %112 : vector<32x128xf32>
    %c0_86 = arith.constant 0 : index
    %c0_87 = arith.constant 0 : index
    %114 = vector.load %arg5[%c0_86, %c0_87] : memref<16x32xf32, #tpu.memory_space<vmem>>, vector<16x32xf32>
    %cst_88 = arith.constant dense<0.000000e+00> : vector<16x128xf32>
    %115 = tpu.matmul %114, %110, %cst_88 {dimension_numbers = #tpu.dot_dimension_numbers<[1], [0], [0], [1], [0, 0, 1, 1], [], []>} : vector<16x32xf32>, vector<32x128xf32>, vector<16x128xf32> -> vector<16x128xf32>
    %c0_89 = arith.constant 0 : index
    %c0_90 = arith.constant 0 : index
    %116 = vector.load %arg6[%c0_89, %c0_90] : memref<128x64xf32, #tpu.memory_space<vmem>>, vector<128x64xf32>
    %cst_91 = arith.constant dense<0.000000e+00> : vector<16x64xf32>
    %117 = tpu.matmul %115, %116, %cst_91 {dimension_numbers = #tpu.dot_dimension_numbers<[1], [0], [0], [1], [0, 0, 1, 1], [], []>} : vector<16x128xf32>, vector<128x64xf32>, vector<16x64xf32> -> vector<16x64xf32>
    %c0_92 = arith.constant 0 : index
    %c2_93 = arith.constant 2 : index
    %c0_94 = arith.constant 0 : index
    %c0_95 = arith.constant 0 : index
    %118 = vector.load %arg7[%c0_92, %c2_93, %c0_94, %c0_95] : memref<1x4x16x64xf32, #tpu.memory_space<vmem>>, vector<1x1x16x64xf32>
    %119 = vector.shape_cast %118 : vector<1x1x16x64xf32> to vector<16x64xf32>
    %120 = vector.shape_cast %117 : vector<16x64xf32> to vector<1x1x16x64xf32>
    tpu.vector_store %arg7[%c0_92, %c2_93, %c0_94, %c0_95], %120 {strides = array<i32>} : memref<1x4x16x64xf32, #tpu.memory_space<vmem>>, vector<1x1x16x64xf32>,
    %c0_96 = arith.constant 0 : index
    %c3 = arith.constant 3 : index
    %c0_97 = arith.constant 0 : index
    %c0_98 = arith.constant 0 : index
    %121 = vector.load %arg1[%c0_96, %c3, %c0_97, %c0_98] : memref<1x4x34x68xf32, #tpu.memory_space<vmem>>, vector<1x1x34x68xf32>
    %122 = vector.shape_cast %121 : vector<1x1x34x68xf32> to vector<34x68xf32>
    %123 = vector.extract_strided_slice %122 {offsets = [0, 0], sizes = [32, 68], strides = [1, 1]} : vector<34x68xf32> to vector<32x68xf32>
    %c0_99 = arith.constant 0 : index
    %c0_100 = arith.constant 0 : index
    %c0_101 = arith.constant 0 : index
    %124 = vector.load %arg2[%c0_99, %c0_100, %c0_101] : memref<3x68x128xf32, #tpu.memory_space<vmem>>, vector<1x68x128xf32>
    %125 = vector.shape_cast %124 : vector<1x68x128xf32> to vector<68x128xf32>
    %cst_102 = arith.constant dense<0.000000e+00> : vector<32x128xf32>
    %126 = tpu.matmul %123, %125, %cst_102 {dimension_numbers = #tpu.dot_dimension_numbers<[1], [0], [0], [1], [0, 0, 1, 1], [], []>} : vector<32x68xf32>, vector<68x128xf32>, vector<32x128xf32> -> vector<32x128xf32>
    %127 = vector.extract_strided_slice %122 {offsets = [1, 0], sizes = [32, 68], strides = [1, 1]} : vector<34x68xf32> to vector<32x68xf32>
    %c1_103 = arith.constant 1 : index
    %c0_104 = arith.constant 0 : index
    %c0_105 = arith.constant 0 : index
    %128 = vector.load %arg2[%c1_103, %c0_104, %c0_105] : memref<3x68x128xf32, #tpu.memory_space<vmem>>, vector<1x68x128xf32>
    %129 = vector.shape_cast %128 : vector<1x68x128xf32> to vector<68x128xf32>
    %cst_106 = arith.constant dense<0.000000e+00> : vector<32x128xf32>
    %130 = tpu.matmul %127, %129, %cst_106 {dimension_numbers = #tpu.dot_dimension_numbers<[1], [0], [0], [1], [0, 0, 1, 1], [], []>} : vector<32x68xf32>, vector<68x128xf32>, vector<32x128xf32> -> vector<32x128xf32>
    %131 = arith.addf %126, %130 : vector<32x128xf32>
    %132 = vector.extract_strided_slice %122 {offsets = [2, 0], sizes = [32, 68], strides = [1, 1]} : vector<34x68xf32> to vector<32x68xf32>
    %c2_107 = arith.constant 2 : index
    %c0_108 = arith.constant 0 : index
    %c0_109 = arith.constant 0 : index
    %133 = vector.load %arg2[%c2_107, %c0_108, %c0_109] : memref<3x68x128xf32, #tpu.memory_space<vmem>>, vector<1x68x128xf32>
    %134 = vector.shape_cast %133 : vector<1x68x128xf32> to vector<68x128xf32>
    %cst_110 = arith.constant dense<0.000000e+00> : vector<32x128xf32>
    %135 = tpu.matmul %132, %134, %cst_110 {dimension_numbers = #tpu.dot_dimension_numbers<[1], [0], [0], [1], [0, 0, 1, 1], [], []>} : vector<32x68xf32>, vector<68x128xf32>, vector<32x128xf32> -> vector<32x128xf32>
    %136 = arith.addf %131, %135 : vector<32x128xf32>
    %c0_111 = arith.constant 0 : index
    %c0_112 = arith.constant 0 : index
    %137 = vector.load %arg3[%c0_111, %c0_112] : memref<1x128xf32, #tpu.memory_space<vmem>>, vector<1x128xf32>
    %138 = vector.broadcast %137 : vector<1x128xf32> to vector<32x128xf32>
    %139 = arith.mulf %136, %138 : vector<32x128xf32>
    %c0_113 = arith.constant 0 : index
    %c0_114 = arith.constant 0 : index
    %140 = vector.load %arg4[%c0_113, %c0_114] : memref<1x128xf32, #tpu.memory_space<vmem>>, vector<1x128xf32>
    %141 = vector.broadcast %140 : vector<1x128xf32> to vector<32x128xf32>
    %142 = arith.addf %139, %141 : vector<32x128xf32>
    %143 = arith.subf %142, %113 : vector<32x128xf32>
    %cst_115 = arith.constant 5.000000e-01 : f32
    %144 = vector.broadcast %cst_115 : f32 to vector<32x128xf32>
    %145 = arith.mulf %143, %144 : vector<32x128xf32>
    %146 = arith.addf %113, %145 : vector<32x128xf32>
    %cst_116 = arith.constant 1.000000e+00 : f32
    %147 = vector.broadcast %cst_116 : f32 to vector<32x128xf32>
    %148 = arith.cmpf oge, %146, %147 : vector<32x128xf32>
    %149 = arith.extui %148 : vector<32x128xi1> to vector<32x128xi32>
    %150 = arith.sitofp %149 : vector<32x128xi32> to vector<32x128xf32>
    %c0_117 = arith.constant 0 : index
    %c0_118 = arith.constant 0 : index
    %151 = vector.load %arg5[%c0_117, %c0_118] : memref<16x32xf32, #tpu.memory_space<vmem>>, vector<16x32xf32>
    %cst_119 = arith.constant dense<0.000000e+00> : vector<16x128xf32>
    %152 = tpu.matmul %151, %150, %cst_119 {dimension_numbers = #tpu.dot_dimension_numbers<[1], [0], [0], [1], [0, 0, 1, 1], [], []>} : vector<16x32xf32>, vector<32x128xf32>, vector<16x128xf32> -> vector<16x128xf32>
    %c0_120 = arith.constant 0 : index
    %c0_121 = arith.constant 0 : index
    %153 = vector.load %arg6[%c0_120, %c0_121] : memref<128x64xf32, #tpu.memory_space<vmem>>, vector<128x64xf32>
    %cst_122 = arith.constant dense<0.000000e+00> : vector<16x64xf32>
    %154 = tpu.matmul %152, %153, %cst_122 {dimension_numbers = #tpu.dot_dimension_numbers<[1], [0], [0], [1], [0, 0, 1, 1], [], []>} : vector<16x128xf32>, vector<128x64xf32>, vector<16x64xf32> -> vector<16x64xf32>
    %c0_123 = arith.constant 0 : index
    %c3_124 = arith.constant 3 : index
    %c0_125 = arith.constant 0 : index
    %c0_126 = arith.constant 0 : index
    %155 = vector.load %arg7[%c0_123, %c3_124, %c0_125, %c0_126] : memref<1x4x16x64xf32, #tpu.memory_space<vmem>>, vector<1x1x16x64xf32>
    %156 = vector.shape_cast %155 : vector<1x1x16x64xf32> to vector<16x64xf32>
    %157 = vector.shape_cast %154 : vector<16x64xf32> to vector<1x1x16x64xf32>
    tpu.vector_store %arg7[%c0_123, %c3_124, %c0_125, %c0_126], %157 {strides = array<i32>} : memref<1x4x16x64xf32, #tpu.memory_space<vmem>>, vector<1x1x16x64xf32>,
    return
  }
  func.func @transform_0(%arg0: i32) -> (i32, i32, i32, i32) {
    %c0_i32 = arith.constant 0 : i32
    %c0_i32_0 = arith.constant 0 : i32
    %c0_i32_1 = arith.constant 0 : i32
    %c0_i32_2 = arith.constant 0 : i32
    return %arg0, %c0_i32, %c0_i32_0, %c0_i32_1 : i32, i32, i32, i32
  }
  func.func @transform_1(%arg0: i32) -> (i32, i32, i32) {
    %c0_i32 = arith.constant 0 : i32
    %c0_i32_0 = arith.constant 0 : i32
    %c0_i32_1 = arith.constant 0 : i32
    %c0_i32_2 = arith.constant 0 : i32
    return %c0_i32, %c0_i32_0, %c0_i32_1 : i32, i32, i32
  }
  func.func @transform_2(%arg0: i32) -> (i32, i32) {
    %c0_i32 = arith.constant 0 : i32
    %c0_i32_0 = arith.constant 0 : i32
    %c0_i32_1 = arith.constant 0 : i32
    return %c0_i32, %c0_i32_0 : i32, i32
  }
  func.func @transform_3(%arg0: i32) -> (i32, i32) {
    %c0_i32 = arith.constant 0 : i32
    %c0_i32_0 = arith.constant 0 : i32
    %c0_i32_1 = arith.constant 0 : i32
    return %c0_i32, %c0_i32_0 : i32, i32
  }
  func.func @transform_4(%arg0: i32) -> (i32, i32) {
    %c0_i32 = arith.constant 0 : i32
    %c0_i32_0 = arith.constant 0 : i32
    %c0_i32_1 = arith.constant 0 : i32
    return %c0_i32, %c0_i32_0 : i32, i32
  }
  func.func @transform_5(%arg0: i32) -> (i32, i32) {
    %c0_i32 = arith.constant 0 : i32
    %c0_i32_0 = arith.constant 0 : i32
    %c0_i32_1 = arith.constant 0 : i32
    return %c0_i32, %c0_i32_0 : i32, i32
  }
  func.func @transform_6(%arg0: i32) -> (i32, i32, i32, i32) {
    %c0_i32 = arith.constant 0 : i32
    %c0_i32_0 = arith.constant 0 : i32
    %c0_i32_1 = arith.constant 0 : i32
    %c0_i32_2 = arith.constant 0 : i32
    return %arg0, %c0_i32, %c0_i32_0, %c0_i32_1 : i32, i32, i32, i32
  }
}

module attributes {stable_mosaic.version = 11 : i64} {
  func.func @_sps_stage_kernel(%arg0: i32, %arg1: memref<1x4x18x72xf32, #tpu.memory_space<vmem>>, %arg2: memref<3x72x128xf32, #tpu.memory_space<vmem>>, %arg3: memref<1x128xf32, #tpu.memory_space<vmem>>, %arg4: memref<1x128xf32, #tpu.memory_space<vmem>>, %arg5: memref<8x16xf32, #tpu.memory_space<vmem>>, %arg6: memref<128x64xf32, #tpu.memory_space<vmem>>, %arg7: memref<1x4x8x64xf32, #tpu.memory_space<vmem>>) attributes {dimension_semantics = [#tpu.dimension_semantics<parallel>], iteration_bounds = array<i64: 2>, scalar_prefetch = 0 : i64, scratch_operands = 0 : i64, tpu.core_type = #tpu.core_type<tc>, window_params = [{transform_indices = @transform_0, window_bounds = array<i64: 1, 4, 18, 72>}, {pipeline_mode = #tpu.pipeline_mode<synchronous>, transform_indices = @transform_1, window_bounds = array<i64: 3, 72, 128>}, {pipeline_mode = #tpu.pipeline_mode<synchronous>, transform_indices = @transform_2, window_bounds = array<i64: 1, 128>}, {pipeline_mode = #tpu.pipeline_mode<synchronous>, transform_indices = @transform_3, window_bounds = array<i64: 1, 128>}, {pipeline_mode = #tpu.pipeline_mode<synchronous>, transform_indices = @transform_4, window_bounds = array<i64: 8, 16>}, {pipeline_mode = #tpu.pipeline_mode<synchronous>, transform_indices = @transform_5, window_bounds = array<i64: 128, 64>}, {transform_indices = @transform_6, window_bounds = array<i64: 1, 4, 8, 64>}]} {
    %cst = arith.constant 0.000000e+00 : f32
    %0 = vector.broadcast %cst : f32 to vector<16x128xf32>
    %c0 = arith.constant 0 : index
    %c0_0 = arith.constant 0 : index
    %c0_1 = arith.constant 0 : index
    %c0_2 = arith.constant 0 : index
    %1 = vector.load %arg1[%c0, %c0_0, %c0_1, %c0_2] : memref<1x4x18x72xf32, #tpu.memory_space<vmem>>, vector<1x1x18x72xf32>
    %2 = vector.shape_cast %1 : vector<1x1x18x72xf32> to vector<18x72xf32>
    %3 = vector.extract_strided_slice %2 {offsets = [0, 0], sizes = [16, 72], strides = [1, 1]} : vector<18x72xf32> to vector<16x72xf32>
    %c0_3 = arith.constant 0 : index
    %c0_4 = arith.constant 0 : index
    %c0_5 = arith.constant 0 : index
    %4 = vector.load %arg2[%c0_3, %c0_4, %c0_5] : memref<3x72x128xf32, #tpu.memory_space<vmem>>, vector<1x72x128xf32>
    %5 = vector.shape_cast %4 : vector<1x72x128xf32> to vector<72x128xf32>
    %cst_6 = arith.constant dense<0.000000e+00> : vector<16x128xf32>
    %6 = tpu.matmul %3, %5, %cst_6 {dimension_numbers = #tpu.dot_dimension_numbers<[1], [0], [0], [1], [0, 0, 1, 1], [], []>} : vector<16x72xf32>, vector<72x128xf32>, vector<16x128xf32> -> vector<16x128xf32>
    %7 = vector.extract_strided_slice %2 {offsets = [1, 0], sizes = [16, 72], strides = [1, 1]} : vector<18x72xf32> to vector<16x72xf32>
    %c1 = arith.constant 1 : index
    %c0_7 = arith.constant 0 : index
    %c0_8 = arith.constant 0 : index
    %8 = vector.load %arg2[%c1, %c0_7, %c0_8] : memref<3x72x128xf32, #tpu.memory_space<vmem>>, vector<1x72x128xf32>
    %9 = vector.shape_cast %8 : vector<1x72x128xf32> to vector<72x128xf32>
    %cst_9 = arith.constant dense<0.000000e+00> : vector<16x128xf32>
    %10 = tpu.matmul %7, %9, %cst_9 {dimension_numbers = #tpu.dot_dimension_numbers<[1], [0], [0], [1], [0, 0, 1, 1], [], []>} : vector<16x72xf32>, vector<72x128xf32>, vector<16x128xf32> -> vector<16x128xf32>
    %11 = arith.addf %6, %10 : vector<16x128xf32>
    %12 = vector.extract_strided_slice %2 {offsets = [2, 0], sizes = [16, 72], strides = [1, 1]} : vector<18x72xf32> to vector<16x72xf32>
    %c2 = arith.constant 2 : index
    %c0_10 = arith.constant 0 : index
    %c0_11 = arith.constant 0 : index
    %13 = vector.load %arg2[%c2, %c0_10, %c0_11] : memref<3x72x128xf32, #tpu.memory_space<vmem>>, vector<1x72x128xf32>
    %14 = vector.shape_cast %13 : vector<1x72x128xf32> to vector<72x128xf32>
    %cst_12 = arith.constant dense<0.000000e+00> : vector<16x128xf32>
    %15 = tpu.matmul %12, %14, %cst_12 {dimension_numbers = #tpu.dot_dimension_numbers<[1], [0], [0], [1], [0, 0, 1, 1], [], []>} : vector<16x72xf32>, vector<72x128xf32>, vector<16x128xf32> -> vector<16x128xf32>
    %16 = arith.addf %11, %15 : vector<16x128xf32>
    %c0_13 = arith.constant 0 : index
    %c0_14 = arith.constant 0 : index
    %17 = vector.load %arg3[%c0_13, %c0_14] : memref<1x128xf32, #tpu.memory_space<vmem>>, vector<1x128xf32>
    %18 = vector.broadcast %17 : vector<1x128xf32> to vector<16x128xf32>
    %19 = arith.mulf %16, %18 : vector<16x128xf32>
    %c0_15 = arith.constant 0 : index
    %c0_16 = arith.constant 0 : index
    %20 = vector.load %arg4[%c0_15, %c0_16] : memref<1x128xf32, #tpu.memory_space<vmem>>, vector<1x128xf32>
    %21 = vector.broadcast %20 : vector<1x128xf32> to vector<16x128xf32>
    %22 = arith.addf %19, %21 : vector<16x128xf32>
    %23 = arith.subf %22, %0 : vector<16x128xf32>
    %cst_17 = arith.constant 5.000000e-01 : f32
    %24 = vector.broadcast %cst_17 : f32 to vector<16x128xf32>
    %25 = arith.mulf %23, %24 : vector<16x128xf32>
    %26 = arith.addf %0, %25 : vector<16x128xf32>
    %cst_18 = arith.constant 1.000000e+00 : f32
    %27 = vector.broadcast %cst_18 : f32 to vector<16x128xf32>
    %28 = arith.cmpf oge, %26, %27 : vector<16x128xf32>
    %29 = arith.extui %28 : vector<16x128xi1> to vector<16x128xi32>
    %30 = arith.sitofp %29 : vector<16x128xi32> to vector<16x128xf32>
    %cst_19 = arith.constant 1.000000e+00 : f32
    %31 = vector.broadcast %cst_19 : f32 to vector<16x128xf32>
    %32 = arith.subf %31, %30 : vector<16x128xf32>
    %33 = arith.mulf %26, %32 : vector<16x128xf32>
    %c0_20 = arith.constant 0 : index
    %c0_21 = arith.constant 0 : index
    %34 = vector.load %arg5[%c0_20, %c0_21] : memref<8x16xf32, #tpu.memory_space<vmem>>, vector<8x16xf32>
    %cst_22 = arith.constant dense<0.000000e+00> : vector<8x128xf32>
    %35 = tpu.matmul %34, %30, %cst_22 {dimension_numbers = #tpu.dot_dimension_numbers<[1], [0], [0], [1], [0, 0, 1, 1], [], []>} : vector<8x16xf32>, vector<16x128xf32>, vector<8x128xf32> -> vector<8x128xf32>
    %c0_23 = arith.constant 0 : index
    %c0_24 = arith.constant 0 : index
    %36 = vector.load %arg6[%c0_23, %c0_24] : memref<128x64xf32, #tpu.memory_space<vmem>>, vector<128x64xf32>
    %cst_25 = arith.constant dense<0.000000e+00> : vector<8x64xf32>
    %37 = tpu.matmul %35, %36, %cst_25 {dimension_numbers = #tpu.dot_dimension_numbers<[1], [0], [0], [1], [0, 0, 1, 1], [], []>} : vector<8x128xf32>, vector<128x64xf32>, vector<8x64xf32> -> vector<8x64xf32>
    %c0_26 = arith.constant 0 : index
    %c0_27 = arith.constant 0 : index
    %c0_28 = arith.constant 0 : index
    %c0_29 = arith.constant 0 : index
    %38 = vector.load %arg7[%c0_26, %c0_27, %c0_28, %c0_29] : memref<1x4x8x64xf32, #tpu.memory_space<vmem>>, vector<1x1x8x64xf32>
    %39 = vector.shape_cast %38 : vector<1x1x8x64xf32> to vector<8x64xf32>
    %40 = vector.shape_cast %37 : vector<8x64xf32> to vector<1x1x8x64xf32>
    tpu.vector_store %arg7[%c0_26, %c0_27, %c0_28, %c0_29], %40 {strides = array<i32>} : memref<1x4x8x64xf32, #tpu.memory_space<vmem>>, vector<1x1x8x64xf32>,
    %c0_30 = arith.constant 0 : index
    %c1_31 = arith.constant 1 : index
    %c0_32 = arith.constant 0 : index
    %c0_33 = arith.constant 0 : index
    %41 = vector.load %arg1[%c0_30, %c1_31, %c0_32, %c0_33] : memref<1x4x18x72xf32, #tpu.memory_space<vmem>>, vector<1x1x18x72xf32>
    %42 = vector.shape_cast %41 : vector<1x1x18x72xf32> to vector<18x72xf32>
    %43 = vector.extract_strided_slice %42 {offsets = [0, 0], sizes = [16, 72], strides = [1, 1]} : vector<18x72xf32> to vector<16x72xf32>
    %c0_34 = arith.constant 0 : index
    %c0_35 = arith.constant 0 : index
    %c0_36 = arith.constant 0 : index
    %44 = vector.load %arg2[%c0_34, %c0_35, %c0_36] : memref<3x72x128xf32, #tpu.memory_space<vmem>>, vector<1x72x128xf32>
    %45 = vector.shape_cast %44 : vector<1x72x128xf32> to vector<72x128xf32>
    %cst_37 = arith.constant dense<0.000000e+00> : vector<16x128xf32>
    %46 = tpu.matmul %43, %45, %cst_37 {dimension_numbers = #tpu.dot_dimension_numbers<[1], [0], [0], [1], [0, 0, 1, 1], [], []>} : vector<16x72xf32>, vector<72x128xf32>, vector<16x128xf32> -> vector<16x128xf32>
    %47 = vector.extract_strided_slice %42 {offsets = [1, 0], sizes = [16, 72], strides = [1, 1]} : vector<18x72xf32> to vector<16x72xf32>
    %c1_38 = arith.constant 1 : index
    %c0_39 = arith.constant 0 : index
    %c0_40 = arith.constant 0 : index
    %48 = vector.load %arg2[%c1_38, %c0_39, %c0_40] : memref<3x72x128xf32, #tpu.memory_space<vmem>>, vector<1x72x128xf32>
    %49 = vector.shape_cast %48 : vector<1x72x128xf32> to vector<72x128xf32>
    %cst_41 = arith.constant dense<0.000000e+00> : vector<16x128xf32>
    %50 = tpu.matmul %47, %49, %cst_41 {dimension_numbers = #tpu.dot_dimension_numbers<[1], [0], [0], [1], [0, 0, 1, 1], [], []>} : vector<16x72xf32>, vector<72x128xf32>, vector<16x128xf32> -> vector<16x128xf32>
    %51 = arith.addf %46, %50 : vector<16x128xf32>
    %52 = vector.extract_strided_slice %42 {offsets = [2, 0], sizes = [16, 72], strides = [1, 1]} : vector<18x72xf32> to vector<16x72xf32>
    %c2_42 = arith.constant 2 : index
    %c0_43 = arith.constant 0 : index
    %c0_44 = arith.constant 0 : index
    %53 = vector.load %arg2[%c2_42, %c0_43, %c0_44] : memref<3x72x128xf32, #tpu.memory_space<vmem>>, vector<1x72x128xf32>
    %54 = vector.shape_cast %53 : vector<1x72x128xf32> to vector<72x128xf32>
    %cst_45 = arith.constant dense<0.000000e+00> : vector<16x128xf32>
    %55 = tpu.matmul %52, %54, %cst_45 {dimension_numbers = #tpu.dot_dimension_numbers<[1], [0], [0], [1], [0, 0, 1, 1], [], []>} : vector<16x72xf32>, vector<72x128xf32>, vector<16x128xf32> -> vector<16x128xf32>
    %56 = arith.addf %51, %55 : vector<16x128xf32>
    %c0_46 = arith.constant 0 : index
    %c0_47 = arith.constant 0 : index
    %57 = vector.load %arg3[%c0_46, %c0_47] : memref<1x128xf32, #tpu.memory_space<vmem>>, vector<1x128xf32>
    %58 = vector.broadcast %57 : vector<1x128xf32> to vector<16x128xf32>
    %59 = arith.mulf %56, %58 : vector<16x128xf32>
    %c0_48 = arith.constant 0 : index
    %c0_49 = arith.constant 0 : index
    %60 = vector.load %arg4[%c0_48, %c0_49] : memref<1x128xf32, #tpu.memory_space<vmem>>, vector<1x128xf32>
    %61 = vector.broadcast %60 : vector<1x128xf32> to vector<16x128xf32>
    %62 = arith.addf %59, %61 : vector<16x128xf32>
    %63 = arith.subf %62, %33 : vector<16x128xf32>
    %cst_50 = arith.constant 5.000000e-01 : f32
    %64 = vector.broadcast %cst_50 : f32 to vector<16x128xf32>
    %65 = arith.mulf %63, %64 : vector<16x128xf32>
    %66 = arith.addf %33, %65 : vector<16x128xf32>
    %cst_51 = arith.constant 1.000000e+00 : f32
    %67 = vector.broadcast %cst_51 : f32 to vector<16x128xf32>
    %68 = arith.cmpf oge, %66, %67 : vector<16x128xf32>
    %69 = arith.extui %68 : vector<16x128xi1> to vector<16x128xi32>
    %70 = arith.sitofp %69 : vector<16x128xi32> to vector<16x128xf32>
    %cst_52 = arith.constant 1.000000e+00 : f32
    %71 = vector.broadcast %cst_52 : f32 to vector<16x128xf32>
    %72 = arith.subf %71, %70 : vector<16x128xf32>
    %73 = arith.mulf %66, %72 : vector<16x128xf32>
    %c0_53 = arith.constant 0 : index
    %c0_54 = arith.constant 0 : index
    %74 = vector.load %arg5[%c0_53, %c0_54] : memref<8x16xf32, #tpu.memory_space<vmem>>, vector<8x16xf32>
    %cst_55 = arith.constant dense<0.000000e+00> : vector<8x128xf32>
    %75 = tpu.matmul %74, %70, %cst_55 {dimension_numbers = #tpu.dot_dimension_numbers<[1], [0], [0], [1], [0, 0, 1, 1], [], []>} : vector<8x16xf32>, vector<16x128xf32>, vector<8x128xf32> -> vector<8x128xf32>
    %c0_56 = arith.constant 0 : index
    %c0_57 = arith.constant 0 : index
    %76 = vector.load %arg6[%c0_56, %c0_57] : memref<128x64xf32, #tpu.memory_space<vmem>>, vector<128x64xf32>
    %cst_58 = arith.constant dense<0.000000e+00> : vector<8x64xf32>
    %77 = tpu.matmul %75, %76, %cst_58 {dimension_numbers = #tpu.dot_dimension_numbers<[1], [0], [0], [1], [0, 0, 1, 1], [], []>} : vector<8x128xf32>, vector<128x64xf32>, vector<8x64xf32> -> vector<8x64xf32>
    %c0_59 = arith.constant 0 : index
    %c1_60 = arith.constant 1 : index
    %c0_61 = arith.constant 0 : index
    %c0_62 = arith.constant 0 : index
    %78 = vector.load %arg7[%c0_59, %c1_60, %c0_61, %c0_62] : memref<1x4x8x64xf32, #tpu.memory_space<vmem>>, vector<1x1x8x64xf32>
    %79 = vector.shape_cast %78 : vector<1x1x8x64xf32> to vector<8x64xf32>
    %80 = vector.shape_cast %77 : vector<8x64xf32> to vector<1x1x8x64xf32>
    tpu.vector_store %arg7[%c0_59, %c1_60, %c0_61, %c0_62], %80 {strides = array<i32>} : memref<1x4x8x64xf32, #tpu.memory_space<vmem>>, vector<1x1x8x64xf32>,
    %c0_63 = arith.constant 0 : index
    %c2_64 = arith.constant 2 : index
    %c0_65 = arith.constant 0 : index
    %c0_66 = arith.constant 0 : index
    %81 = vector.load %arg1[%c0_63, %c2_64, %c0_65, %c0_66] : memref<1x4x18x72xf32, #tpu.memory_space<vmem>>, vector<1x1x18x72xf32>
    %82 = vector.shape_cast %81 : vector<1x1x18x72xf32> to vector<18x72xf32>
    %83 = vector.extract_strided_slice %82 {offsets = [0, 0], sizes = [16, 72], strides = [1, 1]} : vector<18x72xf32> to vector<16x72xf32>
    %c0_67 = arith.constant 0 : index
    %c0_68 = arith.constant 0 : index
    %c0_69 = arith.constant 0 : index
    %84 = vector.load %arg2[%c0_67, %c0_68, %c0_69] : memref<3x72x128xf32, #tpu.memory_space<vmem>>, vector<1x72x128xf32>
    %85 = vector.shape_cast %84 : vector<1x72x128xf32> to vector<72x128xf32>
    %cst_70 = arith.constant dense<0.000000e+00> : vector<16x128xf32>
    %86 = tpu.matmul %83, %85, %cst_70 {dimension_numbers = #tpu.dot_dimension_numbers<[1], [0], [0], [1], [0, 0, 1, 1], [], []>} : vector<16x72xf32>, vector<72x128xf32>, vector<16x128xf32> -> vector<16x128xf32>
    %87 = vector.extract_strided_slice %82 {offsets = [1, 0], sizes = [16, 72], strides = [1, 1]} : vector<18x72xf32> to vector<16x72xf32>
    %c1_71 = arith.constant 1 : index
    %c0_72 = arith.constant 0 : index
    %c0_73 = arith.constant 0 : index
    %88 = vector.load %arg2[%c1_71, %c0_72, %c0_73] : memref<3x72x128xf32, #tpu.memory_space<vmem>>, vector<1x72x128xf32>
    %89 = vector.shape_cast %88 : vector<1x72x128xf32> to vector<72x128xf32>
    %cst_74 = arith.constant dense<0.000000e+00> : vector<16x128xf32>
    %90 = tpu.matmul %87, %89, %cst_74 {dimension_numbers = #tpu.dot_dimension_numbers<[1], [0], [0], [1], [0, 0, 1, 1], [], []>} : vector<16x72xf32>, vector<72x128xf32>, vector<16x128xf32> -> vector<16x128xf32>
    %91 = arith.addf %86, %90 : vector<16x128xf32>
    %92 = vector.extract_strided_slice %82 {offsets = [2, 0], sizes = [16, 72], strides = [1, 1]} : vector<18x72xf32> to vector<16x72xf32>
    %c2_75 = arith.constant 2 : index
    %c0_76 = arith.constant 0 : index
    %c0_77 = arith.constant 0 : index
    %93 = vector.load %arg2[%c2_75, %c0_76, %c0_77] : memref<3x72x128xf32, #tpu.memory_space<vmem>>, vector<1x72x128xf32>
    %94 = vector.shape_cast %93 : vector<1x72x128xf32> to vector<72x128xf32>
    %cst_78 = arith.constant dense<0.000000e+00> : vector<16x128xf32>
    %95 = tpu.matmul %92, %94, %cst_78 {dimension_numbers = #tpu.dot_dimension_numbers<[1], [0], [0], [1], [0, 0, 1, 1], [], []>} : vector<16x72xf32>, vector<72x128xf32>, vector<16x128xf32> -> vector<16x128xf32>
    %96 = arith.addf %91, %95 : vector<16x128xf32>
    %c0_79 = arith.constant 0 : index
    %c0_80 = arith.constant 0 : index
    %97 = vector.load %arg3[%c0_79, %c0_80] : memref<1x128xf32, #tpu.memory_space<vmem>>, vector<1x128xf32>
    %98 = vector.broadcast %97 : vector<1x128xf32> to vector<16x128xf32>
    %99 = arith.mulf %96, %98 : vector<16x128xf32>
    %c0_81 = arith.constant 0 : index
    %c0_82 = arith.constant 0 : index
    %100 = vector.load %arg4[%c0_81, %c0_82] : memref<1x128xf32, #tpu.memory_space<vmem>>, vector<1x128xf32>
    %101 = vector.broadcast %100 : vector<1x128xf32> to vector<16x128xf32>
    %102 = arith.addf %99, %101 : vector<16x128xf32>
    %103 = arith.subf %102, %73 : vector<16x128xf32>
    %cst_83 = arith.constant 5.000000e-01 : f32
    %104 = vector.broadcast %cst_83 : f32 to vector<16x128xf32>
    %105 = arith.mulf %103, %104 : vector<16x128xf32>
    %106 = arith.addf %73, %105 : vector<16x128xf32>
    %cst_84 = arith.constant 1.000000e+00 : f32
    %107 = vector.broadcast %cst_84 : f32 to vector<16x128xf32>
    %108 = arith.cmpf oge, %106, %107 : vector<16x128xf32>
    %109 = arith.extui %108 : vector<16x128xi1> to vector<16x128xi32>
    %110 = arith.sitofp %109 : vector<16x128xi32> to vector<16x128xf32>
    %cst_85 = arith.constant 1.000000e+00 : f32
    %111 = vector.broadcast %cst_85 : f32 to vector<16x128xf32>
    %112 = arith.subf %111, %110 : vector<16x128xf32>
    %113 = arith.mulf %106, %112 : vector<16x128xf32>
    %c0_86 = arith.constant 0 : index
    %c0_87 = arith.constant 0 : index
    %114 = vector.load %arg5[%c0_86, %c0_87] : memref<8x16xf32, #tpu.memory_space<vmem>>, vector<8x16xf32>
    %cst_88 = arith.constant dense<0.000000e+00> : vector<8x128xf32>
    %115 = tpu.matmul %114, %110, %cst_88 {dimension_numbers = #tpu.dot_dimension_numbers<[1], [0], [0], [1], [0, 0, 1, 1], [], []>} : vector<8x16xf32>, vector<16x128xf32>, vector<8x128xf32> -> vector<8x128xf32>
    %c0_89 = arith.constant 0 : index
    %c0_90 = arith.constant 0 : index
    %116 = vector.load %arg6[%c0_89, %c0_90] : memref<128x64xf32, #tpu.memory_space<vmem>>, vector<128x64xf32>
    %cst_91 = arith.constant dense<0.000000e+00> : vector<8x64xf32>
    %117 = tpu.matmul %115, %116, %cst_91 {dimension_numbers = #tpu.dot_dimension_numbers<[1], [0], [0], [1], [0, 0, 1, 1], [], []>} : vector<8x128xf32>, vector<128x64xf32>, vector<8x64xf32> -> vector<8x64xf32>
    %c0_92 = arith.constant 0 : index
    %c2_93 = arith.constant 2 : index
    %c0_94 = arith.constant 0 : index
    %c0_95 = arith.constant 0 : index
    %118 = vector.load %arg7[%c0_92, %c2_93, %c0_94, %c0_95] : memref<1x4x8x64xf32, #tpu.memory_space<vmem>>, vector<1x1x8x64xf32>
    %119 = vector.shape_cast %118 : vector<1x1x8x64xf32> to vector<8x64xf32>
    %120 = vector.shape_cast %117 : vector<8x64xf32> to vector<1x1x8x64xf32>
    tpu.vector_store %arg7[%c0_92, %c2_93, %c0_94, %c0_95], %120 {strides = array<i32>} : memref<1x4x8x64xf32, #tpu.memory_space<vmem>>, vector<1x1x8x64xf32>,
    %c0_96 = arith.constant 0 : index
    %c3 = arith.constant 3 : index
    %c0_97 = arith.constant 0 : index
    %c0_98 = arith.constant 0 : index
    %121 = vector.load %arg1[%c0_96, %c3, %c0_97, %c0_98] : memref<1x4x18x72xf32, #tpu.memory_space<vmem>>, vector<1x1x18x72xf32>
    %122 = vector.shape_cast %121 : vector<1x1x18x72xf32> to vector<18x72xf32>
    %123 = vector.extract_strided_slice %122 {offsets = [0, 0], sizes = [16, 72], strides = [1, 1]} : vector<18x72xf32> to vector<16x72xf32>
    %c0_99 = arith.constant 0 : index
    %c0_100 = arith.constant 0 : index
    %c0_101 = arith.constant 0 : index
    %124 = vector.load %arg2[%c0_99, %c0_100, %c0_101] : memref<3x72x128xf32, #tpu.memory_space<vmem>>, vector<1x72x128xf32>
    %125 = vector.shape_cast %124 : vector<1x72x128xf32> to vector<72x128xf32>
    %cst_102 = arith.constant dense<0.000000e+00> : vector<16x128xf32>
    %126 = tpu.matmul %123, %125, %cst_102 {dimension_numbers = #tpu.dot_dimension_numbers<[1], [0], [0], [1], [0, 0, 1, 1], [], []>} : vector<16x72xf32>, vector<72x128xf32>, vector<16x128xf32> -> vector<16x128xf32>
    %127 = vector.extract_strided_slice %122 {offsets = [1, 0], sizes = [16, 72], strides = [1, 1]} : vector<18x72xf32> to vector<16x72xf32>
    %c1_103 = arith.constant 1 : index
    %c0_104 = arith.constant 0 : index
    %c0_105 = arith.constant 0 : index
    %128 = vector.load %arg2[%c1_103, %c0_104, %c0_105] : memref<3x72x128xf32, #tpu.memory_space<vmem>>, vector<1x72x128xf32>
    %129 = vector.shape_cast %128 : vector<1x72x128xf32> to vector<72x128xf32>
    %cst_106 = arith.constant dense<0.000000e+00> : vector<16x128xf32>
    %130 = tpu.matmul %127, %129, %cst_106 {dimension_numbers = #tpu.dot_dimension_numbers<[1], [0], [0], [1], [0, 0, 1, 1], [], []>} : vector<16x72xf32>, vector<72x128xf32>, vector<16x128xf32> -> vector<16x128xf32>
    %131 = arith.addf %126, %130 : vector<16x128xf32>
    %132 = vector.extract_strided_slice %122 {offsets = [2, 0], sizes = [16, 72], strides = [1, 1]} : vector<18x72xf32> to vector<16x72xf32>
    %c2_107 = arith.constant 2 : index
    %c0_108 = arith.constant 0 : index
    %c0_109 = arith.constant 0 : index
    %133 = vector.load %arg2[%c2_107, %c0_108, %c0_109] : memref<3x72x128xf32, #tpu.memory_space<vmem>>, vector<1x72x128xf32>
    %134 = vector.shape_cast %133 : vector<1x72x128xf32> to vector<72x128xf32>
    %cst_110 = arith.constant dense<0.000000e+00> : vector<16x128xf32>
    %135 = tpu.matmul %132, %134, %cst_110 {dimension_numbers = #tpu.dot_dimension_numbers<[1], [0], [0], [1], [0, 0, 1, 1], [], []>} : vector<16x72xf32>, vector<72x128xf32>, vector<16x128xf32> -> vector<16x128xf32>
    %136 = arith.addf %131, %135 : vector<16x128xf32>
    %c0_111 = arith.constant 0 : index
    %c0_112 = arith.constant 0 : index
    %137 = vector.load %arg3[%c0_111, %c0_112] : memref<1x128xf32, #tpu.memory_space<vmem>>, vector<1x128xf32>
    %138 = vector.broadcast %137 : vector<1x128xf32> to vector<16x128xf32>
    %139 = arith.mulf %136, %138 : vector<16x128xf32>
    %c0_113 = arith.constant 0 : index
    %c0_114 = arith.constant 0 : index
    %140 = vector.load %arg4[%c0_113, %c0_114] : memref<1x128xf32, #tpu.memory_space<vmem>>, vector<1x128xf32>
    %141 = vector.broadcast %140 : vector<1x128xf32> to vector<16x128xf32>
    %142 = arith.addf %139, %141 : vector<16x128xf32>
    %143 = arith.subf %142, %113 : vector<16x128xf32>
    %cst_115 = arith.constant 5.000000e-01 : f32
    %144 = vector.broadcast %cst_115 : f32 to vector<16x128xf32>
    %145 = arith.mulf %143, %144 : vector<16x128xf32>
    %146 = arith.addf %113, %145 : vector<16x128xf32>
    %cst_116 = arith.constant 1.000000e+00 : f32
    %147 = vector.broadcast %cst_116 : f32 to vector<16x128xf32>
    %148 = arith.cmpf oge, %146, %147 : vector<16x128xf32>
    %149 = arith.extui %148 : vector<16x128xi1> to vector<16x128xi32>
    %150 = arith.sitofp %149 : vector<16x128xi32> to vector<16x128xf32>
    %c0_117 = arith.constant 0 : index
    %c0_118 = arith.constant 0 : index
    %151 = vector.load %arg5[%c0_117, %c0_118] : memref<8x16xf32, #tpu.memory_space<vmem>>, vector<8x16xf32>
    %cst_119 = arith.constant dense<0.000000e+00> : vector<8x128xf32>
    %152 = tpu.matmul %151, %150, %cst_119 {dimension_numbers = #tpu.dot_dimension_numbers<[1], [0], [0], [1], [0, 0, 1, 1], [], []>} : vector<8x16xf32>, vector<16x128xf32>, vector<8x128xf32> -> vector<8x128xf32>
    %c0_120 = arith.constant 0 : index
    %c0_121 = arith.constant 0 : index
    %153 = vector.load %arg6[%c0_120, %c0_121] : memref<128x64xf32, #tpu.memory_space<vmem>>, vector<128x64xf32>
    %cst_122 = arith.constant dense<0.000000e+00> : vector<8x64xf32>
    %154 = tpu.matmul %152, %153, %cst_122 {dimension_numbers = #tpu.dot_dimension_numbers<[1], [0], [0], [1], [0, 0, 1, 1], [], []>} : vector<8x128xf32>, vector<128x64xf32>, vector<8x64xf32> -> vector<8x64xf32>
    %c0_123 = arith.constant 0 : index
    %c3_124 = arith.constant 3 : index
    %c0_125 = arith.constant 0 : index
    %c0_126 = arith.constant 0 : index
    %155 = vector.load %arg7[%c0_123, %c3_124, %c0_125, %c0_126] : memref<1x4x8x64xf32, #tpu.memory_space<vmem>>, vector<1x1x8x64xf32>
    %156 = vector.shape_cast %155 : vector<1x1x8x64xf32> to vector<8x64xf32>
    %157 = vector.shape_cast %154 : vector<8x64xf32> to vector<1x1x8x64xf32>
    tpu.vector_store %arg7[%c0_123, %c3_124, %c0_125, %c0_126], %157 {strides = array<i32>} : memref<1x4x8x64xf32, #tpu.memory_space<vmem>>, vector<1x1x8x64xf32>,
    return
  }
  func.func @transform_0(%arg0: i32) -> (i32, i32, i32, i32) {
    %c0_i32 = arith.constant 0 : i32
    %c0_i32_0 = arith.constant 0 : i32
    %c0_i32_1 = arith.constant 0 : i32
    %c0_i32_2 = arith.constant 0 : i32
    return %arg0, %c0_i32, %c0_i32_0, %c0_i32_1 : i32, i32, i32, i32
  }
  func.func @transform_1(%arg0: i32) -> (i32, i32, i32) {
    %c0_i32 = arith.constant 0 : i32
    %c0_i32_0 = arith.constant 0 : i32
    %c0_i32_1 = arith.constant 0 : i32
    %c0_i32_2 = arith.constant 0 : i32
    return %c0_i32, %c0_i32_0, %c0_i32_1 : i32, i32, i32
  }
  func.func @transform_2(%arg0: i32) -> (i32, i32) {
    %c0_i32 = arith.constant 0 : i32
    %c0_i32_0 = arith.constant 0 : i32
    %c0_i32_1 = arith.constant 0 : i32
    return %c0_i32, %c0_i32_0 : i32, i32
  }
  func.func @transform_3(%arg0: i32) -> (i32, i32) {
    %c0_i32 = arith.constant 0 : i32
    %c0_i32_0 = arith.constant 0 : i32
    %c0_i32_1 = arith.constant 0 : i32
    return %c0_i32, %c0_i32_0 : i32, i32
  }
  func.func @transform_4(%arg0: i32) -> (i32, i32) {
    %c0_i32 = arith.constant 0 : i32
    %c0_i32_0 = arith.constant 0 : i32
    %c0_i32_1 = arith.constant 0 : i32
    return %c0_i32, %c0_i32_0 : i32, i32
  }
  func.func @transform_5(%arg0: i32) -> (i32, i32) {
    %c0_i32 = arith.constant 0 : i32
    %c0_i32_0 = arith.constant 0 : i32
    %c0_i32_1 = arith.constant 0 : i32
    return %c0_i32, %c0_i32_0 : i32, i32
  }
  func.func @transform_6(%arg0: i32) -> (i32, i32, i32, i32) {
    %c0_i32 = arith.constant 0 : i32
    %c0_i32_0 = arith.constant 0 : i32
    %c0_i32_1 = arith.constant 0 : i32
    %c0_i32_2 = arith.constant 0 : i32
    return %arg0, %c0_i32, %c0_i32_0, %c0_i32_1 : i32, i32, i32, i32
  }
}

module attributes {stable_mosaic.version = 11 : i64} {
  func.func @_sps_stage_kernel(%arg0: i32, %arg1: memref<1x4x10x80xf32, #tpu.memory_space<vmem>>, %arg2: memref<3x80x128xf32, #tpu.memory_space<vmem>>, %arg3: memref<1x128xf32, #tpu.memory_space<vmem>>, %arg4: memref<1x128xf32, #tpu.memory_space<vmem>>, %arg5: memref<4x8xf32, #tpu.memory_space<vmem>>, %arg6: memref<128x64xf32, #tpu.memory_space<vmem>>, %arg7: memref<1x4x4x64xf32, #tpu.memory_space<vmem>>) attributes {dimension_semantics = [#tpu.dimension_semantics<parallel>], iteration_bounds = array<i64: 2>, scalar_prefetch = 0 : i64, scratch_operands = 0 : i64, tpu.core_type = #tpu.core_type<tc>, window_params = [{transform_indices = @transform_0, window_bounds = array<i64: 1, 4, 10, 80>}, {pipeline_mode = #tpu.pipeline_mode<synchronous>, transform_indices = @transform_1, window_bounds = array<i64: 3, 80, 128>}, {pipeline_mode = #tpu.pipeline_mode<synchronous>, transform_indices = @transform_2, window_bounds = array<i64: 1, 128>}, {pipeline_mode = #tpu.pipeline_mode<synchronous>, transform_indices = @transform_3, window_bounds = array<i64: 1, 128>}, {pipeline_mode = #tpu.pipeline_mode<synchronous>, transform_indices = @transform_4, window_bounds = array<i64: 4, 8>}, {pipeline_mode = #tpu.pipeline_mode<synchronous>, transform_indices = @transform_5, window_bounds = array<i64: 128, 64>}, {transform_indices = @transform_6, window_bounds = array<i64: 1, 4, 4, 64>}]} {
    %cst = arith.constant 0.000000e+00 : f32
    %0 = vector.broadcast %cst : f32 to vector<8x128xf32>
    %c0 = arith.constant 0 : index
    %c0_0 = arith.constant 0 : index
    %c0_1 = arith.constant 0 : index
    %c0_2 = arith.constant 0 : index
    %1 = vector.load %arg1[%c0, %c0_0, %c0_1, %c0_2] : memref<1x4x10x80xf32, #tpu.memory_space<vmem>>, vector<1x1x10x80xf32>
    %2 = vector.shape_cast %1 : vector<1x1x10x80xf32> to vector<10x80xf32>
    %3 = vector.extract_strided_slice %2 {offsets = [0, 0], sizes = [8, 80], strides = [1, 1]} : vector<10x80xf32> to vector<8x80xf32>
    %c0_3 = arith.constant 0 : index
    %c0_4 = arith.constant 0 : index
    %c0_5 = arith.constant 0 : index
    %4 = vector.load %arg2[%c0_3, %c0_4, %c0_5] : memref<3x80x128xf32, #tpu.memory_space<vmem>>, vector<1x80x128xf32>
    %5 = vector.shape_cast %4 : vector<1x80x128xf32> to vector<80x128xf32>
    %cst_6 = arith.constant dense<0.000000e+00> : vector<8x128xf32>
    %6 = tpu.matmul %3, %5, %cst_6 {dimension_numbers = #tpu.dot_dimension_numbers<[1], [0], [0], [1], [0, 0, 1, 1], [], []>} : vector<8x80xf32>, vector<80x128xf32>, vector<8x128xf32> -> vector<8x128xf32>
    %7 = vector.extract_strided_slice %2 {offsets = [1, 0], sizes = [8, 80], strides = [1, 1]} : vector<10x80xf32> to vector<8x80xf32>
    %c1 = arith.constant 1 : index
    %c0_7 = arith.constant 0 : index
    %c0_8 = arith.constant 0 : index
    %8 = vector.load %arg2[%c1, %c0_7, %c0_8] : memref<3x80x128xf32, #tpu.memory_space<vmem>>, vector<1x80x128xf32>
    %9 = vector.shape_cast %8 : vector<1x80x128xf32> to vector<80x128xf32>
    %cst_9 = arith.constant dense<0.000000e+00> : vector<8x128xf32>
    %10 = tpu.matmul %7, %9, %cst_9 {dimension_numbers = #tpu.dot_dimension_numbers<[1], [0], [0], [1], [0, 0, 1, 1], [], []>} : vector<8x80xf32>, vector<80x128xf32>, vector<8x128xf32> -> vector<8x128xf32>
    %11 = arith.addf %6, %10 : vector<8x128xf32>
    %12 = vector.extract_strided_slice %2 {offsets = [2, 0], sizes = [8, 80], strides = [1, 1]} : vector<10x80xf32> to vector<8x80xf32>
    %c2 = arith.constant 2 : index
    %c0_10 = arith.constant 0 : index
    %c0_11 = arith.constant 0 : index
    %13 = vector.load %arg2[%c2, %c0_10, %c0_11] : memref<3x80x128xf32, #tpu.memory_space<vmem>>, vector<1x80x128xf32>
    %14 = vector.shape_cast %13 : vector<1x80x128xf32> to vector<80x128xf32>
    %cst_12 = arith.constant dense<0.000000e+00> : vector<8x128xf32>
    %15 = tpu.matmul %12, %14, %cst_12 {dimension_numbers = #tpu.dot_dimension_numbers<[1], [0], [0], [1], [0, 0, 1, 1], [], []>} : vector<8x80xf32>, vector<80x128xf32>, vector<8x128xf32> -> vector<8x128xf32>
    %16 = arith.addf %11, %15 : vector<8x128xf32>
    %c0_13 = arith.constant 0 : index
    %c0_14 = arith.constant 0 : index
    %17 = vector.load %arg3[%c0_13, %c0_14] : memref<1x128xf32, #tpu.memory_space<vmem>>, vector<1x128xf32>
    %18 = vector.broadcast %17 : vector<1x128xf32> to vector<8x128xf32>
    %19 = arith.mulf %16, %18 : vector<8x128xf32>
    %c0_15 = arith.constant 0 : index
    %c0_16 = arith.constant 0 : index
    %20 = vector.load %arg4[%c0_15, %c0_16] : memref<1x128xf32, #tpu.memory_space<vmem>>, vector<1x128xf32>
    %21 = vector.broadcast %20 : vector<1x128xf32> to vector<8x128xf32>
    %22 = arith.addf %19, %21 : vector<8x128xf32>
    %23 = arith.subf %22, %0 : vector<8x128xf32>
    %cst_17 = arith.constant 5.000000e-01 : f32
    %24 = vector.broadcast %cst_17 : f32 to vector<8x128xf32>
    %25 = arith.mulf %23, %24 : vector<8x128xf32>
    %26 = arith.addf %0, %25 : vector<8x128xf32>
    %cst_18 = arith.constant 1.000000e+00 : f32
    %27 = vector.broadcast %cst_18 : f32 to vector<8x128xf32>
    %28 = arith.cmpf oge, %26, %27 : vector<8x128xf32>
    %29 = arith.extui %28 : vector<8x128xi1> to vector<8x128xi32>
    %30 = arith.sitofp %29 : vector<8x128xi32> to vector<8x128xf32>
    %cst_19 = arith.constant 1.000000e+00 : f32
    %31 = vector.broadcast %cst_19 : f32 to vector<8x128xf32>
    %32 = arith.subf %31, %30 : vector<8x128xf32>
    %33 = arith.mulf %26, %32 : vector<8x128xf32>
    %c0_20 = arith.constant 0 : index
    %c0_21 = arith.constant 0 : index
    %34 = vector.load %arg5[%c0_20, %c0_21] : memref<4x8xf32, #tpu.memory_space<vmem>>, vector<4x8xf32>
    %cst_22 = arith.constant dense<0.000000e+00> : vector<4x128xf32>
    %35 = tpu.matmul %34, %30, %cst_22 {dimension_numbers = #tpu.dot_dimension_numbers<[1], [0], [0], [1], [0, 0, 1, 1], [], []>} : vector<4x8xf32>, vector<8x128xf32>, vector<4x128xf32> -> vector<4x128xf32>
    %c0_23 = arith.constant 0 : index
    %c0_24 = arith.constant 0 : index
    %36 = vector.load %arg6[%c0_23, %c0_24] : memref<128x64xf32, #tpu.memory_space<vmem>>, vector<128x64xf32>
    %cst_25 = arith.constant dense<0.000000e+00> : vector<4x64xf32>
    %37 = tpu.matmul %35, %36, %cst_25 {dimension_numbers = #tpu.dot_dimension_numbers<[1], [0], [0], [1], [0, 0, 1, 1], [], []>} : vector<4x128xf32>, vector<128x64xf32>, vector<4x64xf32> -> vector<4x64xf32>
    %c0_26 = arith.constant 0 : index
    %c0_27 = arith.constant 0 : index
    %c0_28 = arith.constant 0 : index
    %c0_29 = arith.constant 0 : index
    %38 = vector.load %arg7[%c0_26, %c0_27, %c0_28, %c0_29] : memref<1x4x4x64xf32, #tpu.memory_space<vmem>>, vector<1x1x4x64xf32>
    %39 = vector.shape_cast %38 : vector<1x1x4x64xf32> to vector<4x64xf32>
    %40 = vector.shape_cast %37 : vector<4x64xf32> to vector<1x1x4x64xf32>
    tpu.vector_store %arg7[%c0_26, %c0_27, %c0_28, %c0_29], %40 {strides = array<i32>} : memref<1x4x4x64xf32, #tpu.memory_space<vmem>>, vector<1x1x4x64xf32>,
    %c0_30 = arith.constant 0 : index
    %c1_31 = arith.constant 1 : index
    %c0_32 = arith.constant 0 : index
    %c0_33 = arith.constant 0 : index
    %41 = vector.load %arg1[%c0_30, %c1_31, %c0_32, %c0_33] : memref<1x4x10x80xf32, #tpu.memory_space<vmem>>, vector<1x1x10x80xf32>
    %42 = vector.shape_cast %41 : vector<1x1x10x80xf32> to vector<10x80xf32>
    %43 = vector.extract_strided_slice %42 {offsets = [0, 0], sizes = [8, 80], strides = [1, 1]} : vector<10x80xf32> to vector<8x80xf32>
    %c0_34 = arith.constant 0 : index
    %c0_35 = arith.constant 0 : index
    %c0_36 = arith.constant 0 : index
    %44 = vector.load %arg2[%c0_34, %c0_35, %c0_36] : memref<3x80x128xf32, #tpu.memory_space<vmem>>, vector<1x80x128xf32>
    %45 = vector.shape_cast %44 : vector<1x80x128xf32> to vector<80x128xf32>
    %cst_37 = arith.constant dense<0.000000e+00> : vector<8x128xf32>
    %46 = tpu.matmul %43, %45, %cst_37 {dimension_numbers = #tpu.dot_dimension_numbers<[1], [0], [0], [1], [0, 0, 1, 1], [], []>} : vector<8x80xf32>, vector<80x128xf32>, vector<8x128xf32> -> vector<8x128xf32>
    %47 = vector.extract_strided_slice %42 {offsets = [1, 0], sizes = [8, 80], strides = [1, 1]} : vector<10x80xf32> to vector<8x80xf32>
    %c1_38 = arith.constant 1 : index
    %c0_39 = arith.constant 0 : index
    %c0_40 = arith.constant 0 : index
    %48 = vector.load %arg2[%c1_38, %c0_39, %c0_40] : memref<3x80x128xf32, #tpu.memory_space<vmem>>, vector<1x80x128xf32>
    %49 = vector.shape_cast %48 : vector<1x80x128xf32> to vector<80x128xf32>
    %cst_41 = arith.constant dense<0.000000e+00> : vector<8x128xf32>
    %50 = tpu.matmul %47, %49, %cst_41 {dimension_numbers = #tpu.dot_dimension_numbers<[1], [0], [0], [1], [0, 0, 1, 1], [], []>} : vector<8x80xf32>, vector<80x128xf32>, vector<8x128xf32> -> vector<8x128xf32>
    %51 = arith.addf %46, %50 : vector<8x128xf32>
    %52 = vector.extract_strided_slice %42 {offsets = [2, 0], sizes = [8, 80], strides = [1, 1]} : vector<10x80xf32> to vector<8x80xf32>
    %c2_42 = arith.constant 2 : index
    %c0_43 = arith.constant 0 : index
    %c0_44 = arith.constant 0 : index
    %53 = vector.load %arg2[%c2_42, %c0_43, %c0_44] : memref<3x80x128xf32, #tpu.memory_space<vmem>>, vector<1x80x128xf32>
    %54 = vector.shape_cast %53 : vector<1x80x128xf32> to vector<80x128xf32>
    %cst_45 = arith.constant dense<0.000000e+00> : vector<8x128xf32>
    %55 = tpu.matmul %52, %54, %cst_45 {dimension_numbers = #tpu.dot_dimension_numbers<[1], [0], [0], [1], [0, 0, 1, 1], [], []>} : vector<8x80xf32>, vector<80x128xf32>, vector<8x128xf32> -> vector<8x128xf32>
    %56 = arith.addf %51, %55 : vector<8x128xf32>
    %c0_46 = arith.constant 0 : index
    %c0_47 = arith.constant 0 : index
    %57 = vector.load %arg3[%c0_46, %c0_47] : memref<1x128xf32, #tpu.memory_space<vmem>>, vector<1x128xf32>
    %58 = vector.broadcast %57 : vector<1x128xf32> to vector<8x128xf32>
    %59 = arith.mulf %56, %58 : vector<8x128xf32>
    %c0_48 = arith.constant 0 : index
    %c0_49 = arith.constant 0 : index
    %60 = vector.load %arg4[%c0_48, %c0_49] : memref<1x128xf32, #tpu.memory_space<vmem>>, vector<1x128xf32>
    %61 = vector.broadcast %60 : vector<1x128xf32> to vector<8x128xf32>
    %62 = arith.addf %59, %61 : vector<8x128xf32>
    %63 = arith.subf %62, %33 : vector<8x128xf32>
    %cst_50 = arith.constant 5.000000e-01 : f32
    %64 = vector.broadcast %cst_50 : f32 to vector<8x128xf32>
    %65 = arith.mulf %63, %64 : vector<8x128xf32>
    %66 = arith.addf %33, %65 : vector<8x128xf32>
    %cst_51 = arith.constant 1.000000e+00 : f32
    %67 = vector.broadcast %cst_51 : f32 to vector<8x128xf32>
    %68 = arith.cmpf oge, %66, %67 : vector<8x128xf32>
    %69 = arith.extui %68 : vector<8x128xi1> to vector<8x128xi32>
    %70 = arith.sitofp %69 : vector<8x128xi32> to vector<8x128xf32>
    %cst_52 = arith.constant 1.000000e+00 : f32
    %71 = vector.broadcast %cst_52 : f32 to vector<8x128xf32>
    %72 = arith.subf %71, %70 : vector<8x128xf32>
    %73 = arith.mulf %66, %72 : vector<8x128xf32>
    %c0_53 = arith.constant 0 : index
    %c0_54 = arith.constant 0 : index
    %74 = vector.load %arg5[%c0_53, %c0_54] : memref<4x8xf32, #tpu.memory_space<vmem>>, vector<4x8xf32>
    %cst_55 = arith.constant dense<0.000000e+00> : vector<4x128xf32>
    %75 = tpu.matmul %74, %70, %cst_55 {dimension_numbers = #tpu.dot_dimension_numbers<[1], [0], [0], [1], [0, 0, 1, 1], [], []>} : vector<4x8xf32>, vector<8x128xf32>, vector<4x128xf32> -> vector<4x128xf32>
    %c0_56 = arith.constant 0 : index
    %c0_57 = arith.constant 0 : index
    %76 = vector.load %arg6[%c0_56, %c0_57] : memref<128x64xf32, #tpu.memory_space<vmem>>, vector<128x64xf32>
    %cst_58 = arith.constant dense<0.000000e+00> : vector<4x64xf32>
    %77 = tpu.matmul %75, %76, %cst_58 {dimension_numbers = #tpu.dot_dimension_numbers<[1], [0], [0], [1], [0, 0, 1, 1], [], []>} : vector<4x128xf32>, vector<128x64xf32>, vector<4x64xf32> -> vector<4x64xf32>
    %c0_59 = arith.constant 0 : index
    %c1_60 = arith.constant 1 : index
    %c0_61 = arith.constant 0 : index
    %c0_62 = arith.constant 0 : index
    %78 = vector.load %arg7[%c0_59, %c1_60, %c0_61, %c0_62] : memref<1x4x4x64xf32, #tpu.memory_space<vmem>>, vector<1x1x4x64xf32>
    %79 = vector.shape_cast %78 : vector<1x1x4x64xf32> to vector<4x64xf32>
    %80 = vector.shape_cast %77 : vector<4x64xf32> to vector<1x1x4x64xf32>
    tpu.vector_store %arg7[%c0_59, %c1_60, %c0_61, %c0_62], %80 {strides = array<i32>} : memref<1x4x4x64xf32, #tpu.memory_space<vmem>>, vector<1x1x4x64xf32>,
    %c0_63 = arith.constant 0 : index
    %c2_64 = arith.constant 2 : index
    %c0_65 = arith.constant 0 : index
    %c0_66 = arith.constant 0 : index
    %81 = vector.load %arg1[%c0_63, %c2_64, %c0_65, %c0_66] : memref<1x4x10x80xf32, #tpu.memory_space<vmem>>, vector<1x1x10x80xf32>
    %82 = vector.shape_cast %81 : vector<1x1x10x80xf32> to vector<10x80xf32>
    %83 = vector.extract_strided_slice %82 {offsets = [0, 0], sizes = [8, 80], strides = [1, 1]} : vector<10x80xf32> to vector<8x80xf32>
    %c0_67 = arith.constant 0 : index
    %c0_68 = arith.constant 0 : index
    %c0_69 = arith.constant 0 : index
    %84 = vector.load %arg2[%c0_67, %c0_68, %c0_69] : memref<3x80x128xf32, #tpu.memory_space<vmem>>, vector<1x80x128xf32>
    %85 = vector.shape_cast %84 : vector<1x80x128xf32> to vector<80x128xf32>
    %cst_70 = arith.constant dense<0.000000e+00> : vector<8x128xf32>
    %86 = tpu.matmul %83, %85, %cst_70 {dimension_numbers = #tpu.dot_dimension_numbers<[1], [0], [0], [1], [0, 0, 1, 1], [], []>} : vector<8x80xf32>, vector<80x128xf32>, vector<8x128xf32> -> vector<8x128xf32>
    %87 = vector.extract_strided_slice %82 {offsets = [1, 0], sizes = [8, 80], strides = [1, 1]} : vector<10x80xf32> to vector<8x80xf32>
    %c1_71 = arith.constant 1 : index
    %c0_72 = arith.constant 0 : index
    %c0_73 = arith.constant 0 : index
    %88 = vector.load %arg2[%c1_71, %c0_72, %c0_73] : memref<3x80x128xf32, #tpu.memory_space<vmem>>, vector<1x80x128xf32>
    %89 = vector.shape_cast %88 : vector<1x80x128xf32> to vector<80x128xf32>
    %cst_74 = arith.constant dense<0.000000e+00> : vector<8x128xf32>
    %90 = tpu.matmul %87, %89, %cst_74 {dimension_numbers = #tpu.dot_dimension_numbers<[1], [0], [0], [1], [0, 0, 1, 1], [], []>} : vector<8x80xf32>, vector<80x128xf32>, vector<8x128xf32> -> vector<8x128xf32>
    %91 = arith.addf %86, %90 : vector<8x128xf32>
    %92 = vector.extract_strided_slice %82 {offsets = [2, 0], sizes = [8, 80], strides = [1, 1]} : vector<10x80xf32> to vector<8x80xf32>
    %c2_75 = arith.constant 2 : index
    %c0_76 = arith.constant 0 : index
    %c0_77 = arith.constant 0 : index
    %93 = vector.load %arg2[%c2_75, %c0_76, %c0_77] : memref<3x80x128xf32, #tpu.memory_space<vmem>>, vector<1x80x128xf32>
    %94 = vector.shape_cast %93 : vector<1x80x128xf32> to vector<80x128xf32>
    %cst_78 = arith.constant dense<0.000000e+00> : vector<8x128xf32>
    %95 = tpu.matmul %92, %94, %cst_78 {dimension_numbers = #tpu.dot_dimension_numbers<[1], [0], [0], [1], [0, 0, 1, 1], [], []>} : vector<8x80xf32>, vector<80x128xf32>, vector<8x128xf32> -> vector<8x128xf32>
    %96 = arith.addf %91, %95 : vector<8x128xf32>
    %c0_79 = arith.constant 0 : index
    %c0_80 = arith.constant 0 : index
    %97 = vector.load %arg3[%c0_79, %c0_80] : memref<1x128xf32, #tpu.memory_space<vmem>>, vector<1x128xf32>
    %98 = vector.broadcast %97 : vector<1x128xf32> to vector<8x128xf32>
    %99 = arith.mulf %96, %98 : vector<8x128xf32>
    %c0_81 = arith.constant 0 : index
    %c0_82 = arith.constant 0 : index
    %100 = vector.load %arg4[%c0_81, %c0_82] : memref<1x128xf32, #tpu.memory_space<vmem>>, vector<1x128xf32>
    %101 = vector.broadcast %100 : vector<1x128xf32> to vector<8x128xf32>
    %102 = arith.addf %99, %101 : vector<8x128xf32>
    %103 = arith.subf %102, %73 : vector<8x128xf32>
    %cst_83 = arith.constant 5.000000e-01 : f32
    %104 = vector.broadcast %cst_83 : f32 to vector<8x128xf32>
    %105 = arith.mulf %103, %104 : vector<8x128xf32>
    %106 = arith.addf %73, %105 : vector<8x128xf32>
    %cst_84 = arith.constant 1.000000e+00 : f32
    %107 = vector.broadcast %cst_84 : f32 to vector<8x128xf32>
    %108 = arith.cmpf oge, %106, %107 : vector<8x128xf32>
    %109 = arith.extui %108 : vector<8x128xi1> to vector<8x128xi32>
    %110 = arith.sitofp %109 : vector<8x128xi32> to vector<8x128xf32>
    %cst_85 = arith.constant 1.000000e+00 : f32
    %111 = vector.broadcast %cst_85 : f32 to vector<8x128xf32>
    %112 = arith.subf %111, %110 : vector<8x128xf32>
    %113 = arith.mulf %106, %112 : vector<8x128xf32>
    %c0_86 = arith.constant 0 : index
    %c0_87 = arith.constant 0 : index
    %114 = vector.load %arg5[%c0_86, %c0_87] : memref<4x8xf32, #tpu.memory_space<vmem>>, vector<4x8xf32>
    %cst_88 = arith.constant dense<0.000000e+00> : vector<4x128xf32>
    %115 = tpu.matmul %114, %110, %cst_88 {dimension_numbers = #tpu.dot_dimension_numbers<[1], [0], [0], [1], [0, 0, 1, 1], [], []>} : vector<4x8xf32>, vector<8x128xf32>, vector<4x128xf32> -> vector<4x128xf32>
    %c0_89 = arith.constant 0 : index
    %c0_90 = arith.constant 0 : index
    %116 = vector.load %arg6[%c0_89, %c0_90] : memref<128x64xf32, #tpu.memory_space<vmem>>, vector<128x64xf32>
    %cst_91 = arith.constant dense<0.000000e+00> : vector<4x64xf32>
    %117 = tpu.matmul %115, %116, %cst_91 {dimension_numbers = #tpu.dot_dimension_numbers<[1], [0], [0], [1], [0, 0, 1, 1], [], []>} : vector<4x128xf32>, vector<128x64xf32>, vector<4x64xf32> -> vector<4x64xf32>
    %c0_92 = arith.constant 0 : index
    %c2_93 = arith.constant 2 : index
    %c0_94 = arith.constant 0 : index
    %c0_95 = arith.constant 0 : index
    %118 = vector.load %arg7[%c0_92, %c2_93, %c0_94, %c0_95] : memref<1x4x4x64xf32, #tpu.memory_space<vmem>>, vector<1x1x4x64xf32>
    %119 = vector.shape_cast %118 : vector<1x1x4x64xf32> to vector<4x64xf32>
    %120 = vector.shape_cast %117 : vector<4x64xf32> to vector<1x1x4x64xf32>
    tpu.vector_store %arg7[%c0_92, %c2_93, %c0_94, %c0_95], %120 {strides = array<i32>} : memref<1x4x4x64xf32, #tpu.memory_space<vmem>>, vector<1x1x4x64xf32>,
    %c0_96 = arith.constant 0 : index
    %c3 = arith.constant 3 : index
    %c0_97 = arith.constant 0 : index
    %c0_98 = arith.constant 0 : index
    %121 = vector.load %arg1[%c0_96, %c3, %c0_97, %c0_98] : memref<1x4x10x80xf32, #tpu.memory_space<vmem>>, vector<1x1x10x80xf32>
    %122 = vector.shape_cast %121 : vector<1x1x10x80xf32> to vector<10x80xf32>
    %123 = vector.extract_strided_slice %122 {offsets = [0, 0], sizes = [8, 80], strides = [1, 1]} : vector<10x80xf32> to vector<8x80xf32>
    %c0_99 = arith.constant 0 : index
    %c0_100 = arith.constant 0 : index
    %c0_101 = arith.constant 0 : index
    %124 = vector.load %arg2[%c0_99, %c0_100, %c0_101] : memref<3x80x128xf32, #tpu.memory_space<vmem>>, vector<1x80x128xf32>
    %125 = vector.shape_cast %124 : vector<1x80x128xf32> to vector<80x128xf32>
    %cst_102 = arith.constant dense<0.000000e+00> : vector<8x128xf32>
    %126 = tpu.matmul %123, %125, %cst_102 {dimension_numbers = #tpu.dot_dimension_numbers<[1], [0], [0], [1], [0, 0, 1, 1], [], []>} : vector<8x80xf32>, vector<80x128xf32>, vector<8x128xf32> -> vector<8x128xf32>
    %127 = vector.extract_strided_slice %122 {offsets = [1, 0], sizes = [8, 80], strides = [1, 1]} : vector<10x80xf32> to vector<8x80xf32>
    %c1_103 = arith.constant 1 : index
    %c0_104 = arith.constant 0 : index
    %c0_105 = arith.constant 0 : index
    %128 = vector.load %arg2[%c1_103, %c0_104, %c0_105] : memref<3x80x128xf32, #tpu.memory_space<vmem>>, vector<1x80x128xf32>
    %129 = vector.shape_cast %128 : vector<1x80x128xf32> to vector<80x128xf32>
    %cst_106 = arith.constant dense<0.000000e+00> : vector<8x128xf32>
    %130 = tpu.matmul %127, %129, %cst_106 {dimension_numbers = #tpu.dot_dimension_numbers<[1], [0], [0], [1], [0, 0, 1, 1], [], []>} : vector<8x80xf32>, vector<80x128xf32>, vector<8x128xf32> -> vector<8x128xf32>
    %131 = arith.addf %126, %130 : vector<8x128xf32>
    %132 = vector.extract_strided_slice %122 {offsets = [2, 0], sizes = [8, 80], strides = [1, 1]} : vector<10x80xf32> to vector<8x80xf32>
    %c2_107 = arith.constant 2 : index
    %c0_108 = arith.constant 0 : index
    %c0_109 = arith.constant 0 : index
    %133 = vector.load %arg2[%c2_107, %c0_108, %c0_109] : memref<3x80x128xf32, #tpu.memory_space<vmem>>, vector<1x80x128xf32>
    %134 = vector.shape_cast %133 : vector<1x80x128xf32> to vector<80x128xf32>
    %cst_110 = arith.constant dense<0.000000e+00> : vector<8x128xf32>
    %135 = tpu.matmul %132, %134, %cst_110 {dimension_numbers = #tpu.dot_dimension_numbers<[1], [0], [0], [1], [0, 0, 1, 1], [], []>} : vector<8x80xf32>, vector<80x128xf32>, vector<8x128xf32> -> vector<8x128xf32>
    %136 = arith.addf %131, %135 : vector<8x128xf32>
    %c0_111 = arith.constant 0 : index
    %c0_112 = arith.constant 0 : index
    %137 = vector.load %arg3[%c0_111, %c0_112] : memref<1x128xf32, #tpu.memory_space<vmem>>, vector<1x128xf32>
    %138 = vector.broadcast %137 : vector<1x128xf32> to vector<8x128xf32>
    %139 = arith.mulf %136, %138 : vector<8x128xf32>
    %c0_113 = arith.constant 0 : index
    %c0_114 = arith.constant 0 : index
    %140 = vector.load %arg4[%c0_113, %c0_114] : memref<1x128xf32, #tpu.memory_space<vmem>>, vector<1x128xf32>
    %141 = vector.broadcast %140 : vector<1x128xf32> to vector<8x128xf32>
    %142 = arith.addf %139, %141 : vector<8x128xf32>
    %143 = arith.subf %142, %113 : vector<8x128xf32>
    %cst_115 = arith.constant 5.000000e-01 : f32
    %144 = vector.broadcast %cst_115 : f32 to vector<8x128xf32>
    %145 = arith.mulf %143, %144 : vector<8x128xf32>
    %146 = arith.addf %113, %145 : vector<8x128xf32>
    %cst_116 = arith.constant 1.000000e+00 : f32
    %147 = vector.broadcast %cst_116 : f32 to vector<8x128xf32>
    %148 = arith.cmpf oge, %146, %147 : vector<8x128xf32>
    %149 = arith.extui %148 : vector<8x128xi1> to vector<8x128xi32>
    %150 = arith.sitofp %149 : vector<8x128xi32> to vector<8x128xf32>
    %c0_117 = arith.constant 0 : index
    %c0_118 = arith.constant 0 : index
    %151 = vector.load %arg5[%c0_117, %c0_118] : memref<4x8xf32, #tpu.memory_space<vmem>>, vector<4x8xf32>
    %cst_119 = arith.constant dense<0.000000e+00> : vector<4x128xf32>
    %152 = tpu.matmul %151, %150, %cst_119 {dimension_numbers = #tpu.dot_dimension_numbers<[1], [0], [0], [1], [0, 0, 1, 1], [], []>} : vector<4x8xf32>, vector<8x128xf32>, vector<4x128xf32> -> vector<4x128xf32>
    %c0_120 = arith.constant 0 : index
    %c0_121 = arith.constant 0 : index
    %153 = vector.load %arg6[%c0_120, %c0_121] : memref<128x64xf32, #tpu.memory_space<vmem>>, vector<128x64xf32>
    %cst_122 = arith.constant dense<0.000000e+00> : vector<4x64xf32>
    %154 = tpu.matmul %152, %153, %cst_122 {dimension_numbers = #tpu.dot_dimension_numbers<[1], [0], [0], [1], [0, 0, 1, 1], [], []>} : vector<4x128xf32>, vector<128x64xf32>, vector<4x64xf32> -> vector<4x64xf32>
    %c0_123 = arith.constant 0 : index
    %c3_124 = arith.constant 3 : index
    %c0_125 = arith.constant 0 : index
    %c0_126 = arith.constant 0 : index
    %155 = vector.load %arg7[%c0_123, %c3_124, %c0_125, %c0_126] : memref<1x4x4x64xf32, #tpu.memory_space<vmem>>, vector<1x1x4x64xf32>
    %156 = vector.shape_cast %155 : vector<1x1x4x64xf32> to vector<4x64xf32>
    %157 = vector.shape_cast %154 : vector<4x64xf32> to vector<1x1x4x64xf32>
    tpu.vector_store %arg7[%c0_123, %c3_124, %c0_125, %c0_126], %157 {strides = array<i32>} : memref<1x4x4x64xf32, #tpu.memory_space<vmem>>, vector<1x1x4x64xf32>,
    return
  }
  func.func @transform_0(%arg0: i32) -> (i32, i32, i32, i32) {
    %c0_i32 = arith.constant 0 : i32
    %c0_i32_0 = arith.constant 0 : i32
    %c0_i32_1 = arith.constant 0 : i32
    %c0_i32_2 = arith.constant 0 : i32
    return %arg0, %c0_i32, %c0_i32_0, %c0_i32_1 : i32, i32, i32, i32
  }
  func.func @transform_1(%arg0: i32) -> (i32, i32, i32) {
    %c0_i32 = arith.constant 0 : i32
    %c0_i32_0 = arith.constant 0 : i32
    %c0_i32_1 = arith.constant 0 : i32
    %c0_i32_2 = arith.constant 0 : i32
    return %c0_i32, %c0_i32_0, %c0_i32_1 : i32, i32, i32
  }
  func.func @transform_2(%arg0: i32) -> (i32, i32) {
    %c0_i32 = arith.constant 0 : i32
    %c0_i32_0 = arith.constant 0 : i32
    %c0_i32_1 = arith.constant 0 : i32
    return %c0_i32, %c0_i32_0 : i32, i32
  }
  func.func @transform_3(%arg0: i32) -> (i32, i32) {
    %c0_i32 = arith.constant 0 : i32
    %c0_i32_0 = arith.constant 0 : i32
    %c0_i32_1 = arith.constant 0 : i32
    return %c0_i32, %c0_i32_0 : i32, i32
  }
  func.func @transform_4(%arg0: i32) -> (i32, i32) {
    %c0_i32 = arith.constant 0 : i32
    %c0_i32_0 = arith.constant 0 : i32
    %c0_i32_1 = arith.constant 0 : i32
    return %c0_i32, %c0_i32_0 : i32, i32
  }
  func.func @transform_5(%arg0: i32) -> (i32, i32) {
    %c0_i32 = arith.constant 0 : i32
    %c0_i32_0 = arith.constant 0 : i32
    %c0_i32_1 = arith.constant 0 : i32
    return %c0_i32, %c0_i32_0 : i32, i32
  }
  func.func @transform_6(%arg0: i32) -> (i32, i32, i32, i32) {
    %c0_i32 = arith.constant 0 : i32
    %c0_i32_0 = arith.constant 0 : i32
    %c0_i32_1 = arith.constant 0 : i32
    %c0_i32_2 = arith.constant 0 : i32
    return %arg0, %c0_i32, %c0_i32_0, %c0_i32_1 : i32, i32, i32, i32
  }
}

module attributes {stable_mosaic.version = 11 : i64} {
  func.func @_sps_stage_kernel(%arg0: i32, %arg1: memref<1x4x6x96xf32, #tpu.memory_space<vmem>>, %arg2: memref<3x96x128xf32, #tpu.memory_space<vmem>>, %arg3: memref<1x128xf32, #tpu.memory_space<vmem>>, %arg4: memref<1x128xf32, #tpu.memory_space<vmem>>, %arg5: memref<2x4xf32, #tpu.memory_space<vmem>>, %arg6: memref<128x64xf32, #tpu.memory_space<vmem>>, %arg7: memref<1x4x2x64xf32, #tpu.memory_space<vmem>>) attributes {dimension_semantics = [#tpu.dimension_semantics<parallel>], iteration_bounds = array<i64: 2>, scalar_prefetch = 0 : i64, scratch_operands = 0 : i64, tpu.core_type = #tpu.core_type<tc>, window_params = [{transform_indices = @transform_0, window_bounds = array<i64: 1, 4, 6, 96>}, {pipeline_mode = #tpu.pipeline_mode<synchronous>, transform_indices = @transform_1, window_bounds = array<i64: 3, 96, 128>}, {pipeline_mode = #tpu.pipeline_mode<synchronous>, transform_indices = @transform_2, window_bounds = array<i64: 1, 128>}, {pipeline_mode = #tpu.pipeline_mode<synchronous>, transform_indices = @transform_3, window_bounds = array<i64: 1, 128>}, {pipeline_mode = #tpu.pipeline_mode<synchronous>, transform_indices = @transform_4, window_bounds = array<i64: 2, 4>}, {pipeline_mode = #tpu.pipeline_mode<synchronous>, transform_indices = @transform_5, window_bounds = array<i64: 128, 64>}, {transform_indices = @transform_6, window_bounds = array<i64: 1, 4, 2, 64>}]} {
    %cst = arith.constant 0.000000e+00 : f32
    %0 = vector.broadcast %cst : f32 to vector<4x128xf32>
    %c0 = arith.constant 0 : index
    %c0_0 = arith.constant 0 : index
    %c0_1 = arith.constant 0 : index
    %c0_2 = arith.constant 0 : index
    %1 = vector.load %arg1[%c0, %c0_0, %c0_1, %c0_2] : memref<1x4x6x96xf32, #tpu.memory_space<vmem>>, vector<1x1x6x96xf32>
    %2 = vector.shape_cast %1 : vector<1x1x6x96xf32> to vector<6x96xf32>
    %3 = vector.extract_strided_slice %2 {offsets = [0, 0], sizes = [4, 96], strides = [1, 1]} : vector<6x96xf32> to vector<4x96xf32>
    %c0_3 = arith.constant 0 : index
    %c0_4 = arith.constant 0 : index
    %c0_5 = arith.constant 0 : index
    %4 = vector.load %arg2[%c0_3, %c0_4, %c0_5] : memref<3x96x128xf32, #tpu.memory_space<vmem>>, vector<1x96x128xf32>
    %5 = vector.shape_cast %4 : vector<1x96x128xf32> to vector<96x128xf32>
    %cst_6 = arith.constant dense<0.000000e+00> : vector<4x128xf32>
    %6 = tpu.matmul %3, %5, %cst_6 {dimension_numbers = #tpu.dot_dimension_numbers<[1], [0], [0], [1], [0, 0, 1, 1], [], []>} : vector<4x96xf32>, vector<96x128xf32>, vector<4x128xf32> -> vector<4x128xf32>
    %7 = vector.extract_strided_slice %2 {offsets = [1, 0], sizes = [4, 96], strides = [1, 1]} : vector<6x96xf32> to vector<4x96xf32>
    %c1 = arith.constant 1 : index
    %c0_7 = arith.constant 0 : index
    %c0_8 = arith.constant 0 : index
    %8 = vector.load %arg2[%c1, %c0_7, %c0_8] : memref<3x96x128xf32, #tpu.memory_space<vmem>>, vector<1x96x128xf32>
    %9 = vector.shape_cast %8 : vector<1x96x128xf32> to vector<96x128xf32>
    %cst_9 = arith.constant dense<0.000000e+00> : vector<4x128xf32>
    %10 = tpu.matmul %7, %9, %cst_9 {dimension_numbers = #tpu.dot_dimension_numbers<[1], [0], [0], [1], [0, 0, 1, 1], [], []>} : vector<4x96xf32>, vector<96x128xf32>, vector<4x128xf32> -> vector<4x128xf32>
    %11 = arith.addf %6, %10 : vector<4x128xf32>
    %12 = vector.extract_strided_slice %2 {offsets = [2, 0], sizes = [4, 96], strides = [1, 1]} : vector<6x96xf32> to vector<4x96xf32>
    %c2 = arith.constant 2 : index
    %c0_10 = arith.constant 0 : index
    %c0_11 = arith.constant 0 : index
    %13 = vector.load %arg2[%c2, %c0_10, %c0_11] : memref<3x96x128xf32, #tpu.memory_space<vmem>>, vector<1x96x128xf32>
    %14 = vector.shape_cast %13 : vector<1x96x128xf32> to vector<96x128xf32>
    %cst_12 = arith.constant dense<0.000000e+00> : vector<4x128xf32>
    %15 = tpu.matmul %12, %14, %cst_12 {dimension_numbers = #tpu.dot_dimension_numbers<[1], [0], [0], [1], [0, 0, 1, 1], [], []>} : vector<4x96xf32>, vector<96x128xf32>, vector<4x128xf32> -> vector<4x128xf32>
    %16 = arith.addf %11, %15 : vector<4x128xf32>
    %c0_13 = arith.constant 0 : index
    %c0_14 = arith.constant 0 : index
    %17 = vector.load %arg3[%c0_13, %c0_14] : memref<1x128xf32, #tpu.memory_space<vmem>>, vector<1x128xf32>
    %18 = vector.broadcast %17 : vector<1x128xf32> to vector<4x128xf32>
    %19 = arith.mulf %16, %18 : vector<4x128xf32>
    %c0_15 = arith.constant 0 : index
    %c0_16 = arith.constant 0 : index
    %20 = vector.load %arg4[%c0_15, %c0_16] : memref<1x128xf32, #tpu.memory_space<vmem>>, vector<1x128xf32>
    %21 = vector.broadcast %20 : vector<1x128xf32> to vector<4x128xf32>
    %22 = arith.addf %19, %21 : vector<4x128xf32>
    %23 = arith.subf %22, %0 : vector<4x128xf32>
    %cst_17 = arith.constant 5.000000e-01 : f32
    %24 = vector.broadcast %cst_17 : f32 to vector<4x128xf32>
    %25 = arith.mulf %23, %24 : vector<4x128xf32>
    %26 = arith.addf %0, %25 : vector<4x128xf32>
    %cst_18 = arith.constant 1.000000e+00 : f32
    %27 = vector.broadcast %cst_18 : f32 to vector<4x128xf32>
    %28 = arith.cmpf oge, %26, %27 : vector<4x128xf32>
    %29 = arith.extui %28 : vector<4x128xi1> to vector<4x128xi32>
    %30 = arith.sitofp %29 : vector<4x128xi32> to vector<4x128xf32>
    %cst_19 = arith.constant 1.000000e+00 : f32
    %31 = vector.broadcast %cst_19 : f32 to vector<4x128xf32>
    %32 = arith.subf %31, %30 : vector<4x128xf32>
    %33 = arith.mulf %26, %32 : vector<4x128xf32>
    %c0_20 = arith.constant 0 : index
    %c0_21 = arith.constant 0 : index
    %34 = vector.load %arg5[%c0_20, %c0_21] : memref<2x4xf32, #tpu.memory_space<vmem>>, vector<2x4xf32>
    %cst_22 = arith.constant dense<0.000000e+00> : vector<2x128xf32>
    %35 = tpu.matmul %34, %30, %cst_22 {dimension_numbers = #tpu.dot_dimension_numbers<[1], [0], [0], [1], [0, 0, 1, 1], [], []>} : vector<2x4xf32>, vector<4x128xf32>, vector<2x128xf32> -> vector<2x128xf32>
    %c0_23 = arith.constant 0 : index
    %c0_24 = arith.constant 0 : index
    %36 = vector.load %arg6[%c0_23, %c0_24] : memref<128x64xf32, #tpu.memory_space<vmem>>, vector<128x64xf32>
    %cst_25 = arith.constant dense<0.000000e+00> : vector<2x64xf32>
    %37 = tpu.matmul %35, %36, %cst_25 {dimension_numbers = #tpu.dot_dimension_numbers<[1], [0], [0], [1], [0, 0, 1, 1], [], []>} : vector<2x128xf32>, vector<128x64xf32>, vector<2x64xf32> -> vector<2x64xf32>
    %c0_26 = arith.constant 0 : index
    %c0_27 = arith.constant 0 : index
    %c0_28 = arith.constant 0 : index
    %c0_29 = arith.constant 0 : index
    %38 = vector.load %arg7[%c0_26, %c0_27, %c0_28, %c0_29] : memref<1x4x2x64xf32, #tpu.memory_space<vmem>>, vector<1x1x2x64xf32>
    %39 = vector.shape_cast %38 : vector<1x1x2x64xf32> to vector<2x64xf32>
    %40 = vector.shape_cast %37 : vector<2x64xf32> to vector<1x1x2x64xf32>
    tpu.vector_store %arg7[%c0_26, %c0_27, %c0_28, %c0_29], %40 {strides = array<i32>} : memref<1x4x2x64xf32, #tpu.memory_space<vmem>>, vector<1x1x2x64xf32>,
    %c0_30 = arith.constant 0 : index
    %c1_31 = arith.constant 1 : index
    %c0_32 = arith.constant 0 : index
    %c0_33 = arith.constant 0 : index
    %41 = vector.load %arg1[%c0_30, %c1_31, %c0_32, %c0_33] : memref<1x4x6x96xf32, #tpu.memory_space<vmem>>, vector<1x1x6x96xf32>
    %42 = vector.shape_cast %41 : vector<1x1x6x96xf32> to vector<6x96xf32>
    %43 = vector.extract_strided_slice %42 {offsets = [0, 0], sizes = [4, 96], strides = [1, 1]} : vector<6x96xf32> to vector<4x96xf32>
    %c0_34 = arith.constant 0 : index
    %c0_35 = arith.constant 0 : index
    %c0_36 = arith.constant 0 : index
    %44 = vector.load %arg2[%c0_34, %c0_35, %c0_36] : memref<3x96x128xf32, #tpu.memory_space<vmem>>, vector<1x96x128xf32>
    %45 = vector.shape_cast %44 : vector<1x96x128xf32> to vector<96x128xf32>
    %cst_37 = arith.constant dense<0.000000e+00> : vector<4x128xf32>
    %46 = tpu.matmul %43, %45, %cst_37 {dimension_numbers = #tpu.dot_dimension_numbers<[1], [0], [0], [1], [0, 0, 1, 1], [], []>} : vector<4x96xf32>, vector<96x128xf32>, vector<4x128xf32> -> vector<4x128xf32>
    %47 = vector.extract_strided_slice %42 {offsets = [1, 0], sizes = [4, 96], strides = [1, 1]} : vector<6x96xf32> to vector<4x96xf32>
    %c1_38 = arith.constant 1 : index
    %c0_39 = arith.constant 0 : index
    %c0_40 = arith.constant 0 : index
    %48 = vector.load %arg2[%c1_38, %c0_39, %c0_40] : memref<3x96x128xf32, #tpu.memory_space<vmem>>, vector<1x96x128xf32>
    %49 = vector.shape_cast %48 : vector<1x96x128xf32> to vector<96x128xf32>
    %cst_41 = arith.constant dense<0.000000e+00> : vector<4x128xf32>
    %50 = tpu.matmul %47, %49, %cst_41 {dimension_numbers = #tpu.dot_dimension_numbers<[1], [0], [0], [1], [0, 0, 1, 1], [], []>} : vector<4x96xf32>, vector<96x128xf32>, vector<4x128xf32> -> vector<4x128xf32>
    %51 = arith.addf %46, %50 : vector<4x128xf32>
    %52 = vector.extract_strided_slice %42 {offsets = [2, 0], sizes = [4, 96], strides = [1, 1]} : vector<6x96xf32> to vector<4x96xf32>
    %c2_42 = arith.constant 2 : index
    %c0_43 = arith.constant 0 : index
    %c0_44 = arith.constant 0 : index
    %53 = vector.load %arg2[%c2_42, %c0_43, %c0_44] : memref<3x96x128xf32, #tpu.memory_space<vmem>>, vector<1x96x128xf32>
    %54 = vector.shape_cast %53 : vector<1x96x128xf32> to vector<96x128xf32>
    %cst_45 = arith.constant dense<0.000000e+00> : vector<4x128xf32>
    %55 = tpu.matmul %52, %54, %cst_45 {dimension_numbers = #tpu.dot_dimension_numbers<[1], [0], [0], [1], [0, 0, 1, 1], [], []>} : vector<4x96xf32>, vector<96x128xf32>, vector<4x128xf32> -> vector<4x128xf32>
    %56 = arith.addf %51, %55 : vector<4x128xf32>
    %c0_46 = arith.constant 0 : index
    %c0_47 = arith.constant 0 : index
    %57 = vector.load %arg3[%c0_46, %c0_47] : memref<1x128xf32, #tpu.memory_space<vmem>>, vector<1x128xf32>
    %58 = vector.broadcast %57 : vector<1x128xf32> to vector<4x128xf32>
    %59 = arith.mulf %56, %58 : vector<4x128xf32>
    %c0_48 = arith.constant 0 : index
    %c0_49 = arith.constant 0 : index
    %60 = vector.load %arg4[%c0_48, %c0_49] : memref<1x128xf32, #tpu.memory_space<vmem>>, vector<1x128xf32>
    %61 = vector.broadcast %60 : vector<1x128xf32> to vector<4x128xf32>
    %62 = arith.addf %59, %61 : vector<4x128xf32>
    %63 = arith.subf %62, %33 : vector<4x128xf32>
    %cst_50 = arith.constant 5.000000e-01 : f32
    %64 = vector.broadcast %cst_50 : f32 to vector<4x128xf32>
    %65 = arith.mulf %63, %64 : vector<4x128xf32>
    %66 = arith.addf %33, %65 : vector<4x128xf32>
    %cst_51 = arith.constant 1.000000e+00 : f32
    %67 = vector.broadcast %cst_51 : f32 to vector<4x128xf32>
    %68 = arith.cmpf oge, %66, %67 : vector<4x128xf32>
    %69 = arith.extui %68 : vector<4x128xi1> to vector<4x128xi32>
    %70 = arith.sitofp %69 : vector<4x128xi32> to vector<4x128xf32>
    %cst_52 = arith.constant 1.000000e+00 : f32
    %71 = vector.broadcast %cst_52 : f32 to vector<4x128xf32>
    %72 = arith.subf %71, %70 : vector<4x128xf32>
    %73 = arith.mulf %66, %72 : vector<4x128xf32>
    %c0_53 = arith.constant 0 : index
    %c0_54 = arith.constant 0 : index
    %74 = vector.load %arg5[%c0_53, %c0_54] : memref<2x4xf32, #tpu.memory_space<vmem>>, vector<2x4xf32>
    %cst_55 = arith.constant dense<0.000000e+00> : vector<2x128xf32>
    %75 = tpu.matmul %74, %70, %cst_55 {dimension_numbers = #tpu.dot_dimension_numbers<[1], [0], [0], [1], [0, 0, 1, 1], [], []>} : vector<2x4xf32>, vector<4x128xf32>, vector<2x128xf32> -> vector<2x128xf32>
    %c0_56 = arith.constant 0 : index
    %c0_57 = arith.constant 0 : index
    %76 = vector.load %arg6[%c0_56, %c0_57] : memref<128x64xf32, #tpu.memory_space<vmem>>, vector<128x64xf32>
    %cst_58 = arith.constant dense<0.000000e+00> : vector<2x64xf32>
    %77 = tpu.matmul %75, %76, %cst_58 {dimension_numbers = #tpu.dot_dimension_numbers<[1], [0], [0], [1], [0, 0, 1, 1], [], []>} : vector<2x128xf32>, vector<128x64xf32>, vector<2x64xf32> -> vector<2x64xf32>
    %c0_59 = arith.constant 0 : index
    %c1_60 = arith.constant 1 : index
    %c0_61 = arith.constant 0 : index
    %c0_62 = arith.constant 0 : index
    %78 = vector.load %arg7[%c0_59, %c1_60, %c0_61, %c0_62] : memref<1x4x2x64xf32, #tpu.memory_space<vmem>>, vector<1x1x2x64xf32>
    %79 = vector.shape_cast %78 : vector<1x1x2x64xf32> to vector<2x64xf32>
    %80 = vector.shape_cast %77 : vector<2x64xf32> to vector<1x1x2x64xf32>
    tpu.vector_store %arg7[%c0_59, %c1_60, %c0_61, %c0_62], %80 {strides = array<i32>} : memref<1x4x2x64xf32, #tpu.memory_space<vmem>>, vector<1x1x2x64xf32>,
    %c0_63 = arith.constant 0 : index
    %c2_64 = arith.constant 2 : index
    %c0_65 = arith.constant 0 : index
    %c0_66 = arith.constant 0 : index
    %81 = vector.load %arg1[%c0_63, %c2_64, %c0_65, %c0_66] : memref<1x4x6x96xf32, #tpu.memory_space<vmem>>, vector<1x1x6x96xf32>
    %82 = vector.shape_cast %81 : vector<1x1x6x96xf32> to vector<6x96xf32>
    %83 = vector.extract_strided_slice %82 {offsets = [0, 0], sizes = [4, 96], strides = [1, 1]} : vector<6x96xf32> to vector<4x96xf32>
    %c0_67 = arith.constant 0 : index
    %c0_68 = arith.constant 0 : index
    %c0_69 = arith.constant 0 : index
    %84 = vector.load %arg2[%c0_67, %c0_68, %c0_69] : memref<3x96x128xf32, #tpu.memory_space<vmem>>, vector<1x96x128xf32>
    %85 = vector.shape_cast %84 : vector<1x96x128xf32> to vector<96x128xf32>
    %cst_70 = arith.constant dense<0.000000e+00> : vector<4x128xf32>
    %86 = tpu.matmul %83, %85, %cst_70 {dimension_numbers = #tpu.dot_dimension_numbers<[1], [0], [0], [1], [0, 0, 1, 1], [], []>} : vector<4x96xf32>, vector<96x128xf32>, vector<4x128xf32> -> vector<4x128xf32>
    %87 = vector.extract_strided_slice %82 {offsets = [1, 0], sizes = [4, 96], strides = [1, 1]} : vector<6x96xf32> to vector<4x96xf32>
    %c1_71 = arith.constant 1 : index
    %c0_72 = arith.constant 0 : index
    %c0_73 = arith.constant 0 : index
    %88 = vector.load %arg2[%c1_71, %c0_72, %c0_73] : memref<3x96x128xf32, #tpu.memory_space<vmem>>, vector<1x96x128xf32>
    %89 = vector.shape_cast %88 : vector<1x96x128xf32> to vector<96x128xf32>
    %cst_74 = arith.constant dense<0.000000e+00> : vector<4x128xf32>
    %90 = tpu.matmul %87, %89, %cst_74 {dimension_numbers = #tpu.dot_dimension_numbers<[1], [0], [0], [1], [0, 0, 1, 1], [], []>} : vector<4x96xf32>, vector<96x128xf32>, vector<4x128xf32> -> vector<4x128xf32>
    %91 = arith.addf %86, %90 : vector<4x128xf32>
    %92 = vector.extract_strided_slice %82 {offsets = [2, 0], sizes = [4, 96], strides = [1, 1]} : vector<6x96xf32> to vector<4x96xf32>
    %c2_75 = arith.constant 2 : index
    %c0_76 = arith.constant 0 : index
    %c0_77 = arith.constant 0 : index
    %93 = vector.load %arg2[%c2_75, %c0_76, %c0_77] : memref<3x96x128xf32, #tpu.memory_space<vmem>>, vector<1x96x128xf32>
    %94 = vector.shape_cast %93 : vector<1x96x128xf32> to vector<96x128xf32>
    %cst_78 = arith.constant dense<0.000000e+00> : vector<4x128xf32>
    %95 = tpu.matmul %92, %94, %cst_78 {dimension_numbers = #tpu.dot_dimension_numbers<[1], [0], [0], [1], [0, 0, 1, 1], [], []>} : vector<4x96xf32>, vector<96x128xf32>, vector<4x128xf32> -> vector<4x128xf32>
    %96 = arith.addf %91, %95 : vector<4x128xf32>
    %c0_79 = arith.constant 0 : index
    %c0_80 = arith.constant 0 : index
    %97 = vector.load %arg3[%c0_79, %c0_80] : memref<1x128xf32, #tpu.memory_space<vmem>>, vector<1x128xf32>
    %98 = vector.broadcast %97 : vector<1x128xf32> to vector<4x128xf32>
    %99 = arith.mulf %96, %98 : vector<4x128xf32>
    %c0_81 = arith.constant 0 : index
    %c0_82 = arith.constant 0 : index
    %100 = vector.load %arg4[%c0_81, %c0_82] : memref<1x128xf32, #tpu.memory_space<vmem>>, vector<1x128xf32>
    %101 = vector.broadcast %100 : vector<1x128xf32> to vector<4x128xf32>
    %102 = arith.addf %99, %101 : vector<4x128xf32>
    %103 = arith.subf %102, %73 : vector<4x128xf32>
    %cst_83 = arith.constant 5.000000e-01 : f32
    %104 = vector.broadcast %cst_83 : f32 to vector<4x128xf32>
    %105 = arith.mulf %103, %104 : vector<4x128xf32>
    %106 = arith.addf %73, %105 : vector<4x128xf32>
    %cst_84 = arith.constant 1.000000e+00 : f32
    %107 = vector.broadcast %cst_84 : f32 to vector<4x128xf32>
    %108 = arith.cmpf oge, %106, %107 : vector<4x128xf32>
    %109 = arith.extui %108 : vector<4x128xi1> to vector<4x128xi32>
    %110 = arith.sitofp %109 : vector<4x128xi32> to vector<4x128xf32>
    %cst_85 = arith.constant 1.000000e+00 : f32
    %111 = vector.broadcast %cst_85 : f32 to vector<4x128xf32>
    %112 = arith.subf %111, %110 : vector<4x128xf32>
    %113 = arith.mulf %106, %112 : vector<4x128xf32>
    %c0_86 = arith.constant 0 : index
    %c0_87 = arith.constant 0 : index
    %114 = vector.load %arg5[%c0_86, %c0_87] : memref<2x4xf32, #tpu.memory_space<vmem>>, vector<2x4xf32>
    %cst_88 = arith.constant dense<0.000000e+00> : vector<2x128xf32>
    %115 = tpu.matmul %114, %110, %cst_88 {dimension_numbers = #tpu.dot_dimension_numbers<[1], [0], [0], [1], [0, 0, 1, 1], [], []>} : vector<2x4xf32>, vector<4x128xf32>, vector<2x128xf32> -> vector<2x128xf32>
    %c0_89 = arith.constant 0 : index
    %c0_90 = arith.constant 0 : index
    %116 = vector.load %arg6[%c0_89, %c0_90] : memref<128x64xf32, #tpu.memory_space<vmem>>, vector<128x64xf32>
    %cst_91 = arith.constant dense<0.000000e+00> : vector<2x64xf32>
    %117 = tpu.matmul %115, %116, %cst_91 {dimension_numbers = #tpu.dot_dimension_numbers<[1], [0], [0], [1], [0, 0, 1, 1], [], []>} : vector<2x128xf32>, vector<128x64xf32>, vector<2x64xf32> -> vector<2x64xf32>
    %c0_92 = arith.constant 0 : index
    %c2_93 = arith.constant 2 : index
    %c0_94 = arith.constant 0 : index
    %c0_95 = arith.constant 0 : index
    %118 = vector.load %arg7[%c0_92, %c2_93, %c0_94, %c0_95] : memref<1x4x2x64xf32, #tpu.memory_space<vmem>>, vector<1x1x2x64xf32>
    %119 = vector.shape_cast %118 : vector<1x1x2x64xf32> to vector<2x64xf32>
    %120 = vector.shape_cast %117 : vector<2x64xf32> to vector<1x1x2x64xf32>
    tpu.vector_store %arg7[%c0_92, %c2_93, %c0_94, %c0_95], %120 {strides = array<i32>} : memref<1x4x2x64xf32, #tpu.memory_space<vmem>>, vector<1x1x2x64xf32>,
    %c0_96 = arith.constant 0 : index
    %c3 = arith.constant 3 : index
    %c0_97 = arith.constant 0 : index
    %c0_98 = arith.constant 0 : index
    %121 = vector.load %arg1[%c0_96, %c3, %c0_97, %c0_98] : memref<1x4x6x96xf32, #tpu.memory_space<vmem>>, vector<1x1x6x96xf32>
    %122 = vector.shape_cast %121 : vector<1x1x6x96xf32> to vector<6x96xf32>
    %123 = vector.extract_strided_slice %122 {offsets = [0, 0], sizes = [4, 96], strides = [1, 1]} : vector<6x96xf32> to vector<4x96xf32>
    %c0_99 = arith.constant 0 : index
    %c0_100 = arith.constant 0 : index
    %c0_101 = arith.constant 0 : index
    %124 = vector.load %arg2[%c0_99, %c0_100, %c0_101] : memref<3x96x128xf32, #tpu.memory_space<vmem>>, vector<1x96x128xf32>
    %125 = vector.shape_cast %124 : vector<1x96x128xf32> to vector<96x128xf32>
    %cst_102 = arith.constant dense<0.000000e+00> : vector<4x128xf32>
    %126 = tpu.matmul %123, %125, %cst_102 {dimension_numbers = #tpu.dot_dimension_numbers<[1], [0], [0], [1], [0, 0, 1, 1], [], []>} : vector<4x96xf32>, vector<96x128xf32>, vector<4x128xf32> -> vector<4x128xf32>
    %127 = vector.extract_strided_slice %122 {offsets = [1, 0], sizes = [4, 96], strides = [1, 1]} : vector<6x96xf32> to vector<4x96xf32>
    %c1_103 = arith.constant 1 : index
    %c0_104 = arith.constant 0 : index
    %c0_105 = arith.constant 0 : index
    %128 = vector.load %arg2[%c1_103, %c0_104, %c0_105] : memref<3x96x128xf32, #tpu.memory_space<vmem>>, vector<1x96x128xf32>
    %129 = vector.shape_cast %128 : vector<1x96x128xf32> to vector<96x128xf32>
    %cst_106 = arith.constant dense<0.000000e+00> : vector<4x128xf32>
    %130 = tpu.matmul %127, %129, %cst_106 {dimension_numbers = #tpu.dot_dimension_numbers<[1], [0], [0], [1], [0, 0, 1, 1], [], []>} : vector<4x96xf32>, vector<96x128xf32>, vector<4x128xf32> -> vector<4x128xf32>
    %131 = arith.addf %126, %130 : vector<4x128xf32>
    %132 = vector.extract_strided_slice %122 {offsets = [2, 0], sizes = [4, 96], strides = [1, 1]} : vector<6x96xf32> to vector<4x96xf32>
    %c2_107 = arith.constant 2 : index
    %c0_108 = arith.constant 0 : index
    %c0_109 = arith.constant 0 : index
    %133 = vector.load %arg2[%c2_107, %c0_108, %c0_109] : memref<3x96x128xf32, #tpu.memory_space<vmem>>, vector<1x96x128xf32>
    %134 = vector.shape_cast %133 : vector<1x96x128xf32> to vector<96x128xf32>
    %cst_110 = arith.constant dense<0.000000e+00> : vector<4x128xf32>
    %135 = tpu.matmul %132, %134, %cst_110 {dimension_numbers = #tpu.dot_dimension_numbers<[1], [0], [0], [1], [0, 0, 1, 1], [], []>} : vector<4x96xf32>, vector<96x128xf32>, vector<4x128xf32> -> vector<4x128xf32>
    %136 = arith.addf %131, %135 : vector<4x128xf32>
    %c0_111 = arith.constant 0 : index
    %c0_112 = arith.constant 0 : index
    %137 = vector.load %arg3[%c0_111, %c0_112] : memref<1x128xf32, #tpu.memory_space<vmem>>, vector<1x128xf32>
    %138 = vector.broadcast %137 : vector<1x128xf32> to vector<4x128xf32>
    %139 = arith.mulf %136, %138 : vector<4x128xf32>
    %c0_113 = arith.constant 0 : index
    %c0_114 = arith.constant 0 : index
    %140 = vector.load %arg4[%c0_113, %c0_114] : memref<1x128xf32, #tpu.memory_space<vmem>>, vector<1x128xf32>
    %141 = vector.broadcast %140 : vector<1x128xf32> to vector<4x128xf32>
    %142 = arith.addf %139, %141 : vector<4x128xf32>
    %143 = arith.subf %142, %113 : vector<4x128xf32>
    %cst_115 = arith.constant 5.000000e-01 : f32
    %144 = vector.broadcast %cst_115 : f32 to vector<4x128xf32>
    %145 = arith.mulf %143, %144 : vector<4x128xf32>
    %146 = arith.addf %113, %145 : vector<4x128xf32>
    %cst_116 = arith.constant 1.000000e+00 : f32
    %147 = vector.broadcast %cst_116 : f32 to vector<4x128xf32>
    %148 = arith.cmpf oge, %146, %147 : vector<4x128xf32>
    %149 = arith.extui %148 : vector<4x128xi1> to vector<4x128xi32>
    %150 = arith.sitofp %149 : vector<4x128xi32> to vector<4x128xf32>
    %c0_117 = arith.constant 0 : index
    %c0_118 = arith.constant 0 : index
    %151 = vector.load %arg5[%c0_117, %c0_118] : memref<2x4xf32, #tpu.memory_space<vmem>>, vector<2x4xf32>
    %cst_119 = arith.constant dense<0.000000e+00> : vector<2x128xf32>
    %152 = tpu.matmul %151, %150, %cst_119 {dimension_numbers = #tpu.dot_dimension_numbers<[1], [0], [0], [1], [0, 0, 1, 1], [], []>} : vector<2x4xf32>, vector<4x128xf32>, vector<2x128xf32> -> vector<2x128xf32>
    %c0_120 = arith.constant 0 : index
    %c0_121 = arith.constant 0 : index
    %153 = vector.load %arg6[%c0_120, %c0_121] : memref<128x64xf32, #tpu.memory_space<vmem>>, vector<128x64xf32>
    %cst_122 = arith.constant dense<0.000000e+00> : vector<2x64xf32>
    %154 = tpu.matmul %152, %153, %cst_122 {dimension_numbers = #tpu.dot_dimension_numbers<[1], [0], [0], [1], [0, 0, 1, 1], [], []>} : vector<2x128xf32>, vector<128x64xf32>, vector<2x64xf32> -> vector<2x64xf32>
    %c0_123 = arith.constant 0 : index
    %c3_124 = arith.constant 3 : index
    %c0_125 = arith.constant 0 : index
    %c0_126 = arith.constant 0 : index
    %155 = vector.load %arg7[%c0_123, %c3_124, %c0_125, %c0_126] : memref<1x4x2x64xf32, #tpu.memory_space<vmem>>, vector<1x1x2x64xf32>
    %156 = vector.shape_cast %155 : vector<1x1x2x64xf32> to vector<2x64xf32>
    %157 = vector.shape_cast %154 : vector<2x64xf32> to vector<1x1x2x64xf32>
    tpu.vector_store %arg7[%c0_123, %c3_124, %c0_125, %c0_126], %157 {strides = array<i32>} : memref<1x4x2x64xf32, #tpu.memory_space<vmem>>, vector<1x1x2x64xf32>,
    return
  }
  func.func @transform_0(%arg0: i32) -> (i32, i32, i32, i32) {
    %c0_i32 = arith.constant 0 : i32
    %c0_i32_0 = arith.constant 0 : i32
    %c0_i32_1 = arith.constant 0 : i32
    %c0_i32_2 = arith.constant 0 : i32
    return %arg0, %c0_i32, %c0_i32_0, %c0_i32_1 : i32, i32, i32, i32
  }
  func.func @transform_1(%arg0: i32) -> (i32, i32, i32) {
    %c0_i32 = arith.constant 0 : i32
    %c0_i32_0 = arith.constant 0 : i32
    %c0_i32_1 = arith.constant 0 : i32
    %c0_i32_2 = arith.constant 0 : i32
    return %c0_i32, %c0_i32_0, %c0_i32_1 : i32, i32, i32
  }
  func.func @transform_2(%arg0: i32) -> (i32, i32) {
    %c0_i32 = arith.constant 0 : i32
    %c0_i32_0 = arith.constant 0 : i32
    %c0_i32_1 = arith.constant 0 : i32
    return %c0_i32, %c0_i32_0 : i32, i32
  }
  func.func @transform_3(%arg0: i32) -> (i32, i32) {
    %c0_i32 = arith.constant 0 : i32
    %c0_i32_0 = arith.constant 0 : i32
    %c0_i32_1 = arith.constant 0 : i32
    return %c0_i32, %c0_i32_0 : i32, i32
  }
  func.func @transform_4(%arg0: i32) -> (i32, i32) {
    %c0_i32 = arith.constant 0 : i32
    %c0_i32_0 = arith.constant 0 : i32
    %c0_i32_1 = arith.constant 0 : i32
    return %c0_i32, %c0_i32_0 : i32, i32
  }
  func.func @transform_5(%arg0: i32) -> (i32, i32) {
    %c0_i32 = arith.constant 0 : i32
    %c0_i32_0 = arith.constant 0 : i32
    %c0_i32_1 = arith.constant 0 : i32
    return %c0_i32, %c0_i32_0 : i32, i32
  }
  func.func @transform_6(%arg0: i32) -> (i32, i32, i32, i32) {
    %c0_i32 = arith.constant 0 : i32
    %c0_i32_0 = arith.constant 0 : i32
    %c0_i32_1 = arith.constant 0 : i32
    %c0_i32_2 = arith.constant 0 : i32
    return %arg0, %c0_i32, %c0_i32_0, %c0_i32_1 : i32, i32, i32, i32
  }
}

module attributes {stable_mosaic.version = 11 : i64} {
  func.func @_sps_rpe_kernel(%arg0: i32, %arg1: memref<1x4x4x128xf32, #tpu.memory_space<vmem>>, %arg2: memref<1x4x2x64xf32, #tpu.memory_space<vmem>>, %arg3: memref<3x128x64xf32, #tpu.memory_space<vmem>>, %arg4: memref<1x64xf32, #tpu.memory_space<vmem>>, %arg5: memref<1x64xf32, #tpu.memory_space<vmem>>, %arg6: memref<1x2x64xf32, #tpu.memory_space<vmem>>) attributes {dimension_semantics = [#tpu.dimension_semantics<parallel>], iteration_bounds = array<i64: 2>, scalar_prefetch = 0 : i64, scratch_operands = 0 : i64, tpu.core_type = #tpu.core_type<tc>, window_params = [{transform_indices = @transform_0, window_bounds = array<i64: 1, 4, 4, 128>}, {transform_indices = @transform_1, window_bounds = array<i64: 1, 4, 2, 64>}, {pipeline_mode = #tpu.pipeline_mode<synchronous>, transform_indices = @transform_2, window_bounds = array<i64: 3, 128, 64>}, {pipeline_mode = #tpu.pipeline_mode<synchronous>, transform_indices = @transform_3, window_bounds = array<i64: 1, 64>}, {pipeline_mode = #tpu.pipeline_mode<synchronous>, transform_indices = @transform_4, window_bounds = array<i64: 1, 64>}, {transform_indices = @transform_5, window_bounds = array<i64: 1, 2, 64>}]} {
    %cst = arith.constant 0.000000e+00 : f32
    %0 = vector.broadcast %cst : f32 to vector<2x64xf32>
    %cst_0 = arith.constant 0.000000e+00 : f32
    %1 = vector.broadcast %cst_0 : f32 to vector<2x64xf32>
    %c0 = arith.constant 0 : index
    %c0_1 = arith.constant 0 : index
    %c0_2 = arith.constant 0 : index
    %c0_3 = arith.constant 0 : index
    %2 = vector.load %arg1[%c0, %c0_1, %c0_2, %c0_3] : memref<1x4x4x128xf32, #tpu.memory_space<vmem>>, vector<1x1x4x128xf32>
    %3 = vector.shape_cast %2 : vector<1x1x4x128xf32> to vector<4x128xf32>
    %4 = vector.extract_strided_slice %3 {offsets = [0, 0], sizes = [2, 128], strides = [1, 1]} : vector<4x128xf32> to vector<2x128xf32>
    %c0_4 = arith.constant 0 : index
    %c0_5 = arith.constant 0 : index
    %c0_6 = arith.constant 0 : index
    %5 = vector.load %arg3[%c0_4, %c0_5, %c0_6] : memref<3x128x64xf32, #tpu.memory_space<vmem>>, vector<1x128x64xf32>
    %6 = vector.shape_cast %5 : vector<1x128x64xf32> to vector<128x64xf32>
    %cst_7 = arith.constant dense<0.000000e+00> : vector<2x64xf32>
    %7 = tpu.matmul %4, %6, %cst_7 {dimension_numbers = #tpu.dot_dimension_numbers<[1], [0], [0], [1], [0, 0, 1, 1], [], []>} : vector<2x128xf32>, vector<128x64xf32>, vector<2x64xf32> -> vector<2x64xf32>
    %8 = vector.extract_strided_slice %3 {offsets = [1, 0], sizes = [2, 128], strides = [1, 1]} : vector<4x128xf32> to vector<2x128xf32>
    %c1 = arith.constant 1 : index
    %c0_8 = arith.constant 0 : index
    %c0_9 = arith.constant 0 : index
    %9 = vector.load %arg3[%c1, %c0_8, %c0_9] : memref<3x128x64xf32, #tpu.memory_space<vmem>>, vector<1x128x64xf32>
    %10 = vector.shape_cast %9 : vector<1x128x64xf32> to vector<128x64xf32>
    %cst_10 = arith.constant dense<0.000000e+00> : vector<2x64xf32>
    %11 = tpu.matmul %8, %10, %cst_10 {dimension_numbers = #tpu.dot_dimension_numbers<[1], [0], [0], [1], [0, 0, 1, 1], [], []>} : vector<2x128xf32>, vector<128x64xf32>, vector<2x64xf32> -> vector<2x64xf32>
    %12 = arith.addf %7, %11 : vector<2x64xf32>
    %13 = vector.extract_strided_slice %3 {offsets = [2, 0], sizes = [2, 128], strides = [1, 1]} : vector<4x128xf32> to vector<2x128xf32>
    %c2 = arith.constant 2 : index
    %c0_11 = arith.constant 0 : index
    %c0_12 = arith.constant 0 : index
    %14 = vector.load %arg3[%c2, %c0_11, %c0_12] : memref<3x128x64xf32, #tpu.memory_space<vmem>>, vector<1x128x64xf32>
    %15 = vector.shape_cast %14 : vector<1x128x64xf32> to vector<128x64xf32>
    %cst_13 = arith.constant dense<0.000000e+00> : vector<2x64xf32>
    %16 = tpu.matmul %13, %15, %cst_13 {dimension_numbers = #tpu.dot_dimension_numbers<[1], [0], [0], [1], [0, 0, 1, 1], [], []>} : vector<2x128xf32>, vector<128x64xf32>, vector<2x64xf32> -> vector<2x64xf32>
    %17 = arith.addf %12, %16 : vector<2x64xf32>
    %c0_14 = arith.constant 0 : index
    %c0_15 = arith.constant 0 : index
    %18 = vector.load %arg4[%c0_14, %c0_15] : memref<1x64xf32, #tpu.memory_space<vmem>>, vector<1x64xf32>
    %19 = vector.broadcast %18 : vector<1x64xf32> to vector<2x64xf32>
    %20 = arith.mulf %17, %19 : vector<2x64xf32>
    %c0_16 = arith.constant 0 : index
    %c0_17 = arith.constant 0 : index
    %21 = vector.load %arg5[%c0_16, %c0_17] : memref<1x64xf32, #tpu.memory_space<vmem>>, vector<1x64xf32>
    %22 = vector.broadcast %21 : vector<1x64xf32> to vector<2x64xf32>
    %23 = arith.addf %20, %22 : vector<2x64xf32>
    %24 = arith.subf %23, %0 : vector<2x64xf32>
    %cst_18 = arith.constant 5.000000e-01 : f32
    %25 = vector.broadcast %cst_18 : f32 to vector<2x64xf32>
    %26 = arith.mulf %24, %25 : vector<2x64xf32>
    %27 = arith.addf %0, %26 : vector<2x64xf32>
    %cst_19 = arith.constant 1.000000e+00 : f32
    %28 = vector.broadcast %cst_19 : f32 to vector<2x64xf32>
    %29 = arith.cmpf oge, %27, %28 : vector<2x64xf32>
    %30 = arith.extui %29 : vector<2x64xi1> to vector<2x64xi32>
    %31 = arith.sitofp %30 : vector<2x64xi32> to vector<2x64xf32>
    %cst_20 = arith.constant 1.000000e+00 : f32
    %32 = vector.broadcast %cst_20 : f32 to vector<2x64xf32>
    %33 = arith.subf %32, %31 : vector<2x64xf32>
    %34 = arith.mulf %27, %33 : vector<2x64xf32>
    %35 = arith.addf %1, %31 : vector<2x64xf32>
    %c0_21 = arith.constant 0 : index
    %c0_22 = arith.constant 0 : index
    %c0_23 = arith.constant 0 : index
    %c0_24 = arith.constant 0 : index
    %36 = vector.load %arg2[%c0_21, %c0_22, %c0_23, %c0_24] : memref<1x4x2x64xf32, #tpu.memory_space<vmem>>, vector<1x1x2x64xf32>
    %37 = vector.shape_cast %36 : vector<1x1x2x64xf32> to vector<2x64xf32>
    %38 = arith.addf %35, %37 : vector<2x64xf32>
    %c0_25 = arith.constant 0 : index
    %c1_26 = arith.constant 1 : index
    %c0_27 = arith.constant 0 : index
    %c0_28 = arith.constant 0 : index
    %39 = vector.load %arg1[%c0_25, %c1_26, %c0_27, %c0_28] : memref<1x4x4x128xf32, #tpu.memory_space<vmem>>, vector<1x1x4x128xf32>
    %40 = vector.shape_cast %39 : vector<1x1x4x128xf32> to vector<4x128xf32>
    %41 = vector.extract_strided_slice %40 {offsets = [0, 0], sizes = [2, 128], strides = [1, 1]} : vector<4x128xf32> to vector<2x128xf32>
    %c0_29 = arith.constant 0 : index
    %c0_30 = arith.constant 0 : index
    %c0_31 = arith.constant 0 : index
    %42 = vector.load %arg3[%c0_29, %c0_30, %c0_31] : memref<3x128x64xf32, #tpu.memory_space<vmem>>, vector<1x128x64xf32>
    %43 = vector.shape_cast %42 : vector<1x128x64xf32> to vector<128x64xf32>
    %cst_32 = arith.constant dense<0.000000e+00> : vector<2x64xf32>
    %44 = tpu.matmul %41, %43, %cst_32 {dimension_numbers = #tpu.dot_dimension_numbers<[1], [0], [0], [1], [0, 0, 1, 1], [], []>} : vector<2x128xf32>, vector<128x64xf32>, vector<2x64xf32> -> vector<2x64xf32>
    %45 = vector.extract_strided_slice %40 {offsets = [1, 0], sizes = [2, 128], strides = [1, 1]} : vector<4x128xf32> to vector<2x128xf32>
    %c1_33 = arith.constant 1 : index
    %c0_34 = arith.constant 0 : index
    %c0_35 = arith.constant 0 : index
    %46 = vector.load %arg3[%c1_33, %c0_34, %c0_35] : memref<3x128x64xf32, #tpu.memory_space<vmem>>, vector<1x128x64xf32>
    %47 = vector.shape_cast %46 : vector<1x128x64xf32> to vector<128x64xf32>
    %cst_36 = arith.constant dense<0.000000e+00> : vector<2x64xf32>
    %48 = tpu.matmul %45, %47, %cst_36 {dimension_numbers = #tpu.dot_dimension_numbers<[1], [0], [0], [1], [0, 0, 1, 1], [], []>} : vector<2x128xf32>, vector<128x64xf32>, vector<2x64xf32> -> vector<2x64xf32>
    %49 = arith.addf %44, %48 : vector<2x64xf32>
    %50 = vector.extract_strided_slice %40 {offsets = [2, 0], sizes = [2, 128], strides = [1, 1]} : vector<4x128xf32> to vector<2x128xf32>
    %c2_37 = arith.constant 2 : index
    %c0_38 = arith.constant 0 : index
    %c0_39 = arith.constant 0 : index
    %51 = vector.load %arg3[%c2_37, %c0_38, %c0_39] : memref<3x128x64xf32, #tpu.memory_space<vmem>>, vector<1x128x64xf32>
    %52 = vector.shape_cast %51 : vector<1x128x64xf32> to vector<128x64xf32>
    %cst_40 = arith.constant dense<0.000000e+00> : vector<2x64xf32>
    %53 = tpu.matmul %50, %52, %cst_40 {dimension_numbers = #tpu.dot_dimension_numbers<[1], [0], [0], [1], [0, 0, 1, 1], [], []>} : vector<2x128xf32>, vector<128x64xf32>, vector<2x64xf32> -> vector<2x64xf32>
    %54 = arith.addf %49, %53 : vector<2x64xf32>
    %c0_41 = arith.constant 0 : index
    %c0_42 = arith.constant 0 : index
    %55 = vector.load %arg4[%c0_41, %c0_42] : memref<1x64xf32, #tpu.memory_space<vmem>>, vector<1x64xf32>
    %56 = vector.broadcast %55 : vector<1x64xf32> to vector<2x64xf32>
    %57 = arith.mulf %54, %56 : vector<2x64xf32>
    %c0_43 = arith.constant 0 : index
    %c0_44 = arith.constant 0 : index
    %58 = vector.load %arg5[%c0_43, %c0_44] : memref<1x64xf32, #tpu.memory_space<vmem>>, vector<1x64xf32>
    %59 = vector.broadcast %58 : vector<1x64xf32> to vector<2x64xf32>
    %60 = arith.addf %57, %59 : vector<2x64xf32>
    %61 = arith.subf %60, %34 : vector<2x64xf32>
    %cst_45 = arith.constant 5.000000e-01 : f32
    %62 = vector.broadcast %cst_45 : f32 to vector<2x64xf32>
    %63 = arith.mulf %61, %62 : vector<2x64xf32>
    %64 = arith.addf %34, %63 : vector<2x64xf32>
    %cst_46 = arith.constant 1.000000e+00 : f32
    %65 = vector.broadcast %cst_46 : f32 to vector<2x64xf32>
    %66 = arith.cmpf oge, %64, %65 : vector<2x64xf32>
    %67 = arith.extui %66 : vector<2x64xi1> to vector<2x64xi32>
    %68 = arith.sitofp %67 : vector<2x64xi32> to vector<2x64xf32>
    %cst_47 = arith.constant 1.000000e+00 : f32
    %69 = vector.broadcast %cst_47 : f32 to vector<2x64xf32>
    %70 = arith.subf %69, %68 : vector<2x64xf32>
    %71 = arith.mulf %64, %70 : vector<2x64xf32>
    %72 = arith.addf %38, %68 : vector<2x64xf32>
    %c0_48 = arith.constant 0 : index
    %c1_49 = arith.constant 1 : index
    %c0_50 = arith.constant 0 : index
    %c0_51 = arith.constant 0 : index
    %73 = vector.load %arg2[%c0_48, %c1_49, %c0_50, %c0_51] : memref<1x4x2x64xf32, #tpu.memory_space<vmem>>, vector<1x1x2x64xf32>
    %74 = vector.shape_cast %73 : vector<1x1x2x64xf32> to vector<2x64xf32>
    %75 = arith.addf %72, %74 : vector<2x64xf32>
    %c0_52 = arith.constant 0 : index
    %c2_53 = arith.constant 2 : index
    %c0_54 = arith.constant 0 : index
    %c0_55 = arith.constant 0 : index
    %76 = vector.load %arg1[%c0_52, %c2_53, %c0_54, %c0_55] : memref<1x4x4x128xf32, #tpu.memory_space<vmem>>, vector<1x1x4x128xf32>
    %77 = vector.shape_cast %76 : vector<1x1x4x128xf32> to vector<4x128xf32>
    %78 = vector.extract_strided_slice %77 {offsets = [0, 0], sizes = [2, 128], strides = [1, 1]} : vector<4x128xf32> to vector<2x128xf32>
    %c0_56 = arith.constant 0 : index
    %c0_57 = arith.constant 0 : index
    %c0_58 = arith.constant 0 : index
    %79 = vector.load %arg3[%c0_56, %c0_57, %c0_58] : memref<3x128x64xf32, #tpu.memory_space<vmem>>, vector<1x128x64xf32>
    %80 = vector.shape_cast %79 : vector<1x128x64xf32> to vector<128x64xf32>
    %cst_59 = arith.constant dense<0.000000e+00> : vector<2x64xf32>
    %81 = tpu.matmul %78, %80, %cst_59 {dimension_numbers = #tpu.dot_dimension_numbers<[1], [0], [0], [1], [0, 0, 1, 1], [], []>} : vector<2x128xf32>, vector<128x64xf32>, vector<2x64xf32> -> vector<2x64xf32>
    %82 = vector.extract_strided_slice %77 {offsets = [1, 0], sizes = [2, 128], strides = [1, 1]} : vector<4x128xf32> to vector<2x128xf32>
    %c1_60 = arith.constant 1 : index
    %c0_61 = arith.constant 0 : index
    %c0_62 = arith.constant 0 : index
    %83 = vector.load %arg3[%c1_60, %c0_61, %c0_62] : memref<3x128x64xf32, #tpu.memory_space<vmem>>, vector<1x128x64xf32>
    %84 = vector.shape_cast %83 : vector<1x128x64xf32> to vector<128x64xf32>
    %cst_63 = arith.constant dense<0.000000e+00> : vector<2x64xf32>
    %85 = tpu.matmul %82, %84, %cst_63 {dimension_numbers = #tpu.dot_dimension_numbers<[1], [0], [0], [1], [0, 0, 1, 1], [], []>} : vector<2x128xf32>, vector<128x64xf32>, vector<2x64xf32> -> vector<2x64xf32>
    %86 = arith.addf %81, %85 : vector<2x64xf32>
    %87 = vector.extract_strided_slice %77 {offsets = [2, 0], sizes = [2, 128], strides = [1, 1]} : vector<4x128xf32> to vector<2x128xf32>
    %c2_64 = arith.constant 2 : index
    %c0_65 = arith.constant 0 : index
    %c0_66 = arith.constant 0 : index
    %88 = vector.load %arg3[%c2_64, %c0_65, %c0_66] : memref<3x128x64xf32, #tpu.memory_space<vmem>>, vector<1x128x64xf32>
    %89 = vector.shape_cast %88 : vector<1x128x64xf32> to vector<128x64xf32>
    %cst_67 = arith.constant dense<0.000000e+00> : vector<2x64xf32>
    %90 = tpu.matmul %87, %89, %cst_67 {dimension_numbers = #tpu.dot_dimension_numbers<[1], [0], [0], [1], [0, 0, 1, 1], [], []>} : vector<2x128xf32>, vector<128x64xf32>, vector<2x64xf32> -> vector<2x64xf32>
    %91 = arith.addf %86, %90 : vector<2x64xf32>
    %c0_68 = arith.constant 0 : index
    %c0_69 = arith.constant 0 : index
    %92 = vector.load %arg4[%c0_68, %c0_69] : memref<1x64xf32, #tpu.memory_space<vmem>>, vector<1x64xf32>
    %93 = vector.broadcast %92 : vector<1x64xf32> to vector<2x64xf32>
    %94 = arith.mulf %91, %93 : vector<2x64xf32>
    %c0_70 = arith.constant 0 : index
    %c0_71 = arith.constant 0 : index
    %95 = vector.load %arg5[%c0_70, %c0_71] : memref<1x64xf32, #tpu.memory_space<vmem>>, vector<1x64xf32>
    %96 = vector.broadcast %95 : vector<1x64xf32> to vector<2x64xf32>
    %97 = arith.addf %94, %96 : vector<2x64xf32>
    %98 = arith.subf %97, %71 : vector<2x64xf32>
    %cst_72 = arith.constant 5.000000e-01 : f32
    %99 = vector.broadcast %cst_72 : f32 to vector<2x64xf32>
    %100 = arith.mulf %98, %99 : vector<2x64xf32>
    %101 = arith.addf %71, %100 : vector<2x64xf32>
    %cst_73 = arith.constant 1.000000e+00 : f32
    %102 = vector.broadcast %cst_73 : f32 to vector<2x64xf32>
    %103 = arith.cmpf oge, %101, %102 : vector<2x64xf32>
    %104 = arith.extui %103 : vector<2x64xi1> to vector<2x64xi32>
    %105 = arith.sitofp %104 : vector<2x64xi32> to vector<2x64xf32>
    %cst_74 = arith.constant 1.000000e+00 : f32
    %106 = vector.broadcast %cst_74 : f32 to vector<2x64xf32>
    %107 = arith.subf %106, %105 : vector<2x64xf32>
    %108 = arith.mulf %101, %107 : vector<2x64xf32>
    %109 = arith.addf %75, %105 : vector<2x64xf32>
    %c0_75 = arith.constant 0 : index
    %c2_76 = arith.constant 2 : index
    %c0_77 = arith.constant 0 : index
    %c0_78 = arith.constant 0 : index
    %110 = vector.load %arg2[%c0_75, %c2_76, %c0_77, %c0_78] : memref<1x4x2x64xf32, #tpu.memory_space<vmem>>, vector<1x1x2x64xf32>
    %111 = vector.shape_cast %110 : vector<1x1x2x64xf32> to vector<2x64xf32>
    %112 = arith.addf %109, %111 : vector<2x64xf32>
    %c0_79 = arith.constant 0 : index
    %c3 = arith.constant 3 : index
    %c0_80 = arith.constant 0 : index
    %c0_81 = arith.constant 0 : index
    %113 = vector.load %arg1[%c0_79, %c3, %c0_80, %c0_81] : memref<1x4x4x128xf32, #tpu.memory_space<vmem>>, vector<1x1x4x128xf32>
    %114 = vector.shape_cast %113 : vector<1x1x4x128xf32> to vector<4x128xf32>
    %115 = vector.extract_strided_slice %114 {offsets = [0, 0], sizes = [2, 128], strides = [1, 1]} : vector<4x128xf32> to vector<2x128xf32>
    %c0_82 = arith.constant 0 : index
    %c0_83 = arith.constant 0 : index
    %c0_84 = arith.constant 0 : index
    %116 = vector.load %arg3[%c0_82, %c0_83, %c0_84] : memref<3x128x64xf32, #tpu.memory_space<vmem>>, vector<1x128x64xf32>
    %117 = vector.shape_cast %116 : vector<1x128x64xf32> to vector<128x64xf32>
    %cst_85 = arith.constant dense<0.000000e+00> : vector<2x64xf32>
    %118 = tpu.matmul %115, %117, %cst_85 {dimension_numbers = #tpu.dot_dimension_numbers<[1], [0], [0], [1], [0, 0, 1, 1], [], []>} : vector<2x128xf32>, vector<128x64xf32>, vector<2x64xf32> -> vector<2x64xf32>
    %119 = vector.extract_strided_slice %114 {offsets = [1, 0], sizes = [2, 128], strides = [1, 1]} : vector<4x128xf32> to vector<2x128xf32>
    %c1_86 = arith.constant 1 : index
    %c0_87 = arith.constant 0 : index
    %c0_88 = arith.constant 0 : index
    %120 = vector.load %arg3[%c1_86, %c0_87, %c0_88] : memref<3x128x64xf32, #tpu.memory_space<vmem>>, vector<1x128x64xf32>
    %121 = vector.shape_cast %120 : vector<1x128x64xf32> to vector<128x64xf32>
    %cst_89 = arith.constant dense<0.000000e+00> : vector<2x64xf32>
    %122 = tpu.matmul %119, %121, %cst_89 {dimension_numbers = #tpu.dot_dimension_numbers<[1], [0], [0], [1], [0, 0, 1, 1], [], []>} : vector<2x128xf32>, vector<128x64xf32>, vector<2x64xf32> -> vector<2x64xf32>
    %123 = arith.addf %118, %122 : vector<2x64xf32>
    %124 = vector.extract_strided_slice %114 {offsets = [2, 0], sizes = [2, 128], strides = [1, 1]} : vector<4x128xf32> to vector<2x128xf32>
    %c2_90 = arith.constant 2 : index
    %c0_91 = arith.constant 0 : index
    %c0_92 = arith.constant 0 : index
    %125 = vector.load %arg3[%c2_90, %c0_91, %c0_92] : memref<3x128x64xf32, #tpu.memory_space<vmem>>, vector<1x128x64xf32>
    %126 = vector.shape_cast %125 : vector<1x128x64xf32> to vector<128x64xf32>
    %cst_93 = arith.constant dense<0.000000e+00> : vector<2x64xf32>
    %127 = tpu.matmul %124, %126, %cst_93 {dimension_numbers = #tpu.dot_dimension_numbers<[1], [0], [0], [1], [0, 0, 1, 1], [], []>} : vector<2x128xf32>, vector<128x64xf32>, vector<2x64xf32> -> vector<2x64xf32>
    %128 = arith.addf %123, %127 : vector<2x64xf32>
    %c0_94 = arith.constant 0 : index
    %c0_95 = arith.constant 0 : index
    %129 = vector.load %arg4[%c0_94, %c0_95] : memref<1x64xf32, #tpu.memory_space<vmem>>, vector<1x64xf32>
    %130 = vector.broadcast %129 : vector<1x64xf32> to vector<2x64xf32>
    %131 = arith.mulf %128, %130 : vector<2x64xf32>
    %c0_96 = arith.constant 0 : index
    %c0_97 = arith.constant 0 : index
    %132 = vector.load %arg5[%c0_96, %c0_97] : memref<1x64xf32, #tpu.memory_space<vmem>>, vector<1x64xf32>
    %133 = vector.broadcast %132 : vector<1x64xf32> to vector<2x64xf32>
    %134 = arith.addf %131, %133 : vector<2x64xf32>
    %135 = arith.subf %134, %108 : vector<2x64xf32>
    %cst_98 = arith.constant 5.000000e-01 : f32
    %136 = vector.broadcast %cst_98 : f32 to vector<2x64xf32>
    %137 = arith.mulf %135, %136 : vector<2x64xf32>
    %138 = arith.addf %108, %137 : vector<2x64xf32>
    %cst_99 = arith.constant 1.000000e+00 : f32
    %139 = vector.broadcast %cst_99 : f32 to vector<2x64xf32>
    %140 = arith.cmpf oge, %138, %139 : vector<2x64xf32>
    %141 = arith.extui %140 : vector<2x64xi1> to vector<2x64xi32>
    %142 = arith.sitofp %141 : vector<2x64xi32> to vector<2x64xf32>
    %143 = arith.addf %112, %142 : vector<2x64xf32>
    %c0_100 = arith.constant 0 : index
    %c3_101 = arith.constant 3 : index
    %c0_102 = arith.constant 0 : index
    %c0_103 = arith.constant 0 : index
    %144 = vector.load %arg2[%c0_100, %c3_101, %c0_102, %c0_103] : memref<1x4x2x64xf32, #tpu.memory_space<vmem>>, vector<1x1x2x64xf32>
    %145 = vector.shape_cast %144 : vector<1x1x2x64xf32> to vector<2x64xf32>
    %146 = arith.addf %143, %145 : vector<2x64xf32>
    %c0_104 = arith.constant 0 : index
    %c0_105 = arith.constant 0 : index
    %c0_106 = arith.constant 0 : index
    %147 = vector.load %arg6[%c0_104, %c0_105, %c0_106] : memref<1x2x64xf32, #tpu.memory_space<vmem>>, vector<1x2x64xf32>
    %148 = vector.shape_cast %147 : vector<1x2x64xf32> to vector<2x64xf32>
    %149 = vector.shape_cast %146 : vector<2x64xf32> to vector<1x2x64xf32>
    tpu.vector_store %arg6[%c0_104, %c0_105, %c0_106], %149 {strides = array<i32>} : memref<1x2x64xf32, #tpu.memory_space<vmem>>, vector<1x2x64xf32>,
    return
  }
  func.func @transform_0(%arg0: i32) -> (i32, i32, i32, i32) {
    %c0_i32 = arith.constant 0 : i32
    %c0_i32_0 = arith.constant 0 : i32
    %c0_i32_1 = arith.constant 0 : i32
    %c0_i32_2 = arith.constant 0 : i32
    return %arg0, %c0_i32, %c0_i32_0, %c0_i32_1 : i32, i32, i32, i32
  }
  func.func @transform_1(%arg0: i32) -> (i32, i32, i32, i32) {
    %c0_i32 = arith.constant 0 : i32
    %c0_i32_0 = arith.constant 0 : i32
    %c0_i32_1 = arith.constant 0 : i32
    %c0_i32_2 = arith.constant 0 : i32
    return %arg0, %c0_i32, %c0_i32_0, %c0_i32_1 : i32, i32, i32, i32
  }
  func.func @transform_2(%arg0: i32) -> (i32, i32, i32) {
    %c0_i32 = arith.constant 0 : i32
    %c0_i32_0 = arith.constant 0 : i32
    %c0_i32_1 = arith.constant 0 : i32
    %c0_i32_2 = arith.constant 0 : i32
    return %c0_i32, %c0_i32_0, %c0_i32_1 : i32, i32, i32
  }
  func.func @transform_3(%arg0: i32) -> (i32, i32) {
    %c0_i32 = arith.constant 0 : i32
    %c0_i32_0 = arith.constant 0 : i32
    %c0_i32_1 = arith.constant 0 : i32
    return %c0_i32, %c0_i32_0 : i32, i32
  }
  func.func @transform_4(%arg0: i32) -> (i32, i32) {
    %c0_i32 = arith.constant 0 : i32
    %c0_i32_0 = arith.constant 0 : i32
    %c0_i32_1 = arith.constant 0 : i32
    return %c0_i32, %c0_i32_0 : i32, i32
  }
  func.func @transform_5(%arg0: i32) -> (i32, i32, i32) {
    %c0_i32 = arith.constant 0 : i32
    %c0_i32_0 = arith.constant 0 : i32
    %c0_i32_1 = arith.constant 0 : i32
    return %arg0, %c0_i32, %c0_i32_0 : i32, i32, i32
  }
}

module attributes {stable_mosaic.version = 11 : i64} {
  func.func @_block_kernel(%arg0: i32, %arg1: memref<1x1x4x32xf32, #tpu.memory_space<vmem>>, %arg2: memref<32x384xf32, #tpu.memory_space<vmem>>, %arg3: memref<1x384xf32, #tpu.memory_space<vmem>>, %arg4: memref<1x384xf32, #tpu.memory_space<vmem>>, %arg5: memref<128x32xf32, #tpu.memory_space<vmem>>, %arg6: memref<1x32xf32, #tpu.memory_space<vmem>>, %arg7: memref<1x32xf32, #tpu.memory_space<vmem>>, %arg8: memref<32x256xf32, #tpu.memory_space<vmem>>, %arg9: memref<1x256xf32, #tpu.memory_space<vmem>>, %arg10: memref<1x256xf32, #tpu.memory_space<vmem>>, %arg11: memref<128x32xf32, #tpu.memory_space<vmem>>, %arg12: memref<1x32xf32, #tpu.memory_space<vmem>>, %arg13: memref<1x32xf32, #tpu.memory_space<vmem>>, %arg14: memref<1x1x4x32xf32, #tpu.memory_space<vmem>>) attributes {dimension_semantics = [#tpu.dimension_semantics<parallel>], iteration_bounds = array<i64: 2>, scalar_prefetch = 0 : i64, scratch_operands = 0 : i64, tpu.core_type = #tpu.core_type<tc>, window_params = [{transform_indices = @transform_0, window_bounds = array<i64: 1, 1, 4, 32>}, {pipeline_mode = #tpu.pipeline_mode<synchronous>, transform_indices = @transform_1, window_bounds = array<i64: 32, 384>}, {pipeline_mode = #tpu.pipeline_mode<synchronous>, transform_indices = @transform_2, window_bounds = array<i64: 1, 384>}, {pipeline_mode = #tpu.pipeline_mode<synchronous>, transform_indices = @transform_3, window_bounds = array<i64: 1, 384>}, {pipeline_mode = #tpu.pipeline_mode<synchronous>, transform_indices = @transform_4, window_bounds = array<i64: 128, 32>}, {pipeline_mode = #tpu.pipeline_mode<synchronous>, transform_indices = @transform_5, window_bounds = array<i64: 1, 32>}, {pipeline_mode = #tpu.pipeline_mode<synchronous>, transform_indices = @transform_6, window_bounds = array<i64: 1, 32>}, {pipeline_mode = #tpu.pipeline_mode<synchronous>, transform_indices = @transform_7, window_bounds = array<i64: 32, 256>}, {pipeline_mode = #tpu.pipeline_mode<synchronous>, transform_indices = @transform_8, window_bounds = array<i64: 1, 256>}, {pipeline_mode = #tpu.pipeline_mode<synchronous>, transform_indices = @transform_9, window_bounds = array<i64: 1, 256>}, {pipeline_mode = #tpu.pipeline_mode<synchronous>, transform_indices = @transform_10, window_bounds = array<i64: 128, 32>}, {pipeline_mode = #tpu.pipeline_mode<synchronous>, transform_indices = @transform_11, window_bounds = array<i64: 1, 32>}, {pipeline_mode = #tpu.pipeline_mode<synchronous>, transform_indices = @transform_12, window_bounds = array<i64: 1, 32>}, {transform_indices = @transform_13, window_bounds = array<i64: 1, 1, 4, 32>}]} {
    %cst = arith.constant 0.000000e+00 : f32
    %0 = vector.broadcast %cst : f32 to vector<4x128xf32>
    %cst_0 = arith.constant 0.000000e+00 : f32
    %1 = vector.broadcast %cst_0 : f32 to vector<4x128xf32>
    %cst_1 = arith.constant 0.000000e+00 : f32
    %2 = vector.broadcast %cst_1 : f32 to vector<4x32xf32>
    %cst_2 = arith.constant 0.000000e+00 : f32
    %3 = vector.broadcast %cst_2 : f32 to vector<4x128xf32>
    %cst_3 = arith.constant 0.000000e+00 : f32
    %4 = vector.broadcast %cst_3 : f32 to vector<4x32xf32>
    %c0 = arith.constant 0 : index
    %c0_4 = arith.constant 0 : index
    %c0_5 = arith.constant 0 : index
    %c0_6 = arith.constant 0 : index
    %5 = vector.load %arg1[%c0, %c0_4, %c0_5, %c0_6] : memref<1x1x4x32xf32, #tpu.memory_space<vmem>>, vector<1x1x4x32xf32>
    %6 = vector.shape_cast %5 : vector<1x1x4x32xf32> to vector<4x32xf32>
    %c0_7 = arith.constant 0 : index
    %c0_8 = arith.constant 0 : index
    %7 = vector.load %arg2[%c0_7, %c0_8] : memref<32x384xf32, #tpu.memory_space<vmem>>, vector<32x384xf32>
    %cst_9 = arith.constant dense<0.000000e+00> : vector<4x384xf32>
    %8 = tpu.matmul %6, %7, %cst_9 {dimension_numbers = #tpu.dot_dimension_numbers<[1], [0], [0], [1], [0, 0, 1, 1], [], []>} : vector<4x32xf32>, vector<32x384xf32>, vector<4x384xf32> -> vector<4x384xf32>
    %c0_10 = arith.constant 0 : index
    %c0_11 = arith.constant 0 : index
    %9 = vector.load %arg3[%c0_10, %c0_11] : memref<1x384xf32, #tpu.memory_space<vmem>>, vector<1x384xf32>
    %10 = vector.broadcast %9 : vector<1x384xf32> to vector<4x384xf32>
    %11 = arith.mulf %8, %10 : vector<4x384xf32>
    %c0_12 = arith.constant 0 : index
    %c0_13 = arith.constant 0 : index
    %12 = vector.load %arg4[%c0_12, %c0_13] : memref<1x384xf32, #tpu.memory_space<vmem>>, vector<1x384xf32>
    %13 = vector.broadcast %12 : vector<1x384xf32> to vector<4x384xf32>
    %14 = arith.addf %11, %13 : vector<4x384xf32>
    %15 = vector.extract_strided_slice %14 {offsets = [0, 0], sizes = [4, 128], strides = [1, 1]} : vector<4x384xf32> to vector<4x128xf32>
    %16 = vector.extract_strided_slice %14 {offsets = [0, 128], sizes = [4, 128], strides = [1, 1]} : vector<4x384xf32> to vector<4x128xf32>
    %17 = vector.extract_strided_slice %14 {offsets = [0, 256], sizes = [4, 128], strides = [1, 1]} : vector<4x384xf32> to vector<4x128xf32>
    %18 = arith.subf %16, %1 : vector<4x128xf32>
    %cst_14 = arith.constant 5.000000e-01 : f32
    %19 = vector.broadcast %cst_14 : f32 to vector<4x128xf32>
    %20 = arith.mulf %18, %19 : vector<4x128xf32>
    %21 = arith.addf %1, %20 : vector<4x128xf32>
    %cst_15 = arith.constant 5.000000e-01 : f32
    %22 = vector.broadcast %cst_15 : f32 to vector<4x128xf32>
    %23 = arith.cmpf oge, %21, %22 : vector<4x128xf32>
    %24 = arith.extui %23 : vector<4x128xi1> to vector<4x128xi32>
    %25 = arith.sitofp %24 : vector<4x128xi32> to vector<4x128xf32>
    %26 = arith.subf %15, %0 : vector<4x128xf32>
    %cst_16 = arith.constant 5.000000e-01 : f32
    %27 = vector.broadcast %cst_16 : f32 to vector<4x128xf32>
    %28 = arith.mulf %26, %27 : vector<4x128xf32>
    %29 = arith.addf %0, %28 : vector<4x128xf32>
    %cst_17 = arith.constant 5.000000e-01 : f32
    %30 = vector.broadcast %cst_17 : f32 to vector<4x128xf32>
    %31 = arith.cmpf oge, %29, %30 : vector<4x128xf32>
    %32 = arith.extui %31 : vector<4x128xi1> to vector<4x128xi32>
    %33 = arith.sitofp %32 : vector<4x128xi32> to vector<4x128xf32>
    %34 = arith.mulf %25, %17 : vector<4x128xf32>
    %cst_18 = arith.constant dense<0.000000e+00> : vector<128xf32>
    %35 = vector.multi_reduction <add>, %34, %cst_18 [0] : vector<4x128xf32> to vector<128xf32>
    %36 = vector.shape_cast %35 : vector<128xf32> to vector<1x128xf32>
    %37 = vector.broadcast %36 : vector<1x128xf32> to vector<4x128xf32>
    %38 = arith.mulf %33, %37 : vector<4x128xf32>
    %c0_19 = arith.constant 0 : index
    %c0_20 = arith.constant 0 : index
    %39 = vector.load %arg5[%c0_19, %c0_20] : memref<128x32xf32, #tpu.memory_space<vmem>>, vector<128x32xf32>
    %cst_21 = arith.constant dense<0.000000e+00> : vector<4x32xf32>
    %40 = tpu.matmul %38, %39, %cst_21 {dimension_numbers = #tpu.dot_dimension_numbers<[1], [0], [0], [1], [0, 0, 1, 1], [], []>} : vector<4x128xf32>, vector<128x32xf32>, vector<4x32xf32> -> vector<4x32xf32>
    %c0_22 = arith.constant 0 : index
    %c0_23 = arith.constant 0 : index
    %41 = vector.load %arg6[%c0_22, %c0_23] : memref<1x32xf32, #tpu.memory_space<vmem>>, vector<1x32xf32>
    %42 = vector.broadcast %41 : vector<1x32xf32> to vector<4x32xf32>
    %43 = arith.mulf %40, %42 : vector<4x32xf32>
    %c0_24 = arith.constant 0 : index
    %c0_25 = arith.constant 0 : index
    %44 = vector.load %arg7[%c0_24, %c0_25] : memref<1x32xf32, #tpu.memory_space<vmem>>, vector<1x32xf32>
    %45 = vector.broadcast %44 : vector<1x32xf32> to vector<4x32xf32>
    %46 = arith.addf %43, %45 : vector<4x32xf32>
    %47 = arith.subf %46, %2 : vector<4x32xf32>
    %cst_26 = arith.constant 5.000000e-01 : f32
    %48 = vector.broadcast %cst_26 : f32 to vector<4x32xf32>
    %49 = arith.mulf %47, %48 : vector<4x32xf32>
    %50 = arith.addf %2, %49 : vector<4x32xf32>
    %cst_27 = arith.constant 5.000000e-01 : f32
    %51 = vector.broadcast %cst_27 : f32 to vector<4x32xf32>
    %52 = arith.cmpf oge, %50, %51 : vector<4x32xf32>
    %53 = arith.extui %52 : vector<4x32xi1> to vector<4x32xi32>
    %54 = arith.sitofp %53 : vector<4x32xi32> to vector<4x32xf32>
    %55 = arith.addf %6, %54 : vector<4x32xf32>
    %c0_28 = arith.constant 0 : index
    %c0_29 = arith.constant 0 : index
    %56 = vector.load %arg8[%c0_28, %c0_29] : memref<32x256xf32, #tpu.memory_space<vmem>>, vector<32x256xf32>
    %cst_30 = arith.constant dense<0.000000e+00> : vector<4x256xf32>
    %57 = tpu.matmul %55, %56, %cst_30 {dimension_numbers = #tpu.dot_dimension_numbers<[1], [0], [0], [1], [0, 0, 1, 1], [], []>} : vector<4x32xf32>, vector<32x256xf32>, vector<4x256xf32> -> vector<4x256xf32>
    %c0_31 = arith.constant 0 : index
    %c0_32 = arith.constant 0 : index
    %58 = vector.load %arg9[%c0_31, %c0_32] : memref<1x256xf32, #tpu.memory_space<vmem>>, vector<1x256xf32>
    %59 = vector.broadcast %58 : vector<1x256xf32> to vector<4x256xf32>
    %60 = arith.mulf %57, %59 : vector<4x256xf32>
    %c0_33 = arith.constant 0 : index
    %c0_34 = arith.constant 0 : index
    %61 = vector.load %arg10[%c0_33, %c0_34] : memref<1x256xf32, #tpu.memory_space<vmem>>, vector<1x256xf32>
    %62 = vector.broadcast %61 : vector<1x256xf32> to vector<4x256xf32>
    %63 = arith.addf %60, %62 : vector<4x256xf32>
    %64 = vector.extract_strided_slice %63 {offsets = [0, 0], sizes = [4, 128], strides = [1, 1]} : vector<4x256xf32> to vector<4x128xf32>
    %65 = vector.extract_strided_slice %63 {offsets = [0, 128], sizes = [4, 128], strides = [1, 1]} : vector<4x256xf32> to vector<4x128xf32>
    %66 = arith.subf %64, %3 : vector<4x128xf32>
    %cst_35 = arith.constant 5.000000e-01 : f32
    %67 = vector.broadcast %cst_35 : f32 to vector<4x128xf32>
    %68 = arith.mulf %66, %67 : vector<4x128xf32>
    %69 = arith.addf %3, %68 : vector<4x128xf32>
    %cst_36 = arith.constant 1.000000e+00 : f32
    %70 = vector.broadcast %cst_36 : f32 to vector<4x128xf32>
    %71 = arith.cmpf oge, %69, %70 : vector<4x128xf32>
    %72 = arith.extui %71 : vector<4x128xi1> to vector<4x128xi32>
    %73 = arith.sitofp %72 : vector<4x128xi32> to vector<4x128xf32>
    %74 = arith.mulf %65, %73 : vector<4x128xf32>
    %c0_37 = arith.constant 0 : index
    %c0_38 = arith.constant 0 : index
    %75 = vector.load %arg11[%c0_37, %c0_38] : memref<128x32xf32, #tpu.memory_space<vmem>>, vector<128x32xf32>
    %cst_39 = arith.constant dense<0.000000e+00> : vector<4x32xf32>
    %76 = tpu.matmul %74, %75, %cst_39 {dimension_numbers = #tpu.dot_dimension_numbers<[1], [0], [0], [1], [0, 0, 1, 1], [], []>} : vector<4x128xf32>, vector<128x32xf32>, vector<4x32xf32> -> vector<4x32xf32>
    %c0_40 = arith.constant 0 : index
    %c0_41 = arith.constant 0 : index
    %77 = vector.load %arg12[%c0_40, %c0_41] : memref<1x32xf32, #tpu.memory_space<vmem>>, vector<1x32xf32>
    %78 = vector.broadcast %77 : vector<1x32xf32> to vector<4x32xf32>
    %79 = arith.mulf %76, %78 : vector<4x32xf32>
    %c0_42 = arith.constant 0 : index
    %c0_43 = arith.constant 0 : index
    %80 = vector.load %arg13[%c0_42, %c0_43] : memref<1x32xf32, #tpu.memory_space<vmem>>, vector<1x32xf32>
    %81 = vector.broadcast %80 : vector<1x32xf32> to vector<4x32xf32>
    %82 = arith.addf %79, %81 : vector<4x32xf32>
    %83 = arith.subf %82, %4 : vector<4x32xf32>
    %cst_44 = arith.constant 5.000000e-01 : f32
    %84 = vector.broadcast %cst_44 : f32 to vector<4x32xf32>
    %85 = arith.mulf %83, %84 : vector<4x32xf32>
    %86 = arith.addf %4, %85 : vector<4x32xf32>
    %cst_45 = arith.constant 1.000000e+00 : f32
    %87 = vector.broadcast %cst_45 : f32 to vector<4x32xf32>
    %88 = arith.cmpf oge, %86, %87 : vector<4x32xf32>
    %89 = arith.extui %88 : vector<4x32xi1> to vector<4x32xi32>
    %90 = arith.sitofp %89 : vector<4x32xi32> to vector<4x32xf32>
    %91 = arith.addf %55, %90 : vector<4x32xf32>
    %c0_46 = arith.constant 0 : index
    %c0_47 = arith.constant 0 : index
    %c0_48 = arith.constant 0 : index
    %c0_49 = arith.constant 0 : index
    %92 = vector.load %arg14[%c0_46, %c0_47, %c0_48, %c0_49] : memref<1x1x4x32xf32, #tpu.memory_space<vmem>>, vector<1x1x4x32xf32>
    %93 = vector.shape_cast %92 : vector<1x1x4x32xf32> to vector<4x32xf32>
    %94 = vector.shape_cast %91 : vector<4x32xf32> to vector<1x1x4x32xf32>
    tpu.vector_store %arg14[%c0_46, %c0_47, %c0_48, %c0_49], %94 {strides = array<i32>} : memref<1x1x4x32xf32, #tpu.memory_space<vmem>>, vector<1x1x4x32xf32>,
    return
  }
  func.func @transform_0(%arg0: i32) -> (i32, i32, i32, i32) {
    %c0_i32 = arith.constant 0 : i32
    %c0_i32_0 = arith.constant 0 : i32
    %c0_i32_1 = arith.constant 0 : i32
    %c0_i32_2 = arith.constant 0 : i32
    return %arg0, %c0_i32, %c0_i32_0, %c0_i32_1 : i32, i32, i32, i32
  }
  func.func @transform_1(%arg0: i32) -> (i32, i32) {
    %c0_i32 = arith.constant 0 : i32
    %c0_i32_0 = arith.constant 0 : i32
    %c0_i32_1 = arith.constant 0 : i32
    return %c0_i32, %c0_i32_0 : i32, i32
  }
  func.func @transform_2(%arg0: i32) -> (i32, i32) {
    %c0_i32 = arith.constant 0 : i32
    %c0_i32_0 = arith.constant 0 : i32
    %c0_i32_1 = arith.constant 0 : i32
    return %c0_i32, %c0_i32_0 : i32, i32
  }
  func.func @transform_3(%arg0: i32) -> (i32, i32) {
    %c0_i32 = arith.constant 0 : i32
    %c0_i32_0 = arith.constant 0 : i32
    %c0_i32_1 = arith.constant 0 : i32
    return %c0_i32, %c0_i32_0 : i32, i32
  }
  func.func @transform_4(%arg0: i32) -> (i32, i32) {
    %c0_i32 = arith.constant 0 : i32
    %c0_i32_0 = arith.constant 0 : i32
    %c0_i32_1 = arith.constant 0 : i32
    return %c0_i32, %c0_i32_0 : i32, i32
  }
  func.func @transform_5(%arg0: i32) -> (i32, i32) {
    %c0_i32 = arith.constant 0 : i32
    %c0_i32_0 = arith.constant 0 : i32
    %c0_i32_1 = arith.constant 0 : i32
    return %c0_i32, %c0_i32_0 : i32, i32
  }
  func.func @transform_6(%arg0: i32) -> (i32, i32) {
    %c0_i32 = arith.constant 0 : i32
    %c0_i32_0 = arith.constant 0 : i32
    %c0_i32_1 = arith.constant 0 : i32
    return %c0_i32, %c0_i32_0 : i32, i32
  }
  func.func @transform_7(%arg0: i32) -> (i32, i32) {
    %c0_i32 = arith.constant 0 : i32
    %c0_i32_0 = arith.constant 0 : i32
    %c0_i32_1 = arith.constant 0 : i32
    return %c0_i32, %c0_i32_0 : i32, i32
  }
  func.func @transform_8(%arg0: i32) -> (i32, i32) {
    %c0_i32 = arith.constant 0 : i32
    %c0_i32_0 = arith.constant 0 : i32
    %c0_i32_1 = arith.constant 0 : i32
    return %c0_i32, %c0_i32_0 : i32, i32
  }
  func.func @transform_9(%arg0: i32) -> (i32, i32) {
    %c0_i32 = arith.constant 0 : i32
    %c0_i32_0 = arith.constant 0 : i32
    %c0_i32_1 = arith.constant 0 : i32
    return %c0_i32, %c0_i32_0 : i32, i32
  }
  func.func @transform_10(%arg0: i32) -> (i32, i32) {
    %c0_i32 = arith.constant 0 : i32
    %c0_i32_0 = arith.constant 0 : i32
    %c0_i32_1 = arith.constant 0 : i32
    return %c0_i32, %c0_i32_0 : i32, i32
  }
  func.func @transform_11(%arg0: i32) -> (i32, i32) {
    %c0_i32 = arith.constant 0 : i32
    %c0_i32_0 = arith.constant 0 : i32
    %c0_i32_1 = arith.constant 0 : i32
    return %c0_i32, %c0_i32_0 : i32, i32
  }
  func.func @transform_12(%arg0: i32) -> (i32, i32) {
    %c0_i32 = arith.constant 0 : i32
    %c0_i32_0 = arith.constant 0 : i32
    %c0_i32_1 = arith.constant 0 : i32
    return %c0_i32, %c0_i32_0 : i32, i32
  }
  func.func @transform_13(%arg0: i32) -> (i32, i32, i32, i32) {
    %c0_i32 = arith.constant 0 : i32
    %c0_i32_0 = arith.constant 0 : i32
    %c0_i32_1 = arith.constant 0 : i32
    %c0_i32_2 = arith.constant 0 : i32
    return %arg0, %c0_i32, %c0_i32_0, %c0_i32_1 : i32, i32, i32, i32
  }
}

module attributes {stable_mosaic.version = 11 : i64} {
  func.func @_head_kernel(%arg0: i32, %arg1: memref<4x2x32xf32, #tpu.memory_space<vmem>>, %arg2: memref<32x11xf32, #tpu.memory_space<vmem>>, %arg3: memref<1x11xf32, #tpu.memory_space<vmem>>, %arg4: memref<2x11xf32, #tpu.memory_space<vmem>>) attributes {dimension_semantics = [#tpu.dimension_semantics<arbitrary>], iteration_bounds = array<i64: 1>, scalar_prefetch = 0 : i64, scratch_operands = 0 : i64, tpu.core_type = #tpu.core_type<tc>, window_params = [{pipeline_mode = #tpu.pipeline_mode<synchronous>, transform_indices = @transform_0, window_bounds = array<i64: 4, 2, 32>}, {pipeline_mode = #tpu.pipeline_mode<synchronous>, transform_indices = @transform_1, window_bounds = array<i64: 32, 11>}, {pipeline_mode = #tpu.pipeline_mode<synchronous>, transform_indices = @transform_2, window_bounds = array<i64: 1, 11>}, {pipeline_mode = #tpu.pipeline_mode<synchronous>, transform_indices = @transform_3, window_bounds = array<i64: 2, 11>}]} {
    %cst = arith.constant 0.000000e+00 : f32
    %0 = vector.broadcast %cst : f32 to vector<2x32xf32>
    %c0 = arith.constant 0 : index
    %c0_0 = arith.constant 0 : index
    %c0_1 = arith.constant 0 : index
    %1 = vector.load %arg1[%c0, %c0_0, %c0_1] : memref<4x2x32xf32, #tpu.memory_space<vmem>>, vector<1x2x32xf32>
    %2 = vector.shape_cast %1 : vector<1x2x32xf32> to vector<2x32xf32>
    %3 = arith.addf %0, %2 : vector<2x32xf32>
    %c1 = arith.constant 1 : index
    %c0_2 = arith.constant 0 : index
    %c0_3 = arith.constant 0 : index
    %4 = vector.load %arg1[%c1, %c0_2, %c0_3] : memref<4x2x32xf32, #tpu.memory_space<vmem>>, vector<1x2x32xf32>
    %5 = vector.shape_cast %4 : vector<1x2x32xf32> to vector<2x32xf32>
    %6 = arith.addf %3, %5 : vector<2x32xf32>
    %c2 = arith.constant 2 : index
    %c0_4 = arith.constant 0 : index
    %c0_5 = arith.constant 0 : index
    %7 = vector.load %arg1[%c2, %c0_4, %c0_5] : memref<4x2x32xf32, #tpu.memory_space<vmem>>, vector<1x2x32xf32>
    %8 = vector.shape_cast %7 : vector<1x2x32xf32> to vector<2x32xf32>
    %9 = arith.addf %6, %8 : vector<2x32xf32>
    %c3 = arith.constant 3 : index
    %c0_6 = arith.constant 0 : index
    %c0_7 = arith.constant 0 : index
    %10 = vector.load %arg1[%c3, %c0_6, %c0_7] : memref<4x2x32xf32, #tpu.memory_space<vmem>>, vector<1x2x32xf32>
    %11 = vector.shape_cast %10 : vector<1x2x32xf32> to vector<2x32xf32>
    %12 = arith.addf %9, %11 : vector<2x32xf32>
    %cst_8 = arith.constant 2.500000e-01 : f32
    %13 = vector.broadcast %cst_8 : f32 to vector<2x32xf32>
    %14 = arith.mulf %12, %13 : vector<2x32xf32>
    %c0_9 = arith.constant 0 : index
    %c0_10 = arith.constant 0 : index
    %15 = vector.load %arg2[%c0_9, %c0_10] : memref<32x11xf32, #tpu.memory_space<vmem>>, vector<32x11xf32>
    %cst_11 = arith.constant dense<0.000000e+00> : vector<2x11xf32>
    %16 = tpu.matmul %14, %15, %cst_11 {dimension_numbers = #tpu.dot_dimension_numbers<[1], [0], [0], [1], [0, 0, 1, 1], [], []>} : vector<2x32xf32>, vector<32x11xf32>, vector<2x11xf32> -> vector<2x11xf32>
    %c0_12 = arith.constant 0 : index
    %c0_13 = arith.constant 0 : index
    %17 = vector.load %arg3[%c0_12, %c0_13] : memref<1x11xf32, #tpu.memory_space<vmem>>, vector<1x11xf32>
    %18 = vector.broadcast %17 : vector<1x11xf32> to vector<2x11xf32>
    %19 = arith.addf %16, %18 : vector<2x11xf32>
    %c0_14 = arith.constant 0 : index
    %c0_15 = arith.constant 0 : index
    %20 = vector.load %arg4[%c0_14, %c0_15] : memref<2x11xf32, #tpu.memory_space<vmem>>, vector<2x11xf32>
    tpu.vector_store %arg4[%c0_14, %c0_15], %19 {strides = array<i32>} : memref<2x11xf32, #tpu.memory_space<vmem>>, vector<2x11xf32>,
    return
  }
  func.func @transform_0(%arg0: i32) -> (i32, i32, i32) {
    %c0_i32 = arith.constant 0 : i32
    %c0_i32_0 = arith.constant 0 : i32
    %c0_i32_1 = arith.constant 0 : i32
    %c0_i32_2 = arith.constant 0 : i32
    return %c0_i32, %c0_i32_0, %c0_i32_1 : i32, i32, i32
  }
  func.func @transform_1(%arg0: i32) -> (i32, i32) {
    %c0_i32 = arith.constant 0 : i32
    %c0_i32_0 = arith.constant 0 : i32
    %c0_i32_1 = arith.constant 0 : i32
    return %c0_i32, %c0_i32_0 : i32, i32
  }
  func.func @transform_2(%arg0: i32) -> (i32, i32) {
    %c0_i32 = arith.constant 0 : i32
    %c0_i32_0 = arith.constant 0 : i32
    %c0_i32_1 = arith.constant 0 : i32
    return %c0_i32, %c0_i32_0 : i32, i32
  }
  func.func @transform_3(%arg0: i32) -> (i32, i32) {
    %c0_i32 = arith.constant 0 : i32
    %c0_i32_0 = arith.constant 0 : i32
    %c0_i32_1 = arith.constant 0 : i32
    return %c0_i32, %c0_i32_0 : i32, i32
  }
}

</mosaic_0001>

<llo_original>
// kernel: spikformer_forward.8
$region0: #{spikformer_forward.8}
  #allocation0 [shape = 'u32[]', space=smem, size = 0x4, offset = 0x4, fixed_abs, tag = 'smem constant byte address 0x4 - core index']
  #allocation1 [shape = 'u32[72,128]{1,0:T(1,128)}', space=vmem, size = 0x9000, scoped, tag = 'internal scratch']
  %s0 = inlined_call_operand.vmem [shape: f32[2,4,34,68], index: 0, kind: input, shape index: {}]
  %s1 = inlined_call_operand.vmem [shape: f32[3,68,128], index: 1, kind: input, shape index: {}]
  %s2 = inlined_call_operand.vmem [shape: f32[1,128], index: 2, kind: input, shape index: {}]
  %s3 = inlined_call_operand.vmem [shape: f32[1,128], index: 3, kind: input, shape index: {}]
  %s4 = inlined_call_operand.vmem [shape: f32[16,32], index: 4, kind: input, shape index: {}]
  %s5 = inlined_call_operand.vmem [shape: f32[128,64], index: 5, kind: input, shape index: {}]
  %s6 = inlined_call_operand.vmem [shape: f32[2,4,16,64], index: 6, kind: output, shape index: {}]
  %s7 = sld [smem:[#allocation0]]
  $region57: #{spikformer_forward.8} parent=0
    _
  %s9 = ssub.s32 1, %s7
  %s10 = scalar_select 0, %s9, %s7
  loop: start=0, step=1, limit=4
  $region2: #{spikformer_forward.8} parent=0 // loop_pre_header
    _
  $region3: #{spikformer_forward.8} parent=0 // loop_header
    %s12 = sphi 0, %s16
    %p13 = scmp.ge.s32.totalorder %s12, 4
    %s22 = sphi 0, %s24
    %s25 = sphi 0, %s22
    %s26 = sphi 0, %s25
    %s42 = sphi 0, %s26
    %s46 = sphi 0, %s46
    %s48 = sphi 0, %s46
    %s49 = sphi 0, %s48
    %s63 = sphi 0, %s49
    %s67 = sphi 0, %s67
    %s69 = sphi 0, %s67
    %s70 = sphi 0, %s69
    %s84 = sphi 0, %s70
    %s88 = sphi 0, %s88
    %s90 = sphi 0, %s88
    %s91 = sphi 0, %s90
    %s105 = sphi 0, %s91
    %s109 = sphi 0, %s109
    %s111 = sphi 0, %s109
    %s112 = sphi 0, %s111
    %s126 = sphi 0, %s112
    %s130 = sphi 0, %s130
    %s132 = sphi 0, %s130
    %s133 = sphi 0, %s132
    %s147 = sphi 0, %s133
    %s153 = sphi 0, %s155
    %s156 = sphi 0, %s153
    %s157 = sphi 0, %s156
    %s173 = sphi 0, %s157
  $region4: #{spikformer_forward.8} parent=0 // loop_header_branch
    %15 = sbr.rel (%p13) target = $region8
  $region5: #{spikformer_forward.8} parent=0 // loop_body
    %s17 = ssub.s32 %s12, 1
    %s18 = ssub.s32 %s12, 2
    %s19 = sadd.s32 %s12, 1
    %s20 = ssub.s32 %s12, %s19
    %p21 = scmp.eq.s32.totalorder %s20, 0
    %s23 = sadd.s32 %s22, 1
    %s24 = scalar_select %p21, %s22, %s23
    %p27 = pneg %p21
    %p28 = scmp.eq.s32.totalorder %s12, 1
    %p29 = por %p27, %p28
    %p30 = scmp.ne.s32.totalorder %s22, %s25
    %p31 = scmp.eq.s32.totalorder %s12, 0
    %p32 = por %p30, %p31
    %p33 = scmp.ne.s32.totalorder %s22, %s25
    %p34 = scmp.eq.s32.totalorder %s17, 1
    %p35 = por %p33, %p34
    %p36 = scmp.ne.s32.totalorder %s25, %s26
    %p37 = scmp.eq.s32.totalorder %s17, 0
    %p38 = por %p36, %p37
    %p39 = scmp.ne.s32.totalorder %s25, %s26
    %p40 = scmp.eq.s32.totalorder %s18, 1
    %p41 = por %p39, %p40
    %p43 = scmp.ne.s32.totalorder %s26, %s42
    %p44 = scmp.eq.s32.totalorder %s18, 0
    %p45 = por %p43, %p44
    %s47 = sadd.s32 %s46, 1
    %p50 = scmp.eq.s32.totalorder %s12, 1
    %p51 = scmp.ne.s32.totalorder %s46, %s48
    %p52 = scmp.eq.s32.totalorder %s12, 0
    %p53 = por %p51, %p52
    %p54 = scmp.ne.s32.totalorder %s46, %s48
    %p55 = scmp.eq.s32.totalorder %s17, 1
    %p56 = por %p54, %p55
    %p57 = scmp.ne.s32.totalorder %s48, %s49
    %p58 = scmp.eq.s32.totalorder %s17, 0
    %p59 = por %p57, %p58
    %p60 = scmp.ne.s32.totalorder %s48, %s49
    %p61 = scmp.eq.s32.totalorder %s18, 1
    %p62 = por %p60, %p61
    %p64 = scmp.ne.s32.totalorder %s49, %s63
    %p65 = scmp.eq.s32.totalorder %s18, 0
    %p66 = por %p64, %p65
    %s68 = sadd.s32 %s67, 1
    %p71 = scmp.eq.s32.totalorder %s12, 1
    %p72 = scmp.ne.s32.totalorder %s67, %s69
    %p73 = scmp.eq.s32.totalorder %s12, 0
    %p74 = por %p72, %p73
    %p75 = scmp.ne.s32.totalorder %s67, %s69
    %p76 = scmp.eq.s32.totalorder %s17, 1
    %p77 = por %p75, %p76
    %p78 = scmp.ne.s32.totalorder %s69, %s70
    %p79 = scmp.eq.s32.totalorder %s17, 0
    %p80 = por %p78, %p79
    %p81 = scmp.ne.s32.totalorder %s69, %s70
    %p82 = scmp.eq.s32.totalorder %s18, 1
    %p83 = por %p81, %p82
    %p85 = scmp.ne.s32.totalorder %s70, %s84
    %p86 = scmp.eq.s32.totalorder %s18, 0
    %p87 = por %p85, %p86
    %s89 = sadd.s32 %s88, 1
    %p92 = scmp.eq.s32.totalorder %s12, 1
    %p93 = scmp.ne.s32.totalorder %s88, %s90
    %p94 = scmp.eq.s32.totalorder %s12, 0
    %p95 = por %p93, %p94
    %p96 = scmp.ne.s32.totalorder %s88, %s90
    %p97 = scmp.eq.s32.totalorder %s17, 1
    %p98 = por %p96, %p97
    %p99 = scmp.ne.s32.totalorder %s90, %s91
    %p100 = scmp.eq.s32.totalorder %s17, 0
    %p101 = por %p99, %p100
    %p102 = scmp.ne.s32.totalorder %s90, %s91
    %p103 = scmp.eq.s32.totalorder %s18, 1
    %p104 = por %p102, %p103
    %p106 = scmp.ne.s32.totalorder %s91, %s105
    %p107 = scmp.eq.s32.totalorder %s18, 0
    %p108 = por %p106, %p107
    %s110 = sadd.s32 %s109, 1
    %p113 = scmp.eq.s32.totalorder %s12, 1
    %p114 = scmp.ne.s32.totalorder %s109, %s111
    %p115 = scmp.eq.s32.totalorder %s12, 0
    %p116 = por %p114, %p115
    %p117 = scmp.ne.s32.totalorder %s109, %s111
    %p118 = scmp.eq.s32.totalorder %s17, 1
    %p119 = por %p117, %p118
    %p120 = scmp.ne.s32.totalorder %s111, %s112
    %p121 = scmp.eq.s32.totalorder %s17, 0
    %p122 = por %p120, %p121
    %p123 = scmp.ne.s32.totalorder %s111, %s112
    %p124 = scmp.eq.s32.totalorder %s18, 1
    %p125 = por %p123, %p124
    %p127 = scmp.ne.s32.totalorder %s112, %s126
    %p128 = scmp.eq.s32.totalorder %s18, 0
    %p129 = por %p127, %p128
    %s131 = sadd.s32 %s130, 1
    %p134 = scmp.eq.s32.totalorder %s12, 1
    %p135 = scmp.ne.s32.totalorder %s130, %s132
    %p136 = scmp.eq.s32.totalorder %s12, 0
    %p137 = por %p135, %p136
    %p138 = scmp.ne.s32.totalorder %s130, %s132
    %p139 = scmp.eq.s32.totalorder %s17, 1
    %p140 = por %p138, %p139
    %p141 = scmp.ne.s32.totalorder %s132, %s133
    %p142 = scmp.eq.s32.totalorder %s17, 0
    %p143 = por %p141, %p142
    %p144 = scmp.ne.s32.totalorder %s132, %s133
    %p145 = scmp.eq.s32.totalorder %s18, 1
    %p146 = por %p144, %p145
    %p148 = scmp.ne.s32.totalorder %s133, %s147
    %p149 = scmp.eq.s32.totalorder %s18, 0
    %p150 = por %p148, %p149
    %s151 = ssub.s32 %s12, %s19
    %p152 = scmp.eq.s32.totalorder %s151, 0
    %s154 = sadd.s32 %s153, 1
    %s155 = scalar_select %p152, %s153, %s154
    %p158 = pneg %p152
    %p159 = scmp.eq.s32.totalorder %s12, 1
    %p160 = por %p158, %p159
    %p161 = scmp.ne.s32.totalorder %s153, %s156
    %p162 = scmp.eq.s32.totalorder %s12, 0
    %p163 = por %p161, %p162
    %p164 = scmp.ne.s32.totalorder %s153, %s156
    %p165 = scmp.eq.s32.totalorder %s17, 1
    %p166 = por %p164, %p165
    %p167 = scmp.ne.s32.totalorder %s156, %s157
    %p168 = scmp.eq.s32.totalorder %s17, 0
    %p169 = por %p167, %p168
    %p170 = scmp.ne.s32.totalorder %s156, %s157
    %p171 = scmp.eq.s32.totalorder %s18, 1
    %p172 = por %p170, %p171
    %p174 = scmp.ne.s32.totalorder %s157, %s173
    %p175 = scmp.eq.s32.totalorder %s18, 0
    %p176 = por %p174, %p175
    %p177 = scmp.le.s32.totalorder 1, %s12
    %p178 = scmp.lt.s32.totalorder %s12, 3
    %p179 = pnand %p177, %p178
    %p180 = pneg %p179
    // Predicated region
    $region9: #{spikformer_forward.8} parent=5 // pred_check
      _
    $region10: #{spikformer_forward.8} parent=5 // pred_check_branch
      %182 = sbr.rel (%p179) target = $region12
    $region11: #{spikformer_forward.8} parent=5 // pred_region
      %s183 = ssub.s32 %s12, 1
      // Predicated region
      $region13: #{spikformer_forward.8} parent=11 // pred_check
        %p184 = pneg %p59
      $region14: #{spikformer_forward.8} parent=11 // pred_check_branch
        %186 = sbr.rel (%p184) target = $region16
      $region15: #{spikformer_forward.8} parent=11 // pred_region
        _
      $region16: #{spikformer_forward.8} parent=11 // pred_fallthru
        _
      // Predicated region
      $region17: #{spikformer_forward.8} parent=11 // pred_check
        %p187 = pneg %p80
      $region18: #{spikformer_forward.8} parent=11 // pred_check_branch
        %189 = sbr.rel (%p187) target = $region20
      $region19: #{spikformer_forward.8} parent=11 // pred_region
        _
      $region20: #{spikformer_forward.8} parent=11 // pred_fallthru
        _
      // Predicated region
      $region21: #{spikformer_forward.8} parent=11 // pred_check
        %p190 = pneg %p101
      $region22: #{spikformer_forward.8} parent=11 // pred_check_branch
        %192 = sbr.rel (%p190) target = $region24
      $region23: #{spikformer_forward.8} parent=11 // pred_region
        _
      $region24: #{spikformer_forward.8} parent=11 // pred_fallthru
        _
      // Predicated region
      $region25: #{spikformer_forward.8} parent=11 // pred_check
        %p193 = pneg %p122
      $region26: #{spikformer_forward.8} parent=11 // pred_check_branch
        %195 = sbr.rel (%p193) target = $region28
      $region27: #{spikformer_forward.8} parent=11 // pred_region
        _
      $region28: #{spikformer_forward.8} parent=11 // pred_fallthru
        _
      // Predicated region
      $region29: #{spikformer_forward.8} parent=11 // pred_check
        %p196 = pneg %p143
      $region30: #{spikformer_forward.8} parent=11 // pred_check_branch
        %198 = sbr.rel (%p196) target = $region32
      $region31: #{spikformer_forward.8} parent=11 // pred_region
        _
      $region32: #{spikformer_forward.8} parent=11 // pred_fallthru
        _
    $region12: #{spikformer_forward.8} parent=5 // pred_fallthru
      _
    %p199 = scmp.lt.s32.totalorder %s12, 2
    // Predicated region
    $region33: #{spikformer_forward.8} parent=5 // pred_check
      %p200 = pneg %p199
    $region34: #{spikformer_forward.8} parent=5 // pred_check_branch
      %202 = sbr.rel (%p200) target = $region36
    $region35: #{spikformer_forward.8} parent=5 // pred_region
      // Predicated region
      $region37: #{spikformer_forward.8} parent=35 // pred_check
        %p203 = pneg %p32
      $region38: #{spikformer_forward.8} parent=35 // pred_check_branch
        %205 = sbr.rel (%p203) target = $region40
      $region39: #{spikformer_forward.8} parent=35 // pred_region
        %p206 = scmp.lt.s32.totalorder %s12, 1
        %s207 = scalar_select %p206, %s12, 1
        %s208 = smul.addr %s207, 20
        %s209 = smul.addr %s208, 8
        %s210 = scalar_lea.vmem %s0, %s209
      $region40: #{spikformer_forward.8} parent=35 // pred_fallthru
        _
    $region36: #{spikformer_forward.8} parent=5 // pred_fallthru
      _
    %p211 = scmp.le.s32.totalorder 1, %s12
    %p212 = scmp.lt.s32.totalorder %s12, 3
    %p213 = pnand %p211, %p212
    %p214 = pneg %p213
    // Predicated region
    $region41: #{spikformer_forward.8} parent=5 // pred_check
      _
    $region42: #{spikformer_forward.8} parent=5 // pred_check_branch
      %216 = sbr.rel (%p213) target = $region44
    $region43: #{spikformer_forward.8} parent=5 // pred_region
      %s217 = ssub.s32 %s12, 1
      %p218 = scmp.lt.s32.totalorder %s17, 1
      %s219 = scalar_select %p218, %s17, 1
      %s220 = smul.addr %s219, 20
      %s221 = smul.addr %s220, 8
      %s222 = scalar_lea.vmem %s0, %s221
      %p223 = pneg %p38
      %p224 = pneg %p35
      %p225 = pneg %p59
      %p226 = pneg %p56
      %p227 = pneg %p80
      %p228 = pneg %p77
      %p229 = pneg %p101
      %p230 = pneg %p98
      %p231 = pneg %p122
      %p232 = pneg %p119
      %p233 = pneg %p143
      %p234 = pneg %p140
      %p235 = pneg %p169
      %p236 = pneg %p166
      %p237 = scmp.lt.s32.totalorder %s17, 1
      %s238 = scalar_select %p237, %s17, 1
      %s239 = smul.addr %s238, 8
      %s240 = smul.addr %s239, 8
      %s241 = scalar_lea.vmem %s6, %s240
      %p242 = scmp.lt.s32.totalorder %s17, 1
      %s243 = scalar_select %p242, %s17, 1
      %s244 = smul.addr %s243, 20
      %s245 = smul.addr %s244, 8
      %s246 = scalar_lea.vmem %s0, %s245
      %p247 = scmp.lt.s32.totalorder %s17, 1
      %s248 = scalar_select %p247, %s17, 1
      %s249 = smul.addr %s248, 8
      %s250 = smul.addr %s249, 8
      %s251 = scalar_lea.vmem %s6, %s250
      %v252 = vld [vmem:[%s246] sm:$0xff]
      %v253 = vld [vmem:[%s246 + $0x8] sm:$0xff]
      %v254 = vld [vmem:[%s246 + $0x10] sm:$0xff]
      %v255 = vld [vmem:[%s246 + $0x18] sm:$0xff]
      %v256 = vld [vmem:[%s246 + $0x20] sm:$0x3]
      %v257 = vld [vmem:[%s1] sm:$0xff]
      %v258 = vld [vmem:[%s1 + $0x8] sm:$0xff]
      %v259 = vld [vmem:[%s1 + $0x10] sm:$0xff]
      %v260 = vld [vmem:[%s1 + $0x18] sm:$0xff]
      %v261 = vld [vmem:[%s1 + $0x20] sm:$0xff]
      %v262 = vld [vmem:[%s1 + $0x28] sm:$0xff]
      %v263 = vld [vmem:[%s1 + $0x30] sm:$0xff]
      %v264 = vld [vmem:[%s1 + $0x38] sm:$0xff]
      %v265 = vld [vmem:[%s1 + $0x40] sm:$0xf]
      %s266 = scalar_lea.vmem %s1, 72
      %v267 = vld [vmem:[%s266] sm:$0xff]
      %v268 = vld [vmem:[%s266 + $0x8] sm:$0xff]
      %v269 = vld [vmem:[%s266 + $0x10] sm:$0xff]
      %v270 = vld [vmem:[%s266 + $0x18] sm:$0xff]
      %v271 = vld [vmem:[%s266 + $0x20] sm:$0xff]
      %v272 = vld [vmem:[%s266 + $0x28] sm:$0xff]
      %v273 = vld [vmem:[%s266 + $0x30] sm:$0xff]
      %v274 = vld [vmem:[%s266 + $0x38] sm:$0xff]
      %v275 = vld [vmem:[%s266 + $0x40] sm:$0xf]
      %vm281 = vcmask 1046528
      %v282 = vrot.slane %v252, 1
      %v283 = vrot.slane %v253, 1
      %v284 = vsel %vm281, %v282, %v283
      %v285 = vrot.slane %v254, 1
      %v286 = vsel %vm281, %v283, %v285
      %v287 = vrot.slane %v255, 1
      %v288 = vsel %vm281, %v285, %v287
      %v289 = vrot.slane %v256, 1
      %v290 = vsel %vm281, %v287, %v289
      %vm291 = vcmask 556032
      %v292 = vsel %vm291, %v284, 0
      %v294 = vsel %vm291, %v286, 0
      %v296 = vsel %vm291, %v288, 0
      %v298 = vsel %vm291, %v290, 0
      %vm300 = vcmask 1043456
      %v302 = vsel %vm300, %v275, 0
      %304 = vmatpush.msra.mxu0 0.0
      %305 = vmatpush.msra.mxu0 0.0
      %306 = vmatpush.msra.mxu0 0.0
      %307 = vmatpush.msra.mxu0 0.0
      %308 = vmatpush.msra.mxu0 0.0
      %309 = vmatpush.msra.mxu0 0.0
      %310 = vmatpush.msra.mxu0 0.0
      %311 = vmatpush.msra.mxu0 %v302
      %312 = vmatpush.msra.mxu0 %v274
      %313 = vmatpush.msra.mxu0 %v273
      %314 = vmatpush.msra.mxu0 %v272
      %315 = vmatpush.msra.mxu0 %v271
      %316 = vmatpush.msra.mxu0 %v270
      %317 = vmatpush.msra.mxu0 %v269
      %318 = vmatpush.msra.mxu0 %v268
      %319 = vmatpush.msra.mxu0 %v267
      %320 = vmatmul.f32.gmra.mxu0 %v292
      %v321 = vpop.f32.mrf.mxu0
      %v322 = vadd.f32 0.0, %v321
      %323 = vmatmul.f32.gmra.mxu0 %v294
      %v324 = vpop.f32.mrf.mxu0
      %v325 = vadd.f32 0.0, %v324
      %326 = vmatmul.f32.gmra.mxu0 %v296
      %v327 = vpop.f32.mrf.mxu0
      %v328 = vadd.f32 0.0, %v327
      %329 = vmatmul.f32.gmra.mxu0 %v298
      %v330 = vpop.f32.mrf.mxu0
      %v331 = vadd.f32 0.0, %v330
      %332 = vdwg.mxu0
      %v333 = vsel %vm291, %v252, 0
      %v335 = vsel %vm291, %v253, 0
      %v337 = vsel %vm291, %v254, 0
      %v339 = vsel %vm291, %v255, 0
      %v342 = vsel %vm300, %v265, 0
      %344 = vmatpush.msra.mxu0 0.0
      %345 = vmatpush.msra.mxu0 0.0
      %346 = vmatpush.msra.mxu0 0.0
      %347 = vmatpush.msra.mxu0 0.0
      %348 = vmatpush.msra.mxu0 0.0
      %349 = vmatpush.msra.mxu0 0.0
      %350 = vmatpush.msra.mxu0 0.0
      %351 = vmatpush.msra.mxu0 %v342
      %352 = vmatpush.msra.mxu0 %v264
      %353 = vmatpush.msra.mxu0 %v263
      %354 = vmatpush.msra.mxu0 %v262
      %355 = vmatpush.msra.mxu0 %v261
      %356 = vmatpush.msra.mxu0 %v260
      %357 = vmatpush.msra.mxu0 %v259
      %358 = vmatpush.msra.mxu0 %v258
      %359 = vmatpush.msra.mxu0 %v257
      %360 = vmatmul.f32.gmra.mxu0 %v333
      %v361 = vpop.f32.mrf.mxu0
      %v362 = vadd.f32 %v322, %v361
      %363 = vmatmul.f32.gmra.mxu0 %v335
      %v364 = vpop.f32.mrf.mxu0
      %v365 = vadd.f32 %v325, %v364
      %366 = vmatmul.f32.gmra.mxu0 %v337
      %v367 = vpop.f32.mrf.mxu0
      %v368 = vadd.f32 %v328, %v367
      %369 = vmatmul.f32.gmra.mxu0 %v339
      %v370 = vpop.f32.mrf.mxu0
      %v371 = vadd.f32 %v331, %v370
      %372 = vdwg.mxu0
      %s373 = scalar_lea.vmem %s1, 144
      %v374 = vld [vmem:[%s373] sm:$0xff]
      %v375 = vld [vmem:[%s373 + $0x8] sm:$0xff]
      %v376 = vld [vmem:[%s373 + $0x10] sm:$0xff]
      %v377 = vld [vmem:[%s373 + $0x18] sm:$0xff]
      %v378 = vld [vmem:[%s373 + $0x20] sm:$0xff]
      %v379 = vld [vmem:[%s373 + $0x28] sm:$0xff]
      %v380 = vld [vmem:[%s373 + $0x30] sm:$0xff]
      %v381 = vld [vmem:[%s373 + $0x38] sm:$0xff]
      %v382 = vld [vmem:[%s373 + $0x40] sm:$0xf]
      %vm383 = vcmask 1045504
      %v384 = vrot.slane %v252, 2
      %v385 = vrot.slane %v253, 2
      %v386 = vsel %vm383, %v384, %v385
      %v387 = vrot.slane %v254, 2
      %v388 = vsel %vm383, %v385, %v387
      %v389 = vrot.slane %v255, 2
      %v390 = vsel %vm383, %v387, %v389
      %v391 = vrot.slane %v256, 2
      %v392 = vsel %vm383, %v389, %v391
      %v393 = vsel %vm291, %v386, 0
      %v395 = vsel %vm291, %v388, 0
      %v397 = vsel %vm291, %v390, 0
      %v399 = vsel %vm291, %v392, 0
      %v402 = vsel %vm300, %v382, 0
      %404 = vmatpush.msra.mxu0 0.0
      %405 = vmatpush.msra.mxu0 0.0
      %406 = vmatpush.msra.mxu0 0.0
      %407 = vmatpush.msra.mxu0 0.0
      %408 = vmatpush.msra.mxu0 0.0
      %409 = vmatpush.msra.mxu0 0.0
      %410 = vmatpush.msra.mxu0 0.0
      %411 = vmatpush.msra.mxu0 %v402
      %412 = vmatpush.msra.mxu0 %v381
      %413 = vmatpush.msra.mxu0 %v380
      %414 = vmatpush.msra.mxu0 %v379
      %415 = vmatpush.msra.mxu0 %v378
      %416 = vmatpush.msra.mxu0 %v377
      %417 = vmatpush.msra.mxu0 %v376
      %418 = vmatpush.msra.mxu0 %v375
      %419 = vmatpush.msra.mxu0 %v374
      %420 = vmatmul.f32.gmra.mxu0 %v393
      %v421 = vpop.f32.mrf.mxu0
      %v422 = vadd.f32 0.0, %v421
      %423 = vmatmul.f32.gmra.mxu0 %v395
      %v424 = vpop.f32.mrf.mxu0
      %v425 = vadd.f32 0.0, %v424
      %426 = vmatmul.f32.gmra.mxu0 %v397
      %v427 = vpop.f32.mrf.mxu0
      %v428 = vadd.f32 0.0, %v427
      %429 = vmatmul.f32.gmra.mxu0 %v399
      %v430 = vpop.f32.mrf.mxu0
      %v431 = vadd.f32 0.0, %v430
      %432 = vdwg.mxu0
      %v433 = vadd.f32 %v362, %v422
      %v434 = vadd.f32 %v365, %v425
      %v435 = vadd.f32 %v368, %v428
      %v436 = vadd.f32 %v371, %v431
      %v437 = vld [vmem:[%s2] sm:$0x1]
      %v439 = vperm.slane %v437, 0
      %v441 = vmul.f32 %v433, %v439
      %v442 = vmul.f32 %v434, %v439
      %v443 = vmul.f32 %v435, %v439
      %v444 = vmul.f32 %v436, %v439
      %v445 = vld [vmem:[%s3] sm:$0x1]
      %v447 = vperm.slane %v445, 0
      %v449 = vadd.f32 %v441, %v447
      %v450 = vadd.f32 %v442, %v447
      %v451 = vadd.f32 %v443, %v447
      %v452 = vadd.f32 %v444, %v447
      %v453 = vmul.f32 %v449, 0.5
      %v454 = vmul.f32 %v450, 0.5
      %v455 = vmul.f32 %v451, 0.5
      %v456 = vmul.f32 %v452, 0.5
      %v457 = vadd.f32 %v453, 0.0
      %v458 = vadd.f32 %v454, 0.0
      %v459 = vadd.f32 %v455, 0.0
      %v460 = vadd.f32 %v456, 0.0
      %vm461 = vcmp.ge.f32.partialorder %v457, 1.0
      %vm462 = vcmp.ge.f32.partialorder %v458, 1.0
      %vm463 = vcmp.ge.f32.partialorder %v459, 1.0
      %vm464 = vcmp.ge.f32.partialorder %v460, 1.0
      %v465 = vsel %vm461, 1, 0
      %v466 = vsel %vm462, 1, 0
      %v467 = vsel %vm463, 1, 0
      %v468 = vsel %vm464, 1, 0
      %v469 = vcvt.s32.f32 %v465
      %v470 = vcvt.s32.f32 %v466
      %v471 = vcvt.s32.f32 %v467
      %v472 = vcvt.s32.f32 %v468
      %v473 = vsub.f32 1.0, %v469
      %v474 = vsub.f32 1.0, %v470
      %v475 = vsub.f32 1.0, %v471
      %v476 = vsub.f32 1.0, %v472
      %v477 = vmul.f32 %v457, %v473
      %v478 = vmul.f32 %v458, %v474
      %v479 = vmul.f32 %v459, %v475
      %v480 = vmul.f32 %v460, %v476
      %v481 = vld [vmem:[%s4] sm:$0xff]
      %v482 = vld [vmem:[%s4 + $0x8] sm:$0xff]
      %vm483 = vcmask 261120
      %v485 = vsel %vm483, %v481, 0
      %v488 = vsel %vm483, %v482, 0
      %490 = vmatpush.msra.mxu0 0.0
      %491 = vmatpush.msra.mxu0 0.0
      %492 = vmatpush.msra.mxu0 0.0
      %493 = vmatpush.msra.mxu0 0.0
      %494 = vmatpush.msra.mxu0 0.0
      %495 = vmatpush.msra.mxu0 0.0
      %496 = vmatpush.msra.mxu0 0.0
      %497 = vmatpush.msra.mxu0 0.0
      %498 = vmatpush.msra.mxu0 0.0
      %499 = vmatpush.msra.mxu0 0.0
      %500 = vmatpush.msra.mxu0 0.0
      %501 = vmatpush.msra.mxu0 0.0
      %502 = vmatpush.msra.mxu0 %v472
      %503 = vmatpush.msra.mxu0 %v471
      %504 = vmatpush.msra.mxu0 %v470
      %505 = vmatpush.msra.mxu0 %v469
      %506 = vmatmul.f32.gmra.mxu0 %v485
      %v507 = vpop.f32.mrf.mxu0
      %v508 = vadd.f32 0.0, %v507
      %509 = vmatmul.f32.gmra.mxu0 %v488
      %v510 = vpop.f32.mrf.mxu0
      %v511 = vadd.f32 0.0, %v510
      %512 = vdwg.mxu0
      %v513 = vld [vmem:[%s5] sm:$0xff]
      %v514 = vld [vmem:[%s5 + $0x8] sm:$0xff]
      %v515 = vld [vmem:[%s5 + $0x10] sm:$0xff]
      %v516 = vld [vmem:[%s5 + $0x18] sm:$0xff]
      %v517 = vld [vmem:[%s5 + $0x20] sm:$0xff]
      %v518 = vld [vmem:[%s5 + $0x28] sm:$0xff]
      %v519 = vld [vmem:[%s5 + $0x30] sm:$0xff]
      %v520 = vld [vmem:[%s5 + $0x38] sm:$0xff]
      %v521 = vld [vmem:[%s5 + $0x40] sm:$0xff]
      %v522 = vld [vmem:[%s5 + $0x48] sm:$0xff]
      %v523 = vld [vmem:[%s5 + $0x50] sm:$0xff]
      %v524 = vld [vmem:[%s5 + $0x58] sm:$0xff]
      %v525 = vld [vmem:[%s5 + $0x60] sm:$0xff]
      %v526 = vld [vmem:[%s5 + $0x68] sm:$0xff]
      %v527 = vld [vmem:[%s5 + $0x70] sm:$0xff]
      %v528 = vld [vmem:[%s5 + $0x78] sm:$0xff]
      %529 = vmatpush.msra.mxu0 %v528
      %530 = vmatpush.msra.mxu0 %v527
      %531 = vmatpush.msra.mxu0 %v526
      %532 = vmatpush.msra.mxu0 %v525
      %533 = vmatpush.msra.mxu0 %v524
      %534 = vmatpush.msra.mxu0 %v523
      %535 = vmatpush.msra.mxu0 %v522
      %536 = vmatpush.msra.mxu0 %v521
      %537 = vmatpush.msra.mxu0 %v520
      %538 = vmatpush.msra.mxu0 %v519
      %539 = vmatpush.msra.mxu0 %v518
      %540 = vmatpush.msra.mxu0 %v517
      %541 = vmatpush.msra.mxu0 %v516
      %542 = vmatpush.msra.mxu0 %v515
      %543 = vmatpush.msra.mxu0 %v514
      %544 = vmatpush.msra.mxu0 %v513
      %545 = vmatmul.f32.gmra.mxu0 %v508
      %v546 = vpop.f32.mrf.mxu0
      %v547 = vadd.f32 0.0, %v546
      %548 = vmatmul.f32.gmra.mxu0 %v511
      %v549 = vpop.f32.mrf.mxu0
      %v550 = vadd.f32 0.0, %v549
      %551 = vdwg.mxu0
      %vm552 = vcmask 523264
      %553 = vst.msk [vmem:[%s251] sm:$0xff] %vm552, %v547
      %554 = vst.msk [vmem:[%s251 + $0x8] sm:$0xff] %vm552, %v550
      %s555 = scalar_lea.vmem %s246, 40
      %v556 = vld [vmem:[%s555] sm:$0xff]
      %v557 = vld [vmem:[%s555 + $0x8] sm:$0xff]
      %v558 = vld [vmem:[%s555 + $0x10] sm:$0xff]
      %v559 = vld [vmem:[%s555 + $0x18] sm:$0xff]
      %v560 = vld [vmem:[%s555 + $0x20] sm:$0x3]
      %v561 = vld [vmem:[%s1] sm:$0xff]
      %v562 = vld [vmem:[%s1 + $0x8] sm:$0xff]
      %v563 = vld [vmem:[%s1 + $0x10] sm:$0xff]
      %v564 = vld [vmem:[%s1 + $0x18] sm:$0xff]
      %v565 = vld [vmem:[%s1 + $0x20] sm:$0xff]
      %v566 = vld [vmem:[%s1 + $0x28] sm:$0xff]
      %v567 = vld [vmem:[%s1 + $0x30] sm:$0xff]
      %v568 = vld [vmem:[%s1 + $0x38] sm:$0xff]
      %v569 = vld [vmem:[%s1 + $0x40] sm:$0xf]
      %v570 = vld [vmem:[%s266] sm:$0xff]
      %v571 = vld [vmem:[%s266 + $0x8] sm:$0xff]
      %v572 = vld [vmem:[%s266 + $0x10] sm:$0xff]
      %v573 = vld [vmem:[%s266 + $0x18] sm:$0xff]
      %v574 = vld [vmem:[%s266 + $0x20] sm:$0xff]
      %v575 = vld [vmem:[%s266 + $0x28] sm:$0xff]
      %v576 = vld [vmem:[%s266 + $0x30] sm:$0xff]
      %v577 = vld [vmem:[%s266 + $0x38] sm:$0xff]
      %v578 = vld [vmem:[%s266 + $0x40] sm:$0xf]
      %v584 = vrot.slane %v556, 1
      %v585 = vrot.slane %v557, 1
      %v586 = vsel %vm281, %v584, %v585
      %v587 = vrot.slane %v558, 1
      %v588 = vsel %vm281, %v585, %v587
      %v589 = vrot.slane %v559, 1
      %v590 = vsel %vm281, %v587, %v589
      %v591 = vrot.slane %v560, 1
      %v592 = vsel %vm281, %v589, %v591
      %v593 = vsel %vm291, %v586, 0
      %v595 = vsel %vm291, %v588, 0
      %v597 = vsel %vm291, %v590, 0
      %v599 = vsel %vm291, %v592, 0
      %v602 = vsel %vm300, %v578, 0
      %604 = vmatpush.msra.mxu0 0.0
      %605 = vmatpush.msra.mxu0 0.0
      %606 = vmatpush.msra.mxu0 0.0
      %607 = vmatpush.msra.mxu0 0.0
      %608 = vmatpush.msra.mxu0 0.0
      %609 = vmatpush.msra.mxu0 0.0
      %610 = vmatpush.msra.mxu0 0.0
      %611 = vmatpush.msra.mxu0 %v602
      %612 = vmatpush.msra.mxu0 %v577
      %613 = vmatpush.msra.mxu0 %v576
      %614 = vmatpush.msra.mxu0 %v575
      %615 = vmatpush.msra.mxu0 %v574
      %616 = vmatpush.msra.mxu0 %v573
      %617 = vmatpush.msra.mxu0 %v572
      %618 = vmatpush.msra.mxu0 %v571
      %619 = vmatpush.msra.mxu0 %v570
      %620 = vmatmul.f32.gmra.mxu0 %v593
      %v621 = vpop.f32.mrf.mxu0
      %v622 = vadd.f32 0.0, %v621
      %623 = vmatmul.f32.gmra.mxu0 %v595
      %v624 = vpop.f32.mrf.mxu0
      %v625 = vadd.f32 0.0, %v624
      %626 = vmatmul.f32.gmra.mxu0 %v597
      %v627 = vpop.f32.mrf.mxu0
      %v628 = vadd.f32 0.0, %v627
      %629 = vmatmul.f32.gmra.mxu0 %v599
      %v630 = vpop.f32.mrf.mxu0
      %v631 = vadd.f32 0.0, %v630
      %632 = vdwg.mxu0
      %v633 = vsel %vm291, %v556, 0
      %v635 = vsel %vm291, %v557, 0
      %v637 = vsel %vm291, %v558, 0
      %v639 = vsel %vm291, %v559, 0
      %v642 = vsel %vm300, %v569, 0
      %644 = vmatpush.msra.mxu0 0.0
      %645 = vmatpush.msra.mxu0 0.0
      %646 = vmatpush.msra.mxu0 0.0
      %647 = vmatpush.msra.mxu0 0.0
      %648 = vmatpush.msra.mxu0 0.0
      %649 = vmatpush.msra.mxu0 0.0
      %650 = vmatpush.msra.mxu0 0.0
      %651 = vmatpush.msra.mxu0 %v642
      %652 = vmatpush.msra.mxu0 %v568
      %653 = vmatpush.msra.mxu0 %v567
      %654 = vmatpush.msra.mxu0 %v566
      %655 = vmatpush.msra.mxu0 %v565
      %656 = vmatpush.msra.mxu0 %v564
      %657 = vmatpush.msra.mxu0 %v563
      %658 = vmatpush.msra.mxu0 %v562
      %659 = vmatpush.msra.mxu0 %v561
      %660 = vmatmul.f32.gmra.mxu0 %v633
      %v661 = vpop.f32.mrf.mxu0
      %v662 = vadd.f32 %v622, %v661
      %663 = vmatmul.f32.gmra.mxu0 %v635
      %v664 = vpop.f32.mrf.mxu0
      %v665 = vadd.f32 %v625, %v664
      %666 = vmatmul.f32.gmra.mxu0 %v637
      %v667 = vpop.f32.mrf.mxu0
      %v668 = vadd.f32 %v628, %v667
      %669 = vmatmul.f32.gmra.mxu0 %v639
      %v670 = vpop.f32.mrf.mxu0
      %v671 = vadd.f32 %v631, %v670
      %672 = vdwg.mxu0
      %v673 = vld [vmem:[%s373] sm:$0xff]
      %v674 = vld [vmem:[%s373 + $0x8] sm:$0xff]
      %v675 = vld [vmem:[%s373 + $0x10] sm:$0xff]
      %v676 = vld [vmem:[%s373 + $0x18] sm:$0xff]
      %v677 = vld [vmem:[%s373 + $0x20] sm:$0xff]
      %v678 = vld [vmem:[%s373 + $0x28] sm:$0xff]
      %v679 = vld [vmem:[%s373 + $0x30] sm:$0xff]
      %v680 = vld [vmem:[%s373 + $0x38] sm:$0xff]
      %v681 = vld [vmem:[%s373 + $0x40] sm:$0xf]
      %v682 = vrot.slane %v556, 2
      %v683 = vrot.slane %v557, 2
      %v684 = vsel %vm383, %v682, %v683
      %v685 = vrot.slane %v558, 2
      %v686 = vsel %vm383, %v683, %v685
      %v687 = vrot.slane %v559, 2
      %v688 = vsel %vm383, %v685, %v687
      %v689 = vrot.slane %v560, 2
      %v690 = vsel %vm383, %v687, %v689
      %v691 = vsel %vm291, %v684, 0
      %v693 = vsel %vm291, %v686, 0
      %v695 = vsel %vm291, %v688, 0
      %v697 = vsel %vm291, %v690, 0
      %v700 = vsel %vm300, %v681, 0
      %702 = vmatpush.msra.mxu0 0.0
      %703 = vmatpush.msra.mxu0 0.0
      %704 = vmatpush.msra.mxu0 0.0
      %705 = vmatpush.msra.mxu0 0.0
      %706 = vmatpush.msra.mxu0 0.0
      %707 = vmatpush.msra.mxu0 0.0
      %708 = vmatpush.msra.mxu0 0.0
      %709 = vmatpush.msra.mxu0 %v700
      %710 = vmatpush.msra.mxu0 %v680
      %711 = vmatpush.msra.mxu0 %v679
      %712 = vmatpush.msra.mxu0 %v678
      %713 = vmatpush.msra.mxu0 %v677
      %714 = vmatpush.msra.mxu0 %v676
      %715 = vmatpush.msra.mxu0 %v675
      %716 = vmatpush.msra.mxu0 %v674
      %717 = vmatpush.msra.mxu0 %v673
      %718 = vmatmul.f32.gmra.mxu0 %v691
      %v719 = vpop.f32.mrf.mxu0
      %v720 = vadd.f32 0.0, %v719
      %721 = vmatmul.f32.gmra.mxu0 %v693
      %v722 = vpop.f32.mrf.mxu0
      %v723 = vadd.f32 0.0, %v722
      %724 = vmatmul.f32.gmra.mxu0 %v695
      %v725 = vpop.f32.mrf.mxu0
      %v726 = vadd.f32 0.0, %v725
      %727 = vmatmul.f32.gmra.mxu0 %v697
      %v728 = vpop.f32.mrf.mxu0
      %v729 = vadd.f32 0.0, %v728
      %730 = vdwg.mxu0
      %v731 = vadd.f32 %v662, %v720
      %v732 = vadd.f32 %v665, %v723
      %v733 = vadd.f32 %v668, %v726
      %v734 = vadd.f32 %v671, %v729
      %v735 = vld [vmem:[%s2] sm:$0x1]
      %v737 = vperm.slane %v735, 0
      %v739 = vmul.f32 %v731, %v737
      %v740 = vmul.f32 %v732, %v737
      %v741 = vmul.f32 %v733, %v737
      %v742 = vmul.f32 %v734, %v737
      %v743 = vld [vmem:[%s3] sm:$0x1]
      %v745 = vperm.slane %v743, 0
      %v747 = vadd.f32 %v739, %v745
      %v748 = vadd.f32 %v740, %v745
      %v749 = vadd.f32 %v741, %v745
      %v750 = vadd.f32 %v742, %v745
      %v751 = vsub.f32 %v747, %v477
      %v752 = vsub.f32 %v748, %v478
      %v753 = vsub.f32 %v749, %v479
      %v754 = vsub.f32 %v750, %v480
      %v755 = vmul.f32 %v751, 0.5
      %v756 = vmul.f32 %v752, 0.5
      %v757 = vmul.f32 %v753, 0.5
      %v758 = vmul.f32 %v754, 0.5
      %v759 = vadd.f32 %v477, %v755
      %v760 = vadd.f32 %v478, %v756
      %v761 = vadd.f32 %v479, %v757
      %v762 = vadd.f32 %v480, %v758
      %vm763 = vcmp.ge.f32.partialorder %v759, 1.0
      %vm764 = vcmp.ge.f32.partialorder %v760, 1.0
      %vm765 = vcmp.ge.f32.partialorder %v761, 1.0
      %vm766 = vcmp.ge.f32.partialorder %v762, 1.0
      %v767 = vsel %vm763, 1, 0
      %v768 = vsel %vm764, 1, 0
      %v769 = vsel %vm765, 1, 0
      %v770 = vsel %vm766, 1, 0
      %v771 = vcvt.s32.f32 %v767
      %v772 = vcvt.s32.f32 %v768
      %v773 = vcvt.s32.f32 %v769
      %v774 = vcvt.s32.f32 %v770
      %v775 = vsub.f32 1.0, %v771
      %v776 = vsub.f32 1.0, %v772
      %v777 = vsub.f32 1.0, %v773
      %v778 = vsub.f32 1.0, %v774
      %v779 = vmul.f32 %v759, %v775
      %v780 = vmul.f32 %v760, %v776
      %v781 = vmul.f32 %v761, %v777
      %v782 = vmul.f32 %v762, %v778
      %v783 = vld [vmem:[%s4] sm:$0xff]
      %v784 = vld [vmem:[%s4 + $0x8] sm:$0xff]
      %v786 = vsel %vm483, %v783, 0
      %v789 = vsel %vm483, %v784, 0
      %791 = vmatpush.msra.mxu0 0.0
      %792 = vmatpush.msra.mxu0 0.0
      %793 = vmatpush.msra.mxu0 0.0
      %794 = vmatpush.msra.mxu0 0.0
      %795 = vmatpush.msra.mxu0 0.0
      %796 = vmatpush.msra.mxu0 0.0
      %797 = vmatpush.msra.mxu0 0.0
      %798 = vmatpush.msra.mxu0 0.0
      %799 = vmatpush.msra.mxu0 0.0
      %800 = vmatpush.msra.mxu0 0.0
      %801 = vmatpush.msra.mxu0 0.0
      %802 = vmatpush.msra.mxu0 0.0
      %803 = vmatpush.msra.mxu0 %v774
      %804 = vmatpush.msra.mxu0 %v773
      %805 = vmatpush.msra.mxu0 %v772
      %806 = vmatpush.msra.mxu0 %v771
      %807 = vmatmul.f32.gmra.mxu0 %v786
      %v808 = vpop.f32.mrf.mxu0
      %v809 = vadd.f32 0.0, %v808
      %810 = vmatmul.f32.gmra.mxu0 %v789
      %v811 = vpop.f32.mrf.mxu0
      %v812 = vadd.f32 0.0, %v811
      %813 = vdwg.mxu0
      %v814 = vld [vmem:[%s5] sm:$0xff]
      %v815 = vld [vmem:[%s5 + $0x8] sm:$0xff]
      %v816 = vld [vmem:[%s5 + $0x10] sm:$0xff]
      %v817 = vld [vmem:[%s5 + $0x18] sm:$0xff]
      %v818 = vld [vmem:[%s5 + $0x20] sm:$0xff]
      %v819 = vld [vmem:[%s5 + $0x28] sm:$0xff]
      %v820 = vld [vmem:[%s5 + $0x30] sm:$0xff]
      %v821 = vld [vmem:[%s5 + $0x38] sm:$0xff]
      %v822 = vld [vmem:[%s5 + $0x40] sm:$0xff]
      %v823 = vld [vmem:[%s5 + $0x48] sm:$0xff]
      %v824 = vld [vmem:[%s5 + $0x50] sm:$0xff]
      %v825 = vld [vmem:[%s5 + $0x58] sm:$0xff]
      %v826 = vld [vmem:[%s5 + $0x60] sm:$0xff]
      %v827 = vld [vmem:[%s5 + $0x68] sm:$0xff]
      %v828 = vld [vmem:[%s5 + $0x70] sm:$0xff]
      %v829 = vld [vmem:[%s5 + $0x78] sm:$0xff]
      %830 = vmatpush.msra.mxu0 %v829
      %831 = vmatpush.msra.mxu0 %v828
      %832 = vmatpush.msra.mxu0 %v827
      %833 = vmatpush.msra.mxu0 %v826
      %834 = vmatpush.msra.mxu0 %v825
      %835 = vmatpush.msra.mxu0 %v824
      %836 = vmatpush.msra.mxu0 %v823
      %837 = vmatpush.msra.mxu0 %v822
      %838 = vmatpush.msra.mxu0 %v821
      %839 = vmatpush.msra.mxu0 %v820
      %840 = vmatpush.msra.mxu0 %v819
      %841 = vmatpush.msra.mxu0 %v818
      %842 = vmatpush.msra.mxu0 %v817
      %843 = vmatpush.msra.mxu0 %v816
      %844 = vmatpush.msra.mxu0 %v815
      %845 = vmatpush.msra.mxu0 %v814
      %846 = vmatmul.f32.gmra.mxu0 %v809
      %v847 = vpop.f32.mrf.mxu0
      %v848 = vadd.f32 0.0, %v847
      %849 = vmatmul.f32.gmra.mxu0 %v812
      %v850 = vpop.f32.mrf.mxu0
      %v851 = vadd.f32 0.0, %v850
      %852 = vdwg.mxu0
      %s853 = scalar_lea.vmem %s251, 16
      %854 = vst.msk [vmem:[%s853] sm:$0xff] %vm552, %v848
      %855 = vst.msk [vmem:[%s853 + $0x8] sm:$0xff] %vm552, %v851
      %s856 = scalar_lea.vmem %s246, 80
      %v857 = vld [vmem:[%s856] sm:$0xff]
      %v858 = vld [vmem:[%s856 + $0x8] sm:$0xff]
      %v859 = vld [vmem:[%s856 + $0x10] sm:$0xff]
      %v860 = vld [vmem:[%s856 + $0x18] sm:$0xff]
      %v861 = vld [vmem:[%s856 + $0x20] sm:$0x3]
      %v862 = vld [vmem:[%s1] sm:$0xff]
      %v863 = vld [vmem:[%s1 + $0x8] sm:$0xff]
      %v864 = vld [vmem:[%s1 + $0x10] sm:$0xff]
      %v865 = vld [vmem:[%s1 + $0x18] sm:$0xff]
      %v866 = vld [vmem:[%s1 + $0x20] sm:$0xff]
      %v867 = vld [vmem:[%s1 + $0x28] sm:$0xff]
      %v868 = vld [vmem:[%s1 + $0x30] sm:$0xff]
      %v869 = vld [vmem:[%s1 + $0x38] sm:$0xff]
      %v870 = vld [vmem:[%s1 + $0x40] sm:$0xf]
      %v871 = vld [vmem:[%s266] sm:$0xff]
      %v872 = vld [vmem:[%s266 + $0x8] sm:$0xff]
      %v873 = vld [vmem:[%s266 + $0x10] sm:$0xff]
      %v874 = vld [vmem:[%s266 + $0x18] sm:$0xff]
      %v875 = vld [vmem:[%s266 + $0x20] sm:$0xff]
      %v876 = vld [vmem:[%s266 + $0x28] sm:$0xff]
      %v877 = vld [vmem:[%s266 + $0x30] sm:$0xff]
      %v878 = vld [vmem:[%s266 + $0x38] sm:$0xff]
      %v879 = vld [vmem:[%s266 + $0x40] sm:$0xf]
      %v885 = vrot.slane %v857, 1
      %v886 = vrot.slane %v858, 1
      %v887 = vsel %vm281, %v885, %v886
      %v888 = vrot.slane %v859, 1
      %v889 = vsel %vm281, %v886, %v888
      %v890 = vrot.slane %v860, 1
      %v891 = vsel %vm281, %v888, %v890
      %v892 = vrot.slane %v861, 1
      %v893 = vsel %vm281, %v890, %v892
      %v894 = vsel %vm291, %v887, 0
      %v896 = vsel %vm291, %v889, 0
      %v898 = vsel %vm291, %v891, 0
      %v900 = vsel %vm291, %v893, 0
      %v903 = vsel %vm300, %v879, 0
      %905 = vmatpush.msra.mxu0 0.0
      %906 = vmatpush.msra.mxu0 0.0
      %907 = vmatpush.msra.mxu0 0.0
      %908 = vmatpush.msra.mxu0 0.0
      %909 = vmatpush.msra.mxu0 0.0
      %910 = vmatpush.msra.mxu0 0.0
      %911 = vmatpush.msra.mxu0 0.0
      %912 = vmatpush.msra.mxu0 %v903
      %913 = vmatpush.msra.mxu0 %v878
      %914 = vmatpush.msra.mxu0 %v877
      %915 = vmatpush.msra.mxu0 %v876
      %916 = vmatpush.msra.mxu0 %v875
      %917 = vmatpush.msra.mxu0 %v874
      %918 = vmatpush.msra.mxu0 %v873
      %919 = vmatpush.msra.mxu0 %v872
      %920 = vmatpush.msra.mxu0 %v871
      %921 = vmatmul.f32.gmra.mxu0 %v894
      %v922 = vpop.f32.mrf.mxu0
      %v923 = vadd.f32 0.0, %v922
      %924 = vmatmul.f32.gmra.mxu0 %v896
      %v925 = vpop.f32.mrf.mxu0
      %v926 = vadd.f32 0.0, %v925
      %927 = vmatmul.f32.gmra.mxu0 %v898
      %v928 = vpop.f32.mrf.mxu0
      %v929 = vadd.f32 0.0, %v928
      %930 = vmatmul.f32.gmra.mxu0 %v900
      %v931 = vpop.f32.mrf.mxu0
      %v932 = vadd.f32 0.0, %v931
      %933 = vdwg.mxu0
      %v934 = vsel %vm291, %v857, 0
      %v936 = vsel %vm291, %v858, 0
      %v938 = vsel %vm291, %v859, 0
      %v940 = vsel %vm291, %v860, 0
      %v943 = vsel %vm300, %v870, 0
      %945 = vmatpush.msra.mxu0 0.0
      %946 = vmatpush.msra.mxu0 0.0
      %947 = vmatpush.msra.mxu0 0.0
      %948 = vmatpush.msra.mxu0 0.0
      %949 = vmatpush.msra.mxu0 0.0
      %950 = vmatpush.msra.mxu0 0.0
      %951 = vmatpush.msra.mxu0 0.0
      %952 = vmatpush.msra.mxu0 %v943
      %953 = vmatpush.msra.mxu0 %v869
      %954 = vmatpush.msra.mxu0 %v868
      %955 = vmatpush.msra.mxu0 %v867
      %956 = vmatpush.msra.mxu0 %v866
      %957 = vmatpush.msra.mxu0 %v865
      %958 = vmatpush.msra.mxu0 %v864
      %959 = vmatpush.msra.mxu0 %v863
      %960 = vmatpush.msra.mxu0 %v862
      %961 = vmatmul.f32.gmra.mxu0 %v934
      %v962 = vpop.f32.mrf.mxu0
      %v963 = vadd.f32 %v923, %v962
      %964 = vmatmul.f32.gmra.mxu0 %v936
      %v965 = vpop.f32.mrf.mxu0
      %v966 = vadd.f32 %v926, %v965
      %967 = vmatmul.f32.gmra.mxu0 %v938
      %v968 = vpop.f32.mrf.mxu0
      %v969 = vadd.f32 %v929, %v968
      %970 = vmatmul.f32.gmra.mxu0 %v940
      %v971 = vpop.f32.mrf.mxu0
      %v972 = vadd.f32 %v932, %v971
      %973 = vdwg.mxu0
      %v974 = vld [vmem:[%s373] sm:$0xff]
      %v975 = vld [vmem:[%s373 + $0x8] sm:$0xff]
      %v976 = vld [vmem:[%s373 + $0x10] sm:$0xff]
      %v977 = vld [vmem:[%s373 + $0x18] sm:$0xff]
      %v978 = vld [vmem:[%s373 + $0x20] sm:$0xff]
      %v979 = vld [vmem:[%s373 + $0x28] sm:$0xff]
      %v980 = vld [vmem:[%s373 + $0x30] sm:$0xff]
      %v981 = vld [vmem:[%s373 + $0x38] sm:$0xff]
      %v982 = vld [vmem:[%s373 + $0x40] sm:$0xf]
      %v983 = vrot.slane %v857, 2
      %v984 = vrot.slane %v858, 2
      %v985 = vsel %vm383, %v983, %v984
      %v986 = vrot.slane %v859, 2
      %v987 = vsel %vm383, %v984, %v986
      %v988 = vrot.slane %v860, 2
      %v989 = vsel %vm383, %v986, %v988
      %v990 = vrot.slane %v861, 2
      %v991 = vsel %vm383, %v988, %v990
      %v992 = vsel %vm291, %v985, 0
      %v994 = vsel %vm291, %v987, 0
      %v996 = vsel %vm291, %v989, 0
      %v998 = vsel %vm291, %v991, 0
      %v1001 = vsel %vm300, %v982, 0
      %1003 = vmatpush.msra.mxu0 0.0
      %1004 = vmatpush.msra.mxu0 0.0
      %1005 = vmatpush.msra.mxu0 0.0
      %1006 = vmatpush.msra.mxu0 0.0
      %1007 = vmatpush.msra.mxu0 0.0
      %1008 = vmatpush.msra.mxu0 0.0
      %1009 = vmatpush.msra.mxu0 0.0
      %1010 = vmatpush.msra.mxu0 %v1001
      %1011 = vmatpush.msra.mxu0 %v981
      %1012 = vmatpush.msra.mxu0 %v980
      %1013 = vmatpush.msra.mxu0 %v979
      %1014 = vmatpush.msra.mxu0 %v978
      %1015 = vmatpush.msra.mxu0 %v977
      %1016 = vmatpush.msra.mxu0 %v976
      %1017 = vmatpush.msra.mxu0 %v975
      %1018 = vmatpush.msra.mxu0 %v974
      %1019 = vmatmul.f32.gmra.mxu0 %v992
      %v1020 = vpop.f32.mrf.mxu0
      %v1021 = vadd.f32 0.0, %v1020
      %1022 = vmatmul.f32.gmra.mxu0 %v994
      %v1023 = vpop.f32.mrf.mxu0
      %v1024 = vadd.f32 0.0, %v1023
      %1025 = vmatmul.f32.gmra.mxu0 %v996
      %v1026 = vpop.f32.mrf.mxu0
      %v1027 = vadd.f32 0.0, %v1026
      %1028 = vmatmul.f32.gmra.mxu0 %v998
      %v1029 = vpop.f32.mrf.mxu0
      %v1030 = vadd.f32 0.0, %v1029
      %1031 = vdwg.mxu0
      %v1032 = vadd.f32 %v963, %v1021
      %v1033 = vadd.f32 %v966, %v1024
      %v1034 = vadd.f32 %v969, %v1027
      %v1035 = vadd.f32 %v972, %v1030
      %v1036 = vld [vmem:[%s2] sm:$0x1]
      %v1038 = vperm.slane %v1036, 0
      %v1040 = vmul.f32 %v1032, %v1038
      %v1041 = vmul.f32 %v1033, %v1038
      %v1042 = vmul.f32 %v1034, %v1038
      %v1043 = vmul.f32 %v1035, %v1038
      %v1044 = vld [vmem:[%s3] sm:$0x1]
      %v1046 = vperm.slane %v1044, 0
      %v1048 = vadd.f32 %v1040, %v1046
      %v1049 = vadd.f32 %v1041, %v1046
      %v1050 = vadd.f32 %v1042, %v1046
      %v1051 = vadd.f32 %v1043, %v1046
      %v1052 = vsub.f32 %v1048, %v779
      %v1053 = vsub.f32 %v1049, %v780
      %v1054 = vsub.f32 %v1050, %v781
      %v1055 = vsub.f32 %v1051, %v782
      %v1056 = vmul.f32 %v1052, 0.5
      %v1057 = vmul.f32 %v1053, 0.5
      %v1058 = vmul.f32 %v1054, 0.5
      %v1059 = vmul.f32 %v1055, 0.5
      %v1060 = vadd.f32 %v779, %v1056
      %v1061 = vadd.f32 %v780, %v1057
      %v1062 = vadd.f32 %v781, %v1058
      %v1063 = vadd.f32 %v782, %v1059
      %vm1064 = vcmp.ge.f32.partialorder %v1060, 1.0
      %vm1065 = vcmp.ge.f32.partialorder %v1061, 1.0
      %vm1066 = vcmp.ge.f32.partialorder %v1062, 1.0
      %vm1067 = vcmp.ge.f32.partialorder %v1063, 1.0
      %v1068 = vsel %vm1064, 1, 0
      %v1069 = vsel %vm1065, 1, 0
      %v1070 = vsel %vm1066, 1, 0
      %v1071 = vsel %vm1067, 1, 0
      %v1072 = vcvt.s32.f32 %v1068
      %v1073 = vcvt.s32.f32 %v1069
      %v1074 = vcvt.s32.f32 %v1070
      %v1075 = vcvt.s32.f32 %v1071
      %v1076 = vsub.f32 1.0, %v1072
      %v1077 = vsub.f32 1.0, %v1073
      %v1078 = vsub.f32 1.0, %v1074
      %v1079 = vsub.f32 1.0, %v1075
      %v1080 = vmul.f32 %v1060, %v1076
      %v1081 = vmul.f32 %v1061, %v1077
      %v1082 = vmul.f32 %v1062, %v1078
      %v1083 = vmul.f32 %v1063, %v1079
      %v1084 = vld [vmem:[%s4] sm:$0xff]
      %v1085 = vld [vmem:[%s4 + $0x8] sm:$0xff]
      %v1087 = vsel %vm483, %v1084, 0
      %v1090 = vsel %vm483, %v1085, 0
      %1092 = vmatpush.msra.mxu0 0.0
      %1093 = vmatpush.msra.mxu0 0.0
      %1094 = vmatpush.msra.mxu0 0.0
      %1095 = vmatpush.msra.mxu0 0.0
      %1096 = vmatpush.msra.mxu0 0.0
      %1097 = vmatpush.msra.mxu0 0.0
      %1098 = vmatpush.msra.mxu0 0.0
      %1099 = vmatpush.msra.mxu0 0.0
      %1100 = vmatpush.msra.mxu0 0.0
      %1101 = vmatpush.msra.mxu0 0.0
      %1102 = vmatpush.msra.mxu0 0.0
      %1103 = vmatpush.msra.mxu0 0.0
      %1104 = vmatpush.msra.mxu0 %v1075
      %1105 = vmatpush.msra.mxu0 %v1074
      %1106 = vmatpush.msra.mxu0 %v1073
      %1107 = vmatpush.msra.mxu0 %v1072
      %1108 = vmatmul.f32.gmra.mxu0 %v1087
      %v1109 = vpop.f32.mrf.mxu0
      %v1110 = vadd.f32 0.0, %v1109
      %1111 = vmatmul.f32.gmra.mxu0 %v1090
      %v1112 = vpop.f32.mrf.mxu0
      %v1113 = vadd.f32 0.0, %v1112
      %1114 = vdwg.mxu0
      %v1115 = vld [vmem:[%s5] sm:$0xff]
      %v1116 = vld [vmem:[%s5 + $0x8] sm:$0xff]
      %v1117 = vld [vmem:[%s5 + $0x10] sm:$0xff]
      %v1118 = vld [vmem:[%s5 + $0x18] sm:$0xff]
      %v1119 = vld [vmem:[%s5 + $0x20] sm:$0xff]
      %v1120 = vld [vmem:[%s5 + $0x28] sm:$0xff]
      %v1121 = vld [vmem:[%s5 + $0x30] sm:$0xff]
      %v1122 = vld [vmem:[%s5 + $0x38] sm:$0xff]
      %v1123 = vld [vmem:[%s5 + $0x40] sm:$0xff]
      %v1124 = vld [vmem:[%s5 + $0x48] sm:$0xff]
      %v1125 = vld [vmem:[%s5 + $0x50] sm:$0xff]
      %v1126 = vld [vmem:[%s5 + $0x58] sm:$0xff]
      %v1127 = vld [vmem:[%s5 + $0x60] sm:$0xff]
      %v1128 = vld [vmem:[%s5 + $0x68] sm:$0xff]
      %v1129 = vld [vmem:[%s5 + $0x70] sm:$0xff]
      %v1130 = vld [vmem:[%s5 + $0x78] sm:$0xff]
      %1131 = vmatpush.msra.mxu0 %v1130
      %1132 = vmatpush.msra.mxu0 %v1129
      %1133 = vmatpush.msra.mxu0 %v1128
      %1134 = vmatpush.msra.mxu0 %v1127
      %1135 = vmatpush.msra.mxu0 %v1126
      %1136 = vmatpush.msra.mxu0 %v1125
      %1137 = vmatpush.msra.mxu0 %v1124
      %1138 = vmatpush.msra.mxu0 %v1123
      %1139 = vmatpush.msra.mxu0 %v1122
      %1140 = vmatpush.msra.mxu0 %v1121
      %1141 = vmatpush.msra.mxu0 %v1120
      %1142 = vmatpush.msra.mxu0 %v1119
      %1143 = vmatpush.msra.mxu0 %v1118
      %1144 = vmatpush.msra.mxu0 %v1117
      %1145 = vmatpush.msra.mxu0 %v1116
      %1146 = vmatpush.msra.mxu0 %v1115
      %1147 = vmatmul.f32.gmra.mxu0 %v1110
      %v1148 = vpop.f32.mrf.mxu0
      %v1149 = vadd.f32 0.0, %v1148
      %1150 = vmatmul.f32.gmra.mxu0 %v1113
      %v1151 = vpop.f32.mrf.mxu0
      %v1152 = vadd.f32 0.0, %v1151
      %1153 = vdwg.mxu0
      %s1154 = scalar_lea.vmem %s251, 32
      %1155 = vst.msk [vmem:[%s1154] sm:$0xff] %vm552, %v1149
      %1156 = vst.msk [vmem:[%s1154 + $0x8] sm:$0xff] %vm552, %v1152
      %s1157 = scalar_lea.vmem %s246, 120
      %v1158 = vld [vmem:[%s1157] sm:$0xff]
      %v1159 = vld [vmem:[%s1157 + $0x8] sm:$0xff]
      %v1160 = vld [vmem:[%s1157 + $0x10] sm:$0xff]
      %v1161 = vld [vmem:[%s1157 + $0x18] sm:$0xff]
      %v1162 = vld [vmem:[%s1157 + $0x20] sm:$0x3]
      %v1163 = vld [vmem:[%s1] sm:$0xff]
      %v1164 = vld [vmem:[%s1 + $0x8] sm:$0xff]
      %v1165 = vld [vmem:[%s1 + $0x10] sm:$0xff]
      %v1166 = vld [vmem:[%s1 + $0x18] sm:$0xff]
      %v1167 = vld [vmem:[%s1 + $0x20] sm:$0xff]
      %v1168 = vld [vmem:[%s1 + $0x28] sm:$0xff]
      %v1169 = vld [vmem:[%s1 + $0x30] sm:$0xff]
      %v1170 = vld [vmem:[%s1 + $0x38] sm:$0xff]
      %v1171 = vld [vmem:[%s1 + $0x40] sm:$0xf]
      %v1172 = vld [vmem:[%s266] sm:$0xff]
      %v1173 = vld [vmem:[%s266 + $0x8] sm:$0xff]
      %v1174 = vld [vmem:[%s266 + $0x10] sm:$0xff]
      %v1175 = vld [vmem:[%s266 + $0x18] sm:$0xff]
      %v1176 = vld [vmem:[%s266 + $0x20] sm:$0xff]
      %v1177 = vld [vmem:[%s266 + $0x28] sm:$0xff]
      %v1178 = vld [vmem:[%s266 + $0x30] sm:$0xff]
      %v1179 = vld [vmem:[%s266 + $0x38] sm:$0xff]
      %v1180 = vld [vmem:[%s266 + $0x40] sm:$0xf]
      %v1186 = vrot.slane %v1158, 1
      %v1187 = vrot.slane %v1159, 1
      %v1188 = vsel %vm281, %v1186, %v1187
      %v1189 = vrot.slane %v1160, 1
      %v1190 = vsel %vm281, %v1187, %v1189
      %v1191 = vrot.slane %v1161, 1
      %v1192 = vsel %vm281, %v1189, %v1191
      %v1193 = vrot.slane %v1162, 1
      %v1194 = vsel %vm281, %v1191, %v1193
      %v1195 = vsel %vm291, %v1188, 0
      %v1197 = vsel %vm291, %v1190, 0
      %v1199 = vsel %vm291, %v1192, 0
      %v1201 = vsel %vm291, %v1194, 0
      %v1204 = vsel %vm300, %v1180, 0
      %1206 = vmatpush.msra.mxu0 0.0
      %1207 = vmatpush.msra.mxu0 0.0
      %1208 = vmatpush.msra.mxu0 0.0
      %1209 = vmatpush.msra.mxu0 0.0
      %1210 = vmatpush.msra.mxu0 0.0
      %1211 = vmatpush.msra.mxu0 0.0
      %1212 = vmatpush.msra.mxu0 0.0
      %1213 = vmatpush.msra.mxu0 %v1204
      %1214 = vmatpush.msra.mxu0 %v1179
      %1215 = vmatpush.msra.mxu0 %v1178
      %1216 = vmatpush.msra.mxu0 %v1177
      %1217 = vmatpush.msra.mxu0 %v1176
      %1218 = vmatpush.msra.mxu0 %v1175
      %1219 = vmatpush.msra.mxu0 %v1174
      %1220 = vmatpush.msra.mxu0 %v1173
      %1221 = vmatpush.msra.mxu0 %v1172
      %1222 = vmatmul.f32.gmra.mxu0 %v1195
      %v1223 = vpop.f32.mrf.mxu0
      %v1224 = vadd.f32 0.0, %v1223
      %1225 = vmatmul.f32.gmra.mxu0 %v1197
      %v1226 = vpop.f32.mrf.mxu0
      %v1227 = vadd.f32 0.0, %v1226
      %1228 = vmatmul.f32.gmra.mxu0 %v1199
      %v1229 = vpop.f32.mrf.mxu0
      %v1230 = vadd.f32 0.0, %v1229
      %1231 = vmatmul.f32.gmra.mxu0 %v1201
      %v1232 = vpop.f32.mrf.mxu0
      %v1233 = vadd.f32 0.0, %v1232
      %1234 = vdwg.mxu0
      %v1235 = vsel %vm291, %v1158, 0
      %v1237 = vsel %vm291, %v1159, 0
      %v1239 = vsel %vm291, %v1160, 0
      %v1241 = vsel %vm291, %v1161, 0
      %v1244 = vsel %vm300, %v1171, 0
      %1246 = vmatpush.msra.mxu0 0.0
      %1247 = vmatpush.msra.mxu0 0.0
      %1248 = vmatpush.msra.mxu0 0.0
      %1249 = vmatpush.msra.mxu0 0.0
      %1250 = vmatpush.msra.mxu0 0.0
      %1251 = vmatpush.msra.mxu0 0.0
      %1252 = vmatpush.msra.mxu0 0.0
      %1253 = vmatpush.msra.mxu0 %v1244
      %1254 = vmatpush.msra.mxu0 %v1170
      %1255 = vmatpush.msra.mxu0 %v1169
      %1256 = vmatpush.msra.mxu0 %v1168
      %1257 = vmatpush.msra.mxu0 %v1167
      %1258 = vmatpush.msra.mxu0 %v1166
      %1259 = vmatpush.msra.mxu0 %v1165
      %1260 = vmatpush.msra.mxu0 %v1164
      %1261 = vmatpush.msra.mxu0 %v1163
      %1262 = vmatmul.f32.gmra.mxu0 %v1235
      %v1263 = vpop.f32.mrf.mxu0
      %v1264 = vadd.f32 %v1224, %v1263
      %1265 = vmatmul.f32.gmra.mxu0 %v1237
      %v1266 = vpop.f32.mrf.mxu0
      %v1267 = vadd.f32 %v1227, %v1266
      %1268 = vmatmul.f32.gmra.mxu0 %v1239
      %v1269 = vpop.f32.mrf.mxu0
      %v1270 = vadd.f32 %v1230, %v1269
      %1271 = vmatmul.f32.gmra.mxu0 %v1241
      %v1272 = vpop.f32.mrf.mxu0
      %v1273 = vadd.f32 %v1233, %v1272
      %1274 = vdwg.mxu0
      %v1275 = vld [vmem:[%s373] sm:$0xff]
      %v1276 = vld [vmem:[%s373 + $0x8] sm:$0xff]
      %v1277 = vld [vmem:[%s373 + $0x10] sm:$0xff]
      %v1278 = vld [vmem:[%s373 + $0x18] sm:$0xff]
      %v1279 = vld [vmem:[%s373 + $0x20] sm:$0xff]
      %v1280 = vld [vmem:[%s373 + $0x28] sm:$0xff]
      %v1281 = vld [vmem:[%s373 + $0x30] sm:$0xff]
      %v1282 = vld [vmem:[%s373 + $0x38] sm:$0xff]
      %v1283 = vld [vmem:[%s373 + $0x40] sm:$0xf]
      %v1284 = vrot.slane %v1158, 2
      %v1285 = vrot.slane %v1159, 2
      %v1286 = vsel %vm383, %v1284, %v1285
      %v1287 = vrot.slane %v1160, 2
      %v1288 = vsel %vm383, %v1285, %v1287
      %v1289 = vrot.slane %v1161, 2
      %v1290 = vsel %vm383, %v1287, %v1289
      %v1291 = vrot.slane %v1162, 2
      %v1292 = vsel %vm383, %v1289, %v1291
      %v1293 = vsel %vm291, %v1286, 0
      %v1295 = vsel %vm291, %v1288, 0
      %v1297 = vsel %vm291, %v1290, 0
      %v1299 = vsel %vm291, %v1292, 0
      %v1302 = vsel %vm300, %v1283, 0
      %1304 = vmatpush.msra.mxu0 0.0
      %1305 = vmatpush.msra.mxu0 0.0
      %1306 = vmatpush.msra.mxu0 0.0
      %1307 = vmatpush.msra.mxu0 0.0
      %1308 = vmatpush.msra.mxu0 0.0
      %1309 = vmatpush.msra.mxu0 0.0
      %1310 = vmatpush.msra.mxu0 0.0
      %1311 = vmatpush.msra.mxu0 %v1302
      %1312 = vmatpush.msra.mxu0 %v1282
      %1313 = vmatpush.msra.mxu0 %v1281
      %1314 = vmatpush.msra.mxu0 %v1280
      %1315 = vmatpush.msra.mxu0 %v1279
      %1316 = vmatpush.msra.mxu0 %v1278
      %1317 = vmatpush.msra.mxu0 %v1277
      %1318 = vmatpush.msra.mxu0 %v1276
      %1319 = vmatpush.msra.mxu0 %v1275
      %1320 = vmatmul.f32.gmra.mxu0 %v1293
      %v1321 = vpop.f32.mrf.mxu0
      %v1322 = vadd.f32 0.0, %v1321
      %1323 = vmatmul.f32.gmra.mxu0 %v1295
      %v1324 = vpop.f32.mrf.mxu0
      %v1325 = vadd.f32 0.0, %v1324
      %1326 = vmatmul.f32.gmra.mxu0 %v1297
      %v1327 = vpop.f32.mrf.mxu0
      %v1328 = vadd.f32 0.0, %v1327
      %1329 = vmatmul.f32.gmra.mxu0 %v1299
      %v1330 = vpop.f32.mrf.mxu0
      %v1331 = vadd.f32 0.0, %v1330
      %1332 = vdwg.mxu0
      %v1333 = vadd.f32 %v1264, %v1322
      %v1334 = vadd.f32 %v1267, %v1325
      %v1335 = vadd.f32 %v1270, %v1328
      %v1336 = vadd.f32 %v1273, %v1331
      %v1337 = vld [vmem:[%s2] sm:$0x1]
      %v1339 = vperm.slane %v1337, 0
      %v1341 = vmul.f32 %v1333, %v1339
      %v1342 = vmul.f32 %v1334, %v1339
      %v1343 = vmul.f32 %v1335, %v1339
      %v1344 = vmul.f32 %v1336, %v1339
      %v1345 = vld [vmem:[%s3] sm:$0x1]
      %v1347 = vperm.slane %v1345, 0
      %v1349 = vadd.f32 %v1341, %v1347
      %v1350 = vadd.f32 %v1342, %v1347
      %v1351 = vadd.f32 %v1343, %v1347
      %v1352 = vadd.f32 %v1344, %v1347
      %v1353 = vsub.f32 %v1349, %v1080
      %v1354 = vsub.f32 %v1350, %v1081
      %v1355 = vsub.f32 %v1351, %v1082
      %v1356 = vsub.f32 %v1352, %v1083
      %v1357 = vmul.f32 %v1353, 0.5
      %v1358 = vmul.f32 %v1354, 0.5
      %v1359 = vmul.f32 %v1355, 0.5
      %v1360 = vmul.f32 %v1356, 0.5
      %v1361 = vadd.f32 %v1080, %v1357
      %v1362 = vadd.f32 %v1081, %v1358
      %v1363 = vadd.f32 %v1082, %v1359
      %v1364 = vadd.f32 %v1083, %v1360
      %vm1365 = vcmp.ge.f32.partialorder %v1361, 1.0
      %vm1366 = vcmp.ge.f32.partialorder %v1362, 1.0
      %vm1367 = vcmp.ge.f32.partialorder %v1363, 1.0
      %vm1368 = vcmp.ge.f32.partialorder %v1364, 1.0
      %v1369 = vsel %vm1365, 1, 0
      %v1370 = vsel %vm1366, 1, 0
      %v1371 = vsel %vm1367, 1, 0
      %v1372 = vsel %vm1368, 1, 0
      %v1373 = vcvt.s32.f32 %v1369
      %v1374 = vcvt.s32.f32 %v1370
      %v1375 = vcvt.s32.f32 %v1371
      %v1376 = vcvt.s32.f32 %v1372
      %v1377 = vld [vmem:[%s4] sm:$0xff]
      %v1378 = vld [vmem:[%s4 + $0x8] sm:$0xff]
      %v1380 = vsel %vm483, %v1377, 0
      %v1383 = vsel %vm483, %v1378, 0
      %1385 = vmatpush.msra.mxu0 0.0
      %1386 = vmatpush.msra.mxu0 0.0
      %1387 = vmatpush.msra.mxu0 0.0
      %1388 = vmatpush.msra.mxu0 0.0
      %1389 = vmatpush.msra.mxu0 0.0
      %1390 = vmatpush.msra.mxu0 0.0
      %1391 = vmatpush.msra.mxu0 0.0
      %1392 = vmatpush.msra.mxu0 0.0
      %1393 = vmatpush.msra.mxu0 0.0
      %1394 = vmatpush.msra.mxu0 0.0
      %1395 = vmatpush.msra.mxu0 0.0
      %1396 = vmatpush.msra.mxu0 0.0
      %1397 = vmatpush.msra.mxu0 %v1376
      %1398 = vmatpush.msra.mxu0 %v1375
      %1399 = vmatpush.msra.mxu0 %v1374
      %1400 = vmatpush.msra.mxu0 %v1373
      %1401 = vmatmul.f32.gmra.mxu0 %v1380
      %v1402 = vpop.f32.mrf.mxu0
      %v1403 = vadd.f32 0.0, %v1402
      %1404 = vmatmul.f32.gmra.mxu0 %v1383
      %v1405 = vpop.f32.mrf.mxu0
      %v1406 = vadd.f32 0.0, %v1405
      %1407 = vdwg.mxu0
      %v1408 = vld [vmem:[%s5] sm:$0xff]
      %v1409 = vld [vmem:[%s5 + $0x8] sm:$0xff]
      %v1410 = vld [vmem:[%s5 + $0x10] sm:$0xff]
      %v1411 = vld [vmem:[%s5 + $0x18] sm:$0xff]
      %v1412 = vld [vmem:[%s5 + $0x20] sm:$0xff]
      %v1413 = vld [vmem:[%s5 + $0x28] sm:$0xff]
      %v1414 = vld [vmem:[%s5 + $0x30] sm:$0xff]
      %v1415 = vld [vmem:[%s5 + $0x38] sm:$0xff]
      %v1416 = vld [vmem:[%s5 + $0x40] sm:$0xff]
      %v1417 = vld [vmem:[%s5 + $0x48] sm:$0xff]
      %v1418 = vld [vmem:[%s5 + $0x50] sm:$0xff]
      %v1419 = vld [vmem:[%s5 + $0x58] sm:$0xff]
      %v1420 = vld [vmem:[%s5 + $0x60] sm:$0xff]
      %v1421 = vld [vmem:[%s5 + $0x68] sm:$0xff]
      %v1422 = vld [vmem:[%s5 + $0x70] sm:$0xff]
      %v1423 = vld [vmem:[%s5 + $0x78] sm:$0xff]
      %1424 = vmatpush.msra.mxu0 %v1423
      %1425 = vmatpush.msra.mxu0 %v1422
      %1426 = vmatpush.msra.mxu0 %v1421
      %1427 = vmatpush.msra.mxu0 %v1420
      %1428 = vmatpush.msra.mxu0 %v1419
      %1429 = vmatpush.msra.mxu0 %v1418
      %1430 = vmatpush.msra.mxu0 %v1417
      %1431 = vmatpush.msra.mxu0 %v1416
      %1432 = vmatpush.msra.mxu0 %v1415
      %1433 = vmatpush.msra.mxu0 %v1414
      %1434 = vmatpush.msra.mxu0 %v1413
      %1435 = vmatpush.msra.mxu0 %v1412
      %1436 = vmatpush.msra.mxu0 %v1411
      %1437 = vmatpush.msra.mxu0 %v1410
      %1438 = vmatpush.msra.mxu0 %v1409
      %1439 = vmatpush.msra.mxu0 %v1408
      %1440 = vmatmul.f32.gmra.mxu0 %v1403
      %v1441 = vpop.f32.mrf.mxu0
      %v1442 = vadd.f32 0.0, %v1441
      %1443 = vmatmul.f32.gmra.mxu0 %v1406
      %v1444 = vpop.f32.mrf.mxu0
      %v1445 = vadd.f32 0.0, %v1444
      %1446 = vdwg.mxu0
      %s1447 = scalar_lea.vmem %s251, 48
      %1448 = vst.msk [vmem:[%s1447] sm:$0xff] %vm552, %v1442
      %1449 = vst.msk [vmem:[%s1447 + $0x8] sm:$0xff] %vm552, %v1445
      %p1450 = scmp.lt.s32.totalorder %s17, 1
      %s1451 = scalar_select %p1450, %s17, 1
      %s1452 = smul.addr %s1451, 8
      %s1453 = smul.addr %s1452, 8
      %s1454 = scalar_lea.vmem %s6, %s1453
      // Predicated region
      $region45: #{spikformer_forward.8} parent=43 // pred_check
        %p1455 = pneg %p166
      $region46: #{spikformer_forward.8} parent=43 // pred_check_branch
        %1457 = sbr.rel (%p1455) target = $region48
      $region47: #{spikformer_forward.8} parent=43 // pred_region
        _
      $region48: #{spikformer_forward.8} parent=43 // pred_fallthru
        _
    $region44: #{spikformer_forward.8} parent=5 // pred_fallthru
      _
    %p1458 = scmp.le.s32.totalorder 2, %s12
    // Predicated region
    $region49: #{spikformer_forward.8} parent=5 // pred_check
      %p1459 = pneg %p1458
    $region50: #{spikformer_forward.8} parent=5 // pred_check_branch
      %1461 = sbr.rel (%p1459) target = $region52
    $region51: #{spikformer_forward.8} parent=5 // pred_region
      %s1462 = ssub.s32 %s12, 2
      // Predicated region
      $region53: #{spikformer_forward.8} parent=51 // pred_check
        %p1463 = pneg %p172
      $region54: #{spikformer_forward.8} parent=51 // pred_check_branch
        %1465 = sbr.rel (%p1463) target = $region56
      $region55: #{spikformer_forward.8} parent=51 // pred_region
        %p1466 = scmp.lt.s32.totalorder %s18, 1
        %s1467 = scalar_select %p1466, %s18, 1
        %s1468 = smul.addr %s1467, 8
        %s1469 = smul.addr %s1468, 8
        %s1470 = scalar_lea.vmem %s6, %s1469
      $region56: #{spikformer_forward.8} parent=51 // pred_fallthru
        _
    $region52: #{spikformer_forward.8} parent=5 // pred_fallthru
      _
  $region6: #{spikformer_forward.8} parent=0 // loop_footer
    %s16 = sadd.s32 1, %s12
  $region7: #{spikformer_forward.8} parent=0 // loop_footer_branch
    %11 = sbr.rel target = $region3
  $region8: #{spikformer_forward.8} parent=0 // loop_exit
    _

// kernel: spikformer_forward.9
$region0: #{spikformer_forward.9}
  #allocation0 [shape = 'u32[]', space=smem, size = 0x4, offset = 0x4, fixed_abs, tag = 'smem constant byte address 0x4 - core index']
  #allocation1 [shape = 'u32[72,128]{1,0:T(1,128)}', space=vmem, size = 0x9000, scoped, tag = 'internal scratch']
  %s0 = inlined_call_operand.vmem [shape: f32[2,4,18,72], index: 0, kind: input, shape index: {}]
  %s1 = inlined_call_operand.vmem [shape: f32[3,72,128], index: 1, kind: input, shape index: {}]
  %s2 = inlined_call_operand.vmem [shape: f32[1,128], index: 2, kind: input, shape index: {}]
  %s3 = inlined_call_operand.vmem [shape: f32[1,128], index: 3, kind: input, shape index: {}]
  %s4 = inlined_call_operand.vmem [shape: f32[8,16], index: 4, kind: input, shape index: {}]
  %s5 = inlined_call_operand.vmem [shape: f32[128,64], index: 5, kind: input, shape index: {}]
  %s6 = inlined_call_operand.vmem [shape: f32[2,4,8,64], index: 6, kind: output, shape index: {}]
  %s7 = sld [smem:[#allocation0]]
  $region57: #{spikformer_forward.9} parent=0
    _
  %s9 = ssub.s32 1, %s7
  %s10 = scalar_select 0, %s9, %s7
  loop: start=0, step=1, limit=4
  $region2: #{spikformer_forward.9} parent=0 // loop_pre_header
    _
  $region3: #{spikformer_forward.9} parent=0 // loop_header
    %s12 = sphi 0, %s16
    %p13 = scmp.ge.s32.totalorder %s12, 4
    %s22 = sphi 0, %s24
    %s25 = sphi 0, %s22
    %s26 = sphi 0, %s25
    %s42 = sphi 0, %s26
    %s46 = sphi 0, %s46
    %s48 = sphi 0, %s46
    %s49 = sphi 0, %s48
    %s63 = sphi 0, %s49
    %s67 = sphi 0, %s67
    %s69 = sphi 0, %s67
    %s70 = sphi 0, %s69
    %s84 = sphi 0, %s70
    %s88 = sphi 0, %s88
    %s90 = sphi 0, %s88
    %s91 = sphi 0, %s90
    %s105 = sphi 0, %s91
    %s109 = sphi 0, %s109
    %s111 = sphi 0, %s109
    %s112 = sphi 0, %s111
    %s126 = sphi 0, %s112
    %s130 = sphi 0, %s130
    %s132 = sphi 0, %s130
    %s133 = sphi 0, %s132
    %s147 = sphi 0, %s133
    %s153 = sphi 0, %s155
    %s156 = sphi 0, %s153
    %s157 = sphi 0, %s156
    %s173 = sphi 0, %s157
  $region4: #{spikformer_forward.9} parent=0 // loop_header_branch
    %15 = sbr.rel (%p13) target = $region8
  $region5: #{spikformer_forward.9} parent=0 // loop_body
    %s17 = ssub.s32 %s12, 1
    %s18 = ssub.s32 %s12, 2
    %s19 = sadd.s32 %s12, 1
    %s20 = ssub.s32 %s12, %s19
    %p21 = scmp.eq.s32.totalorder %s20, 0
    %s23 = sadd.s32 %s22, 1
    %s24 = scalar_select %p21, %s22, %s23
    %p27 = pneg %p21
    %p28 = scmp.eq.s32.totalorder %s12, 1
    %p29 = por %p27, %p28
    %p30 = scmp.ne.s32.totalorder %s22, %s25
    %p31 = scmp.eq.s32.totalorder %s12, 0
    %p32 = por %p30, %p31
    %p33 = scmp.ne.s32.totalorder %s22, %s25
    %p34 = scmp.eq.s32.totalorder %s17, 1
    %p35 = por %p33, %p34
    %p36 = scmp.ne.s32.totalorder %s25, %s26
    %p37 = scmp.eq.s32.totalorder %s17, 0
    %p38 = por %p36, %p37
    %p39 = scmp.ne.s32.totalorder %s25, %s26
    %p40 = scmp.eq.s32.totalorder %s18, 1
    %p41 = por %p39, %p40
    %p43 = scmp.ne.s32.totalorder %s26, %s42
    %p44 = scmp.eq.s32.totalorder %s18, 0
    %p45 = por %p43, %p44
    %s47 = sadd.s32 %s46, 1
    %p50 = scmp.eq.s32.totalorder %s12, 1
    %p51 = scmp.ne.s32.totalorder %s46, %s48
    %p52 = scmp.eq.s32.totalorder %s12, 0
    %p53 = por %p51, %p52
    %p54 = scmp.ne.s32.totalorder %s46, %s48
    %p55 = scmp.eq.s32.totalorder %s17, 1
    %p56 = por %p54, %p55
    %p57 = scmp.ne.s32.totalorder %s48, %s49
    %p58 = scmp.eq.s32.totalorder %s17, 0
    %p59 = por %p57, %p58
    %p60 = scmp.ne.s32.totalorder %s48, %s49
    %p61 = scmp.eq.s32.totalorder %s18, 1
    %p62 = por %p60, %p61
    %p64 = scmp.ne.s32.totalorder %s49, %s63
    %p65 = scmp.eq.s32.totalorder %s18, 0
    %p66 = por %p64, %p65
    %s68 = sadd.s32 %s67, 1
    %p71 = scmp.eq.s32.totalorder %s12, 1
    %p72 = scmp.ne.s32.totalorder %s67, %s69
    %p73 = scmp.eq.s32.totalorder %s12, 0
    %p74 = por %p72, %p73
    %p75 = scmp.ne.s32.totalorder %s67, %s69
    %p76 = scmp.eq.s32.totalorder %s17, 1
    %p77 = por %p75, %p76
    %p78 = scmp.ne.s32.totalorder %s69, %s70
    %p79 = scmp.eq.s32.totalorder %s17, 0
    %p80 = por %p78, %p79
    %p81 = scmp.ne.s32.totalorder %s69, %s70
    %p82 = scmp.eq.s32.totalorder %s18, 1
    %p83 = por %p81, %p82
    %p85 = scmp.ne.s32.totalorder %s70, %s84
    %p86 = scmp.eq.s32.totalorder %s18, 0
    %p87 = por %p85, %p86
    %s89 = sadd.s32 %s88, 1
    %p92 = scmp.eq.s32.totalorder %s12, 1
    %p93 = scmp.ne.s32.totalorder %s88, %s90
    %p94 = scmp.eq.s32.totalorder %s12, 0
    %p95 = por %p93, %p94
    %p96 = scmp.ne.s32.totalorder %s88, %s90
    %p97 = scmp.eq.s32.totalorder %s17, 1
    %p98 = por %p96, %p97
    %p99 = scmp.ne.s32.totalorder %s90, %s91
    %p100 = scmp.eq.s32.totalorder %s17, 0
    %p101 = por %p99, %p100
    %p102 = scmp.ne.s32.totalorder %s90, %s91
    %p103 = scmp.eq.s32.totalorder %s18, 1
    %p104 = por %p102, %p103
    %p106 = scmp.ne.s32.totalorder %s91, %s105
    %p107 = scmp.eq.s32.totalorder %s18, 0
    %p108 = por %p106, %p107
    %s110 = sadd.s32 %s109, 1
    %p113 = scmp.eq.s32.totalorder %s12, 1
    %p114 = scmp.ne.s32.totalorder %s109, %s111
    %p115 = scmp.eq.s32.totalorder %s12, 0
    %p116 = por %p114, %p115
    %p117 = scmp.ne.s32.totalorder %s109, %s111
    %p118 = scmp.eq.s32.totalorder %s17, 1
    %p119 = por %p117, %p118
    %p120 = scmp.ne.s32.totalorder %s111, %s112
    %p121 = scmp.eq.s32.totalorder %s17, 0
    %p122 = por %p120, %p121
    %p123 = scmp.ne.s32.totalorder %s111, %s112
    %p124 = scmp.eq.s32.totalorder %s18, 1
    %p125 = por %p123, %p124
    %p127 = scmp.ne.s32.totalorder %s112, %s126
    %p128 = scmp.eq.s32.totalorder %s18, 0
    %p129 = por %p127, %p128
    %s131 = sadd.s32 %s130, 1
    %p134 = scmp.eq.s32.totalorder %s12, 1
    %p135 = scmp.ne.s32.totalorder %s130, %s132
    %p136 = scmp.eq.s32.totalorder %s12, 0
    %p137 = por %p135, %p136
    %p138 = scmp.ne.s32.totalorder %s130, %s132
    %p139 = scmp.eq.s32.totalorder %s17, 1
    %p140 = por %p138, %p139
    %p141 = scmp.ne.s32.totalorder %s132, %s133
    %p142 = scmp.eq.s32.totalorder %s17, 0
    %p143 = por %p141, %p142
    %p144 = scmp.ne.s32.totalorder %s132, %s133
    %p145 = scmp.eq.s32.totalorder %s18, 1
    %p146 = por %p144, %p145
    %p148 = scmp.ne.s32.totalorder %s133, %s147
    %p149 = scmp.eq.s32.totalorder %s18, 0
    %p150 = por %p148, %p149
    %s151 = ssub.s32 %s12, %s19
    %p152 = scmp.eq.s32.totalorder %s151, 0
    %s154 = sadd.s32 %s153, 1
    %s155 = scalar_select %p152, %s153, %s154
    %p158 = pneg %p152
    %p159 = scmp.eq.s32.totalorder %s12, 1
    %p160 = por %p158, %p159
    %p161 = scmp.ne.s32.totalorder %s153, %s156
    %p162 = scmp.eq.s32.totalorder %s12, 0
    %p163 = por %p161, %p162
    %p164 = scmp.ne.s32.totalorder %s153, %s156
    %p165 = scmp.eq.s32.totalorder %s17, 1
    %p166 = por %p164, %p165
    %p167 = scmp.ne.s32.totalorder %s156, %s157
    %p168 = scmp.eq.s32.totalorder %s17, 0
    %p169 = por %p167, %p168
    %p170 = scmp.ne.s32.totalorder %s156, %s157
    %p171 = scmp.eq.s32.totalorder %s18, 1
    %p172 = por %p170, %p171
    %p174 = scmp.ne.s32.totalorder %s157, %s173
    %p175 = scmp.eq.s32.totalorder %s18, 0
    %p176 = por %p174, %p175
    %p177 = scmp.le.s32.totalorder 1, %s12
    %p178 = scmp.lt.s32.totalorder %s12, 3
    %p179 = pnand %p177, %p178
    %p180 = pneg %p179
    // Predicated region
    $region9: #{spikformer_forward.9} parent=5 // pred_check
      _
    $region10: #{spikformer_forward.9} parent=5 // pred_check_branch
      %182 = sbr.rel (%p179) target = $region12
    $region11: #{spikformer_forward.9} parent=5 // pred_region
      %s183 = ssub.s32 %s12, 1
      // Predicated region
      $region13: #{spikformer_forward.9} parent=11 // pred_check
        %p184 = pneg %p59
      $region14: #{spikformer_forward.9} parent=11 // pred_check_branch
        %186 = sbr.rel (%p184) target = $region16
      $region15: #{spikformer_forward.9} parent=11 // pred_region
        _
      $region16: #{spikformer_forward.9} parent=11 // pred_fallthru
        _
      // Predicated region
      $region17: #{spikformer_forward.9} parent=11 // pred_check
        %p187 = pneg %p80
      $region18: #{spikformer_forward.9} parent=11 // pred_check_branch
        %189 = sbr.rel (%p187) target = $region20
      $region19: #{spikformer_forward.9} parent=11 // pred_region
        _
      $region20: #{spikformer_forward.9} parent=11 // pred_fallthru
        _
      // Predicated region
      $region21: #{spikformer_forward.9} parent=11 // pred_check
        %p190 = pneg %p101
      $region22: #{spikformer_forward.9} parent=11 // pred_check_branch
        %192 = sbr.rel (%p190) target = $region24
      $region23: #{spikformer_forward.9} parent=11 // pred_region
        _
      $region24: #{spikformer_forward.9} parent=11 // pred_fallthru
        _
      // Predicated region
      $region25: #{spikformer_forward.9} parent=11 // pred_check
        %p193 = pneg %p122
      $region26: #{spikformer_forward.9} parent=11 // pred_check_branch
        %195 = sbr.rel (%p193) target = $region28
      $region27: #{spikformer_forward.9} parent=11 // pred_region
        _
      $region28: #{spikformer_forward.9} parent=11 // pred_fallthru
        _
      // Predicated region
      $region29: #{spikformer_forward.9} parent=11 // pred_check
        %p196 = pneg %p143
      $region30: #{spikformer_forward.9} parent=11 // pred_check_branch
        %198 = sbr.rel (%p196) target = $region32
      $region31: #{spikformer_forward.9} parent=11 // pred_region
        _
      $region32: #{spikformer_forward.9} parent=11 // pred_fallthru
        _
    $region12: #{spikformer_forward.9} parent=5 // pred_fallthru
      _
    %p199 = scmp.lt.s32.totalorder %s12, 2
    // Predicated region
    $region33: #{spikformer_forward.9} parent=5 // pred_check
      %p200 = pneg %p199
    $region34: #{spikformer_forward.9} parent=5 // pred_check_branch
      %202 = sbr.rel (%p200) target = $region36
    $region35: #{spikformer_forward.9} parent=5 // pred_region
      // Predicated region
      $region37: #{spikformer_forward.9} parent=35 // pred_check
        %p203 = pneg %p32
      $region38: #{spikformer_forward.9} parent=35 // pred_check_branch
        %205 = sbr.rel (%p203) target = $region40
      $region39: #{spikformer_forward.9} parent=35 // pred_region
        %p206 = scmp.lt.s32.totalorder %s12, 1
        %s207 = scalar_select %p206, %s12, 1
        %s208 = smul.addr %s207, 12
        %s209 = smul.addr %s208, 8
        %s210 = scalar_lea.vmem %s0, %s209
      $region40: #{spikformer_forward.9} parent=35 // pred_fallthru
        _
    $region36: #{spikformer_forward.9} parent=5 // pred_fallthru
      _
    %p211 = scmp.le.s32.totalorder 1, %s12
    %p212 = scmp.lt.s32.totalorder %s12, 3
    %p213 = pnand %p211, %p212
    %p214 = pneg %p213
    // Predicated region
    $region41: #{spikformer_forward.9} parent=5 // pred_check
      _
    $region42: #{spikformer_forward.9} parent=5 // pred_check_branch
      %216 = sbr.rel (%p213) target = $region44
    $region43: #{spikformer_forward.9} parent=5 // pred_region
      %s217 = ssub.s32 %s12, 1
      %p218 = scmp.lt.s32.totalorder %s17, 1
      %s219 = scalar_select %p218, %s17, 1
      %s220 = smul.addr %s219, 12
      %s221 = smul.addr %s220, 8
      %s222 = scalar_lea.vmem %s0, %s221
      %p223 = pneg %p38
      %p224 = pneg %p35
      %p225 = pneg %p59
      %p226 = pneg %p56
      %p227 = pneg %p80
      %p228 = pneg %p77
      %p229 = pneg %p101
      %p230 = pneg %p98
      %p231 = pneg %p122
      %p232 = pneg %p119
      %p233 = pneg %p143
      %p234 = pneg %p140
      %p235 = pneg %p169
      %p236 = pneg %p166
      %p237 = scmp.lt.s32.totalorder %s17, 1
      %s238 = scalar_select %p237, %s17, 1
      %s239 = smul.addr %s238, 4
      %s240 = smul.addr %s239, 8
      %s241 = scalar_lea.vmem %s6, %s240
      %p242 = scmp.lt.s32.totalorder %s17, 1
      %s243 = scalar_select %p242, %s17, 1
      %s244 = smul.addr %s243, 12
      %s245 = smul.addr %s244, 8
      %s246 = scalar_lea.vmem %s0, %s245
      %p247 = scmp.lt.s32.totalorder %s17, 1
      %s248 = scalar_select %p247, %s17, 1
      %s249 = smul.addr %s248, 4
      %s250 = smul.addr %s249, 8
      %s251 = scalar_lea.vmem %s6, %s250
      %v252 = vld [vmem:[%s246] sm:$0xff]
      %v253 = vld [vmem:[%s246 + $0x8] sm:$0xff]
      %v254 = vld [vmem:[%s246 + $0x10] sm:$0x3]
      %v255 = vld [vmem:[%s1] sm:$0xff]
      %v256 = vld [vmem:[%s1 + $0x8] sm:$0xff]
      %v257 = vld [vmem:[%s1 + $0x10] sm:$0xff]
      %v258 = vld [vmem:[%s1 + $0x18] sm:$0xff]
      %v259 = vld [vmem:[%s1 + $0x20] sm:$0xff]
      %v260 = vld [vmem:[%s1 + $0x28] sm:$0xff]
      %v261 = vld [vmem:[%s1 + $0x30] sm:$0xff]
      %v262 = vld [vmem:[%s1 + $0x38] sm:$0xff]
      %v263 = vld [vmem:[%s1 + $0x40] sm:$0xff]
      %s264 = scalar_lea.vmem %s1, 72
      %v265 = vld [vmem:[%s264] sm:$0xff]
      %v266 = vld [vmem:[%s264 + $0x8] sm:$0xff]
      %v267 = vld [vmem:[%s264 + $0x10] sm:$0xff]
      %v268 = vld [vmem:[%s264 + $0x18] sm:$0xff]
      %v269 = vld [vmem:[%s264 + $0x20] sm:$0xff]
      %v270 = vld [vmem:[%s264 + $0x28] sm:$0xff]
      %v271 = vld [vmem:[%s264 + $0x30] sm:$0xff]
      %v272 = vld [vmem:[%s264 + $0x38] sm:$0xff]
      %v273 = vld [vmem:[%s264 + $0x40] sm:$0xff]
      %vm277 = vcmask 1046528
      %v278 = vrot.slane %v252, 1
      %v279 = vrot.slane %v253, 1
      %v280 = vsel %vm277, %v278, %v279
      %v281 = vrot.slane %v254, 1
      %v282 = vsel %vm277, %v279, %v281
      %vm283 = vcmask 588800
      %v284 = vsel %vm283, %v280, 0
      %v286 = vsel %vm283, %v282, 0
      %288 = vmatpush.msra.mxu0 0.0
      %289 = vmatpush.msra.mxu0 0.0
      %290 = vmatpush.msra.mxu0 0.0
      %291 = vmatpush.msra.mxu0 0.0
      %292 = vmatpush.msra.mxu0 0.0
      %293 = vmatpush.msra.mxu0 0.0
      %294 = vmatpush.msra.mxu0 0.0
      %295 = vmatpush.msra.mxu0 %v273
      %296 = vmatpush.msra.mxu0 %v272
      %297 = vmatpush.msra.mxu0 %v271
      %298 = vmatpush.msra.mxu0 %v270
      %299 = vmatpush.msra.mxu0 %v269
      %300 = vmatpush.msra.mxu0 %v268
      %301 = vmatpush.msra.mxu0 %v267
      %302 = vmatpush.msra.mxu0 %v266
      %303 = vmatpush.msra.mxu0 %v265
      %304 = vmatmul.f32.gmra.mxu0 %v284
      %v305 = vpop.f32.mrf.mxu0
      %v306 = vadd.f32 0.0, %v305
      %307 = vmatmul.f32.gmra.mxu0 %v286
      %v308 = vpop.f32.mrf.mxu0
      %v309 = vadd.f32 0.0, %v308
      %310 = vdwg.mxu0
      %v311 = vsel %vm283, %v252, 0
      %v313 = vsel %vm283, %v253, 0
      %315 = vmatpush.msra.mxu0 0.0
      %316 = vmatpush.msra.mxu0 0.0
      %317 = vmatpush.msra.mxu0 0.0
      %318 = vmatpush.msra.mxu0 0.0
      %319 = vmatpush.msra.mxu0 0.0
      %320 = vmatpush.msra.mxu0 0.0
      %321 = vmatpush.msra.mxu0 0.0
      %322 = vmatpush.msra.mxu0 %v263
      %323 = vmatpush.msra.mxu0 %v262
      %324 = vmatpush.msra.mxu0 %v261
      %325 = vmatpush.msra.mxu0 %v260
      %326 = vmatpush.msra.mxu0 %v259
      %327 = vmatpush.msra.mxu0 %v258
      %328 = vmatpush.msra.mxu0 %v257
      %329 = vmatpush.msra.mxu0 %v256
      %330 = vmatpush.msra.mxu0 %v255
      %331 = vmatmul.f32.gmra.mxu0 %v311
      %v332 = vpop.f32.mrf.mxu0
      %v333 = vadd.f32 %v306, %v332
      %334 = vmatmul.f32.gmra.mxu0 %v313
      %v335 = vpop.f32.mrf.mxu0
      %v336 = vadd.f32 %v309, %v335
      %337 = vdwg.mxu0
      %s338 = scalar_lea.vmem %s1, 144
      %v339 = vld [vmem:[%s338] sm:$0xff]
      %v340 = vld [vmem:[%s338 + $0x8] sm:$0xff]
      %v341 = vld [vmem:[%s338 + $0x10] sm:$0xff]
      %v342 = vld [vmem:[%s338 + $0x18] sm:$0xff]
      %v343 = vld [vmem:[%s338 + $0x20] sm:$0xff]
      %v344 = vld [vmem:[%s338 + $0x28] sm:$0xff]
      %v345 = vld [vmem:[%s338 + $0x30] sm:$0xff]
      %v346 = vld [vmem:[%s338 + $0x38] sm:$0xff]
      %v347 = vld [vmem:[%s338 + $0x40] sm:$0xff]
      %vm348 = vcmask 1045504
      %v349 = vrot.slane %v252, 2
      %v350 = vrot.slane %v253, 2
      %v351 = vsel %vm348, %v349, %v350
      %v352 = vrot.slane %v254, 2
      %v353 = vsel %vm348, %v350, %v352
      %v354 = vsel %vm283, %v351, 0
      %v356 = vsel %vm283, %v353, 0
      %358 = vmatpush.msra.mxu0 0.0
      %359 = vmatpush.msra.mxu0 0.0
      %360 = vmatpush.msra.mxu0 0.0
      %361 = vmatpush.msra.mxu0 0.0
      %362 = vmatpush.msra.mxu0 0.0
      %363 = vmatpush.msra.mxu0 0.0
      %364 = vmatpush.msra.mxu0 0.0
      %365 = vmatpush.msra.mxu0 %v347
      %366 = vmatpush.msra.mxu0 %v346
      %367 = vmatpush.msra.mxu0 %v345
      %368 = vmatpush.msra.mxu0 %v344
      %369 = vmatpush.msra.mxu0 %v343
      %370 = vmatpush.msra.mxu0 %v342
      %371 = vmatpush.msra.mxu0 %v341
      %372 = vmatpush.msra.mxu0 %v340
      %373 = vmatpush.msra.mxu0 %v339
      %374 = vmatmul.f32.gmra.mxu0 %v354
      %v375 = vpop.f32.mrf.mxu0
      %v376 = vadd.f32 0.0, %v375
      %377 = vmatmul.f32.gmra.mxu0 %v356
      %v378 = vpop.f32.mrf.mxu0
      %v379 = vadd.f32 0.0, %v378
      %380 = vdwg.mxu0
      %v381 = vadd.f32 %v333, %v376
      %v382 = vadd.f32 %v336, %v379
      %v383 = vld [vmem:[%s2] sm:$0x1]
      %v385 = vperm.slane %v383, 0
      %v387 = vmul.f32 %v381, %v385
      %v388 = vmul.f32 %v382, %v385
      %v389 = vld [vmem:[%s3] sm:$0x1]
      %v391 = vperm.slane %v389, 0
      %v393 = vadd.f32 %v387, %v391
      %v394 = vadd.f32 %v388, %v391
      %v395 = vmul.f32 %v393, 0.5
      %v396 = vmul.f32 %v394, 0.5
      %v397 = vadd.f32 %v395, 0.0
      %v398 = vadd.f32 %v396, 0.0
      %vm399 = vcmp.ge.f32.partialorder %v397, 1.0
      %vm400 = vcmp.ge.f32.partialorder %v398, 1.0
      %v401 = vsel %vm399, 1, 0
      %v402 = vsel %vm400, 1, 0
      %v403 = vcvt.s32.f32 %v401
      %v404 = vcvt.s32.f32 %v402
      %v405 = vsub.f32 1.0, %v403
      %v406 = vsub.f32 1.0, %v404
      %v407 = vmul.f32 %v397, %v405
      %v408 = vmul.f32 %v398, %v406
      %v409 = vld [vmem:[%s4] sm:$0xff]
      %vm410 = vcmask 130048
      %v412 = vsel %vm410, %v409, 0
      %414 = vmatpush.msra.mxu0 0.0
      %415 = vmatpush.msra.mxu0 0.0
      %416 = vmatpush.msra.mxu0 0.0
      %417 = vmatpush.msra.mxu0 0.0
      %418 = vmatpush.msra.mxu0 0.0
      %419 = vmatpush.msra.mxu0 0.0
      %420 = vmatpush.msra.mxu0 0.0
      %421 = vmatpush.msra.mxu0 0.0
      %422 = vmatpush.msra.mxu0 0.0
      %423 = vmatpush.msra.mxu0 0.0
      %424 = vmatpush.msra.mxu0 0.0
      %425 = vmatpush.msra.mxu0 0.0
      %426 = vmatpush.msra.mxu0 0.0
      %427 = vmatpush.msra.mxu0 0.0
      %428 = vmatpush.msra.mxu0 %v404
      %429 = vmatpush.msra.mxu0 %v403
      %430 = vmatmul.f32.gmra.mxu0 %v412
      %v431 = vpop.f32.mrf.mxu0
      %v432 = vadd.f32 0.0, %v431
      %433 = vdwg.mxu0
      %v434 = vld [vmem:[%s5] sm:$0xff]
      %v435 = vld [vmem:[%s5 + $0x8] sm:$0xff]
      %v436 = vld [vmem:[%s5 + $0x10] sm:$0xff]
      %v437 = vld [vmem:[%s5 + $0x18] sm:$0xff]
      %v438 = vld [vmem:[%s5 + $0x20] sm:$0xff]
      %v439 = vld [vmem:[%s5 + $0x28] sm:$0xff]
      %v440 = vld [vmem:[%s5 + $0x30] sm:$0xff]
      %v441 = vld [vmem:[%s5 + $0x38] sm:$0xff]
      %v442 = vld [vmem:[%s5 + $0x40] sm:$0xff]
      %v443 = vld [vmem:[%s5 + $0x48] sm:$0xff]
      %v444 = vld [vmem:[%s5 + $0x50] sm:$0xff]
      %v445 = vld [vmem:[%s5 + $0x58] sm:$0xff]
      %v446 = vld [vmem:[%s5 + $0x60] sm:$0xff]
      %v447 = vld [vmem:[%s5 + $0x68] sm:$0xff]
      %v448 = vld [vmem:[%s5 + $0x70] sm:$0xff]
      %v449 = vld [vmem:[%s5 + $0x78] sm:$0xff]
      %450 = vmatpush.msra.mxu0 %v449
      %451 = vmatpush.msra.mxu0 %v448
      %452 = vmatpush.msra.mxu0 %v447
      %453 = vmatpush.msra.mxu0 %v446
      %454 = vmatpush.msra.mxu0 %v445
      %455 = vmatpush.msra.mxu0 %v444
      %456 = vmatpush.msra.mxu0 %v443
      %457 = vmatpush.msra.mxu0 %v442
      %458 = vmatpush.msra.mxu0 %v441
      %459 = vmatpush.msra.mxu0 %v440
      %460 = vmatpush.msra.mxu0 %v439
      %461 = vmatpush.msra.mxu0 %v438
      %462 = vmatpush.msra.mxu0 %v437
      %463 = vmatpush.msra.mxu0 %v436
      %464 = vmatpush.msra.mxu0 %v435
      %465 = vmatpush.msra.mxu0 %v434
      %466 = vmatmul.f32.gmra.mxu0 %v432
      %v467 = vpop.f32.mrf.mxu0
      %v468 = vadd.f32 0.0, %v467
      %469 = vdwg.mxu0
      %vm470 = vcmask 523264
      %471 = vst.msk [vmem:[%s251] sm:$0xff] %vm470, %v468
      %s472 = scalar_lea.vmem %s246, 24
      %v473 = vld [vmem:[%s472] sm:$0xff]
      %v474 = vld [vmem:[%s472 + $0x8] sm:$0xff]
      %v475 = vld [vmem:[%s472 + $0x10] sm:$0x3]
      %v476 = vld [vmem:[%s1] sm:$0xff]
      %v477 = vld [vmem:[%s1 + $0x8] sm:$0xff]
      %v478 = vld [vmem:[%s1 + $0x10] sm:$0xff]
      %v479 = vld [vmem:[%s1 + $0x18] sm:$0xff]
      %v480 = vld [vmem:[%s1 + $0x20] sm:$0xff]
      %v481 = vld [vmem:[%s1 + $0x28] sm:$0xff]
      %v482 = vld [vmem:[%s1 + $0x30] sm:$0xff]
      %v483 = vld [vmem:[%s1 + $0x38] sm:$0xff]
      %v484 = vld [vmem:[%s1 + $0x40] sm:$0xff]
      %v485 = vld [vmem:[%s264] sm:$0xff]
      %v486 = vld [vmem:[%s264 + $0x8] sm:$0xff]
      %v487 = vld [vmem:[%s264 + $0x10] sm:$0xff]
      %v488 = vld [vmem:[%s264 + $0x18] sm:$0xff]
      %v489 = vld [vmem:[%s264 + $0x20] sm:$0xff]
      %v490 = vld [vmem:[%s264 + $0x28] sm:$0xff]
      %v491 = vld [vmem:[%s264 + $0x30] sm:$0xff]
      %v492 = vld [vmem:[%s264 + $0x38] sm:$0xff]
      %v493 = vld [vmem:[%s264 + $0x40] sm:$0xff]
      %v497 = vrot.slane %v473, 1
      %v498 = vrot.slane %v474, 1
      %v499 = vsel %vm277, %v497, %v498
      %v500 = vrot.slane %v475, 1
      %v501 = vsel %vm277, %v498, %v500
      %v502 = vsel %vm283, %v499, 0
      %v504 = vsel %vm283, %v501, 0
      %506 = vmatpush.msra.mxu0 0.0
      %507 = vmatpush.msra.mxu0 0.0
      %508 = vmatpush.msra.mxu0 0.0
      %509 = vmatpush.msra.mxu0 0.0
      %510 = vmatpush.msra.mxu0 0.0
      %511 = vmatpush.msra.mxu0 0.0
      %512 = vmatpush.msra.mxu0 0.0
      %513 = vmatpush.msra.mxu0 %v493
      %514 = vmatpush.msra.mxu0 %v492
      %515 = vmatpush.msra.mxu0 %v491
      %516 = vmatpush.msra.mxu0 %v490
      %517 = vmatpush.msra.mxu0 %v489
      %518 = vmatpush.msra.mxu0 %v488
      %519 = vmatpush.msra.mxu0 %v487
      %520 = vmatpush.msra.mxu0 %v486
      %521 = vmatpush.msra.mxu0 %v485
      %522 = vmatmul.f32.gmra.mxu0 %v502
      %v523 = vpop.f32.mrf.mxu0
      %v524 = vadd.f32 0.0, %v523
      %525 = vmatmul.f32.gmra.mxu0 %v504
      %v526 = vpop.f32.mrf.mxu0
      %v527 = vadd.f32 0.0, %v526
      %528 = vdwg.mxu0
      %v529 = vsel %vm283, %v473, 0
      %v531 = vsel %vm283, %v474, 0
      %533 = vmatpush.msra.mxu0 0.0
      %534 = vmatpush.msra.mxu0 0.0
      %535 = vmatpush.msra.mxu0 0.0
      %536 = vmatpush.msra.mxu0 0.0
      %537 = vmatpush.msra.mxu0 0.0
      %538 = vmatpush.msra.mxu0 0.0
      %539 = vmatpush.msra.mxu0 0.0
      %540 = vmatpush.msra.mxu0 %v484
      %541 = vmatpush.msra.mxu0 %v483
      %542 = vmatpush.msra.mxu0 %v482
      %543 = vmatpush.msra.mxu0 %v481
      %544 = vmatpush.msra.mxu0 %v480
      %545 = vmatpush.msra.mxu0 %v479
      %546 = vmatpush.msra.mxu0 %v478
      %547 = vmatpush.msra.mxu0 %v477
      %548 = vmatpush.msra.mxu0 %v476
      %549 = vmatmul.f32.gmra.mxu0 %v529
      %v550 = vpop.f32.mrf.mxu0
      %v551 = vadd.f32 %v524, %v550
      %552 = vmatmul.f32.gmra.mxu0 %v531
      %v553 = vpop.f32.mrf.mxu0
      %v554 = vadd.f32 %v527, %v553
      %555 = vdwg.mxu0
      %v556 = vld [vmem:[%s338] sm:$0xff]
      %v557 = vld [vmem:[%s338 + $0x8] sm:$0xff]
      %v558 = vld [vmem:[%s338 + $0x10] sm:$0xff]
      %v559 = vld [vmem:[%s338 + $0x18] sm:$0xff]
      %v560 = vld [vmem:[%s338 + $0x20] sm:$0xff]
      %v561 = vld [vmem:[%s338 + $0x28] sm:$0xff]
      %v562 = vld [vmem:[%s338 + $0x30] sm:$0xff]
      %v563 = vld [vmem:[%s338 + $0x38] sm:$0xff]
      %v564 = vld [vmem:[%s338 + $0x40] sm:$0xff]
      %v565 = vrot.slane %v473, 2
      %v566 = vrot.slane %v474, 2
      %v567 = vsel %vm348, %v565, %v566
      %v568 = vrot.slane %v475, 2
      %v569 = vsel %vm348, %v566, %v568
      %v570 = vsel %vm283, %v567, 0
      %v572 = vsel %vm283, %v569, 0
      %574 = vmatpush.msra.mxu0 0.0
      %575 = vmatpush.msra.mxu0 0.0
      %576 = vmatpush.msra.mxu0 0.0
      %577 = vmatpush.msra.mxu0 0.0
      %578 = vmatpush.msra.mxu0 0.0
      %579 = vmatpush.msra.mxu0 0.0
      %580 = vmatpush.msra.mxu0 0.0
      %581 = vmatpush.msra.mxu0 %v564
      %582 = vmatpush.msra.mxu0 %v563
      %583 = vmatpush.msra.mxu0 %v562
      %584 = vmatpush.msra.mxu0 %v561
      %585 = vmatpush.msra.mxu0 %v560
      %586 = vmatpush.msra.mxu0 %v559
      %587 = vmatpush.msra.mxu0 %v558
      %588 = vmatpush.msra.mxu0 %v557
      %589 = vmatpush.msra.mxu0 %v556
      %590 = vmatmul.f32.gmra.mxu0 %v570
      %v591 = vpop.f32.mrf.mxu0
      %v592 = vadd.f32 0.0, %v591
      %593 = vmatmul.f32.gmra.mxu0 %v572
      %v594 = vpop.f32.mrf.mxu0
      %v595 = vadd.f32 0.0, %v594
      %596 = vdwg.mxu0
      %v597 = vadd.f32 %v551, %v592
      %v598 = vadd.f32 %v554, %v595
      %v599 = vld [vmem:[%s2] sm:$0x1]
      %v601 = vperm.slane %v599, 0
      %v603 = vmul.f32 %v597, %v601
      %v604 = vmul.f32 %v598, %v601
      %v605 = vld [vmem:[%s3] sm:$0x1]
      %v607 = vperm.slane %v605, 0
      %v609 = vadd.f32 %v603, %v607
      %v610 = vadd.f32 %v604, %v607
      %v611 = vsub.f32 %v609, %v407
      %v612 = vsub.f32 %v610, %v408
      %v613 = vmul.f32 %v611, 0.5
      %v614 = vmul.f32 %v612, 0.5
      %v615 = vadd.f32 %v407, %v613
      %v616 = vadd.f32 %v408, %v614
      %vm617 = vcmp.ge.f32.partialorder %v615, 1.0
      %vm618 = vcmp.ge.f32.partialorder %v616, 1.0
      %v619 = vsel %vm617, 1, 0
      %v620 = vsel %vm618, 1, 0
      %v621 = vcvt.s32.f32 %v619
      %v622 = vcvt.s32.f32 %v620
      %v623 = vsub.f32 1.0, %v621
      %v624 = vsub.f32 1.0, %v622
      %v625 = vmul.f32 %v615, %v623
      %v626 = vmul.f32 %v616, %v624
      %v627 = vld [vmem:[%s4] sm:$0xff]
      %v629 = vsel %vm410, %v627, 0
      %631 = vmatpush.msra.mxu0 0.0
      %632 = vmatpush.msra.mxu0 0.0
      %633 = vmatpush.msra.mxu0 0.0
      %634 = vmatpush.msra.mxu0 0.0
      %635 = vmatpush.msra.mxu0 0.0
      %636 = vmatpush.msra.mxu0 0.0
      %637 = vmatpush.msra.mxu0 0.0
      %638 = vmatpush.msra.mxu0 0.0
      %639 = vmatpush.msra.mxu0 0.0
      %640 = vmatpush.msra.mxu0 0.0
      %641 = vmatpush.msra.mxu0 0.0
      %642 = vmatpush.msra.mxu0 0.0
      %643 = vmatpush.msra.mxu0 0.0
      %644 = vmatpush.msra.mxu0 0.0
      %645 = vmatpush.msra.mxu0 %v622
      %646 = vmatpush.msra.mxu0 %v621
      %647 = vmatmul.f32.gmra.mxu0 %v629
      %v648 = vpop.f32.mrf.mxu0
      %v649 = vadd.f32 0.0, %v648
      %650 = vdwg.mxu0
      %v651 = vld [vmem:[%s5] sm:$0xff]
      %v652 = vld [vmem:[%s5 + $0x8] sm:$0xff]
      %v653 = vld [vmem:[%s5 + $0x10] sm:$0xff]
      %v654 = vld [vmem:[%s5 + $0x18] sm:$0xff]
      %v655 = vld [vmem:[%s5 + $0x20] sm:$0xff]
      %v656 = vld [vmem:[%s5 + $0x28] sm:$0xff]
      %v657 = vld [vmem:[%s5 + $0x30] sm:$0xff]
      %v658 = vld [vmem:[%s5 + $0x38] sm:$0xff]
      %v659 = vld [vmem:[%s5 + $0x40] sm:$0xff]
      %v660 = vld [vmem:[%s5 + $0x48] sm:$0xff]
      %v661 = vld [vmem:[%s5 + $0x50] sm:$0xff]
      %v662 = vld [vmem:[%s5 + $0x58] sm:$0xff]
      %v663 = vld [vmem:[%s5 + $0x60] sm:$0xff]
      %v664 = vld [vmem:[%s5 + $0x68] sm:$0xff]
      %v665 = vld [vmem:[%s5 + $0x70] sm:$0xff]
      %v666 = vld [vmem:[%s5 + $0x78] sm:$0xff]
      %667 = vmatpush.msra.mxu0 %v666
      %668 = vmatpush.msra.mxu0 %v665
      %669 = vmatpush.msra.mxu0 %v664
      %670 = vmatpush.msra.mxu0 %v663
      %671 = vmatpush.msra.mxu0 %v662
      %672 = vmatpush.msra.mxu0 %v661
      %673 = vmatpush.msra.mxu0 %v660
      %674 = vmatpush.msra.mxu0 %v659
      %675 = vmatpush.msra.mxu0 %v658
      %676 = vmatpush.msra.mxu0 %v657
      %677 = vmatpush.msra.mxu0 %v656
      %678 = vmatpush.msra.mxu0 %v655
      %679 = vmatpush.msra.mxu0 %v654
      %680 = vmatpush.msra.mxu0 %v653
      %681 = vmatpush.msra.mxu0 %v652
      %682 = vmatpush.msra.mxu0 %v651
      %683 = vmatmul.f32.gmra.mxu0 %v649
      %v684 = vpop.f32.mrf.mxu0
      %v685 = vadd.f32 0.0, %v684
      %686 = vdwg.mxu0
      %s687 = scalar_lea.vmem %s251, 8
      %688 = vst.msk [vmem:[%s687] sm:$0xff] %vm470, %v685
      %s689 = scalar_lea.vmem %s246, 48
      %v690 = vld [vmem:[%s689] sm:$0xff]
      %v691 = vld [vmem:[%s689 + $0x8] sm:$0xff]
      %v692 = vld [vmem:[%s689 + $0x10] sm:$0x3]
      %v693 = vld [vmem:[%s1] sm:$0xff]
      %v694 = vld [vmem:[%s1 + $0x8] sm:$0xff]
      %v695 = vld [vmem:[%s1 + $0x10] sm:$0xff]
      %v696 = vld [vmem:[%s1 + $0x18] sm:$0xff]
      %v697 = vld [vmem:[%s1 + $0x20] sm:$0xff]
      %v698 = vld [vmem:[%s1 + $0x28] sm:$0xff]
      %v699 = vld [vmem:[%s1 + $0x30] sm:$0xff]
      %v700 = vld [vmem:[%s1 + $0x38] sm:$0xff]
      %v701 = vld [vmem:[%s1 + $0x40] sm:$0xff]
      %v702 = vld [vmem:[%s264] sm:$0xff]
      %v703 = vld [vmem:[%s264 + $0x8] sm:$0xff]
      %v704 = vld [vmem:[%s264 + $0x10] sm:$0xff]
      %v705 = vld [vmem:[%s264 + $0x18] sm:$0xff]
      %v706 = vld [vmem:[%s264 + $0x20] sm:$0xff]
      %v707 = vld [vmem:[%s264 + $0x28] sm:$0xff]
      %v708 = vld [vmem:[%s264 + $0x30] sm:$0xff]
      %v709 = vld [vmem:[%s264 + $0x38] sm:$0xff]
      %v710 = vld [vmem:[%s264 + $0x40] sm:$0xff]
      %v714 = vrot.slane %v690, 1
      %v715 = vrot.slane %v691, 1
      %v716 = vsel %vm277, %v714, %v715
      %v717 = vrot.slane %v692, 1
      %v718 = vsel %vm277, %v715, %v717
      %v719 = vsel %vm283, %v716, 0
      %v721 = vsel %vm283, %v718, 0
      %723 = vmatpush.msra.mxu0 0.0
      %724 = vmatpush.msra.mxu0 0.0
      %725 = vmatpush.msra.mxu0 0.0
      %726 = vmatpush.msra.mxu0 0.0
      %727 = vmatpush.msra.mxu0 0.0
      %728 = vmatpush.msra.mxu0 0.0
      %729 = vmatpush.msra.mxu0 0.0
      %730 = vmatpush.msra.mxu0 %v710
      %731 = vmatpush.msra.mxu0 %v709
      %732 = vmatpush.msra.mxu0 %v708
      %733 = vmatpush.msra.mxu0 %v707
      %734 = vmatpush.msra.mxu0 %v706
      %735 = vmatpush.msra.mxu0 %v705
      %736 = vmatpush.msra.mxu0 %v704
      %737 = vmatpush.msra.mxu0 %v703
      %738 = vmatpush.msra.mxu0 %v702
      %739 = vmatmul.f32.gmra.mxu0 %v719
      %v740 = vpop.f32.mrf.mxu0
      %v741 = vadd.f32 0.0, %v740
      %742 = vmatmul.f32.gmra.mxu0 %v721
      %v743 = vpop.f32.mrf.mxu0
      %v744 = vadd.f32 0.0, %v743
      %745 = vdwg.mxu0
      %v746 = vsel %vm283, %v690, 0
      %v748 = vsel %vm283, %v691, 0
      %750 = vmatpush.msra.mxu0 0.0
      %751 = vmatpush.msra.mxu0 0.0
      %752 = vmatpush.msra.mxu0 0.0
      %753 = vmatpush.msra.mxu0 0.0
      %754 = vmatpush.msra.mxu0 0.0
      %755 = vmatpush.msra.mxu0 0.0
      %756 = vmatpush.msra.mxu0 0.0
      %757 = vmatpush.msra.mxu0 %v701
      %758 = vmatpush.msra.mxu0 %v700
      %759 = vmatpush.msra.mxu0 %v699
      %760 = vmatpush.msra.mxu0 %v698
      %761 = vmatpush.msra.mxu0 %v697
      %762 = vmatpush.msra.mxu0 %v696
      %763 = vmatpush.msra.mxu0 %v695
      %764 = vmatpush.msra.mxu0 %v694
      %765 = vmatpush.msra.mxu0 %v693
      %766 = vmatmul.f32.gmra.mxu0 %v746
      %v767 = vpop.f32.mrf.mxu0
      %v768 = vadd.f32 %v741, %v767
      %769 = vmatmul.f32.gmra.mxu0 %v748
      %v770 = vpop.f32.mrf.mxu0
      %v771 = vadd.f32 %v744, %v770
      %772 = vdwg.mxu0
      %v773 = vld [vmem:[%s338] sm:$0xff]
      %v774 = vld [vmem:[%s338 + $0x8] sm:$0xff]
      %v775 = vld [vmem:[%s338 + $0x10] sm:$0xff]
      %v776 = vld [vmem:[%s338 + $0x18] sm:$0xff]
      %v777 = vld [vmem:[%s338 + $0x20] sm:$0xff]
      %v778 = vld [vmem:[%s338 + $0x28] sm:$0xff]
      %v779 = vld [vmem:[%s338 + $0x30] sm:$0xff]
      %v780 = vld [vmem:[%s338 + $0x38] sm:$0xff]
      %v781 = vld [vmem:[%s338 + $0x40] sm:$0xff]
      %v782 = vrot.slane %v690, 2
      %v783 = vrot.slane %v691, 2
      %v784 = vsel %vm348, %v782, %v783
      %v785 = vrot.slane %v692, 2
      %v786 = vsel %vm348, %v783, %v785
      %v787 = vsel %vm283, %v784, 0
      %v789 = vsel %vm283, %v786, 0
      %791 = vmatpush.msra.mxu0 0.0
      %792 = vmatpush.msra.mxu0 0.0
      %793 = vmatpush.msra.mxu0 0.0
      %794 = vmatpush.msra.mxu0 0.0
      %795 = vmatpush.msra.mxu0 0.0
      %796 = vmatpush.msra.mxu0 0.0
      %797 = vmatpush.msra.mxu0 0.0
      %798 = vmatpush.msra.mxu0 %v781
      %799 = vmatpush.msra.mxu0 %v780
      %800 = vmatpush.msra.mxu0 %v779
      %801 = vmatpush.msra.mxu0 %v778
      %802 = vmatpush.msra.mxu0 %v777
      %803 = vmatpush.msra.mxu0 %v776
      %804 = vmatpush.msra.mxu0 %v775
      %805 = vmatpush.msra.mxu0 %v774
      %806 = vmatpush.msra.mxu0 %v773
      %807 = vmatmul.f32.gmra.mxu0 %v787
      %v808 = vpop.f32.mrf.mxu0
      %v809 = vadd.f32 0.0, %v808
      %810 = vmatmul.f32.gmra.mxu0 %v789
      %v811 = vpop.f32.mrf.mxu0
      %v812 = vadd.f32 0.0, %v811
      %813 = vdwg.mxu0
      %v814 = vadd.f32 %v768, %v809
      %v815 = vadd.f32 %v771, %v812
      %v816 = vld [vmem:[%s2] sm:$0x1]
      %v818 = vperm.slane %v816, 0
      %v820 = vmul.f32 %v814, %v818
      %v821 = vmul.f32 %v815, %v818
      %v822 = vld [vmem:[%s3] sm:$0x1]
      %v824 = vperm.slane %v822, 0
      %v826 = vadd.f32 %v820, %v824
      %v827 = vadd.f32 %v821, %v824
      %v828 = vsub.f32 %v826, %v625
      %v829 = vsub.f32 %v827, %v626
      %v830 = vmul.f32 %v828, 0.5
      %v831 = vmul.f32 %v829, 0.5
      %v832 = vadd.f32 %v625, %v830
      %v833 = vadd.f32 %v626, %v831
      %vm834 = vcmp.ge.f32.partialorder %v832, 1.0
      %vm835 = vcmp.ge.f32.partialorder %v833, 1.0
      %v836 = vsel %vm834, 1, 0
      %v837 = vsel %vm835, 1, 0
      %v838 = vcvt.s32.f32 %v836
      %v839 = vcvt.s32.f32 %v837
      %v840 = vsub.f32 1.0, %v838
      %v841 = vsub.f32 1.0, %v839
      %v842 = vmul.f32 %v832, %v840
      %v843 = vmul.f32 %v833, %v841
      %v844 = vld [vmem:[%s4] sm:$0xff]
      %v846 = vsel %vm410, %v844, 0
      %848 = vmatpush.msra.mxu0 0.0
      %849 = vmatpush.msra.mxu0 0.0
      %850 = vmatpush.msra.mxu0 0.0
      %851 = vmatpush.msra.mxu0 0.0
      %852 = vmatpush.msra.mxu0 0.0
      %853 = vmatpush.msra.mxu0 0.0
      %854 = vmatpush.msra.mxu0 0.0
      %855 = vmatpush.msra.mxu0 0.0
      %856 = vmatpush.msra.mxu0 0.0
      %857 = vmatpush.msra.mxu0 0.0
      %858 = vmatpush.msra.mxu0 0.0
      %859 = vmatpush.msra.mxu0 0.0
      %860 = vmatpush.msra.mxu0 0.0
      %861 = vmatpush.msra.mxu0 0.0
      %862 = vmatpush.msra.mxu0 %v839
      %863 = vmatpush.msra.mxu0 %v838
      %864 = vmatmul.f32.gmra.mxu0 %v846
      %v865 = vpop.f32.mrf.mxu0
      %v866 = vadd.f32 0.0, %v865
      %867 = vdwg.mxu0
      %v868 = vld [vmem:[%s5] sm:$0xff]
      %v869 = vld [vmem:[%s5 + $0x8] sm:$0xff]
      %v870 = vld [vmem:[%s5 + $0x10] sm:$0xff]
      %v871 = vld [vmem:[%s5 + $0x18] sm:$0xff]
      %v872 = vld [vmem:[%s5 + $0x20] sm:$0xff]
      %v873 = vld [vmem:[%s5 + $0x28] sm:$0xff]
      %v874 = vld [vmem:[%s5 + $0x30] sm:$0xff]
      %v875 = vld [vmem:[%s5 + $0x38] sm:$0xff]
      %v876 = vld [vmem:[%s5 + $0x40] sm:$0xff]
      %v877 = vld [vmem:[%s5 + $0x48] sm:$0xff]
      %v878 = vld [vmem:[%s5 + $0x50] sm:$0xff]
      %v879 = vld [vmem:[%s5 + $0x58] sm:$0xff]
      %v880 = vld [vmem:[%s5 + $0x60] sm:$0xff]
      %v881 = vld [vmem:[%s5 + $0x68] sm:$0xff]
      %v882 = vld [vmem:[%s5 + $0x70] sm:$0xff]
      %v883 = vld [vmem:[%s5 + $0x78] sm:$0xff]
      %884 = vmatpush.msra.mxu0 %v883
      %885 = vmatpush.msra.mxu0 %v882
      %886 = vmatpush.msra.mxu0 %v881
      %887 = vmatpush.msra.mxu0 %v880
      %888 = vmatpush.msra.mxu0 %v879
      %889 = vmatpush.msra.mxu0 %v878
      %890 = vmatpush.msra.mxu0 %v877
      %891 = vmatpush.msra.mxu0 %v876
      %892 = vmatpush.msra.mxu0 %v875
      %893 = vmatpush.msra.mxu0 %v874
      %894 = vmatpush.msra.mxu0 %v873
      %895 = vmatpush.msra.mxu0 %v872
      %896 = vmatpush.msra.mxu0 %v871
      %897 = vmatpush.msra.mxu0 %v870
      %898 = vmatpush.msra.mxu0 %v869
      %899 = vmatpush.msra.mxu0 %v868
      %900 = vmatmul.f32.gmra.mxu0 %v866
      %v901 = vpop.f32.mrf.mxu0
      %v902 = vadd.f32 0.0, %v901
      %903 = vdwg.mxu0
      %s904 = scalar_lea.vmem %s251, 16
      %905 = vst.msk [vmem:[%s904] sm:$0xff] %vm470, %v902
      %s906 = scalar_lea.vmem %s246, 72
      %v907 = vld [vmem:[%s906] sm:$0xff]
      %v908 = vld [vmem:[%s906 + $0x8] sm:$0xff]
      %v909 = vld [vmem:[%s906 + $0x10] sm:$0x3]
      %v910 = vld [vmem:[%s1] sm:$0xff]
      %v911 = vld [vmem:[%s1 + $0x8] sm:$0xff]
      %v912 = vld [vmem:[%s1 + $0x10] sm:$0xff]
      %v913 = vld [vmem:[%s1 + $0x18] sm:$0xff]
      %v914 = vld [vmem:[%s1 + $0x20] sm:$0xff]
      %v915 = vld [vmem:[%s1 + $0x28] sm:$0xff]
      %v916 = vld [vmem:[%s1 + $0x30] sm:$0xff]
      %v917 = vld [vmem:[%s1 + $0x38] sm:$0xff]
      %v918 = vld [vmem:[%s1 + $0x40] sm:$0xff]
      %v919 = vld [vmem:[%s264] sm:$0xff]
      %v920 = vld [vmem:[%s264 + $0x8] sm:$0xff]
      %v921 = vld [vmem:[%s264 + $0x10] sm:$0xff]
      %v922 = vld [vmem:[%s264 + $0x18] sm:$0xff]
      %v923 = vld [vmem:[%s264 + $0x20] sm:$0xff]
      %v924 = vld [vmem:[%s264 + $0x28] sm:$0xff]
      %v925 = vld [vmem:[%s264 + $0x30] sm:$0xff]
      %v926 = vld [vmem:[%s264 + $0x38] sm:$0xff]
      %v927 = vld [vmem:[%s264 + $0x40] sm:$0xff]
      %v931 = vrot.slane %v907, 1
      %v932 = vrot.slane %v908, 1
      %v933 = vsel %vm277, %v931, %v932
      %v934 = vrot.slane %v909, 1
      %v935 = vsel %vm277, %v932, %v934
      %v936 = vsel %vm283, %v933, 0
      %v938 = vsel %vm283, %v935, 0
      %940 = vmatpush.msra.mxu0 0.0
      %941 = vmatpush.msra.mxu0 0.0
      %942 = vmatpush.msra.mxu0 0.0
      %943 = vmatpush.msra.mxu0 0.0
      %944 = vmatpush.msra.mxu0 0.0
      %945 = vmatpush.msra.mxu0 0.0
      %946 = vmatpush.msra.mxu0 0.0
      %947 = vmatpush.msra.mxu0 %v927
      %948 = vmatpush.msra.mxu0 %v926
      %949 = vmatpush.msra.mxu0 %v925
      %950 = vmatpush.msra.mxu0 %v924
      %951 = vmatpush.msra.mxu0 %v923
      %952 = vmatpush.msra.mxu0 %v922
      %953 = vmatpush.msra.mxu0 %v921
      %954 = vmatpush.msra.mxu0 %v920
      %955 = vmatpush.msra.mxu0 %v919
      %956 = vmatmul.f32.gmra.mxu0 %v936
      %v957 = vpop.f32.mrf.mxu0
      %v958 = vadd.f32 0.0, %v957
      %959 = vmatmul.f32.gmra.mxu0 %v938
      %v960 = vpop.f32.mrf.mxu0
      %v961 = vadd.f32 0.0, %v960
      %962 = vdwg.mxu0
      %v963 = vsel %vm283, %v907, 0
      %v965 = vsel %vm283, %v908, 0
      %967 = vmatpush.msra.mxu0 0.0
      %968 = vmatpush.msra.mxu0 0.0
      %969 = vmatpush.msra.mxu0 0.0
      %970 = vmatpush.msra.mxu0 0.0
      %971 = vmatpush.msra.mxu0 0.0
      %972 = vmatpush.msra.mxu0 0.0
      %973 = vmatpush.msra.mxu0 0.0
      %974 = vmatpush.msra.mxu0 %v918
      %975 = vmatpush.msra.mxu0 %v917
      %976 = vmatpush.msra.mxu0 %v916
      %977 = vmatpush.msra.mxu0 %v915
      %978 = vmatpush.msra.mxu0 %v914
      %979 = vmatpush.msra.mxu0 %v913
      %980 = vmatpush.msra.mxu0 %v912
      %981 = vmatpush.msra.mxu0 %v911
      %982 = vmatpush.msra.mxu0 %v910
      %983 = vmatmul.f32.gmra.mxu0 %v963
      %v984 = vpop.f32.mrf.mxu0
      %v985 = vadd.f32 %v958, %v984
      %986 = vmatmul.f32.gmra.mxu0 %v965
      %v987 = vpop.f32.mrf.mxu0
      %v988 = vadd.f32 %v961, %v987
      %989 = vdwg.mxu0
      %v990 = vld [vmem:[%s338] sm:$0xff]
      %v991 = vld [vmem:[%s338 + $0x8] sm:$0xff]
      %v992 = vld [vmem:[%s338 + $0x10] sm:$0xff]
      %v993 = vld [vmem:[%s338 + $0x18] sm:$0xff]
      %v994 = vld [vmem:[%s338 + $0x20] sm:$0xff]
      %v995 = vld [vmem:[%s338 + $0x28] sm:$0xff]
      %v996 = vld [vmem:[%s338 + $0x30] sm:$0xff]
      %v997 = vld [vmem:[%s338 + $0x38] sm:$0xff]
      %v998 = vld [vmem:[%s338 + $0x40] sm:$0xff]
      %v999 = vrot.slane %v907, 2
      %v1000 = vrot.slane %v908, 2
      %v1001 = vsel %vm348, %v999, %v1000
      %v1002 = vrot.slane %v909, 2
      %v1003 = vsel %vm348, %v1000, %v1002
      %v1004 = vsel %vm283, %v1001, 0
      %v1006 = vsel %vm283, %v1003, 0
      %1008 = vmatpush.msra.mxu0 0.0
      %1009 = vmatpush.msra.mxu0 0.0
      %1010 = vmatpush.msra.mxu0 0.0
      %1011 = vmatpush.msra.mxu0 0.0
      %1012 = vmatpush.msra.mxu0 0.0
      %1013 = vmatpush.msra.mxu0 0.0
      %1014 = vmatpush.msra.mxu0 0.0
      %1015 = vmatpush.msra.mxu0 %v998
      %1016 = vmatpush.msra.mxu0 %v997
      %1017 = vmatpush.msra.mxu0 %v996
      %1018 = vmatpush.msra.mxu0 %v995
      %1019 = vmatpush.msra.mxu0 %v994
      %1020 = vmatpush.msra.mxu0 %v993
      %1021 = vmatpush.msra.mxu0 %v992
      %1022 = vmatpush.msra.mxu0 %v991
      %1023 = vmatpush.msra.mxu0 %v990
      %1024 = vmatmul.f32.gmra.mxu0 %v1004
      %v1025 = vpop.f32.mrf.mxu0
      %v1026 = vadd.f32 0.0, %v1025
      %1027 = vmatmul.f32.gmra.mxu0 %v1006
      %v1028 = vpop.f32.mrf.mxu0
      %v1029 = vadd.f32 0.0, %v1028
      %1030 = vdwg.mxu0
      %v1031 = vadd.f32 %v985, %v1026
      %v1032 = vadd.f32 %v988, %v1029
      %v1033 = vld [vmem:[%s2] sm:$0x1]
      %v1035 = vperm.slane %v1033, 0
      %v1037 = vmul.f32 %v1031, %v1035
      %v1038 = vmul.f32 %v1032, %v1035
      %v1039 = vld [vmem:[%s3] sm:$0x1]
      %v1041 = vperm.slane %v1039, 0
      %v1043 = vadd.f32 %v1037, %v1041
      %v1044 = vadd.f32 %v1038, %v1041
      %v1045 = vsub.f32 %v1043, %v842
      %v1046 = vsub.f32 %v1044, %v843
      %v1047 = vmul.f32 %v1045, 0.5
      %v1048 = vmul.f32 %v1046, 0.5
      %v1049 = vadd.f32 %v842, %v1047
      %v1050 = vadd.f32 %v843, %v1048
      %vm1051 = vcmp.ge.f32.partialorder %v1049, 1.0
      %vm1052 = vcmp.ge.f32.partialorder %v1050, 1.0
      %v1053 = vsel %vm1051, 1, 0
      %v1054 = vsel %vm1052, 1, 0
      %v1055 = vcvt.s32.f32 %v1053
      %v1056 = vcvt.s32.f32 %v1054
      %v1057 = vld [vmem:[%s4] sm:$0xff]
      %v1059 = vsel %vm410, %v1057, 0
      %1061 = vmatpush.msra.mxu0 0.0
      %1062 = vmatpush.msra.mxu0 0.0
      %1063 = vmatpush.msra.mxu0 0.0
      %1064 = vmatpush.msra.mxu0 0.0
      %1065 = vmatpush.msra.mxu0 0.0
      %1066 = vmatpush.msra.mxu0 0.0
      %1067 = vmatpush.msra.mxu0 0.0
      %1068 = vmatpush.msra.mxu0 0.0
      %1069 = vmatpush.msra.mxu0 0.0
      %1070 = vmatpush.msra.mxu0 0.0
      %1071 = vmatpush.msra.mxu0 0.0
      %1072 = vmatpush.msra.mxu0 0.0
      %1073 = vmatpush.msra.mxu0 0.0
      %1074 = vmatpush.msra.mxu0 0.0
      %1075 = vmatpush.msra.mxu0 %v1056
      %1076 = vmatpush.msra.mxu0 %v1055
      %1077 = vmatmul.f32.gmra.mxu0 %v1059
      %v1078 = vpop.f32.mrf.mxu0
      %v1079 = vadd.f32 0.0, %v1078
      %1080 = vdwg.mxu0
      %v1081 = vld [vmem:[%s5] sm:$0xff]
      %v1082 = vld [vmem:[%s5 + $0x8] sm:$0xff]
      %v1083 = vld [vmem:[%s5 + $0x10] sm:$0xff]
      %v1084 = vld [vmem:[%s5 + $0x18] sm:$0xff]
      %v1085 = vld [vmem:[%s5 + $0x20] sm:$0xff]
      %v1086 = vld [vmem:[%s5 + $0x28] sm:$0xff]
      %v1087 = vld [vmem:[%s5 + $0x30] sm:$0xff]
      %v1088 = vld [vmem:[%s5 + $0x38] sm:$0xff]
      %v1089 = vld [vmem:[%s5 + $0x40] sm:$0xff]
      %v1090 = vld [vmem:[%s5 + $0x48] sm:$0xff]
      %v1091 = vld [vmem:[%s5 + $0x50] sm:$0xff]
      %v1092 = vld [vmem:[%s5 + $0x58] sm:$0xff]
      %v1093 = vld [vmem:[%s5 + $0x60] sm:$0xff]
      %v1094 = vld [vmem:[%s5 + $0x68] sm:$0xff]
      %v1095 = vld [vmem:[%s5 + $0x70] sm:$0xff]
      %v1096 = vld [vmem:[%s5 + $0x78] sm:$0xff]
      %1097 = vmatpush.msra.mxu0 %v1096
      %1098 = vmatpush.msra.mxu0 %v1095
      %1099 = vmatpush.msra.mxu0 %v1094
      %1100 = vmatpush.msra.mxu0 %v1093
      %1101 = vmatpush.msra.mxu0 %v1092
      %1102 = vmatpush.msra.mxu0 %v1091
      %1103 = vmatpush.msra.mxu0 %v1090
      %1104 = vmatpush.msra.mxu0 %v1089
      %1105 = vmatpush.msra.mxu0 %v1088
      %1106 = vmatpush.msra.mxu0 %v1087
      %1107 = vmatpush.msra.mxu0 %v1086
      %1108 = vmatpush.msra.mxu0 %v1085
      %1109 = vmatpush.msra.mxu0 %v1084
      %1110 = vmatpush.msra.mxu0 %v1083
      %1111 = vmatpush.msra.mxu0 %v1082
      %1112 = vmatpush.msra.mxu0 %v1081
      %1113 = vmatmul.f32.gmra.mxu0 %v1079
      %v1114 = vpop.f32.mrf.mxu0
      %v1115 = vadd.f32 0.0, %v1114
      %1116 = vdwg.mxu0
      %s1117 = scalar_lea.vmem %s251, 24
      %1118 = vst.msk [vmem:[%s1117] sm:$0xff] %vm470, %v1115
      %p1119 = scmp.lt.s32.totalorder %s17, 1
      %s1120 = scalar_select %p1119, %s17, 1
      %s1121 = smul.addr %s1120, 4
      %s1122 = smul.addr %s1121, 8
      %s1123 = scalar_lea.vmem %s6, %s1122
      // Predicated region
      $region45: #{spikformer_forward.9} parent=43 // pred_check
        %p1124 = pneg %p166
      $region46: #{spikformer_forward.9} parent=43 // pred_check_branch
        %1126 = sbr.rel (%p1124) target = $region48
      $region47: #{spikformer_forward.9} parent=43 // pred_region
        _
      $region48: #{spikformer_forward.9} parent=43 // pred_fallthru
        _
    $region44: #{spikformer_forward.9} parent=5 // pred_fallthru
      _
    %p1127 = scmp.le.s32.totalorder 2, %s12
    // Predicated region
    $region49: #{spikformer_forward.9} parent=5 // pred_check
      %p1128 = pneg %p1127
    $region50: #{spikformer_forward.9} parent=5 // pred_check_branch
      %1130 = sbr.rel (%p1128) target = $region52
    $region51: #{spikformer_forward.9} parent=5 // pred_region
      %s1131 = ssub.s32 %s12, 2
      // Predicated region
      $region53: #{spikformer_forward.9} parent=51 // pred_check
        %p1132 = pneg %p172
      $region54: #{spikformer_forward.9} parent=51 // pred_check_branch
        %1134 = sbr.rel (%p1132) target = $region56
      $region55: #{spikformer_forward.9} parent=51 // pred_region
        %p1135 = scmp.lt.s32.totalorder %s18, 1
        %s1136 = scalar_select %p1135, %s18, 1
        %s1137 = smul.addr %s1136, 4
        %s1138 = smul.addr %s1137, 8
        %s1139 = scalar_lea.vmem %s6, %s1138
      $region56: #{spikformer_forward.9} parent=51 // pred_fallthru
        _
    $region52: #{spikformer_forward.9} parent=5 // pred_fallthru
      _
  $region6: #{spikformer_forward.9} parent=0 // loop_footer
    %s16 = sadd.s32 1, %s12
  $region7: #{spikformer_forward.9} parent=0 // loop_footer_branch
    %11 = sbr.rel target = $region3
  $region8: #{spikformer_forward.9} parent=0 // loop_exit
    _

// kernel: spikformer_forward.10
$region0: #{spikformer_forward.10}
  #allocation0 [shape = 'u32[]', space=smem, size = 0x4, offset = 0x4, fixed_abs, tag = 'smem constant byte address 0x4 - core index']
  #allocation1 [shape = 'u32[72,128]{1,0:T(1,128)}', space=vmem, size = 0x9000, scoped, tag = 'internal scratch']
  %s0 = inlined_call_operand.vmem [shape: f32[2,4,10,80], index: 0, kind: input, shape index: {}]
  %s1 = inlined_call_operand.vmem [shape: f32[3,80,128], index: 1, kind: input, shape index: {}]
  %s2 = inlined_call_operand.vmem [shape: f32[1,128], index: 2, kind: input, shape index: {}]
  %s3 = inlined_call_operand.vmem [shape: f32[1,128], index: 3, kind: input, shape index: {}]
  %s4 = inlined_call_operand.vmem [shape: f32[4,8], index: 4, kind: input, shape index: {}]
  %s5 = inlined_call_operand.vmem [shape: f32[128,64], index: 5, kind: input, shape index: {}]
  %s6 = inlined_call_operand.vmem [shape: f32[2,4,4,64], index: 6, kind: output, shape index: {}]
  %s7 = sld [smem:[#allocation0]]
  $region57: #{spikformer_forward.10} parent=0
    _
  %s9 = ssub.s32 1, %s7
  %s10 = scalar_select 0, %s9, %s7
  loop: start=0, step=1, limit=4
  $region2: #{spikformer_forward.10} parent=0 // loop_pre_header
    _
  $region3: #{spikformer_forward.10} parent=0 // loop_header
    %s12 = sphi 0, %s16
    %p13 = scmp.ge.s32.totalorder %s12, 4
    %s22 = sphi 0, %s24
    %s25 = sphi 0, %s22
    %s26 = sphi 0, %s25
    %s42 = sphi 0, %s26
    %s46 = sphi 0, %s46
    %s48 = sphi 0, %s46
    %s49 = sphi 0, %s48
    %s63 = sphi 0, %s49
    %s67 = sphi 0, %s67
    %s69 = sphi 0, %s67
    %s70 = sphi 0, %s69
    %s84 = sphi 0, %s70
    %s88 = sphi 0, %s88
    %s90 = sphi 0, %s88
    %s91 = sphi 0, %s90
    %s105 = sphi 0, %s91
    %s109 = sphi 0, %s109
    %s111 = sphi 0, %s109
    %s112 = sphi 0, %s111
    %s126 = sphi 0, %s112
    %s130 = sphi 0, %s130
    %s132 = sphi 0, %s130
    %s133 = sphi 0, %s132
    %s147 = sphi 0, %s133
    %s153 = sphi 0, %s155
    %s156 = sphi 0, %s153
    %s157 = sphi 0, %s156
    %s173 = sphi 0, %s157
  $region4: #{spikformer_forward.10} parent=0 // loop_header_branch
    %15 = sbr.rel (%p13) target = $region8
  $region5: #{spikformer_forward.10} parent=0 // loop_body
    %s17 = ssub.s32 %s12, 1
    %s18 = ssub.s32 %s12, 2
    %s19 = sadd.s32 %s12, 1
    %s20 = ssub.s32 %s12, %s19
    %p21 = scmp.eq.s32.totalorder %s20, 0
    %s23 = sadd.s32 %s22, 1
    %s24 = scalar_select %p21, %s22, %s23
    %p27 = pneg %p21
    %p28 = scmp.eq.s32.totalorder %s12, 1
    %p29 = por %p27, %p28
    %p30 = scmp.ne.s32.totalorder %s22, %s25
    %p31 = scmp.eq.s32.totalorder %s12, 0
    %p32 = por %p30, %p31
    %p33 = scmp.ne.s32.totalorder %s22, %s25
    %p34 = scmp.eq.s32.totalorder %s17, 1
    %p35 = por %p33, %p34
    %p36 = scmp.ne.s32.totalorder %s25, %s26
    %p37 = scmp.eq.s32.totalorder %s17, 0
    %p38 = por %p36, %p37
    %p39 = scmp.ne.s32.totalorder %s25, %s26
    %p40 = scmp.eq.s32.totalorder %s18, 1
    %p41 = por %p39, %p40
    %p43 = scmp.ne.s32.totalorder %s26, %s42
    %p44 = scmp.eq.s32.totalorder %s18, 0
    %p45 = por %p43, %p44
    %s47 = sadd.s32 %s46, 1
    %p50 = scmp.eq.s32.totalorder %s12, 1
    %p51 = scmp.ne.s32.totalorder %s46, %s48
    %p52 = scmp.eq.s32.totalorder %s12, 0
    %p53 = por %p51, %p52
    %p54 = scmp.ne.s32.totalorder %s46, %s48
    %p55 = scmp.eq.s32.totalorder %s17, 1
    %p56 = por %p54, %p55
    %p57 = scmp.ne.s32.totalorder %s48, %s49
    %p58 = scmp.eq.s32.totalorder %s17, 0
    %p59 = por %p57, %p58
    %p60 = scmp.ne.s32.totalorder %s48, %s49
    %p61 = scmp.eq.s32.totalorder %s18, 1
    %p62 = por %p60, %p61
    %p64 = scmp.ne.s32.totalorder %s49, %s63
    %p65 = scmp.eq.s32.totalorder %s18, 0
    %p66 = por %p64, %p65
    %s68 = sadd.s32 %s67, 1
    %p71 = scmp.eq.s32.totalorder %s12, 1
    %p72 = scmp.ne.s32.totalorder %s67, %s69
    %p73 = scmp.eq.s32.totalorder %s12, 0
    %p74 = por %p72, %p73
    %p75 = scmp.ne.s32.totalorder %s67, %s69
    %p76 = scmp.eq.s32.totalorder %s17, 1
    %p77 = por %p75, %p76
    %p78 = scmp.ne.s32.totalorder %s69, %s70
    %p79 = scmp.eq.s32.totalorder %s17, 0
    %p80 = por %p78, %p79
    %p81 = scmp.ne.s32.totalorder %s69, %s70
    %p82 = scmp.eq.s32.totalorder %s18, 1
    %p83 = por %p81, %p82
    %p85 = scmp.ne.s32.totalorder %s70, %s84
    %p86 = scmp.eq.s32.totalorder %s18, 0
    %p87 = por %p85, %p86
    %s89 = sadd.s32 %s88, 1
    %p92 = scmp.eq.s32.totalorder %s12, 1
    %p93 = scmp.ne.s32.totalorder %s88, %s90
    %p94 = scmp.eq.s32.totalorder %s12, 0
    %p95 = por %p93, %p94
    %p96 = scmp.ne.s32.totalorder %s88, %s90
    %p97 = scmp.eq.s32.totalorder %s17, 1
    %p98 = por %p96, %p97
    %p99 = scmp.ne.s32.totalorder %s90, %s91
    %p100 = scmp.eq.s32.totalorder %s17, 0
    %p101 = por %p99, %p100
    %p102 = scmp.ne.s32.totalorder %s90, %s91
    %p103 = scmp.eq.s32.totalorder %s18, 1
    %p104 = por %p102, %p103
    %p106 = scmp.ne.s32.totalorder %s91, %s105
    %p107 = scmp.eq.s32.totalorder %s18, 0
    %p108 = por %p106, %p107
    %s110 = sadd.s32 %s109, 1
    %p113 = scmp.eq.s32.totalorder %s12, 1
    %p114 = scmp.ne.s32.totalorder %s109, %s111
    %p115 = scmp.eq.s32.totalorder %s12, 0
    %p116 = por %p114, %p115
    %p117 = scmp.ne.s32.totalorder %s109, %s111
    %p118 = scmp.eq.s32.totalorder %s17, 1
    %p119 = por %p117, %p118
    %p120 = scmp.ne.s32.totalorder %s111, %s112
    %p121 = scmp.eq.s32.totalorder %s17, 0
    %p122 = por %p120, %p121
    %p123 = scmp.ne.s32.totalorder %s111, %s112
    %p124 = scmp.eq.s32.totalorder %s18, 1
    %p125 = por %p123, %p124
    %p127 = scmp.ne.s32.totalorder %s112, %s126
    %p128 = scmp.eq.s32.totalorder %s18, 0
    %p129 = por %p127, %p128
    %s131 = sadd.s32 %s130, 1
    %p134 = scmp.eq.s32.totalorder %s12, 1
    %p135 = scmp.ne.s32.totalorder %s130, %s132
    %p136 = scmp.eq.s32.totalorder %s12, 0
    %p137 = por %p135, %p136
    %p138 = scmp.ne.s32.totalorder %s130, %s132
    %p139 = scmp.eq.s32.totalorder %s17, 1
    %p140 = por %p138, %p139
    %p141 = scmp.ne.s32.totalorder %s132, %s133
    %p142 = scmp.eq.s32.totalorder %s17, 0
    %p143 = por %p141, %p142
    %p144 = scmp.ne.s32.totalorder %s132, %s133
    %p145 = scmp.eq.s32.totalorder %s18, 1
    %p146 = por %p144, %p145
    %p148 = scmp.ne.s32.totalorder %s133, %s147
    %p149 = scmp.eq.s32.totalorder %s18, 0
    %p150 = por %p148, %p149
    %s151 = ssub.s32 %s12, %s19
    %p152 = scmp.eq.s32.totalorder %s151, 0
    %s154 = sadd.s32 %s153, 1
    %s155 = scalar_select %p152, %s153, %s154
    %p158 = pneg %p152
    %p159 = scmp.eq.s32.totalorder %s12, 1
    %p160 = por %p158, %p159
    %p161 = scmp.ne.s32.totalorder %s153, %s156
    %p162 = scmp.eq.s32.totalorder %s12, 0
    %p163 = por %p161, %p162
    %p164 = scmp.ne.s32.totalorder %s153, %s156
    %p165 = scmp.eq.s32.totalorder %s17, 1
    %p166 = por %p164, %p165
    %p167 = scmp.ne.s32.totalorder %s156, %s157
    %p168 = scmp.eq.s32.totalorder %s17, 0
    %p169 = por %p167, %p168
    %p170 = scmp.ne.s32.totalorder %s156, %s157
    %p171 = scmp.eq.s32.totalorder %s18, 1
    %p172 = por %p170, %p171
    %p174 = scmp.ne.s32.totalorder %s157, %s173
    %p175 = scmp.eq.s32.totalorder %s18, 0
    %p176 = por %p174, %p175
    %p177 = scmp.le.s32.totalorder 1, %s12
    %p178 = scmp.lt.s32.totalorder %s12, 3
    %p179 = pnand %p177, %p178
    %p180 = pneg %p179
    // Predicated region
    $region9: #{spikformer_forward.10} parent=5 // pred_check
      _
    $region10: #{spikformer_forward.10} parent=5 // pred_check_branch
      %182 = sbr.rel (%p179) target = $region12
    $region11: #{spikformer_forward.10} parent=5 // pred_region
      %s183 = ssub.s32 %s12, 1
      // Predicated region
      $region13: #{spikformer_forward.10} parent=11 // pred_check
        %p184 = pneg %p59
      $region14: #{spikformer_forward.10} parent=11 // pred_check_branch
        %186 = sbr.rel (%p184) target = $region16
      $region15: #{spikformer_forward.10} parent=11 // pred_region
        _
      $region16: #{spikformer_forward.10} parent=11 // pred_fallthru
        _
      // Predicated region
      $region17: #{spikformer_forward.10} parent=11 // pred_check
        %p187 = pneg %p80
      $region18: #{spikformer_forward.10} parent=11 // pred_check_branch
        %189 = sbr.rel (%p187) target = $region20
      $region19: #{spikformer_forward.10} parent=11 // pred_region
        _
      $region20: #{spikformer_forward.10} parent=11 // pred_fallthru
        _
      // Predicated region
      $region21: #{spikformer_forward.10} parent=11 // pred_check
        %p190 = pneg %p101
      $region22: #{spikformer_forward.10} parent=11 // pred_check_branch
        %192 = sbr.rel (%p190) target = $region24
      $region23: #{spikformer_forward.10} parent=11 // pred_region
        _
      $region24: #{spikformer_forward.10} parent=11 // pred_fallthru
        _
      // Predicated region
      $region25: #{spikformer_forward.10} parent=11 // pred_check
        %p193 = pneg %p122
      $region26: #{spikformer_forward.10} parent=11 // pred_check_branch
        %195 = sbr.rel (%p193) target = $region28
      $region27: #{spikformer_forward.10} parent=11 // pred_region
        _
      $region28: #{spikformer_forward.10} parent=11 // pred_fallthru
        _
      // Predicated region
      $region29: #{spikformer_forward.10} parent=11 // pred_check
        %p196 = pneg %p143
      $region30: #{spikformer_forward.10} parent=11 // pred_check_branch
        %198 = sbr.rel (%p196) target = $region32
      $region31: #{spikformer_forward.10} parent=11 // pred_region
        _
      $region32: #{spikformer_forward.10} parent=11 // pred_fallthru
        _
    $region12: #{spikformer_forward.10} parent=5 // pred_fallthru
      _
    %p199 = scmp.lt.s32.totalorder %s12, 2
    // Predicated region
    $region33: #{spikformer_forward.10} parent=5 // pred_check
      %p200 = pneg %p199
    $region34: #{spikformer_forward.10} parent=5 // pred_check_branch
      %202 = sbr.rel (%p200) target = $region36
    $region35: #{spikformer_forward.10} parent=5 // pred_region
      // Predicated region
      $region37: #{spikformer_forward.10} parent=35 // pred_check
        %p203 = pneg %p32
      $region38: #{spikformer_forward.10} parent=35 // pred_check_branch
        %205 = sbr.rel (%p203) target = $region40
      $region39: #{spikformer_forward.10} parent=35 // pred_region
        %p206 = scmp.lt.s32.totalorder %s12, 1
        %s207 = scalar_select %p206, %s12, 1
        %s208 = smul.addr %s207, 8
        %s209 = smul.addr %s208, 8
        %s210 = scalar_lea.vmem %s0, %s209
      $region40: #{spikformer_forward.10} parent=35 // pred_fallthru
        _
    $region36: #{spikformer_forward.10} parent=5 // pred_fallthru
      _
    %p211 = scmp.le.s32.totalorder 1, %s12
    %p212 = scmp.lt.s32.totalorder %s12, 3
    %p213 = pnand %p211, %p212
    %p214 = pneg %p213
    // Predicated region
    $region41: #{spikformer_forward.10} parent=5 // pred_check
      _
    $region42: #{spikformer_forward.10} parent=5 // pred_check_branch
      %216 = sbr.rel (%p213) target = $region44
    $region43: #{spikformer_forward.10} parent=5 // pred_region
      %s217 = ssub.s32 %s12, 1
      %p218 = scmp.lt.s32.totalorder %s17, 1
      %s219 = scalar_select %p218, %s17, 1
      %s220 = smul.addr %s219, 8
      %s221 = smul.addr %s220, 8
      %s222 = scalar_lea.vmem %s0, %s221
      %p223 = pneg %p38
      %p224 = pneg %p35
      %p225 = pneg %p59
      %p226 = pneg %p56
      %p227 = pneg %p80
      %p228 = pneg %p77
      %p229 = pneg %p101
      %p230 = pneg %p98
      %p231 = pneg %p122
      %p232 = pneg %p119
      %p233 = pneg %p143
      %p234 = pneg %p140
      %p235 = pneg %p169
      %p236 = pneg %p166
      %p237 = scmp.lt.s32.totalorder %s17, 1
      %s238 = scalar_select %p237, %s17, 1
      %s239 = smul.addr %s238, 4
      %s240 = smul.addr %s239, 4
      %s241 = scalar_lea.vmem %s6, %s240
      %p242 = scmp.lt.s32.totalorder %s17, 1
      %s243 = scalar_select %p242, %s17, 1
      %s244 = smul.addr %s243, 8
      %s245 = smul.addr %s244, 8
      %s246 = scalar_lea.vmem %s0, %s245
      %p247 = scmp.lt.s32.totalorder %s17, 1
      %s248 = scalar_select %p247, %s17, 1
      %s249 = smul.addr %s248, 4
      %s250 = smul.addr %s249, 4
      %s251 = scalar_lea.vmem %s6, %s250
      %v252 = vld [vmem:[%s246] sm:$0xff]
      %v253 = vld [vmem:[%s246 + $0x8] sm:$0x3]
      %v254 = vld [vmem:[%s1] sm:$0xff]
      %v255 = vld [vmem:[%s1 + $0x8] sm:$0xff]
      %v256 = vld [vmem:[%s1 + $0x10] sm:$0xff]
      %v257 = vld [vmem:[%s1 + $0x18] sm:$0xff]
      %v258 = vld [vmem:[%s1 + $0x20] sm:$0xff]
      %v259 = vld [vmem:[%s1 + $0x28] sm:$0xff]
      %v260 = vld [vmem:[%s1 + $0x30] sm:$0xff]
      %v261 = vld [vmem:[%s1 + $0x38] sm:$0xff]
      %v262 = vld [vmem:[%s1 + $0x40] sm:$0xff]
      %v263 = vld [vmem:[%s1 + $0x48] sm:$0xff]
      %s264 = scalar_lea.vmem %s1, 80
      %v265 = vld [vmem:[%s264] sm:$0xff]
      %v266 = vld [vmem:[%s264 + $0x8] sm:$0xff]
      %v267 = vld [vmem:[%s264 + $0x10] sm:$0xff]
      %v268 = vld [vmem:[%s264 + $0x18] sm:$0xff]
      %v269 = vld [vmem:[%s264 + $0x20] sm:$0xff]
      %v270 = vld [vmem:[%s264 + $0x28] sm:$0xff]
      %v271 = vld [vmem:[%s264 + $0x30] sm:$0xff]
      %v272 = vld [vmem:[%s264 + $0x38] sm:$0xff]
      %v273 = vld [vmem:[%s264 + $0x40] sm:$0xff]
      %v274 = vld [vmem:[%s264 + $0x48] sm:$0xff]
      %vm277 = vcmask 1046528
      %v278 = vrot.slane %v252, 1
      %v279 = vrot.slane %v253, 1
      %v280 = vsel %vm277, %v278, %v279
      %vm281 = vcmask 654336
      %v282 = vsel %vm281, %v280, 0
      %284 = vmatpush.msra.mxu0 0.0
      %285 = vmatpush.msra.mxu0 0.0
      %286 = vmatpush.msra.mxu0 0.0
      %287 = vmatpush.msra.mxu0 0.0
      %288 = vmatpush.msra.mxu0 0.0
      %289 = vmatpush.msra.mxu0 0.0
      %290 = vmatpush.msra.mxu0 %v274
      %291 = vmatpush.msra.mxu0 %v273
      %292 = vmatpush.msra.mxu0 %v272
      %293 = vmatpush.msra.mxu0 %v271
      %294 = vmatpush.msra.mxu0 %v270
      %295 = vmatpush.msra.mxu0 %v269
      %296 = vmatpush.msra.mxu0 %v268
      %297 = vmatpush.msra.mxu0 %v267
      %298 = vmatpush.msra.mxu0 %v266
      %299 = vmatpush.msra.mxu0 %v265
      %300 = vmatmul.f32.gmra.mxu0 %v282
      %v301 = vpop.f32.mrf.mxu0
      %v302 = vadd.f32 0.0, %v301
      %303 = vdwg.mxu0
      %v304 = vsel %vm281, %v252, 0
      %306 = vmatpush.msra.mxu0 0.0
      %307 = vmatpush.msra.mxu0 0.0
      %308 = vmatpush.msra.mxu0 0.0
      %309 = vmatpush.msra.mxu0 0.0
      %310 = vmatpush.msra.mxu0 0.0
      %311 = vmatpush.msra.mxu0 0.0
      %312 = vmatpush.msra.mxu0 %v263
      %313 = vmatpush.msra.mxu0 %v262
      %314 = vmatpush.msra.mxu0 %v261
      %315 = vmatpush.msra.mxu0 %v260
      %316 = vmatpush.msra.mxu0 %v259
      %317 = vmatpush.msra.mxu0 %v258
      %318 = vmatpush.msra.mxu0 %v257
      %319 = vmatpush.msra.mxu0 %v256
      %320 = vmatpush.msra.mxu0 %v255
      %321 = vmatpush.msra.mxu0 %v254
      %322 = vmatmul.f32.gmra.mxu0 %v304
      %v323 = vpop.f32.mrf.mxu0
      %v324 = vadd.f32 %v302, %v323
      %325 = vdwg.mxu0
      %s326 = scalar_lea.vmem %s1, 160
      %v327 = vld [vmem:[%s326] sm:$0xff]
      %v328 = vld [vmem:[%s326 + $0x8] sm:$0xff]
      %v329 = vld [vmem:[%s326 + $0x10] sm:$0xff]
      %v330 = vld [vmem:[%s326 + $0x18] sm:$0xff]
      %v331 = vld [vmem:[%s326 + $0x20] sm:$0xff]
      %v332 = vld [vmem:[%s326 + $0x28] sm:$0xff]
      %v333 = vld [vmem:[%s326 + $0x30] sm:$0xff]
      %v334 = vld [vmem:[%s326 + $0x38] sm:$0xff]
      %v335 = vld [vmem:[%s326 + $0x40] sm:$0xff]
      %v336 = vld [vmem:[%s326 + $0x48] sm:$0xff]
      %vm337 = vcmask 1045504
      %v338 = vrot.slane %v252, 2
      %v339 = vrot.slane %v253, 2
      %v340 = vsel %vm337, %v338, %v339
      %v341 = vsel %vm281, %v340, 0
      %343 = vmatpush.msra.mxu0 0.0
      %344 = vmatpush.msra.mxu0 0.0
      %345 = vmatpush.msra.mxu0 0.0
      %346 = vmatpush.msra.mxu0 0.0
      %347 = vmatpush.msra.mxu0 0.0
      %348 = vmatpush.msra.mxu0 0.0
      %349 = vmatpush.msra.mxu0 %v336
      %350 = vmatpush.msra.mxu0 %v335
      %351 = vmatpush.msra.mxu0 %v334
      %352 = vmatpush.msra.mxu0 %v333
      %353 = vmatpush.msra.mxu0 %v332
      %354 = vmatpush.msra.mxu0 %v331
      %355 = vmatpush.msra.mxu0 %v330
      %356 = vmatpush.msra.mxu0 %v329
      %357 = vmatpush.msra.mxu0 %v328
      %358 = vmatpush.msra.mxu0 %v327
      %359 = vmatmul.f32.gmra.mxu0 %v341
      %v360 = vpop.f32.mrf.mxu0
      %v361 = vadd.f32 0.0, %v360
      %362 = vdwg.mxu0
      %v363 = vadd.f32 %v324, %v361
      %v364 = vld [vmem:[%s2] sm:$0x1]
      %v366 = vperm.slane %v364, 0
      %v368 = vmul.f32 %v363, %v366
      %v369 = vld [vmem:[%s3] sm:$0x1]
      %v371 = vperm.slane %v369, 0
      %v373 = vadd.f32 %v368, %v371
      %v374 = vmul.f32 %v373, 0.5
      %v375 = vadd.f32 %v374, 0.0
      %vm376 = vcmp.ge.f32.partialorder %v375, 1.0
      %v377 = vsel %vm376, 1, 0
      %v378 = vcvt.s32.f32 %v377
      %v379 = vsub.f32 1.0, %v378
      %v380 = vmul.f32 %v375, %v379
      %v381 = vld [vmem:[%s4] sm:$0xf]
      %vm382 = vcmask 64512
      %v384 = vsel %vm382, %v381, 0
      %386 = vmatpush.msra.mxu0 0.0
      %387 = vmatpush.msra.mxu0 0.0
      %388 = vmatpush.msra.mxu0 0.0
      %389 = vmatpush.msra.mxu0 0.0
      %390 = vmatpush.msra.mxu0 0.0
      %391 = vmatpush.msra.mxu0 0.0
      %392 = vmatpush.msra.mxu0 0.0
      %393 = vmatpush.msra.mxu0 0.0
      %394 = vmatpush.msra.mxu0 0.0
      %395 = vmatpush.msra.mxu0 0.0
      %396 = vmatpush.msra.mxu0 0.0
      %397 = vmatpush.msra.mxu0 0.0
      %398 = vmatpush.msra.mxu0 0.0
      %399 = vmatpush.msra.mxu0 0.0
      %400 = vmatpush.msra.mxu0 0.0
      %401 = vmatpush.msra.mxu0 %v378
      %402 = vmatmul.f32.gmra.mxu0 %v384
      %v403 = vpop.f32.mrf.mxu0
      %v404 = vadd.f32 0.0, %v403
      %405 = vdwg.mxu0
      %v406 = vld [vmem:[%s5] sm:$0xff]
      %v407 = vld [vmem:[%s5 + $0x8] sm:$0xff]
      %v408 = vld [vmem:[%s5 + $0x10] sm:$0xff]
      %v409 = vld [vmem:[%s5 + $0x18] sm:$0xff]
      %v410 = vld [vmem:[%s5 + $0x20] sm:$0xff]
      %v411 = vld [vmem:[%s5 + $0x28] sm:$0xff]
      %v412 = vld [vmem:[%s5 + $0x30] sm:$0xff]
      %v413 = vld [vmem:[%s5 + $0x38] sm:$0xff]
      %v414 = vld [vmem:[%s5 + $0x40] sm:$0xff]
      %v415 = vld [vmem:[%s5 + $0x48] sm:$0xff]
      %v416 = vld [vmem:[%s5 + $0x50] sm:$0xff]
      %v417 = vld [vmem:[%s5 + $0x58] sm:$0xff]
      %v418 = vld [vmem:[%s5 + $0x60] sm:$0xff]
      %v419 = vld [vmem:[%s5 + $0x68] sm:$0xff]
      %v420 = vld [vmem:[%s5 + $0x70] sm:$0xff]
      %v421 = vld [vmem:[%s5 + $0x78] sm:$0xff]
      %422 = vmatpush.msra.mxu0 %v421
      %423 = vmatpush.msra.mxu0 %v420
      %424 = vmatpush.msra.mxu0 %v419
      %425 = vmatpush.msra.mxu0 %v418
      %426 = vmatpush.msra.mxu0 %v417
      %427 = vmatpush.msra.mxu0 %v416
      %428 = vmatpush.msra.mxu0 %v415
      %429 = vmatpush.msra.mxu0 %v414
      %430 = vmatpush.msra.mxu0 %v413
      %431 = vmatpush.msra.mxu0 %v412
      %432 = vmatpush.msra.mxu0 %v411
      %433 = vmatpush.msra.mxu0 %v410
      %434 = vmatpush.msra.mxu0 %v409
      %435 = vmatpush.msra.mxu0 %v408
      %436 = vmatpush.msra.mxu0 %v407
      %437 = vmatpush.msra.mxu0 %v406
      %438 = vmatmul.f32.gmra.mxu0 %v404
      %v439 = vpop.f32.mrf.mxu0
      %v440 = vadd.f32 0.0, %v439
      %441 = vdwg.mxu0
      %vm442 = vcmask 519168
      %443 = vst.msk [vmem:[%s251] sm:$0xf] %vm442, %v440
      %s444 = scalar_lea.vmem %s246, 16
      %v445 = vld [vmem:[%s444] sm:$0xff]
      %v446 = vld [vmem:[%s444 + $0x8] sm:$0x3]
      %v447 = vld [vmem:[%s1] sm:$0xff]
      %v448 = vld [vmem:[%s1 + $0x8] sm:$0xff]
      %v449 = vld [vmem:[%s1 + $0x10] sm:$0xff]
      %v450 = vld [vmem:[%s1 + $0x18] sm:$0xff]
      %v451 = vld [vmem:[%s1 + $0x20] sm:$0xff]
      %v452 = vld [vmem:[%s1 + $0x28] sm:$0xff]
      %v453 = vld [vmem:[%s1 + $0x30] sm:$0xff]
      %v454 = vld [vmem:[%s1 + $0x38] sm:$0xff]
      %v455 = vld [vmem:[%s1 + $0x40] sm:$0xff]
      %v456 = vld [vmem:[%s1 + $0x48] sm:$0xff]
      %v457 = vld [vmem:[%s264] sm:$0xff]
      %v458 = vld [vmem:[%s264 + $0x8] sm:$0xff]
      %v459 = vld [vmem:[%s264 + $0x10] sm:$0xff]
      %v460 = vld [vmem:[%s264 + $0x18] sm:$0xff]
      %v461 = vld [vmem:[%s264 + $0x20] sm:$0xff]
      %v462 = vld [vmem:[%s264 + $0x28] sm:$0xff]
      %v463 = vld [vmem:[%s264 + $0x30] sm:$0xff]
      %v464 = vld [vmem:[%s264 + $0x38] sm:$0xff]
      %v465 = vld [vmem:[%s264 + $0x40] sm:$0xff]
      %v466 = vld [vmem:[%s264 + $0x48] sm:$0xff]
      %v469 = vrot.slane %v445, 1
      %v470 = vrot.slane %v446, 1
      %v471 = vsel %vm277, %v469, %v470
      %v472 = vsel %vm281, %v471, 0
      %474 = vmatpush.msra.mxu0 0.0
      %475 = vmatpush.msra.mxu0 0.0
      %476 = vmatpush.msra.mxu0 0.0
      %477 = vmatpush.msra.mxu0 0.0
      %478 = vmatpush.msra.mxu0 0.0
      %479 = vmatpush.msra.mxu0 0.0
      %480 = vmatpush.msra.mxu0 %v466
      %481 = vmatpush.msra.mxu0 %v465
      %482 = vmatpush.msra.mxu0 %v464
      %483 = vmatpush.msra.mxu0 %v463
      %484 = vmatpush.msra.mxu0 %v462
      %485 = vmatpush.msra.mxu0 %v461
      %486 = vmatpush.msra.mxu0 %v460
      %487 = vmatpush.msra.mxu0 %v459
      %488 = vmatpush.msra.mxu0 %v458
      %489 = vmatpush.msra.mxu0 %v457
      %490 = vmatmul.f32.gmra.mxu0 %v472
      %v491 = vpop.f32.mrf.mxu0
      %v492 = vadd.f32 0.0, %v491
      %493 = vdwg.mxu0
      %v494 = vsel %vm281, %v445, 0
      %496 = vmatpush.msra.mxu0 0.0
      %497 = vmatpush.msra.mxu0 0.0
      %498 = vmatpush.msra.mxu0 0.0
      %499 = vmatpush.msra.mxu0 0.0
      %500 = vmatpush.msra.mxu0 0.0
      %501 = vmatpush.msra.mxu0 0.0
      %502 = vmatpush.msra.mxu0 %v456
      %503 = vmatpush.msra.mxu0 %v455
      %504 = vmatpush.msra.mxu0 %v454
      %505 = vmatpush.msra.mxu0 %v453
      %506 = vmatpush.msra.mxu0 %v452
      %507 = vmatpush.msra.mxu0 %v451
      %508 = vmatpush.msra.mxu0 %v450
      %509 = vmatpush.msra.mxu0 %v449
      %510 = vmatpush.msra.mxu0 %v448
      %511 = vmatpush.msra.mxu0 %v447
      %512 = vmatmul.f32.gmra.mxu0 %v494
      %v513 = vpop.f32.mrf.mxu0
      %v514 = vadd.f32 %v492, %v513
      %515 = vdwg.mxu0
      %v516 = vld [vmem:[%s326] sm:$0xff]
      %v517 = vld [vmem:[%s326 + $0x8] sm:$0xff]
      %v518 = vld [vmem:[%s326 + $0x10] sm:$0xff]
      %v519 = vld [vmem:[%s326 + $0x18] sm:$0xff]
      %v520 = vld [vmem:[%s326 + $0x20] sm:$0xff]
      %v521 = vld [vmem:[%s326 + $0x28] sm:$0xff]
      %v522 = vld [vmem:[%s326 + $0x30] sm:$0xff]
      %v523 = vld [vmem:[%s326 + $0x38] sm:$0xff]
      %v524 = vld [vmem:[%s326 + $0x40] sm:$0xff]
      %v525 = vld [vmem:[%s326 + $0x48] sm:$0xff]
      %v526 = vrot.slane %v445, 2
      %v527 = vrot.slane %v446, 2
      %v528 = vsel %vm337, %v526, %v527
      %v529 = vsel %vm281, %v528, 0
      %531 = vmatpush.msra.mxu0 0.0
      %532 = vmatpush.msra.mxu0 0.0
      %533 = vmatpush.msra.mxu0 0.0
      %534 = vmatpush.msra.mxu0 0.0
      %535 = vmatpush.msra.mxu0 0.0
      %536 = vmatpush.msra.mxu0 0.0
      %537 = vmatpush.msra.mxu0 %v525
      %538 = vmatpush.msra.mxu0 %v524
      %539 = vmatpush.msra.mxu0 %v523
      %540 = vmatpush.msra.mxu0 %v522
      %541 = vmatpush.msra.mxu0 %v521
      %542 = vmatpush.msra.mxu0 %v520
      %543 = vmatpush.msra.mxu0 %v519
      %544 = vmatpush.msra.mxu0 %v518
      %545 = vmatpush.msra.mxu0 %v517
      %546 = vmatpush.msra.mxu0 %v516
      %547 = vmatmul.f32.gmra.mxu0 %v529
      %v548 = vpop.f32.mrf.mxu0
      %v549 = vadd.f32 0.0, %v548
      %550 = vdwg.mxu0
      %v551 = vadd.f32 %v514, %v549
      %v552 = vld [vmem:[%s2] sm:$0x1]
      %v554 = vperm.slane %v552, 0
      %v556 = vmul.f32 %v551, %v554
      %v557 = vld [vmem:[%s3] sm:$0x1]
      %v559 = vperm.slane %v557, 0
      %v561 = vadd.f32 %v556, %v559
      %v562 = vsub.f32 %v561, %v380
      %v563 = vmul.f32 %v562, 0.5
      %v564 = vadd.f32 %v380, %v563
      %vm565 = vcmp.ge.f32.partialorder %v564, 1.0
      %v566 = vsel %vm565, 1, 0
      %v567 = vcvt.s32.f32 %v566
      %v568 = vsub.f32 1.0, %v567
      %v569 = vmul.f32 %v564, %v568
      %v570 = vld [vmem:[%s4] sm:$0xf]
      %v572 = vsel %vm382, %v570, 0
      %574 = vmatpush.msra.mxu0 0.0
      %575 = vmatpush.msra.mxu0 0.0
      %576 = vmatpush.msra.mxu0 0.0
      %577 = vmatpush.msra.mxu0 0.0
      %578 = vmatpush.msra.mxu0 0.0
      %579 = vmatpush.msra.mxu0 0.0
      %580 = vmatpush.msra.mxu0 0.0
      %581 = vmatpush.msra.mxu0 0.0
      %582 = vmatpush.msra.mxu0 0.0
      %583 = vmatpush.msra.mxu0 0.0
      %584 = vmatpush.msra.mxu0 0.0
      %585 = vmatpush.msra.mxu0 0.0
      %586 = vmatpush.msra.mxu0 0.0
      %587 = vmatpush.msra.mxu0 0.0
      %588 = vmatpush.msra.mxu0 0.0
      %589 = vmatpush.msra.mxu0 %v567
      %590 = vmatmul.f32.gmra.mxu0 %v572
      %v591 = vpop.f32.mrf.mxu0
      %v592 = vadd.f32 0.0, %v591
      %593 = vdwg.mxu0
      %v594 = vld [vmem:[%s5] sm:$0xff]
      %v595 = vld [vmem:[%s5 + $0x8] sm:$0xff]
      %v596 = vld [vmem:[%s5 + $0x10] sm:$0xff]
      %v597 = vld [vmem:[%s5 + $0x18] sm:$0xff]
      %v598 = vld [vmem:[%s5 + $0x20] sm:$0xff]
      %v599 = vld [vmem:[%s5 + $0x28] sm:$0xff]
      %v600 = vld [vmem:[%s5 + $0x30] sm:$0xff]
      %v601 = vld [vmem:[%s5 + $0x38] sm:$0xff]
      %v602 = vld [vmem:[%s5 + $0x40] sm:$0xff]
      %v603 = vld [vmem:[%s5 + $0x48] sm:$0xff]
      %v604 = vld [vmem:[%s5 + $0x50] sm:$0xff]
      %v605 = vld [vmem:[%s5 + $0x58] sm:$0xff]
      %v606 = vld [vmem:[%s5 + $0x60] sm:$0xff]
      %v607 = vld [vmem:[%s5 + $0x68] sm:$0xff]
      %v608 = vld [vmem:[%s5 + $0x70] sm:$0xff]
      %v609 = vld [vmem:[%s5 + $0x78] sm:$0xff]
      %610 = vmatpush.msra.mxu0 %v609
      %611 = vmatpush.msra.mxu0 %v608
      %612 = vmatpush.msra.mxu0 %v607
      %613 = vmatpush.msra.mxu0 %v606
      %614 = vmatpush.msra.mxu0 %v605
      %615 = vmatpush.msra.mxu0 %v604
      %616 = vmatpush.msra.mxu0 %v603
      %617 = vmatpush.msra.mxu0 %v602
      %618 = vmatpush.msra.mxu0 %v601
      %619 = vmatpush.msra.mxu0 %v600
      %620 = vmatpush.msra.mxu0 %v599
      %621 = vmatpush.msra.mxu0 %v598
      %622 = vmatpush.msra.mxu0 %v597
      %623 = vmatpush.msra.mxu0 %v596
      %624 = vmatpush.msra.mxu0 %v595
      %625 = vmatpush.msra.mxu0 %v594
      %626 = vmatmul.f32.gmra.mxu0 %v592
      %v627 = vpop.f32.mrf.mxu0
      %v628 = vadd.f32 0.0, %v627
      %629 = vdwg.mxu0
      %s630 = scalar_lea.vmem %s251, 4
      %631 = vst.msk [vmem:[%s630] sm:$0xf] %vm442, %v628
      %s632 = scalar_lea.vmem %s246, 32
      %v633 = vld [vmem:[%s632] sm:$0xff]
      %v634 = vld [vmem:[%s632 + $0x8] sm:$0x3]
      %v635 = vld [vmem:[%s1] sm:$0xff]
      %v636 = vld [vmem:[%s1 + $0x8] sm:$0xff]
      %v637 = vld [vmem:[%s1 + $0x10] sm:$0xff]
      %v638 = vld [vmem:[%s1 + $0x18] sm:$0xff]
      %v639 = vld [vmem:[%s1 + $0x20] sm:$0xff]
      %v640 = vld [vmem:[%s1 + $0x28] sm:$0xff]
      %v641 = vld [vmem:[%s1 + $0x30] sm:$0xff]
      %v642 = vld [vmem:[%s1 + $0x38] sm:$0xff]
      %v643 = vld [vmem:[%s1 + $0x40] sm:$0xff]
      %v644 = vld [vmem:[%s1 + $0x48] sm:$0xff]
      %v645 = vld [vmem:[%s264] sm:$0xff]
      %v646 = vld [vmem:[%s264 + $0x8] sm:$0xff]
      %v647 = vld [vmem:[%s264 + $0x10] sm:$0xff]
      %v648 = vld [vmem:[%s264 + $0x18] sm:$0xff]
      %v649 = vld [vmem:[%s264 + $0x20] sm:$0xff]
      %v650 = vld [vmem:[%s264 + $0x28] sm:$0xff]
      %v651 = vld [vmem:[%s264 + $0x30] sm:$0xff]
      %v652 = vld [vmem:[%s264 + $0x38] sm:$0xff]
      %v653 = vld [vmem:[%s264 + $0x40] sm:$0xff]
      %v654 = vld [vmem:[%s264 + $0x48] sm:$0xff]
      %v657 = vrot.slane %v633, 1
      %v658 = vrot.slane %v634, 1
      %v659 = vsel %vm277, %v657, %v658
      %v660 = vsel %vm281, %v659, 0
      %662 = vmatpush.msra.mxu0 0.0
      %663 = vmatpush.msra.mxu0 0.0
      %664 = vmatpush.msra.mxu0 0.0
      %665 = vmatpush.msra.mxu0 0.0
      %666 = vmatpush.msra.mxu0 0.0
      %667 = vmatpush.msra.mxu0 0.0
      %668 = vmatpush.msra.mxu0 %v654
      %669 = vmatpush.msra.mxu0 %v653
      %670 = vmatpush.msra.mxu0 %v652
      %671 = vmatpush.msra.mxu0 %v651
      %672 = vmatpush.msra.mxu0 %v650
      %673 = vmatpush.msra.mxu0 %v649
      %674 = vmatpush.msra.mxu0 %v648
      %675 = vmatpush.msra.mxu0 %v647
      %676 = vmatpush.msra.mxu0 %v646
      %677 = vmatpush.msra.mxu0 %v645
      %678 = vmatmul.f32.gmra.mxu0 %v660
      %v679 = vpop.f32.mrf.mxu0
      %v680 = vadd.f32 0.0, %v679
      %681 = vdwg.mxu0
      %v682 = vsel %vm281, %v633, 0
      %684 = vmatpush.msra.mxu0 0.0
      %685 = vmatpush.msra.mxu0 0.0
      %686 = vmatpush.msra.mxu0 0.0
      %687 = vmatpush.msra.mxu0 0.0
      %688 = vmatpush.msra.mxu0 0.0
      %689 = vmatpush.msra.mxu0 0.0
      %690 = vmatpush.msra.mxu0 %v644
      %691 = vmatpush.msra.mxu0 %v643
      %692 = vmatpush.msra.mxu0 %v642
      %693 = vmatpush.msra.mxu0 %v641
      %694 = vmatpush.msra.mxu0 %v640
      %695 = vmatpush.msra.mxu0 %v639
      %696 = vmatpush.msra.mxu0 %v638
      %697 = vmatpush.msra.mxu0 %v637
      %698 = vmatpush.msra.mxu0 %v636
      %699 = vmatpush.msra.mxu0 %v635
      %700 = vmatmul.f32.gmra.mxu0 %v682
      %v701 = vpop.f32.mrf.mxu0
      %v702 = vadd.f32 %v680, %v701
      %703 = vdwg.mxu0
      %v704 = vld [vmem:[%s326] sm:$0xff]
      %v705 = vld [vmem:[%s326 + $0x8] sm:$0xff]
      %v706 = vld [vmem:[%s326 + $0x10] sm:$0xff]
      %v707 = vld [vmem:[%s326 + $0x18] sm:$0xff]
      %v708 = vld [vmem:[%s326 + $0x20] sm:$0xff]
      %v709 = vld [vmem:[%s326 + $0x28] sm:$0xff]
      %v710 = vld [vmem:[%s326 + $0x30] sm:$0xff]
      %v711 = vld [vmem:[%s326 + $0x38] sm:$0xff]
      %v712 = vld [vmem:[%s326 + $0x40] sm:$0xff]
      %v713 = vld [vmem:[%s326 + $0x48] sm:$0xff]
      %v714 = vrot.slane %v633, 2
      %v715 = vrot.slane %v634, 2
      %v716 = vsel %vm337, %v714, %v715
      %v717 = vsel %vm281, %v716, 0
      %719 = vmatpush.msra.mxu0 0.0
      %720 = vmatpush.msra.mxu0 0.0
      %721 = vmatpush.msra.mxu0 0.0
      %722 = vmatpush.msra.mxu0 0.0
      %723 = vmatpush.msra.mxu0 0.0
      %724 = vmatpush.msra.mxu0 0.0
      %725 = vmatpush.msra.mxu0 %v713
      %726 = vmatpush.msra.mxu0 %v712
      %727 = vmatpush.msra.mxu0 %v711
      %728 = vmatpush.msra.mxu0 %v710
      %729 = vmatpush.msra.mxu0 %v709
      %730 = vmatpush.msra.mxu0 %v708
      %731 = vmatpush.msra.mxu0 %v707
      %732 = vmatpush.msra.mxu0 %v706
      %733 = vmatpush.msra.mxu0 %v705
      %734 = vmatpush.msra.mxu0 %v704
      %735 = vmatmul.f32.gmra.mxu0 %v717
      %v736 = vpop.f32.mrf.mxu0
      %v737 = vadd.f32 0.0, %v736
      %738 = vdwg.mxu0
      %v739 = vadd.f32 %v702, %v737
      %v740 = vld [vmem:[%s2] sm:$0x1]
      %v742 = vperm.slane %v740, 0
      %v744 = vmul.f32 %v739, %v742
      %v745 = vld [vmem:[%s3] sm:$0x1]
      %v747 = vperm.slane %v745, 0
      %v749 = vadd.f32 %v744, %v747
      %v750 = vsub.f32 %v749, %v569
      %v751 = vmul.f32 %v750, 0.5
      %v752 = vadd.f32 %v569, %v751
      %vm753 = vcmp.ge.f32.partialorder %v752, 1.0
      %v754 = vsel %vm753, 1, 0
      %v755 = vcvt.s32.f32 %v754
      %v756 = vsub.f32 1.0, %v755
      %v757 = vmul.f32 %v752, %v756
      %v758 = vld [vmem:[%s4] sm:$0xf]
      %v760 = vsel %vm382, %v758, 0
      %762 = vmatpush.msra.mxu0 0.0
      %763 = vmatpush.msra.mxu0 0.0
      %764 = vmatpush.msra.mxu0 0.0
      %765 = vmatpush.msra.mxu0 0.0
      %766 = vmatpush.msra.mxu0 0.0
      %767 = vmatpush.msra.mxu0 0.0
      %768 = vmatpush.msra.mxu0 0.0
      %769 = vmatpush.msra.mxu0 0.0
      %770 = vmatpush.msra.mxu0 0.0
      %771 = vmatpush.msra.mxu0 0.0
      %772 = vmatpush.msra.mxu0 0.0
      %773 = vmatpush.msra.mxu0 0.0
      %774 = vmatpush.msra.mxu0 0.0
      %775 = vmatpush.msra.mxu0 0.0
      %776 = vmatpush.msra.mxu0 0.0
      %777 = vmatpush.msra.mxu0 %v755
      %778 = vmatmul.f32.gmra.mxu0 %v760
      %v779 = vpop.f32.mrf.mxu0
      %v780 = vadd.f32 0.0, %v779
      %781 = vdwg.mxu0
      %v782 = vld [vmem:[%s5] sm:$0xff]
      %v783 = vld [vmem:[%s5 + $0x8] sm:$0xff]
      %v784 = vld [vmem:[%s5 + $0x10] sm:$0xff]
      %v785 = vld [vmem:[%s5 + $0x18] sm:$0xff]
      %v786 = vld [vmem:[%s5 + $0x20] sm:$0xff]
      %v787 = vld [vmem:[%s5 + $0x28] sm:$0xff]
      %v788 = vld [vmem:[%s5 + $0x30] sm:$0xff]
      %v789 = vld [vmem:[%s5 + $0x38] sm:$0xff]
      %v790 = vld [vmem:[%s5 + $0x40] sm:$0xff]
      %v791 = vld [vmem:[%s5 + $0x48] sm:$0xff]
      %v792 = vld [vmem:[%s5 + $0x50] sm:$0xff]
      %v793 = vld [vmem:[%s5 + $0x58] sm:$0xff]
      %v794 = vld [vmem:[%s5 + $0x60] sm:$0xff]
      %v795 = vld [vmem:[%s5 + $0x68] sm:$0xff]
      %v796 = vld [vmem:[%s5 + $0x70] sm:$0xff]
      %v797 = vld [vmem:[%s5 + $0x78] sm:$0xff]
      %798 = vmatpush.msra.mxu0 %v797
      %799 = vmatpush.msra.mxu0 %v796
      %800 = vmatpush.msra.mxu0 %v795
      %801 = vmatpush.msra.mxu0 %v794
      %802 = vmatpush.msra.mxu0 %v793
      %803 = vmatpush.msra.mxu0 %v792
      %804 = vmatpush.msra.mxu0 %v791
      %805 = vmatpush.msra.mxu0 %v790
      %806 = vmatpush.msra.mxu0 %v789
      %807 = vmatpush.msra.mxu0 %v788
      %808 = vmatpush.msra.mxu0 %v787
      %809 = vmatpush.msra.mxu0 %v786
      %810 = vmatpush.msra.mxu0 %v785
      %811 = vmatpush.msra.mxu0 %v784
      %812 = vmatpush.msra.mxu0 %v783
      %813 = vmatpush.msra.mxu0 %v782
      %814 = vmatmul.f32.gmra.mxu0 %v780
      %v815 = vpop.f32.mrf.mxu0
      %v816 = vadd.f32 0.0, %v815
      %817 = vdwg.mxu0
      %s818 = scalar_lea.vmem %s251, 8
      %819 = vst.msk [vmem:[%s818] sm:$0xf] %vm442, %v816
      %s820 = scalar_lea.vmem %s246, 48
      %v821 = vld [vmem:[%s820] sm:$0xff]
      %v822 = vld [vmem:[%s820 + $0x8] sm:$0x3]
      %v823 = vld [vmem:[%s1] sm:$0xff]
      %v824 = vld [vmem:[%s1 + $0x8] sm:$0xff]
      %v825 = vld [vmem:[%s1 + $0x10] sm:$0xff]
      %v826 = vld [vmem:[%s1 + $0x18] sm:$0xff]
      %v827 = vld [vmem:[%s1 + $0x20] sm:$0xff]
      %v828 = vld [vmem:[%s1 + $0x28] sm:$0xff]
      %v829 = vld [vmem:[%s1 + $0x30] sm:$0xff]
      %v830 = vld [vmem:[%s1 + $0x38] sm:$0xff]
      %v831 = vld [vmem:[%s1 + $0x40] sm:$0xff]
      %v832 = vld [vmem:[%s1 + $0x48] sm:$0xff]
      %v833 = vld [vmem:[%s264] sm:$0xff]
      %v834 = vld [vmem:[%s264 + $0x8] sm:$0xff]
      %v835 = vld [vmem:[%s264 + $0x10] sm:$0xff]
      %v836 = vld [vmem:[%s264 + $0x18] sm:$0xff]
      %v837 = vld [vmem:[%s264 + $0x20] sm:$0xff]
      %v838 = vld [vmem:[%s264 + $0x28] sm:$0xff]
      %v839 = vld [vmem:[%s264 + $0x30] sm:$0xff]
      %v840 = vld [vmem:[%s264 + $0x38] sm:$0xff]
      %v841 = vld [vmem:[%s264 + $0x40] sm:$0xff]
      %v842 = vld [vmem:[%s264 + $0x48] sm:$0xff]
      %v845 = vrot.slane %v821, 1
      %v846 = vrot.slane %v822, 1
      %v847 = vsel %vm277, %v845, %v846
      %v848 = vsel %vm281, %v847, 0
      %850 = vmatpush.msra.mxu0 0.0
      %851 = vmatpush.msra.mxu0 0.0
      %852 = vmatpush.msra.mxu0 0.0
      %853 = vmatpush.msra.mxu0 0.0
      %854 = vmatpush.msra.mxu0 0.0
      %855 = vmatpush.msra.mxu0 0.0
      %856 = vmatpush.msra.mxu0 %v842
      %857 = vmatpush.msra.mxu0 %v841
      %858 = vmatpush.msra.mxu0 %v840
      %859 = vmatpush.msra.mxu0 %v839
      %860 = vmatpush.msra.mxu0 %v838
      %861 = vmatpush.msra.mxu0 %v837
      %862 = vmatpush.msra.mxu0 %v836
      %863 = vmatpush.msra.mxu0 %v835
      %864 = vmatpush.msra.mxu0 %v834
      %865 = vmatpush.msra.mxu0 %v833
      %866 = vmatmul.f32.gmra.mxu0 %v848
      %v867 = vpop.f32.mrf.mxu0
      %v868 = vadd.f32 0.0, %v867
      %869 = vdwg.mxu0
      %v870 = vsel %vm281, %v821, 0
      %872 = vmatpush.msra.mxu0 0.0
      %873 = vmatpush.msra.mxu0 0.0
      %874 = vmatpush.msra.mxu0 0.0
      %875 = vmatpush.msra.mxu0 0.0
      %876 = vmatpush.msra.mxu0 0.0
      %877 = vmatpush.msra.mxu0 0.0
      %878 = vmatpush.msra.mxu0 %v832
      %879 = vmatpush.msra.mxu0 %v831
      %880 = vmatpush.msra.mxu0 %v830
      %881 = vmatpush.msra.mxu0 %v829
      %882 = vmatpush.msra.mxu0 %v828
      %883 = vmatpush.msra.mxu0 %v827
      %884 = vmatpush.msra.mxu0 %v826
      %885 = vmatpush.msra.mxu0 %v825
      %886 = vmatpush.msra.mxu0 %v824
      %887 = vmatpush.msra.mxu0 %v823
      %888 = vmatmul.f32.gmra.mxu0 %v870
      %v889 = vpop.f32.mrf.mxu0
      %v890 = vadd.f32 %v868, %v889
      %891 = vdwg.mxu0
      %v892 = vld [vmem:[%s326] sm:$0xff]
      %v893 = vld [vmem:[%s326 + $0x8] sm:$0xff]
      %v894 = vld [vmem:[%s326 + $0x10] sm:$0xff]
      %v895 = vld [vmem:[%s326 + $0x18] sm:$0xff]
      %v896 = vld [vmem:[%s326 + $0x20] sm:$0xff]
      %v897 = vld [vmem:[%s326 + $0x28] sm:$0xff]
      %v898 = vld [vmem:[%s326 + $0x30] sm:$0xff]
      %v899 = vld [vmem:[%s326 + $0x38] sm:$0xff]
      %v900 = vld [vmem:[%s326 + $0x40] sm:$0xff]
      %v901 = vld [vmem:[%s326 + $0x48] sm:$0xff]
      %v902 = vrot.slane %v821, 2
      %v903 = vrot.slane %v822, 2
      %v904 = vsel %vm337, %v902, %v903
      %v905 = vsel %vm281, %v904, 0
      %907 = vmatpush.msra.mxu0 0.0
      %908 = vmatpush.msra.mxu0 0.0
      %909 = vmatpush.msra.mxu0 0.0
      %910 = vmatpush.msra.mxu0 0.0
      %911 = vmatpush.msra.mxu0 0.0
      %912 = vmatpush.msra.mxu0 0.0
      %913 = vmatpush.msra.mxu0 %v901
      %914 = vmatpush.msra.mxu0 %v900
      %915 = vmatpush.msra.mxu0 %v899
      %916 = vmatpush.msra.mxu0 %v898
      %917 = vmatpush.msra.mxu0 %v897
      %918 = vmatpush.msra.mxu0 %v896
      %919 = vmatpush.msra.mxu0 %v895
      %920 = vmatpush.msra.mxu0 %v894
      %921 = vmatpush.msra.mxu0 %v893
      %922 = vmatpush.msra.mxu0 %v892
      %923 = vmatmul.f32.gmra.mxu0 %v905
      %v924 = vpop.f32.mrf.mxu0
      %v925 = vadd.f32 0.0, %v924
      %926 = vdwg.mxu0
      %v927 = vadd.f32 %v890, %v925
      %v928 = vld [vmem:[%s2] sm:$0x1]
      %v930 = vperm.slane %v928, 0
      %v932 = vmul.f32 %v927, %v930
      %v933 = vld [vmem:[%s3] sm:$0x1]
      %v935 = vperm.slane %v933, 0
      %v937 = vadd.f32 %v932, %v935
      %v938 = vsub.f32 %v937, %v757
      %v939 = vmul.f32 %v938, 0.5
      %v940 = vadd.f32 %v757, %v939
      %vm941 = vcmp.ge.f32.partialorder %v940, 1.0
      %v942 = vsel %vm941, 1, 0
      %v943 = vcvt.s32.f32 %v942
      %v944 = vld [vmem:[%s4] sm:$0xf]
      %v946 = vsel %vm382, %v944, 0
      %948 = vmatpush.msra.mxu0 0.0
      %949 = vmatpush.msra.mxu0 0.0
      %950 = vmatpush.msra.mxu0 0.0
      %951 = vmatpush.msra.mxu0 0.0
      %952 = vmatpush.msra.mxu0 0.0
      %953 = vmatpush.msra.mxu0 0.0
      %954 = vmatpush.msra.mxu0 0.0
      %955 = vmatpush.msra.mxu0 0.0
      %956 = vmatpush.msra.mxu0 0.0
      %957 = vmatpush.msra.mxu0 0.0
      %958 = vmatpush.msra.mxu0 0.0
      %959 = vmatpush.msra.mxu0 0.0
      %960 = vmatpush.msra.mxu0 0.0
      %961 = vmatpush.msra.mxu0 0.0
      %962 = vmatpush.msra.mxu0 0.0
      %963 = vmatpush.msra.mxu0 %v943
      %964 = vmatmul.f32.gmra.mxu0 %v946
      %v965 = vpop.f32.mrf.mxu0
      %v966 = vadd.f32 0.0, %v965
      %967 = vdwg.mxu0
      %v968 = vld [vmem:[%s5] sm:$0xff]
      %v969 = vld [vmem:[%s5 + $0x8] sm:$0xff]
      %v970 = vld [vmem:[%s5 + $0x10] sm:$0xff]
      %v971 = vld [vmem:[%s5 + $0x18] sm:$0xff]
      %v972 = vld [vmem:[%s5 + $0x20] sm:$0xff]
      %v973 = vld [vmem:[%s5 + $0x28] sm:$0xff]
      %v974 = vld [vmem:[%s5 + $0x30] sm:$0xff]
      %v975 = vld [vmem:[%s5 + $0x38] sm:$0xff]
      %v976 = vld [vmem:[%s5 + $0x40] sm:$0xff]
      %v977 = vld [vmem:[%s5 + $0x48] sm:$0xff]
      %v978 = vld [vmem:[%s5 + $0x50] sm:$0xff]
      %v979 = vld [vmem:[%s5 + $0x58] sm:$0xff]
      %v980 = vld [vmem:[%s5 + $0x60] sm:$0xff]
      %v981 = vld [vmem:[%s5 + $0x68] sm:$0xff]
      %v982 = vld [vmem:[%s5 + $0x70] sm:$0xff]
      %v983 = vld [vmem:[%s5 + $0x78] sm:$0xff]
      %984 = vmatpush.msra.mxu0 %v983
      %985 = vmatpush.msra.mxu0 %v982
      %986 = vmatpush.msra.mxu0 %v981
      %987 = vmatpush.msra.mxu0 %v980
      %988 = vmatpush.msra.mxu0 %v979
      %989 = vmatpush.msra.mxu0 %v978
      %990 = vmatpush.msra.mxu0 %v977
      %991 = vmatpush.msra.mxu0 %v976
      %992 = vmatpush.msra.mxu0 %v975
      %993 = vmatpush.msra.mxu0 %v974
      %994 = vmatpush.msra.mxu0 %v973
      %995 = vmatpush.msra.mxu0 %v972
      %996 = vmatpush.msra.mxu0 %v971
      %997 = vmatpush.msra.mxu0 %v970
      %998 = vmatpush.msra.mxu0 %v969
      %999 = vmatpush.msra.mxu0 %v968
      %1000 = vmatmul.f32.gmra.mxu0 %v966
      %v1001 = vpop.f32.mrf.mxu0
      %v1002 = vadd.f32 0.0, %v1001
      %1003 = vdwg.mxu0
      %s1004 = scalar_lea.vmem %s251, 12
      %1005 = vst.msk [vmem:[%s1004] sm:$0xf] %vm442, %v1002
      %p1006 = scmp.lt.s32.totalorder %s17, 1
      %s1007 = scalar_select %p1006, %s17, 1
      %s1008 = smul.addr %s1007, 4
      %s1009 = smul.addr %s1008, 4
      %s1010 = scalar_lea.vmem %s6, %s1009
      // Predicated region
      $region45: #{spikformer_forward.10} parent=43 // pred_check
        %p1011 = pneg %p166
      $region46: #{spikformer_forward.10} parent=43 // pred_check_branch
        %1013 = sbr.rel (%p1011) target = $region48
      $region47: #{spikformer_forward.10} parent=43 // pred_region
        _
      $region48: #{spikformer_forward.10} parent=43 // pred_fallthru
        _
    $region44: #{spikformer_forward.10} parent=5 // pred_fallthru
      _
    %p1014 = scmp.le.s32.totalorder 2, %s12
    // Predicated region
    $region49: #{spikformer_forward.10} parent=5 // pred_check
      %p1015 = pneg %p1014
    $region50: #{spikformer_forward.10} parent=5 // pred_check_branch
      %1017 = sbr.rel (%p1015) target = $region52
    $region51: #{spikformer_forward.10} parent=5 // pred_region
      %s1018 = ssub.s32 %s12, 2
      // Predicated region
      $region53: #{spikformer_forward.10} parent=51 // pred_check
        %p1019 = pneg %p172
      $region54: #{spikformer_forward.10} parent=51 // pred_check_branch
        %1021 = sbr.rel (%p1019) target = $region56
      $region55: #{spikformer_forward.10} parent=51 // pred_region
        %p1022 = scmp.lt.s32.totalorder %s18, 1
        %s1023 = scalar_select %p1022, %s18, 1
        %s1024 = smul.addr %s1023, 4
        %s1025 = smul.addr %s1024, 4
        %s1026 = scalar_lea.vmem %s6, %s1025
      $region56: #{spikformer_forward.10} parent=51 // pred_fallthru
        _
    $region52: #{spikformer_forward.10} parent=5 // pred_fallthru
      _
  $region6: #{spikformer_forward.10} parent=0 // loop_footer
    %s16 = sadd.s32 1, %s12
  $region7: #{spikformer_forward.10} parent=0 // loop_footer_branch
    %11 = sbr.rel target = $region3
  $region8: #{spikformer_forward.10} parent=0 // loop_exit
    _

// kernel: spikformer_forward.11
$region0: #{spikformer_forward.11}
  #allocation0 [shape = 'u32[]', space=smem, size = 0x4, offset = 0x4, fixed_abs, tag = 'smem constant byte address 0x4 - core index']
  #allocation1 [shape = 'u32[72,128]{1,0:T(1,128)}', space=vmem, size = 0x9000, scoped, tag = 'internal scratch']
  %s0 = inlined_call_operand.vmem [shape: f32[2,4,6,96], index: 0, kind: input, shape index: {}]
  %s1 = inlined_call_operand.vmem [shape: f32[3,96,128], index: 1, kind: input, shape index: {}]
  %s2 = inlined_call_operand.vmem [shape: f32[1,128], index: 2, kind: input, shape index: {}]
  %s3 = inlined_call_operand.vmem [shape: f32[1,128], index: 3, kind: input, shape index: {}]
  %s4 = inlined_call_operand.vmem [shape: f32[2,4], index: 4, kind: input, shape index: {}]
  %s5 = inlined_call_operand.vmem [shape: f32[128,64], index: 5, kind: input, shape index: {}]
  %s6 = inlined_call_operand.vmem [shape: f32[2,4,2,64], index: 6, kind: output, shape index: {}]
  %s7 = sld [smem:[#allocation0]]
  $region57: #{spikformer_forward.11} parent=0
    _
  %s9 = ssub.s32 1, %s7
  %s10 = scalar_select 0, %s9, %s7
  loop: start=0, step=1, limit=4
  $region2: #{spikformer_forward.11} parent=0 // loop_pre_header
    _
  $region3: #{spikformer_forward.11} parent=0 // loop_header
    %s12 = sphi 0, %s16
    %p13 = scmp.ge.s32.totalorder %s12, 4
    %s22 = sphi 0, %s24
    %s25 = sphi 0, %s22
    %s26 = sphi 0, %s25
    %s42 = sphi 0, %s26
    %s46 = sphi 0, %s46
    %s48 = sphi 0, %s46
    %s49 = sphi 0, %s48
    %s63 = sphi 0, %s49
    %s67 = sphi 0, %s67
    %s69 = sphi 0, %s67
    %s70 = sphi 0, %s69
    %s84 = sphi 0, %s70
    %s88 = sphi 0, %s88
    %s90 = sphi 0, %s88
    %s91 = sphi 0, %s90
    %s105 = sphi 0, %s91
    %s109 = sphi 0, %s109
    %s111 = sphi 0, %s109
    %s112 = sphi 0, %s111
    %s126 = sphi 0, %s112
    %s130 = sphi 0, %s130
    %s132 = sphi 0, %s130
    %s133 = sphi 0, %s132
    %s147 = sphi 0, %s133
    %s153 = sphi 0, %s155
    %s156 = sphi 0, %s153
    %s157 = sphi 0, %s156
    %s173 = sphi 0, %s157
  $region4: #{spikformer_forward.11} parent=0 // loop_header_branch
    %15 = sbr.rel (%p13) target = $region8
  $region5: #{spikformer_forward.11} parent=0 // loop_body
    %s17 = ssub.s32 %s12, 1
    %s18 = ssub.s32 %s12, 2
    %s19 = sadd.s32 %s12, 1
    %s20 = ssub.s32 %s12, %s19
    %p21 = scmp.eq.s32.totalorder %s20, 0
    %s23 = sadd.s32 %s22, 1
    %s24 = scalar_select %p21, %s22, %s23
    %p27 = pneg %p21
    %p28 = scmp.eq.s32.totalorder %s12, 1
    %p29 = por %p27, %p28
    %p30 = scmp.ne.s32.totalorder %s22, %s25
    %p31 = scmp.eq.s32.totalorder %s12, 0
    %p32 = por %p30, %p31
    %p33 = scmp.ne.s32.totalorder %s22, %s25
    %p34 = scmp.eq.s32.totalorder %s17, 1
    %p35 = por %p33, %p34
    %p36 = scmp.ne.s32.totalorder %s25, %s26
    %p37 = scmp.eq.s32.totalorder %s17, 0
    %p38 = por %p36, %p37
    %p39 = scmp.ne.s32.totalorder %s25, %s26
    %p40 = scmp.eq.s32.totalorder %s18, 1
    %p41 = por %p39, %p40
    %p43 = scmp.ne.s32.totalorder %s26, %s42
    %p44 = scmp.eq.s32.totalorder %s18, 0
    %p45 = por %p43, %p44
    %s47 = sadd.s32 %s46, 1
    %p50 = scmp.eq.s32.totalorder %s12, 1
    %p51 = scmp.ne.s32.totalorder %s46, %s48
    %p52 = scmp.eq.s32.totalorder %s12, 0
    %p53 = por %p51, %p52
    %p54 = scmp.ne.s32.totalorder %s46, %s48
    %p55 = scmp.eq.s32.totalorder %s17, 1
    %p56 = por %p54, %p55
    %p57 = scmp.ne.s32.totalorder %s48, %s49
    %p58 = scmp.eq.s32.totalorder %s17, 0
    %p59 = por %p57, %p58
    %p60 = scmp.ne.s32.totalorder %s48, %s49
    %p61 = scmp.eq.s32.totalorder %s18, 1
    %p62 = por %p60, %p61
    %p64 = scmp.ne.s32.totalorder %s49, %s63
    %p65 = scmp.eq.s32.totalorder %s18, 0
    %p66 = por %p64, %p65
    %s68 = sadd.s32 %s67, 1
    %p71 = scmp.eq.s32.totalorder %s12, 1
    %p72 = scmp.ne.s32.totalorder %s67, %s69
    %p73 = scmp.eq.s32.totalorder %s12, 0
    %p74 = por %p72, %p73
    %p75 = scmp.ne.s32.totalorder %s67, %s69
    %p76 = scmp.eq.s32.totalorder %s17, 1
    %p77 = por %p75, %p76
    %p78 = scmp.ne.s32.totalorder %s69, %s70
    %p79 = scmp.eq.s32.totalorder %s17, 0
    %p80 = por %p78, %p79
    %p81 = scmp.ne.s32.totalorder %s69, %s70
    %p82 = scmp.eq.s32.totalorder %s18, 1
    %p83 = por %p81, %p82
    %p85 = scmp.ne.s32.totalorder %s70, %s84
    %p86 = scmp.eq.s32.totalorder %s18, 0
    %p87 = por %p85, %p86
    %s89 = sadd.s32 %s88, 1
    %p92 = scmp.eq.s32.totalorder %s12, 1
    %p93 = scmp.ne.s32.totalorder %s88, %s90
    %p94 = scmp.eq.s32.totalorder %s12, 0
    %p95 = por %p93, %p94
    %p96 = scmp.ne.s32.totalorder %s88, %s90
    %p97 = scmp.eq.s32.totalorder %s17, 1
    %p98 = por %p96, %p97
    %p99 = scmp.ne.s32.totalorder %s90, %s91
    %p100 = scmp.eq.s32.totalorder %s17, 0
    %p101 = por %p99, %p100
    %p102 = scmp.ne.s32.totalorder %s90, %s91
    %p103 = scmp.eq.s32.totalorder %s18, 1
    %p104 = por %p102, %p103
    %p106 = scmp.ne.s32.totalorder %s91, %s105
    %p107 = scmp.eq.s32.totalorder %s18, 0
    %p108 = por %p106, %p107
    %s110 = sadd.s32 %s109, 1
    %p113 = scmp.eq.s32.totalorder %s12, 1
    %p114 = scmp.ne.s32.totalorder %s109, %s111
    %p115 = scmp.eq.s32.totalorder %s12, 0
    %p116 = por %p114, %p115
    %p117 = scmp.ne.s32.totalorder %s109, %s111
    %p118 = scmp.eq.s32.totalorder %s17, 1
    %p119 = por %p117, %p118
    %p120 = scmp.ne.s32.totalorder %s111, %s112
    %p121 = scmp.eq.s32.totalorder %s17, 0
    %p122 = por %p120, %p121
    %p123 = scmp.ne.s32.totalorder %s111, %s112
    %p124 = scmp.eq.s32.totalorder %s18, 1
    %p125 = por %p123, %p124
    %p127 = scmp.ne.s32.totalorder %s112, %s126
    %p128 = scmp.eq.s32.totalorder %s18, 0
    %p129 = por %p127, %p128
    %s131 = sadd.s32 %s130, 1
    %p134 = scmp.eq.s32.totalorder %s12, 1
    %p135 = scmp.ne.s32.totalorder %s130, %s132
    %p136 = scmp.eq.s32.totalorder %s12, 0
    %p137 = por %p135, %p136
    %p138 = scmp.ne.s32.totalorder %s130, %s132
    %p139 = scmp.eq.s32.totalorder %s17, 1
    %p140 = por %p138, %p139
    %p141 = scmp.ne.s32.totalorder %s132, %s133
    %p142 = scmp.eq.s32.totalorder %s17, 0
    %p143 = por %p141, %p142
    %p144 = scmp.ne.s32.totalorder %s132, %s133
    %p145 = scmp.eq.s32.totalorder %s18, 1
    %p146 = por %p144, %p145
    %p148 = scmp.ne.s32.totalorder %s133, %s147
    %p149 = scmp.eq.s32.totalorder %s18, 0
    %p150 = por %p148, %p149
    %s151 = ssub.s32 %s12, %s19
    %p152 = scmp.eq.s32.totalorder %s151, 0
    %s154 = sadd.s32 %s153, 1
    %s155 = scalar_select %p152, %s153, %s154
    %p158 = pneg %p152
    %p159 = scmp.eq.s32.totalorder %s12, 1
    %p160 = por %p158, %p159
    %p161 = scmp.ne.s32.totalorder %s153, %s156
    %p162 = scmp.eq.s32.totalorder %s12, 0
    %p163 = por %p161, %p162
    %p164 = scmp.ne.s32.totalorder %s153, %s156
    %p165 = scmp.eq.s32.totalorder %s17, 1
    %p166 = por %p164, %p165
    %p167 = scmp.ne.s32.totalorder %s156, %s157
    %p168 = scmp.eq.s32.totalorder %s17, 0
    %p169 = por %p167, %p168
    %p170 = scmp.ne.s32.totalorder %s156, %s157
    %p171 = scmp.eq.s32.totalorder %s18, 1
    %p172 = por %p170, %p171
    %p174 = scmp.ne.s32.totalorder %s157, %s173
    %p175 = scmp.eq.s32.totalorder %s18, 0
    %p176 = por %p174, %p175
    %p177 = scmp.le.s32.totalorder 1, %s12
    %p178 = scmp.lt.s32.totalorder %s12, 3
    %p179 = pnand %p177, %p178
    %p180 = pneg %p179
    // Predicated region
    $region9: #{spikformer_forward.11} parent=5 // pred_check
      _
    $region10: #{spikformer_forward.11} parent=5 // pred_check_branch
      %182 = sbr.rel (%p179) target = $region12
    $region11: #{spikformer_forward.11} parent=5 // pred_region
      %s183 = ssub.s32 %s12, 1
      // Predicated region
      $region13: #{spikformer_forward.11} parent=11 // pred_check
        %p184 = pneg %p59
      $region14: #{spikformer_forward.11} parent=11 // pred_check_branch
        %186 = sbr.rel (%p184) target = $region16
      $region15: #{spikformer_forward.11} parent=11 // pred_region
        _
      $region16: #{spikformer_forward.11} parent=11 // pred_fallthru
        _
      // Predicated region
      $region17: #{spikformer_forward.11} parent=11 // pred_check
        %p187 = pneg %p80
      $region18: #{spikformer_forward.11} parent=11 // pred_check_branch
        %189 = sbr.rel (%p187) target = $region20
      $region19: #{spikformer_forward.11} parent=11 // pred_region
        _
      $region20: #{spikformer_forward.11} parent=11 // pred_fallthru
        _
      // Predicated region
      $region21: #{spikformer_forward.11} parent=11 // pred_check
        %p190 = pneg %p101
      $region22: #{spikformer_forward.11} parent=11 // pred_check_branch
        %192 = sbr.rel (%p190) target = $region24
      $region23: #{spikformer_forward.11} parent=11 // pred_region
        _
      $region24: #{spikformer_forward.11} parent=11 // pred_fallthru
        _
      // Predicated region
      $region25: #{spikformer_forward.11} parent=11 // pred_check
        %p193 = pneg %p122
      $region26: #{spikformer_forward.11} parent=11 // pred_check_branch
        %195 = sbr.rel (%p193) target = $region28
      $region27: #{spikformer_forward.11} parent=11 // pred_region
        _
      $region28: #{spikformer_forward.11} parent=11 // pred_fallthru
        _
      // Predicated region
      $region29: #{spikformer_forward.11} parent=11 // pred_check
        %p196 = pneg %p143
      $region30: #{spikformer_forward.11} parent=11 // pred_check_branch
        %198 = sbr.rel (%p196) target = $region32
      $region31: #{spikformer_forward.11} parent=11 // pred_region
        _
      $region32: #{spikformer_forward.11} parent=11 // pred_fallthru
        _
    $region12: #{spikformer_forward.11} parent=5 // pred_fallthru
      _
    %p199 = scmp.lt.s32.totalorder %s12, 2
    // Predicated region
    $region33: #{spikformer_forward.11} parent=5 // pred_check
      %p200 = pneg %p199
    $region34: #{spikformer_forward.11} parent=5 // pred_check_branch
      %202 = sbr.rel (%p200) target = $region36
    $region35: #{spikformer_forward.11} parent=5 // pred_region
      // Predicated region
      $region37: #{spikformer_forward.11} parent=35 // pred_check
        %p203 = pneg %p32
      $region38: #{spikformer_forward.11} parent=35 // pred_check_branch
        %205 = sbr.rel (%p203) target = $region40
      $region39: #{spikformer_forward.11} parent=35 // pred_region
        %p206 = scmp.lt.s32.totalorder %s12, 1
        %s207 = scalar_select %p206, %s12, 1
        %s208 = smul.addr %s207, 4
        %s209 = smul.addr %s208, 8
        %s210 = scalar_lea.vmem %s0, %s209
      $region40: #{spikformer_forward.11} parent=35 // pred_fallthru
        _
    $region36: #{spikformer_forward.11} parent=5 // pred_fallthru
      _
    %p211 = scmp.le.s32.totalorder 1, %s12
    %p212 = scmp.lt.s32.totalorder %s12, 3
    %p213 = pnand %p211, %p212
    %p214 = pneg %p213
    // Predicated region
    $region41: #{spikformer_forward.11} parent=5 // pred_check
      _
    $region42: #{spikformer_forward.11} parent=5 // pred_check_branch
      %216 = sbr.rel (%p213) target = $region44
    $region43: #{spikformer_forward.11} parent=5 // pred_region
      %s217 = ssub.s32 %s12, 1
      %p218 = scmp.lt.s32.totalorder %s17, 1
      %s219 = scalar_select %p218, %s17, 1
      %s220 = smul.addr %s219, 4
      %s221 = smul.addr %s220, 8
      %s222 = scalar_lea.vmem %s0, %s221
      %p223 = pneg %p38
      %p224 = pneg %p35
      %p225 = pneg %p59
      %p226 = pneg %p56
      %p227 = pneg %p80
      %p228 = pneg %p77
      %p229 = pneg %p101
      %p230 = pneg %p98
      %p231 = pneg %p122
      %p232 = pneg %p119
      %p233 = pneg %p143
      %p234 = pneg %p140
      %p235 = pneg %p169
      %p236 = pneg %p166
      %p237 = scmp.lt.s32.totalorder %s17, 1
      %s238 = scalar_select %p237, %s17, 1
      %s239 = smul.addr %s238, 4
      %s240 = smul.addr %s239, 2
      %s241 = scalar_lea.vmem %s6, %s240
      %p242 = scmp.lt.s32.totalorder %s17, 1
      %s243 = scalar_select %p242, %s17, 1
      %s244 = smul.addr %s243, 4
      %s245 = smul.addr %s244, 8
      %s246 = scalar_lea.vmem %s0, %s245
      %p247 = scmp.lt.s32.totalorder %s17, 1
      %s248 = scalar_select %p247, %s17, 1
      %s249 = smul.addr %s248, 4
      %s250 = smul.addr %s249, 2
      %s251 = scalar_lea.vmem %s6, %s250
      %v252 = vld [vmem:[%s246] sm:$0x3f]
      %v253 = vld [vmem:[%s1] sm:$0xff]
      %v254 = vld [vmem:[%s1 + $0x8] sm:$0xff]
      %v255 = vld [vmem:[%s1 + $0x10] sm:$0xff]
      %v256 = vld [vmem:[%s1 + $0x18] sm:$0xff]
      %v257 = vld [vmem:[%s1 + $0x20] sm:$0xff]
      %v258 = vld [vmem:[%s1 + $0x28] sm:$0xff]
      %v259 = vld [vmem:[%s1 + $0x30] sm:$0xff]
      %v260 = vld [vmem:[%s1 + $0x38] sm:$0xff]
      %v261 = vld [vmem:[%s1 + $0x40] sm:$0xff]
      %v262 = vld [vmem:[%s1 + $0x48] sm:$0xff]
      %v263 = vld [vmem:[%s1 + $0x50] sm:$0xff]
      %v264 = vld [vmem:[%s1 + $0x58] sm:$0xff]
      %s265 = scalar_lea.vmem %s1, 96
      %v266 = vld [vmem:[%s265] sm:$0xff]
      %v267 = vld [vmem:[%s265 + $0x8] sm:$0xff]
      %v268 = vld [vmem:[%s265 + $0x10] sm:$0xff]
      %v269 = vld [vmem:[%s265 + $0x18] sm:$0xff]
      %v270 = vld [vmem:[%s265 + $0x20] sm:$0xff]
      %v271 = vld [vmem:[%s265 + $0x28] sm:$0xff]
      %v272 = vld [vmem:[%s265 + $0x30] sm:$0xff]
      %v273 = vld [vmem:[%s265 + $0x38] sm:$0xff]
      %v274 = vld [vmem:[%s265 + $0x40] sm:$0xff]
      %v275 = vld [vmem:[%s265 + $0x48] sm:$0xff]
      %v276 = vld [vmem:[%s265 + $0x50] sm:$0xff]
      %v277 = vld [vmem:[%s265 + $0x58] sm:$0xff]
      %v279 = vrot.slane %v252, 1
      %vm280 = vcmask 785408
      %v281 = vsel %vm280, %v279, 0
      %283 = vmatpush.msra.mxu0 0.0
      %284 = vmatpush.msra.mxu0 0.0
      %285 = vmatpush.msra.mxu0 0.0
      %286 = vmatpush.msra.mxu0 0.0
      %287 = vmatpush.msra.mxu0 %v277
      %288 = vmatpush.msra.mxu0 %v276
      %289 = vmatpush.msra.mxu0 %v275
      %290 = vmatpush.msra.mxu0 %v274
      %291 = vmatpush.msra.mxu0 %v273
      %292 = vmatpush.msra.mxu0 %v272
      %293 = vmatpush.msra.mxu0 %v271
      %294 = vmatpush.msra.mxu0 %v270
      %295 = vmatpush.msra.mxu0 %v269
      %296 = vmatpush.msra.mxu0 %v268
      %297 = vmatpush.msra.mxu0 %v267
      %298 = vmatpush.msra.mxu0 %v266
      %299 = vmatmul.f32.gmra.mxu0 %v281
      %v300 = vpop.f32.mrf.mxu0
      %v301 = vadd.f32 0.0, %v300
      %302 = vdwg.mxu0
      %v303 = vsel %vm280, %v252, 0
      %305 = vmatpush.msra.mxu0 0.0
      %306 = vmatpush.msra.mxu0 0.0
      %307 = vmatpush.msra.mxu0 0.0
      %308 = vmatpush.msra.mxu0 0.0
      %309 = vmatpush.msra.mxu0 %v264
      %310 = vmatpush.msra.mxu0 %v263
      %311 = vmatpush.msra.mxu0 %v262
      %312 = vmatpush.msra.mxu0 %v261
      %313 = vmatpush.msra.mxu0 %v260
      %314 = vmatpush.msra.mxu0 %v259
      %315 = vmatpush.msra.mxu0 %v258
      %316 = vmatpush.msra.mxu0 %v257
      %317 = vmatpush.msra.mxu0 %v256
      %318 = vmatpush.msra.mxu0 %v255
      %319 = vmatpush.msra.mxu0 %v254
      %320 = vmatpush.msra.mxu0 %v253
      %321 = vmatmul.f32.gmra.mxu0 %v303
      %v322 = vpop.f32.mrf.mxu0
      %v323 = vadd.f32 %v301, %v322
      %324 = vdwg.mxu0
      %s325 = scalar_lea.vmem %s1, 192
      %v326 = vld [vmem:[%s325] sm:$0xff]
      %v327 = vld [vmem:[%s325 + $0x8] sm:$0xff]
      %v328 = vld [vmem:[%s325 + $0x10] sm:$0xff]
      %v329 = vld [vmem:[%s325 + $0x18] sm:$0xff]
      %v330 = vld [vmem:[%s325 + $0x20] sm:$0xff]
      %v331 = vld [vmem:[%s325 + $0x28] sm:$0xff]
      %v332 = vld [vmem:[%s325 + $0x30] sm:$0xff]
      %v333 = vld [vmem:[%s325 + $0x38] sm:$0xff]
      %v334 = vld [vmem:[%s325 + $0x40] sm:$0xff]
      %v335 = vld [vmem:[%s325 + $0x48] sm:$0xff]
      %v336 = vld [vmem:[%s325 + $0x50] sm:$0xff]
      %v337 = vld [vmem:[%s325 + $0x58] sm:$0xff]
      %v338 = vrot.slane %v252, 2
      %v339 = vsel %vm280, %v338, 0
      %341 = vmatpush.msra.mxu0 0.0
      %342 = vmatpush.msra.mxu0 0.0
      %343 = vmatpush.msra.mxu0 0.0
      %344 = vmatpush.msra.mxu0 0.0
      %345 = vmatpush.msra.mxu0 %v337
      %346 = vmatpush.msra.mxu0 %v336
      %347 = vmatpush.msra.mxu0 %v335
      %348 = vmatpush.msra.mxu0 %v334
      %349 = vmatpush.msra.mxu0 %v333
      %350 = vmatpush.msra.mxu0 %v332
      %351 = vmatpush.msra.mxu0 %v331
      %352 = vmatpush.msra.mxu0 %v330
      %353 = vmatpush.msra.mxu0 %v329
      %354 = vmatpush.msra.mxu0 %v328
      %355 = vmatpush.msra.mxu0 %v327
      %356 = vmatpush.msra.mxu0 %v326
      %357 = vmatmul.f32.gmra.mxu0 %v339
      %v358 = vpop.f32.mrf.mxu0
      %v359 = vadd.f32 0.0, %v358
      %360 = vdwg.mxu0
      %v361 = vadd.f32 %v323, %v359
      %v362 = vld [vmem:[%s2] sm:$0x1]
      %v364 = vperm.slane %v362, 0
      %v366 = vmul.f32 %v361, %v364
      %v367 = vld [vmem:[%s3] sm:$0x1]
      %v369 = vperm.slane %v367, 0
      %v371 = vadd.f32 %v366, %v369
      %v372 = vmul.f32 %v371, 0.5
      %v373 = vadd.f32 %v372, 0.0
      %vm374 = vcmp.ge.f32.partialorder %v373, 1.0
      %v375 = vsel %vm374, 1, 0
      %v376 = vcvt.s32.f32 %v375
      %v377 = vsub.f32 1.0, %v376
      %v378 = vmul.f32 %v373, %v377
      %v379 = vld [vmem:[%s4] sm:$0x3]
      %vm380 = vcmask 31744
      %v382 = vsel %vm380, %v379, 0
      %vm384 = vcmask 1043456
      %v386 = vsel %vm384, %v376, 0
      %388 = vmatpush.msra.mxu0 0.0
      %389 = vmatpush.msra.mxu0 0.0
      %390 = vmatpush.msra.mxu0 0.0
      %391 = vmatpush.msra.mxu0 0.0
      %392 = vmatpush.msra.mxu0 0.0
      %393 = vmatpush.msra.mxu0 0.0
      %394 = vmatpush.msra.mxu0 0.0
      %395 = vmatpush.msra.mxu0 0.0
      %396 = vmatpush.msra.mxu0 0.0
      %397 = vmatpush.msra.mxu0 0.0
      %398 = vmatpush.msra.mxu0 0.0
      %399 = vmatpush.msra.mxu0 0.0
      %400 = vmatpush.msra.mxu0 0.0
      %401 = vmatpush.msra.mxu0 0.0
      %402 = vmatpush.msra.mxu0 0.0
      %403 = vmatpush.msra.mxu0 %v386
      %404 = vmatmul.f32.gmra.mxu0 %v382
      %v405 = vpop.f32.mrf.mxu0
      %v406 = vadd.f32 0.0, %v405
      %407 = vdwg.mxu0
      %v408 = vld [vmem:[%s5] sm:$0xff]
      %v409 = vld [vmem:[%s5 + $0x8] sm:$0xff]
      %v410 = vld [vmem:[%s5 + $0x10] sm:$0xff]
      %v411 = vld [vmem:[%s5 + $0x18] sm:$0xff]
      %v412 = vld [vmem:[%s5 + $0x20] sm:$0xff]
      %v413 = vld [vmem:[%s5 + $0x28] sm:$0xff]
      %v414 = vld [vmem:[%s5 + $0x30] sm:$0xff]
      %v415 = vld [vmem:[%s5 + $0x38] sm:$0xff]
      %v416 = vld [vmem:[%s5 + $0x40] sm:$0xff]
      %v417 = vld [vmem:[%s5 + $0x48] sm:$0xff]
      %v418 = vld [vmem:[%s5 + $0x50] sm:$0xff]
      %v419 = vld [vmem:[%s5 + $0x58] sm:$0xff]
      %v420 = vld [vmem:[%s5 + $0x60] sm:$0xff]
      %v421 = vld [vmem:[%s5 + $0x68] sm:$0xff]
      %v422 = vld [vmem:[%s5 + $0x70] sm:$0xff]
      %v423 = vld [vmem:[%s5 + $0x78] sm:$0xff]
      %424 = vmatpush.msra.mxu0 %v423
      %425 = vmatpush.msra.mxu0 %v422
      %426 = vmatpush.msra.mxu0 %v421
      %427 = vmatpush.msra.mxu0 %v420
      %428 = vmatpush.msra.mxu0 %v419
      %429 = vmatpush.msra.mxu0 %v418
      %430 = vmatpush.msra.mxu0 %v417
      %431 = vmatpush.msra.mxu0 %v416
      %432 = vmatpush.msra.mxu0 %v415
      %433 = vmatpush.msra.mxu0 %v414
      %434 = vmatpush.msra.mxu0 %v413
      %435 = vmatpush.msra.mxu0 %v412
      %436 = vmatpush.msra.mxu0 %v411
      %437 = vmatpush.msra.mxu0 %v410
      %438 = vmatpush.msra.mxu0 %v409
      %439 = vmatpush.msra.mxu0 %v408
      %440 = vmatmul.f32.gmra.mxu0 %v406
      %v441 = vpop.f32.mrf.mxu0
      %v442 = vadd.f32 0.0, %v441
      %443 = vdwg.mxu0
      %vm444 = vcmask 517120
      %445 = vst.msk [vmem:[%s251] sm:$0x3] %vm444, %v442
      %s446 = scalar_lea.vmem %s246, 8
      %v447 = vld [vmem:[%s446] sm:$0x3f]
      %v448 = vld [vmem:[%s1] sm:$0xff]
      %v449 = vld [vmem:[%s1 + $0x8] sm:$0xff]
      %v450 = vld [vmem:[%s1 + $0x10] sm:$0xff]
      %v451 = vld [vmem:[%s1 + $0x18] sm:$0xff]
      %v452 = vld [vmem:[%s1 + $0x20] sm:$0xff]
      %v453 = vld [vmem:[%s1 + $0x28] sm:$0xff]
      %v454 = vld [vmem:[%s1 + $0x30] sm:$0xff]
      %v455 = vld [vmem:[%s1 + $0x38] sm:$0xff]
      %v456 = vld [vmem:[%s1 + $0x40] sm:$0xff]
      %v457 = vld [vmem:[%s1 + $0x48] sm:$0xff]
      %v458 = vld [vmem:[%s1 + $0x50] sm:$0xff]
      %v459 = vld [vmem:[%s1 + $0x58] sm:$0xff]
      %v460 = vld [vmem:[%s265] sm:$0xff]
      %v461 = vld [vmem:[%s265 + $0x8] sm:$0xff]
      %v462 = vld [vmem:[%s265 + $0x10] sm:$0xff]
      %v463 = vld [vmem:[%s265 + $0x18] sm:$0xff]
      %v464 = vld [vmem:[%s265 + $0x20] sm:$0xff]
      %v465 = vld [vmem:[%s265 + $0x28] sm:$0xff]
      %v466 = vld [vmem:[%s265 + $0x30] sm:$0xff]
      %v467 = vld [vmem:[%s265 + $0x38] sm:$0xff]
      %v468 = vld [vmem:[%s265 + $0x40] sm:$0xff]
      %v469 = vld [vmem:[%s265 + $0x48] sm:$0xff]
      %v470 = vld [vmem:[%s265 + $0x50] sm:$0xff]
      %v471 = vld [vmem:[%s265 + $0x58] sm:$0xff]
      %v473 = vrot.slane %v447, 1
      %v474 = vsel %vm280, %v473, 0
      %476 = vmatpush.msra.mxu0 0.0
      %477 = vmatpush.msra.mxu0 0.0
      %478 = vmatpush.msra.mxu0 0.0
      %479 = vmatpush.msra.mxu0 0.0
      %480 = vmatpush.msra.mxu0 %v471
      %481 = vmatpush.msra.mxu0 %v470
      %482 = vmatpush.msra.mxu0 %v469
      %483 = vmatpush.msra.mxu0 %v468
      %484 = vmatpush.msra.mxu0 %v467
      %485 = vmatpush.msra.mxu0 %v466
      %486 = vmatpush.msra.mxu0 %v465
      %487 = vmatpush.msra.mxu0 %v464
      %488 = vmatpush.msra.mxu0 %v463
      %489 = vmatpush.msra.mxu0 %v462
      %490 = vmatpush.msra.mxu0 %v461
      %491 = vmatpush.msra.mxu0 %v460
      %492 = vmatmul.f32.gmra.mxu0 %v474
      %v493 = vpop.f32.mrf.mxu0
      %v494 = vadd.f32 0.0, %v493
      %495 = vdwg.mxu0
      %v496 = vsel %vm280, %v447, 0
      %498 = vmatpush.msra.mxu0 0.0
      %499 = vmatpush.msra.mxu0 0.0
      %500 = vmatpush.msra.mxu0 0.0
      %501 = vmatpush.msra.mxu0 0.0
      %502 = vmatpush.msra.mxu0 %v459
      %503 = vmatpush.msra.mxu0 %v458
      %504 = vmatpush.msra.mxu0 %v457
      %505 = vmatpush.msra.mxu0 %v456
      %506 = vmatpush.msra.mxu0 %v455
      %507 = vmatpush.msra.mxu0 %v454
      %508 = vmatpush.msra.mxu0 %v453
      %509 = vmatpush.msra.mxu0 %v452
      %510 = vmatpush.msra.mxu0 %v451
      %511 = vmatpush.msra.mxu0 %v450
      %512 = vmatpush.msra.mxu0 %v449
      %513 = vmatpush.msra.mxu0 %v448
      %514 = vmatmul.f32.gmra.mxu0 %v496
      %v515 = vpop.f32.mrf.mxu0
      %v516 = vadd.f32 %v494, %v515
      %517 = vdwg.mxu0
      %v518 = vld [vmem:[%s325] sm:$0xff]
      %v519 = vld [vmem:[%s325 + $0x8] sm:$0xff]
      %v520 = vld [vmem:[%s325 + $0x10] sm:$0xff]
      %v521 = vld [vmem:[%s325 + $0x18] sm:$0xff]
      %v522 = vld [vmem:[%s325 + $0x20] sm:$0xff]
      %v523 = vld [vmem:[%s325 + $0x28] sm:$0xff]
      %v524 = vld [vmem:[%s325 + $0x30] sm:$0xff]
      %v525 = vld [vmem:[%s325 + $0x38] sm:$0xff]
      %v526 = vld [vmem:[%s325 + $0x40] sm:$0xff]
      %v527 = vld [vmem:[%s325 + $0x48] sm:$0xff]
      %v528 = vld [vmem:[%s325 + $0x50] sm:$0xff]
      %v529 = vld [vmem:[%s325 + $0x58] sm:$0xff]
      %v530 = vrot.slane %v447, 2
      %v531 = vsel %vm280, %v530, 0
      %533 = vmatpush.msra.mxu0 0.0
      %534 = vmatpush.msra.mxu0 0.0
      %535 = vmatpush.msra.mxu0 0.0
      %536 = vmatpush.msra.mxu0 0.0
      %537 = vmatpush.msra.mxu0 %v529
      %538 = vmatpush.msra.mxu0 %v528
      %539 = vmatpush.msra.mxu0 %v527
      %540 = vmatpush.msra.mxu0 %v526
      %541 = vmatpush.msra.mxu0 %v525
      %542 = vmatpush.msra.mxu0 %v524
      %543 = vmatpush.msra.mxu0 %v523
      %544 = vmatpush.msra.mxu0 %v522
      %545 = vmatpush.msra.mxu0 %v521
      %546 = vmatpush.msra.mxu0 %v520
      %547 = vmatpush.msra.mxu0 %v519
      %548 = vmatpush.msra.mxu0 %v518
      %549 = vmatmul.f32.gmra.mxu0 %v531
      %v550 = vpop.f32.mrf.mxu0
      %v551 = vadd.f32 0.0, %v550
      %552 = vdwg.mxu0
      %v553 = vadd.f32 %v516, %v551
      %v554 = vld [vmem:[%s2] sm:$0x1]
      %v556 = vperm.slane %v554, 0
      %v558 = vmul.f32 %v553, %v556
      %v559 = vld [vmem:[%s3] sm:$0x1]
      %v561 = vperm.slane %v559, 0
      %v563 = vadd.f32 %v558, %v561
      %v564 = vsub.f32 %v563, %v378
      %v565 = vmul.f32 %v564, 0.5
      %v566 = vadd.f32 %v378, %v565
      %vm567 = vcmp.ge.f32.partialorder %v566, 1.0
      %v568 = vsel %vm567, 1, 0
      %v569 = vcvt.s32.f32 %v568
      %v570 = vsub.f32 1.0, %v569
      %v571 = vmul.f32 %v566, %v570
      %v572 = vld [vmem:[%s4] sm:$0x3]
      %v574 = vsel %vm380, %v572, 0
      %v577 = vsel %vm384, %v569, 0
      %579 = vmatpush.msra.mxu0 0.0
      %580 = vmatpush.msra.mxu0 0.0
      %581 = vmatpush.msra.mxu0 0.0
      %582 = vmatpush.msra.mxu0 0.0
      %583 = vmatpush.msra.mxu0 0.0
      %584 = vmatpush.msra.mxu0 0.0
      %585 = vmatpush.msra.mxu0 0.0
      %586 = vmatpush.msra.mxu0 0.0
      %587 = vmatpush.msra.mxu0 0.0
      %588 = vmatpush.msra.mxu0 0.0
      %589 = vmatpush.msra.mxu0 0.0
      %590 = vmatpush.msra.mxu0 0.0
      %591 = vmatpush.msra.mxu0 0.0
      %592 = vmatpush.msra.mxu0 0.0
      %593 = vmatpush.msra.mxu0 0.0
      %594 = vmatpush.msra.mxu0 %v577
      %595 = vmatmul.f32.gmra.mxu0 %v574
      %v596 = vpop.f32.mrf.mxu0
      %v597 = vadd.f32 0.0, %v596
      %598 = vdwg.mxu0
      %v599 = vld [vmem:[%s5] sm:$0xff]
      %v600 = vld [vmem:[%s5 + $0x8] sm:$0xff]
      %v601 = vld [vmem:[%s5 + $0x10] sm:$0xff]
      %v602 = vld [vmem:[%s5 + $0x18] sm:$0xff]
      %v603 = vld [vmem:[%s5 + $0x20] sm:$0xff]
      %v604 = vld [vmem:[%s5 + $0x28] sm:$0xff]
      %v605 = vld [vmem:[%s5 + $0x30] sm:$0xff]
      %v606 = vld [vmem:[%s5 + $0x38] sm:$0xff]
      %v607 = vld [vmem:[%s5 + $0x40] sm:$0xff]
      %v608 = vld [vmem:[%s5 + $0x48] sm:$0xff]
      %v609 = vld [vmem:[%s5 + $0x50] sm:$0xff]
      %v610 = vld [vmem:[%s5 + $0x58] sm:$0xff]
      %v611 = vld [vmem:[%s5 + $0x60] sm:$0xff]
      %v612 = vld [vmem:[%s5 + $0x68] sm:$0xff]
      %v613 = vld [vmem:[%s5 + $0x70] sm:$0xff]
      %v614 = vld [vmem:[%s5 + $0x78] sm:$0xff]
      %615 = vmatpush.msra.mxu0 %v614
      %616 = vmatpush.msra.mxu0 %v613
      %617 = vmatpush.msra.mxu0 %v612
      %618 = vmatpush.msra.mxu0 %v611
      %619 = vmatpush.msra.mxu0 %v610
      %620 = vmatpush.msra.mxu0 %v609
      %621 = vmatpush.msra.mxu0 %v608
      %622 = vmatpush.msra.mxu0 %v607
      %623 = vmatpush.msra.mxu0 %v606
      %624 = vmatpush.msra.mxu0 %v605
      %625 = vmatpush.msra.mxu0 %v604
      %626 = vmatpush.msra.mxu0 %v603
      %627 = vmatpush.msra.mxu0 %v602
      %628 = vmatpush.msra.mxu0 %v601
      %629 = vmatpush.msra.mxu0 %v600
      %630 = vmatpush.msra.mxu0 %v599
      %631 = vmatmul.f32.gmra.mxu0 %v597
      %v632 = vpop.f32.mrf.mxu0
      %v633 = vadd.f32 0.0, %v632
      %634 = vdwg.mxu0
      %s635 = scalar_lea.vmem %s251, 2
      %636 = vst.msk [vmem:[%s635] sm:$0x3] %vm444, %v633
      %s637 = scalar_lea.vmem %s246, 16
      %v638 = vld [vmem:[%s637] sm:$0x3f]
      %v639 = vld [vmem:[%s1] sm:$0xff]
      %v640 = vld [vmem:[%s1 + $0x8] sm:$0xff]
      %v641 = vld [vmem:[%s1 + $0x10] sm:$0xff]
      %v642 = vld [vmem:[%s1 + $0x18] sm:$0xff]
      %v643 = vld [vmem:[%s1 + $0x20] sm:$0xff]
      %v644 = vld [vmem:[%s1 + $0x28] sm:$0xff]
      %v645 = vld [vmem:[%s1 + $0x30] sm:$0xff]
      %v646 = vld [vmem:[%s1 + $0x38] sm:$0xff]
      %v647 = vld [vmem:[%s1 + $0x40] sm:$0xff]
      %v648 = vld [vmem:[%s1 + $0x48] sm:$0xff]
      %v649 = vld [vmem:[%s1 + $0x50] sm:$0xff]
      %v650 = vld [vmem:[%s1 + $0x58] sm:$0xff]
      %v651 = vld [vmem:[%s265] sm:$0xff]
      %v652 = vld [vmem:[%s265 + $0x8] sm:$0xff]
      %v653 = vld [vmem:[%s265 + $0x10] sm:$0xff]
      %v654 = vld [vmem:[%s265 + $0x18] sm:$0xff]
      %v655 = vld [vmem:[%s265 + $0x20] sm:$0xff]
      %v656 = vld [vmem:[%s265 + $0x28] sm:$0xff]
      %v657 = vld [vmem:[%s265 + $0x30] sm:$0xff]
      %v658 = vld [vmem:[%s265 + $0x38] sm:$0xff]
      %v659 = vld [vmem:[%s265 + $0x40] sm:$0xff]
      %v660 = vld [vmem:[%s265 + $0x48] sm:$0xff]
      %v661 = vld [vmem:[%s265 + $0x50] sm:$0xff]
      %v662 = vld [vmem:[%s265 + $0x58] sm:$0xff]
      %v664 = vrot.slane %v638, 1
      %v665 = vsel %vm280, %v664, 0
      %667 = vmatpush.msra.mxu0 0.0
      %668 = vmatpush.msra.mxu0 0.0
      %669 = vmatpush.msra.mxu0 0.0
      %670 = vmatpush.msra.mxu0 0.0
      %671 = vmatpush.msra.mxu0 %v662
      %672 = vmatpush.msra.mxu0 %v661
      %673 = vmatpush.msra.mxu0 %v660
      %674 = vmatpush.msra.mxu0 %v659
      %675 = vmatpush.msra.mxu0 %v658
      %676 = vmatpush.msra.mxu0 %v657
      %677 = vmatpush.msra.mxu0 %v656
      %678 = vmatpush.msra.mxu0 %v655
      %679 = vmatpush.msra.mxu0 %v654
      %680 = vmatpush.msra.mxu0 %v653
      %681 = vmatpush.msra.mxu0 %v652
      %682 = vmatpush.msra.mxu0 %v651
      %683 = vmatmul.f32.gmra.mxu0 %v665
      %v684 = vpop.f32.mrf.mxu0
      %v685 = vadd.f32 0.0, %v684
      %686 = vdwg.mxu0
      %v687 = vsel %vm280, %v638, 0
      %689 = vmatpush.msra.mxu0 0.0
      %690 = vmatpush.msra.mxu0 0.0
      %691 = vmatpush.msra.mxu0 0.0
      %692 = vmatpush.msra.mxu0 0.0
      %693 = vmatpush.msra.mxu0 %v650
      %694 = vmatpush.msra.mxu0 %v649
      %695 = vmatpush.msra.mxu0 %v648
      %696 = vmatpush.msra.mxu0 %v647
      %697 = vmatpush.msra.mxu0 %v646
      %698 = vmatpush.msra.mxu0 %v645
      %699 = vmatpush.msra.mxu0 %v644
      %700 = vmatpush.msra.mxu0 %v643
      %701 = vmatpush.msra.mxu0 %v642
      %702 = vmatpush.msra.mxu0 %v641
      %703 = vmatpush.msra.mxu0 %v640
      %704 = vmatpush.msra.mxu0 %v639
      %705 = vmatmul.f32.gmra.mxu0 %v687
      %v706 = vpop.f32.mrf.mxu0
      %v707 = vadd.f32 %v685, %v706
      %708 = vdwg.mxu0
      %v709 = vld [vmem:[%s325] sm:$0xff]
      %v710 = vld [vmem:[%s325 + $0x8] sm:$0xff]
      %v711 = vld [vmem:[%s325 + $0x10] sm:$0xff]
      %v712 = vld [vmem:[%s325 + $0x18] sm:$0xff]
      %v713 = vld [vmem:[%s325 + $0x20] sm:$0xff]
      %v714 = vld [vmem:[%s325 + $0x28] sm:$0xff]
      %v715 = vld [vmem:[%s325 + $0x30] sm:$0xff]
      %v716 = vld [vmem:[%s325 + $0x38] sm:$0xff]
      %v717 = vld [vmem:[%s325 + $0x40] sm:$0xff]
      %v718 = vld [vmem:[%s325 + $0x48] sm:$0xff]
      %v719 = vld [vmem:[%s325 + $0x50] sm:$0xff]
      %v720 = vld [vmem:[%s325 + $0x58] sm:$0xff]
      %v721 = vrot.slane %v638, 2
      %v722 = vsel %vm280, %v721, 0
      %724 = vmatpush.msra.mxu0 0.0
      %725 = vmatpush.msra.mxu0 0.0
      %726 = vmatpush.msra.mxu0 0.0
      %727 = vmatpush.msra.mxu0 0.0
      %728 = vmatpush.msra.mxu0 %v720
      %729 = vmatpush.msra.mxu0 %v719
      %730 = vmatpush.msra.mxu0 %v718
      %731 = vmatpush.msra.mxu0 %v717
      %732 = vmatpush.msra.mxu0 %v716
      %733 = vmatpush.msra.mxu0 %v715
      %734 = vmatpush.msra.mxu0 %v714
      %735 = vmatpush.msra.mxu0 %v713
      %736 = vmatpush.msra.mxu0 %v712
      %737 = vmatpush.msra.mxu0 %v711
      %738 = vmatpush.msra.mxu0 %v710
      %739 = vmatpush.msra.mxu0 %v709
      %740 = vmatmul.f32.gmra.mxu0 %v722
      %v741 = vpop.f32.mrf.mxu0
      %v742 = vadd.f32 0.0, %v741
      %743 = vdwg.mxu0
      %v744 = vadd.f32 %v707, %v742
      %v745 = vld [vmem:[%s2] sm:$0x1]
      %v747 = vperm.slane %v745, 0
      %v749 = vmul.f32 %v744, %v747
      %v750 = vld [vmem:[%s3] sm:$0x1]
      %v752 = vperm.slane %v750, 0
      %v754 = vadd.f32 %v749, %v752
      %v755 = vsub.f32 %v754, %v571
      %v756 = vmul.f32 %v755, 0.5
      %v757 = vadd.f32 %v571, %v756
      %vm758 = vcmp.ge.f32.partialorder %v757, 1.0
      %v759 = vsel %vm758, 1, 0
      %v760 = vcvt.s32.f32 %v759
      %v761 = vsub.f32 1.0, %v760
      %v762 = vmul.f32 %v757, %v761
      %v763 = vld [vmem:[%s4] sm:$0x3]
      %v765 = vsel %vm380, %v763, 0
      %v768 = vsel %vm384, %v760, 0
      %770 = vmatpush.msra.mxu0 0.0
      %771 = vmatpush.msra.mxu0 0.0
      %772 = vmatpush.msra.mxu0 0.0
      %773 = vmatpush.msra.mxu0 0.0
      %774 = vmatpush.msra.mxu0 0.0
      %775 = vmatpush.msra.mxu0 0.0
      %776 = vmatpush.msra.mxu0 0.0
      %777 = vmatpush.msra.mxu0 0.0
      %778 = vmatpush.msra.mxu0 0.0
      %779 = vmatpush.msra.mxu0 0.0
      %780 = vmatpush.msra.mxu0 0.0
      %781 = vmatpush.msra.mxu0 0.0
      %782 = vmatpush.msra.mxu0 0.0
      %783 = vmatpush.msra.mxu0 0.0
      %784 = vmatpush.msra.mxu0 0.0
      %785 = vmatpush.msra.mxu0 %v768
      %786 = vmatmul.f32.gmra.mxu0 %v765
      %v787 = vpop.f32.mrf.mxu0
      %v788 = vadd.f32 0.0, %v787
      %789 = vdwg.mxu0
      %v790 = vld [vmem:[%s5] sm:$0xff]
      %v791 = vld [vmem:[%s5 + $0x8] sm:$0xff]
      %v792 = vld [vmem:[%s5 + $0x10] sm:$0xff]
      %v793 = vld [vmem:[%s5 + $0x18] sm:$0xff]
      %v794 = vld [vmem:[%s5 + $0x20] sm:$0xff]
      %v795 = vld [vmem:[%s5 + $0x28] sm:$0xff]
      %v796 = vld [vmem:[%s5 + $0x30] sm:$0xff]
      %v797 = vld [vmem:[%s5 + $0x38] sm:$0xff]
      %v798 = vld [vmem:[%s5 + $0x40] sm:$0xff]
      %v799 = vld [vmem:[%s5 + $0x48] sm:$0xff]
      %v800 = vld [vmem:[%s5 + $0x50] sm:$0xff]
      %v801 = vld [vmem:[%s5 + $0x58] sm:$0xff]
      %v802 = vld [vmem:[%s5 + $0x60] sm:$0xff]
      %v803 = vld [vmem:[%s5 + $0x68] sm:$0xff]
      %v804 = vld [vmem:[%s5 + $0x70] sm:$0xff]
      %v805 = vld [vmem:[%s5 + $0x78] sm:$0xff]
      %806 = vmatpush.msra.mxu0 %v805
      %807 = vmatpush.msra.mxu0 %v804
      %808 = vmatpush.msra.mxu0 %v803
      %809 = vmatpush.msra.mxu0 %v802
      %810 = vmatpush.msra.mxu0 %v801
      %811 = vmatpush.msra.mxu0 %v800
      %812 = vmatpush.msra.mxu0 %v799
      %813 = vmatpush.msra.mxu0 %v798
      %814 = vmatpush.msra.mxu0 %v797
      %815 = vmatpush.msra.mxu0 %v796
      %816 = vmatpush.msra.mxu0 %v795
      %817 = vmatpush.msra.mxu0 %v794
      %818 = vmatpush.msra.mxu0 %v793
      %819 = vmatpush.msra.mxu0 %v792
      %820 = vmatpush.msra.mxu0 %v791
      %821 = vmatpush.msra.mxu0 %v790
      %822 = vmatmul.f32.gmra.mxu0 %v788
      %v823 = vpop.f32.mrf.mxu0
      %v824 = vadd.f32 0.0, %v823
      %825 = vdwg.mxu0
      %s826 = scalar_lea.vmem %s251, 4
      %827 = vst.msk [vmem:[%s826] sm:$0x3] %vm444, %v824
      %s828 = scalar_lea.vmem %s246, 24
      %v829 = vld [vmem:[%s828] sm:$0x3f]
      %v830 = vld [vmem:[%s1] sm:$0xff]
      %v831 = vld [vmem:[%s1 + $0x8] sm:$0xff]
      %v832 = vld [vmem:[%s1 + $0x10] sm:$0xff]
      %v833 = vld [vmem:[%s1 + $0x18] sm:$0xff]
      %v834 = vld [vmem:[%s1 + $0x20] sm:$0xff]
      %v835 = vld [vmem:[%s1 + $0x28] sm:$0xff]
      %v836 = vld [vmem:[%s1 + $0x30] sm:$0xff]
      %v837 = vld [vmem:[%s1 + $0x38] sm:$0xff]
      %v838 = vld [vmem:[%s1 + $0x40] sm:$0xff]
      %v839 = vld [vmem:[%s1 + $0x48] sm:$0xff]
      %v840 = vld [vmem:[%s1 + $0x50] sm:$0xff]
      %v841 = vld [vmem:[%s1 + $0x58] sm:$0xff]
      %v842 = vld [vmem:[%s265] sm:$0xff]
      %v843 = vld [vmem:[%s265 + $0x8] sm:$0xff]
      %v844 = vld [vmem:[%s265 + $0x10] sm:$0xff]
      %v845 = vld [vmem:[%s265 + $0x18] sm:$0xff]
      %v846 = vld [vmem:[%s265 + $0x20] sm:$0xff]
      %v847 = vld [vmem:[%s265 + $0x28] sm:$0xff]
      %v848 = vld [vmem:[%s265 + $0x30] sm:$0xff]
      %v849 = vld [vmem:[%s265 + $0x38] sm:$0xff]
      %v850 = vld [vmem:[%s265 + $0x40] sm:$0xff]
      %v851 = vld [vmem:[%s265 + $0x48] sm:$0xff]
      %v852 = vld [vmem:[%s265 + $0x50] sm:$0xff]
      %v853 = vld [vmem:[%s265 + $0x58] sm:$0xff]
      %v855 = vrot.slane %v829, 1
      %v856 = vsel %vm280, %v855, 0
      %858 = vmatpush.msra.mxu0 0.0
      %859 = vmatpush.msra.mxu0 0.0
      %860 = vmatpush.msra.mxu0 0.0
      %861 = vmatpush.msra.mxu0 0.0
      %862 = vmatpush.msra.mxu0 %v853
      %863 = vmatpush.msra.mxu0 %v852
      %864 = vmatpush.msra.mxu0 %v851
      %865 = vmatpush.msra.mxu0 %v850
      %866 = vmatpush.msra.mxu0 %v849
      %867 = vmatpush.msra.mxu0 %v848
      %868 = vmatpush.msra.mxu0 %v847
      %869 = vmatpush.msra.mxu0 %v846
      %870 = vmatpush.msra.mxu0 %v845
      %871 = vmatpush.msra.mxu0 %v844
      %872 = vmatpush.msra.mxu0 %v843
      %873 = vmatpush.msra.mxu0 %v842
      %874 = vmatmul.f32.gmra.mxu0 %v856
      %v875 = vpop.f32.mrf.mxu0
      %v876 = vadd.f32 0.0, %v875
      %877 = vdwg.mxu0
      %v878 = vsel %vm280, %v829, 0
      %880 = vmatpush.msra.mxu0 0.0
      %881 = vmatpush.msra.mxu0 0.0
      %882 = vmatpush.msra.mxu0 0.0
      %883 = vmatpush.msra.mxu0 0.0
      %884 = vmatpush.msra.mxu0 %v841
      %885 = vmatpush.msra.mxu0 %v840
      %886 = vmatpush.msra.mxu0 %v839
      %887 = vmatpush.msra.mxu0 %v838
      %888 = vmatpush.msra.mxu0 %v837
      %889 = vmatpush.msra.mxu0 %v836
      %890 = vmatpush.msra.mxu0 %v835
      %891 = vmatpush.msra.mxu0 %v834
      %892 = vmatpush.msra.mxu0 %v833
      %893 = vmatpush.msra.mxu0 %v832
      %894 = vmatpush.msra.mxu0 %v831
      %895 = vmatpush.msra.mxu0 %v830
      %896 = vmatmul.f32.gmra.mxu0 %v878
      %v897 = vpop.f32.mrf.mxu0
      %v898 = vadd.f32 %v876, %v897
      %899 = vdwg.mxu0
      %v900 = vld [vmem:[%s325] sm:$0xff]
      %v901 = vld [vmem:[%s325 + $0x8] sm:$0xff]
      %v902 = vld [vmem:[%s325 + $0x10] sm:$0xff]
      %v903 = vld [vmem:[%s325 + $0x18] sm:$0xff]
      %v904 = vld [vmem:[%s325 + $0x20] sm:$0xff]
      %v905 = vld [vmem:[%s325 + $0x28] sm:$0xff]
      %v906 = vld [vmem:[%s325 + $0x30] sm:$0xff]
      %v907 = vld [vmem:[%s325 + $0x38] sm:$0xff]
      %v908 = vld [vmem:[%s325 + $0x40] sm:$0xff]
      %v909 = vld [vmem:[%s325 + $0x48] sm:$0xff]
      %v910 = vld [vmem:[%s325 + $0x50] sm:$0xff]
      %v911 = vld [vmem:[%s325 + $0x58] sm:$0xff]
      %v912 = vrot.slane %v829, 2
      %v913 = vsel %vm280, %v912, 0
      %915 = vmatpush.msra.mxu0 0.0
      %916 = vmatpush.msra.mxu0 0.0
      %917 = vmatpush.msra.mxu0 0.0
      %918 = vmatpush.msra.mxu0 0.0
      %919 = vmatpush.msra.mxu0 %v911
      %920 = vmatpush.msra.mxu0 %v910
      %921 = vmatpush.msra.mxu0 %v909
      %922 = vmatpush.msra.mxu0 %v908
      %923 = vmatpush.msra.mxu0 %v907
      %924 = vmatpush.msra.mxu0 %v906
      %925 = vmatpush.msra.mxu0 %v905
      %926 = vmatpush.msra.mxu0 %v904
      %927 = vmatpush.msra.mxu0 %v903
      %928 = vmatpush.msra.mxu0 %v902
      %929 = vmatpush.msra.mxu0 %v901
      %930 = vmatpush.msra.mxu0 %v900
      %931 = vmatmul.f32.gmra.mxu0 %v913
      %v932 = vpop.f32.mrf.mxu0
      %v933 = vadd.f32 0.0, %v932
      %934 = vdwg.mxu0
      %v935 = vadd.f32 %v898, %v933
      %v936 = vld [vmem:[%s2] sm:$0x1]
      %v938 = vperm.slane %v936, 0
      %v940 = vmul.f32 %v935, %v938
      %v941 = vld [vmem:[%s3] sm:$0x1]
      %v943 = vperm.slane %v941, 0
      %v945 = vadd.f32 %v940, %v943
      %v946 = vsub.f32 %v945, %v762
      %v947 = vmul.f32 %v946, 0.5
      %v948 = vadd.f32 %v762, %v947
      %vm949 = vcmp.ge.f32.partialorder %v948, 1.0
      %v950 = vsel %vm949, 1, 0
      %v951 = vcvt.s32.f32 %v950
      %v952 = vld [vmem:[%s4] sm:$0x3]
      %v954 = vsel %vm380, %v952, 0
      %v957 = vsel %vm384, %v951, 0
      %959 = vmatpush.msra.mxu0 0.0
      %960 = vmatpush.msra.mxu0 0.0
      %961 = vmatpush.msra.mxu0 0.0
      %962 = vmatpush.msra.mxu0 0.0
      %963 = vmatpush.msra.mxu0 0.0
      %964 = vmatpush.msra.mxu0 0.0
      %965 = vmatpush.msra.mxu0 0.0
      %966 = vmatpush.msra.mxu0 0.0
      %967 = vmatpush.msra.mxu0 0.0
      %968 = vmatpush.msra.mxu0 0.0
      %969 = vmatpush.msra.mxu0 0.0
      %970 = vmatpush.msra.mxu0 0.0
      %971 = vmatpush.msra.mxu0 0.0
      %972 = vmatpush.msra.mxu0 0.0
      %973 = vmatpush.msra.mxu0 0.0
      %974 = vmatpush.msra.mxu0 %v957
      %975 = vmatmul.f32.gmra.mxu0 %v954
      %v976 = vpop.f32.mrf.mxu0
      %v977 = vadd.f32 0.0, %v976
      %978 = vdwg.mxu0
      %v979 = vld [vmem:[%s5] sm:$0xff]
      %v980 = vld [vmem:[%s5 + $0x8] sm:$0xff]
      %v981 = vld [vmem:[%s5 + $0x10] sm:$0xff]
      %v982 = vld [vmem:[%s5 + $0x18] sm:$0xff]
      %v983 = vld [vmem:[%s5 + $0x20] sm:$0xff]
      %v984 = vld [vmem:[%s5 + $0x28] sm:$0xff]
      %v985 = vld [vmem:[%s5 + $0x30] sm:$0xff]
      %v986 = vld [vmem:[%s5 + $0x38] sm:$0xff]
      %v987 = vld [vmem:[%s5 + $0x40] sm:$0xff]
      %v988 = vld [vmem:[%s5 + $0x48] sm:$0xff]
      %v989 = vld [vmem:[%s5 + $0x50] sm:$0xff]
      %v990 = vld [vmem:[%s5 + $0x58] sm:$0xff]
      %v991 = vld [vmem:[%s5 + $0x60] sm:$0xff]
      %v992 = vld [vmem:[%s5 + $0x68] sm:$0xff]
      %v993 = vld [vmem:[%s5 + $0x70] sm:$0xff]
      %v994 = vld [vmem:[%s5 + $0x78] sm:$0xff]
      %995 = vmatpush.msra.mxu0 %v994
      %996 = vmatpush.msra.mxu0 %v993
      %997 = vmatpush.msra.mxu0 %v992
      %998 = vmatpush.msra.mxu0 %v991
      %999 = vmatpush.msra.mxu0 %v990
      %1000 = vmatpush.msra.mxu0 %v989
      %1001 = vmatpush.msra.mxu0 %v988
      %1002 = vmatpush.msra.mxu0 %v987
      %1003 = vmatpush.msra.mxu0 %v986
      %1004 = vmatpush.msra.mxu0 %v985
      %1005 = vmatpush.msra.mxu0 %v984
      %1006 = vmatpush.msra.mxu0 %v983
      %1007 = vmatpush.msra.mxu0 %v982
      %1008 = vmatpush.msra.mxu0 %v981
      %1009 = vmatpush.msra.mxu0 %v980
      %1010 = vmatpush.msra.mxu0 %v979
      %1011 = vmatmul.f32.gmra.mxu0 %v977
      %v1012 = vpop.f32.mrf.mxu0
      %v1013 = vadd.f32 0.0, %v1012
      %1014 = vdwg.mxu0
      %s1015 = scalar_lea.vmem %s251, 6
      %1016 = vst.msk [vmem:[%s1015] sm:$0x3] %vm444, %v1013
      %p1017 = scmp.lt.s32.totalorder %s17, 1
      %s1018 = scalar_select %p1017, %s17, 1
      %s1019 = smul.addr %s1018, 4
      %s1020 = smul.addr %s1019, 2
      %s1021 = scalar_lea.vmem %s6, %s1020
      // Predicated region
      $region45: #{spikformer_forward.11} parent=43 // pred_check
        %p1022 = pneg %p166
      $region46: #{spikformer_forward.11} parent=43 // pred_check_branch
        %1024 = sbr.rel (%p1022) target = $region48
      $region47: #{spikformer_forward.11} parent=43 // pred_region
        _
      $region48: #{spikformer_forward.11} parent=43 // pred_fallthru
        _
    $region44: #{spikformer_forward.11} parent=5 // pred_fallthru
      _
    %p1025 = scmp.le.s32.totalorder 2, %s12
    // Predicated region
    $region49: #{spikformer_forward.11} parent=5 // pred_check
      %p1026 = pneg %p1025
    $region50: #{spikformer_forward.11} parent=5 // pred_check_branch
      %1028 = sbr.rel (%p1026) target = $region52
    $region51: #{spikformer_forward.11} parent=5 // pred_region
      %s1029 = ssub.s32 %s12, 2
      // Predicated region
      $region53: #{spikformer_forward.11} parent=51 // pred_check
        %p1030 = pneg %p172
      $region54: #{spikformer_forward.11} parent=51 // pred_check_branch
        %1032 = sbr.rel (%p1030) target = $region56
      $region55: #{spikformer_forward.11} parent=51 // pred_region
        %p1033 = scmp.lt.s32.totalorder %s18, 1
        %s1034 = scalar_select %p1033, %s18, 1
        %s1035 = smul.addr %s1034, 4
        %s1036 = smul.addr %s1035, 2
        %s1037 = scalar_lea.vmem %s6, %s1036
      $region56: #{spikformer_forward.11} parent=51 // pred_fallthru
        _
    $region52: #{spikformer_forward.11} parent=5 // pred_fallthru
      _
  $region6: #{spikformer_forward.11} parent=0 // loop_footer
    %s16 = sadd.s32 1, %s12
  $region7: #{spikformer_forward.11} parent=0 // loop_footer_branch
    %11 = sbr.rel target = $region3
  $region8: #{spikformer_forward.11} parent=0 // loop_exit
    _

// kernel: spikformer_forward.12
$region0: #{spikformer_forward.12}
  #allocation0 [shape = 'u32[]', space=smem, size = 0x4, offset = 0x4, fixed_abs, tag = 'smem constant byte address 0x4 - core index']
  #allocation1 [shape = 'u32[72,128]{1,0:T(1,128)}', space=vmem, size = 0x9000, scoped, tag = 'internal scratch']
  %s0 = inlined_call_operand.vmem [shape: f32[2,4,4,128], index: 0, kind: input, shape index: {}]
  %s1 = inlined_call_operand.vmem [shape: f32[2,4,2,64], index: 1, kind: input, shape index: {}]
  %s2 = inlined_call_operand.vmem [shape: f32[3,128,64], index: 2, kind: input, shape index: {}]
  %s3 = inlined_call_operand.vmem [shape: f32[1,64], index: 3, kind: input, shape index: {}]
  %s4 = inlined_call_operand.vmem [shape: f32[1,64], index: 4, kind: input, shape index: {}]
  %s5 = inlined_call_operand.vmem [shape: f32[2,2,64], index: 5, kind: output, shape index: {}]
  %s6 = sld [smem:[#allocation0]]
  $region53: #{spikformer_forward.12} parent=0
    _
  %s8 = ssub.s32 1, %s6
  %s9 = scalar_select 0, %s8, %s6
  loop: start=0, step=1, limit=4
  $region2: #{spikformer_forward.12} parent=0 // loop_pre_header
    _
  $region3: #{spikformer_forward.12} parent=0 // loop_header
    %s11 = sphi 0, %s15
    %p12 = scmp.ge.s32.totalorder %s11, 4
    %s21 = sphi 0, %s23
    %s24 = sphi 0, %s21
    %s25 = sphi 0, %s24
    %s41 = sphi 0, %s25
    %s47 = sphi 0, %s49
    %s50 = sphi 0, %s47
    %s51 = sphi 0, %s50
    %s67 = sphi 0, %s51
    %s71 = sphi 0, %s71
    %s73 = sphi 0, %s71
    %s74 = sphi 0, %s73
    %s88 = sphi 0, %s74
    %s92 = sphi 0, %s92
    %s94 = sphi 0, %s92
    %s95 = sphi 0, %s94
    %s109 = sphi 0, %s95
    %s113 = sphi 0, %s113
    %s115 = sphi 0, %s113
    %s116 = sphi 0, %s115
    %s130 = sphi 0, %s116
    %s136 = sphi 0, %s138
    %s139 = sphi 0, %s136
    %s140 = sphi 0, %s139
    %s156 = sphi 0, %s140
  $region4: #{spikformer_forward.12} parent=0 // loop_header_branch
    %14 = sbr.rel (%p12) target = $region8
  $region5: #{spikformer_forward.12} parent=0 // loop_body
    %s16 = ssub.s32 %s11, 1
    %s17 = ssub.s32 %s11, 2
    %s18 = sadd.s32 %s11, 1
    %s19 = ssub.s32 %s11, %s18
    %p20 = scmp.eq.s32.totalorder %s19, 0
    %s22 = sadd.s32 %s21, 1
    %s23 = scalar_select %p20, %s21, %s22
    %p26 = pneg %p20
    %p27 = scmp.eq.s32.totalorder %s11, 1
    %p28 = por %p26, %p27
    %p29 = scmp.ne.s32.totalorder %s21, %s24
    %p30 = scmp.eq.s32.totalorder %s11, 0
    %p31 = por %p29, %p30
    %p32 = scmp.ne.s32.totalorder %s21, %s24
    %p33 = scmp.eq.s32.totalorder %s16, 1
    %p34 = por %p32, %p33
    %p35 = scmp.ne.s32.totalorder %s24, %s25
    %p36 = scmp.eq.s32.totalorder %s16, 0
    %p37 = por %p35, %p36
    %p38 = scmp.ne.s32.totalorder %s24, %s25
    %p39 = scmp.eq.s32.totalorder %s17, 1
    %p40 = por %p38, %p39
    %p42 = scmp.ne.s32.totalorder %s25, %s41
    %p43 = scmp.eq.s32.totalorder %s17, 0
    %p44 = por %p42, %p43
    %s45 = ssub.s32 %s11, %s18
    %p46 = scmp.eq.s32.totalorder %s45, 0
    %s48 = sadd.s32 %s47, 1
    %s49 = scalar_select %p46, %s47, %s48
    %p52 = pneg %p46
    %p53 = scmp.eq.s32.totalorder %s11, 1
    %p54 = por %p52, %p53
    %p55 = scmp.ne.s32.totalorder %s47, %s50
    %p56 = scmp.eq.s32.totalorder %s11, 0
    %p57 = por %p55, %p56
    %p58 = scmp.ne.s32.totalorder %s47, %s50
    %p59 = scmp.eq.s32.totalorder %s16, 1
    %p60 = por %p58, %p59
    %p61 = scmp.ne.s32.totalorder %s50, %s51
    %p62 = scmp.eq.s32.totalorder %s16, 0
    %p63 = por %p61, %p62
    %p64 = scmp.ne.s32.totalorder %s50, %s51
    %p65 = scmp.eq.s32.totalorder %s17, 1
    %p66 = por %p64, %p65
    %p68 = scmp.ne.s32.totalorder %s51, %s67
    %p69 = scmp.eq.s32.totalorder %s17, 0
    %p70 = por %p68, %p69
    %s72 = sadd.s32 %s71, 1
    %p75 = scmp.eq.s32.totalorder %s11, 1
    %p76 = scmp.ne.s32.totalorder %s71, %s73
    %p77 = scmp.eq.s32.totalorder %s11, 0
    %p78 = por %p76, %p77
    %p79 = scmp.ne.s32.totalorder %s71, %s73
    %p80 = scmp.eq.s32.totalorder %s16, 1
    %p81 = por %p79, %p80
    %p82 = scmp.ne.s32.totalorder %s73, %s74
    %p83 = scmp.eq.s32.totalorder %s16, 0
    %p84 = por %p82, %p83
    %p85 = scmp.ne.s32.totalorder %s73, %s74
    %p86 = scmp.eq.s32.totalorder %s17, 1
    %p87 = por %p85, %p86
    %p89 = scmp.ne.s32.totalorder %s74, %s88
    %p90 = scmp.eq.s32.totalorder %s17, 0
    %p91 = por %p89, %p90
    %s93 = sadd.s32 %s92, 1
    %p96 = scmp.eq.s32.totalorder %s11, 1
    %p97 = scmp.ne.s32.totalorder %s92, %s94
    %p98 = scmp.eq.s32.totalorder %s11, 0
    %p99 = por %p97, %p98
    %p100 = scmp.ne.s32.totalorder %s92, %s94
    %p101 = scmp.eq.s32.totalorder %s16, 1
    %p102 = por %p100, %p101
    %p103 = scmp.ne.s32.totalorder %s94, %s95
    %p104 = scmp.eq.s32.totalorder %s16, 0
    %p105 = por %p103, %p104
    %p106 = scmp.ne.s32.totalorder %s94, %s95
    %p107 = scmp.eq.s32.totalorder %s17, 1
    %p108 = por %p106, %p107
    %p110 = scmp.ne.s32.totalorder %s95, %s109
    %p111 = scmp.eq.s32.totalorder %s17, 0
    %p112 = por %p110, %p111
    %s114 = sadd.s32 %s113, 1
    %p117 = scmp.eq.s32.totalorder %s11, 1
    %p118 = scmp.ne.s32.totalorder %s113, %s115
    %p119 = scmp.eq.s32.totalorder %s11, 0
    %p120 = por %p118, %p119
    %p121 = scmp.ne.s32.totalorder %s113, %s115
    %p122 = scmp.eq.s32.totalorder %s16, 1
    %p123 = por %p121, %p122
    %p124 = scmp.ne.s32.totalorder %s115, %s116
    %p125 = scmp.eq.s32.totalorder %s16, 0
    %p126 = por %p124, %p125
    %p127 = scmp.ne.s32.totalorder %s115, %s116
    %p128 = scmp.eq.s32.totalorder %s17, 1
    %p129 = por %p127, %p128
    %p131 = scmp.ne.s32.totalorder %s116, %s130
    %p132 = scmp.eq.s32.totalorder %s17, 0
    %p133 = por %p131, %p132
    %s134 = ssub.s32 %s11, %s18
    %p135 = scmp.eq.s32.totalorder %s134, 0
    %s137 = sadd.s32 %s136, 1
    %s138 = scalar_select %p135, %s136, %s137
    %p141 = pneg %p135
    %p142 = scmp.eq.s32.totalorder %s11, 1
    %p143 = por %p141, %p142
    %p144 = scmp.ne.s32.totalorder %s136, %s139
    %p145 = scmp.eq.s32.totalorder %s11, 0
    %p146 = por %p144, %p145
    %p147 = scmp.ne.s32.totalorder %s136, %s139
    %p148 = scmp.eq.s32.totalorder %s16, 1
    %p149 = por %p147, %p148
    %p150 = scmp.ne.s32.totalorder %s139, %s140
    %p151 = scmp.eq.s32.totalorder %s16, 0
    %p152 = por %p150, %p151
    %p153 = scmp.ne.s32.totalorder %s139, %s140
    %p154 = scmp.eq.s32.totalorder %s17, 1
    %p155 = por %p153, %p154
    %p157 = scmp.ne.s32.totalorder %s140, %s156
    %p158 = scmp.eq.s32.totalorder %s17, 0
    %p159 = por %p157, %p158
    %p160 = scmp.le.s32.totalorder 1, %s11
    %p161 = scmp.lt.s32.totalorder %s11, 3
    %p162 = pnand %p160, %p161
    %p163 = pneg %p162
    // Predicated region
    $region9: #{spikformer_forward.12} parent=5 // pred_check
      _
    $region10: #{spikformer_forward.12} parent=5 // pred_check_branch
      %165 = sbr.rel (%p162) target = $region12
    $region11: #{spikformer_forward.12} parent=5 // pred_region
      %s166 = ssub.s32 %s11, 1
      // Predicated region
      $region13: #{spikformer_forward.12} parent=11 // pred_check
        %p167 = pneg %p84
      $region14: #{spikformer_forward.12} parent=11 // pred_check_branch
        %169 = sbr.rel (%p167) target = $region16
      $region15: #{spikformer_forward.12} parent=11 // pred_region
        _
      $region16: #{spikformer_forward.12} parent=11 // pred_fallthru
        _
      // Predicated region
      $region17: #{spikformer_forward.12} parent=11 // pred_check
        %p170 = pneg %p105
      $region18: #{spikformer_forward.12} parent=11 // pred_check_branch
        %172 = sbr.rel (%p170) target = $region20
      $region19: #{spikformer_forward.12} parent=11 // pred_region
        _
      $region20: #{spikformer_forward.12} parent=11 // pred_fallthru
        _
      // Predicated region
      $region21: #{spikformer_forward.12} parent=11 // pred_check
        %p173 = pneg %p126
      $region22: #{spikformer_forward.12} parent=11 // pred_check_branch
        %175 = sbr.rel (%p173) target = $region24
      $region23: #{spikformer_forward.12} parent=11 // pred_region
        _
      $region24: #{spikformer_forward.12} parent=11 // pred_fallthru
        _
    $region12: #{spikformer_forward.12} parent=5 // pred_fallthru
      _
    %p176 = scmp.lt.s32.totalorder %s11, 2
    // Predicated region
    $region25: #{spikformer_forward.12} parent=5 // pred_check
      %p177 = pneg %p176
    $region26: #{spikformer_forward.12} parent=5 // pred_check_branch
      %179 = sbr.rel (%p177) target = $region28
    $region27: #{spikformer_forward.12} parent=5 // pred_region
      // Predicated region
      $region29: #{spikformer_forward.12} parent=27 // pred_check
        %p180 = pneg %p31
      $region30: #{spikformer_forward.12} parent=27 // pred_check_branch
        %182 = sbr.rel (%p180) target = $region32
      $region31: #{spikformer_forward.12} parent=27 // pred_region
        %p183 = scmp.lt.s32.totalorder %s11, 1
        %s184 = scalar_select %p183, %s11, 1
        %s185 = smul.addr %s184, 4
        %s186 = smul.addr %s185, 4
        %s187 = scalar_lea.vmem %s0, %s186
      $region32: #{spikformer_forward.12} parent=27 // pred_fallthru
        _
      // Predicated region
      $region33: #{spikformer_forward.12} parent=27 // pred_check
        %p188 = pneg %p57
      $region34: #{spikformer_forward.12} parent=27 // pred_check_branch
        %190 = sbr.rel (%p188) target = $region36
      $region35: #{spikformer_forward.12} parent=27 // pred_region
        %p191 = scmp.lt.s32.totalorder %s11, 1
        %s192 = scalar_select %p191, %s11, 1
        %s193 = smul.addr %s192, 4
        %s194 = smul.addr %s193, 2
        %s195 = scalar_lea.vmem %s1, %s194
      $region36: #{spikformer_forward.12} parent=27 // pred_fallthru
        _
    $region28: #{spikformer_forward.12} parent=5 // pred_fallthru
      _
    %p196 = scmp.le.s32.totalorder 1, %s11
    %p197 = scmp.lt.s32.totalorder %s11, 3
    %p198 = pnand %p196, %p197
    %p199 = pneg %p198
    // Predicated region
    $region37: #{spikformer_forward.12} parent=5 // pred_check
      _
    $region38: #{spikformer_forward.12} parent=5 // pred_check_branch
      %201 = sbr.rel (%p198) target = $region40
    $region39: #{spikformer_forward.12} parent=5 // pred_region
      %s202 = ssub.s32 %s11, 1
      %p203 = scmp.lt.s32.totalorder %s16, 1
      %s204 = scalar_select %p203, %s16, 1
      %s205 = smul.addr %s204, 4
      %s206 = smul.addr %s205, 4
      %s207 = scalar_lea.vmem %s0, %s206
      %p208 = pneg %p37
      %p209 = pneg %p34
      %p210 = scmp.lt.s32.totalorder %s16, 1
      %s211 = scalar_select %p210, %s16, 1
      %s212 = smul.addr %s211, 4
      %s213 = smul.addr %s212, 2
      %s214 = scalar_lea.vmem %s1, %s213
      %p215 = pneg %p63
      %p216 = pneg %p60
      %p217 = pneg %p84
      %p218 = pneg %p81
      %p219 = pneg %p105
      %p220 = pneg %p102
      %p221 = pneg %p126
      %p222 = pneg %p123
      %p223 = pneg %p152
      %p224 = pneg %p149
      %p225 = scmp.lt.s32.totalorder %s16, 1
      %s226 = scalar_select %p225, %s16, 1
      %s227 = smul.addr %s226, 2
      %s228 = scalar_lea.vmem %s5, %s227
      %p229 = scmp.lt.s32.totalorder %s16, 1
      %s230 = scalar_select %p229, %s16, 1
      %s231 = smul.addr %s230, 4
      %s232 = smul.addr %s231, 4
      %s233 = scalar_lea.vmem %s0, %s232
      %p234 = scmp.lt.s32.totalorder %s16, 1
      %s235 = scalar_select %p234, %s16, 1
      %s236 = smul.addr %s235, 4
      %s237 = smul.addr %s236, 2
      %s238 = scalar_lea.vmem %s1, %s237
      %p239 = scmp.lt.s32.totalorder %s16, 1
      %s240 = scalar_select %p239, %s16, 1
      %s241 = smul.addr %s240, 2
      %s242 = scalar_lea.vmem %s5, %s241
      %v243 = vld [vmem:[%s233] sm:$0xf]
      %v244 = vld [vmem:[%s2] sm:$0xff]
      %v245 = vld [vmem:[%s2 + $0x8] sm:$0xff]
      %v246 = vld [vmem:[%s2 + $0x10] sm:$0xff]
      %v247 = vld [vmem:[%s2 + $0x18] sm:$0xff]
      %v248 = vld [vmem:[%s2 + $0x20] sm:$0xff]
      %v249 = vld [vmem:[%s2 + $0x28] sm:$0xff]
      %v250 = vld [vmem:[%s2 + $0x30] sm:$0xff]
      %v251 = vld [vmem:[%s2 + $0x38] sm:$0xff]
      %v252 = vld [vmem:[%s2 + $0x40] sm:$0xff]
      %v253 = vld [vmem:[%s2 + $0x48] sm:$0xff]
      %v254 = vld [vmem:[%s2 + $0x50] sm:$0xff]
      %v255 = vld [vmem:[%s2 + $0x58] sm:$0xff]
      %v256 = vld [vmem:[%s2 + $0x60] sm:$0xff]
      %v257 = vld [vmem:[%s2 + $0x68] sm:$0xff]
      %v258 = vld [vmem:[%s2 + $0x70] sm:$0xff]
      %v259 = vld [vmem:[%s2 + $0x78] sm:$0xff]
      %s260 = scalar_lea.vmem %s2, 128
      %v261 = vld [vmem:[%s260] sm:$0xff]
      %v262 = vld [vmem:[%s260 + $0x8] sm:$0xff]
      %v263 = vld [vmem:[%s260 + $0x10] sm:$0xff]
      %v264 = vld [vmem:[%s260 + $0x18] sm:$0xff]
      %v265 = vld [vmem:[%s260 + $0x20] sm:$0xff]
      %v266 = vld [vmem:[%s260 + $0x28] sm:$0xff]
      %v267 = vld [vmem:[%s260 + $0x30] sm:$0xff]
      %v268 = vld [vmem:[%s260 + $0x38] sm:$0xff]
      %v269 = vld [vmem:[%s260 + $0x40] sm:$0xff]
      %v270 = vld [vmem:[%s260 + $0x48] sm:$0xff]
      %v271 = vld [vmem:[%s260 + $0x50] sm:$0xff]
      %v272 = vld [vmem:[%s260 + $0x58] sm:$0xff]
      %v273 = vld [vmem:[%s260 + $0x60] sm:$0xff]
      %v274 = vld [vmem:[%s260 + $0x68] sm:$0xff]
      %v275 = vld [vmem:[%s260 + $0x70] sm:$0xff]
      %v276 = vld [vmem:[%s260 + $0x78] sm:$0xff]
      %v278 = vrot.slane %v243, 1
      %280 = vmatpush.msra.mxu0 %v276
      %281 = vmatpush.msra.mxu0 %v275
      %282 = vmatpush.msra.mxu0 %v274
      %283 = vmatpush.msra.mxu0 %v273
      %284 = vmatpush.msra.mxu0 %v272
      %285 = vmatpush.msra.mxu0 %v271
      %286 = vmatpush.msra.mxu0 %v270
      %287 = vmatpush.msra.mxu0 %v269
      %288 = vmatpush.msra.mxu0 %v268
      %289 = vmatpush.msra.mxu0 %v267
      %290 = vmatpush.msra.mxu0 %v266
      %291 = vmatpush.msra.mxu0 %v265
      %292 = vmatpush.msra.mxu0 %v264
      %293 = vmatpush.msra.mxu0 %v263
      %294 = vmatpush.msra.mxu0 %v262
      %295 = vmatpush.msra.mxu0 %v261
      %296 = vmatmul.f32.gmra.mxu0 %v278
      %v297 = vpop.f32.mrf.mxu0
      %v298 = vadd.f32 0.0, %v297
      %299 = vdwg.mxu0
      %300 = vmatpush.msra.mxu0 %v259
      %301 = vmatpush.msra.mxu0 %v258
      %302 = vmatpush.msra.mxu0 %v257
      %303 = vmatpush.msra.mxu0 %v256
      %304 = vmatpush.msra.mxu0 %v255
      %305 = vmatpush.msra.mxu0 %v254
      %306 = vmatpush.msra.mxu0 %v253
      %307 = vmatpush.msra.mxu0 %v252
      %308 = vmatpush.msra.mxu0 %v251
      %309 = vmatpush.msra.mxu0 %v250
      %310 = vmatpush.msra.mxu0 %v249
      %311 = vmatpush.msra.mxu0 %v248
      %312 = vmatpush.msra.mxu0 %v247
      %313 = vmatpush.msra.mxu0 %v246
      %314 = vmatpush.msra.mxu0 %v245
      %315 = vmatpush.msra.mxu0 %v244
      %316 = vmatmul.f32.gmra.mxu0 %v243
      %v317 = vpop.f32.mrf.mxu0
      %v318 = vadd.f32 %v298, %v317
      %319 = vdwg.mxu0
      %s320 = scalar_lea.vmem %s2, 256
      %v321 = vld [vmem:[%s320] sm:$0xff]
      %v322 = vld [vmem:[%s320 + $0x8] sm:$0xff]
      %v323 = vld [vmem:[%s320 + $0x10] sm:$0xff]
      %v324 = vld [vmem:[%s320 + $0x18] sm:$0xff]
      %v325 = vld [vmem:[%s320 + $0x20] sm:$0xff]
      %v326 = vld [vmem:[%s320 + $0x28] sm:$0xff]
      %v327 = vld [vmem:[%s320 + $0x30] sm:$0xff]
      %v328 = vld [vmem:[%s320 + $0x38] sm:$0xff]
      %v329 = vld [vmem:[%s320 + $0x40] sm:$0xff]
      %v330 = vld [vmem:[%s320 + $0x48] sm:$0xff]
      %v331 = vld [vmem:[%s320 + $0x50] sm:$0xff]
      %v332 = vld [vmem:[%s320 + $0x58] sm:$0xff]
      %v333 = vld [vmem:[%s320 + $0x60] sm:$0xff]
      %v334 = vld [vmem:[%s320 + $0x68] sm:$0xff]
      %v335 = vld [vmem:[%s320 + $0x70] sm:$0xff]
      %v336 = vld [vmem:[%s320 + $0x78] sm:$0xff]
      %v337 = vrot.slane %v243, 2
      %339 = vmatpush.msra.mxu0 %v336
      %340 = vmatpush.msra.mxu0 %v335
      %341 = vmatpush.msra.mxu0 %v334
      %342 = vmatpush.msra.mxu0 %v333
      %343 = vmatpush.msra.mxu0 %v332
      %344 = vmatpush.msra.mxu0 %v331
      %345 = vmatpush.msra.mxu0 %v330
      %346 = vmatpush.msra.mxu0 %v329
      %347 = vmatpush.msra.mxu0 %v328
      %348 = vmatpush.msra.mxu0 %v327
      %349 = vmatpush.msra.mxu0 %v326
      %350 = vmatpush.msra.mxu0 %v325
      %351 = vmatpush.msra.mxu0 %v324
      %352 = vmatpush.msra.mxu0 %v323
      %353 = vmatpush.msra.mxu0 %v322
      %354 = vmatpush.msra.mxu0 %v321
      %355 = vmatmul.f32.gmra.mxu0 %v337
      %v356 = vpop.f32.mrf.mxu0
      %v357 = vadd.f32 0.0, %v356
      %358 = vdwg.mxu0
      %v359 = vadd.f32 %v318, %v357
      %v360 = vld [vmem:[%s3] sm:$0x1]
      %v362 = vperm.slane %v360, 0
      %v364 = vmul.f32 %v359, %v362
      %v365 = vld [vmem:[%s4] sm:$0x1]
      %v367 = vperm.slane %v365, 0
      %v369 = vadd.f32 %v364, %v367
      %v370 = vmul.f32 %v369, 0.5
      %v371 = vadd.f32 %v370, 0.0
      %vm372 = vcmp.ge.f32.partialorder %v371, 1.0
      %v373 = vsel %vm372, 1, 0
      %v374 = vcvt.s32.f32 %v373
      %v375 = vsub.f32 1.0, %v374
      %v376 = vmul.f32 %v371, %v375
      %v377 = vadd.f32 %v374, 0.0
      %v378 = vld [vmem:[%s238] sm:$0x3]
      %v379 = vadd.f32 %v377, %v378
      %s380 = scalar_lea.vmem %s233, 4
      %v381 = vld [vmem:[%s380] sm:$0xf]
      %v383 = vrot.slane %v381, 1
      %385 = vmatpush.msra.mxu0 %v276
      %386 = vmatpush.msra.mxu0 %v275
      %387 = vmatpush.msra.mxu0 %v274
      %388 = vmatpush.msra.mxu0 %v273
      %389 = vmatpush.msra.mxu0 %v272
      %390 = vmatpush.msra.mxu0 %v271
      %391 = vmatpush.msra.mxu0 %v270
      %392 = vmatpush.msra.mxu0 %v269
      %393 = vmatpush.msra.mxu0 %v268
      %394 = vmatpush.msra.mxu0 %v267
      %395 = vmatpush.msra.mxu0 %v266
      %396 = vmatpush.msra.mxu0 %v265
      %397 = vmatpush.msra.mxu0 %v264
      %398 = vmatpush.msra.mxu0 %v263
      %399 = vmatpush.msra.mxu0 %v262
      %400 = vmatpush.msra.mxu0 %v261
      %401 = vmatmul.f32.gmra.mxu0 %v383
      %v402 = vpop.f32.mrf.mxu0
      %v403 = vadd.f32 0.0, %v402
      %404 = vdwg.mxu0
      %405 = vmatpush.msra.mxu0 %v259
      %406 = vmatpush.msra.mxu0 %v258
      %407 = vmatpush.msra.mxu0 %v257
      %408 = vmatpush.msra.mxu0 %v256
      %409 = vmatpush.msra.mxu0 %v255
      %410 = vmatpush.msra.mxu0 %v254
      %411 = vmatpush.msra.mxu0 %v253
      %412 = vmatpush.msra.mxu0 %v252
      %413 = vmatpush.msra.mxu0 %v251
      %414 = vmatpush.msra.mxu0 %v250
      %415 = vmatpush.msra.mxu0 %v249
      %416 = vmatpush.msra.mxu0 %v248
      %417 = vmatpush.msra.mxu0 %v247
      %418 = vmatpush.msra.mxu0 %v246
      %419 = vmatpush.msra.mxu0 %v245
      %420 = vmatpush.msra.mxu0 %v244
      %421 = vmatmul.f32.gmra.mxu0 %v381
      %v422 = vpop.f32.mrf.mxu0
      %v423 = vadd.f32 %v403, %v422
      %424 = vdwg.mxu0
      %v425 = vrot.slane %v381, 2
      %427 = vmatpush.msra.mxu0 %v336
      %428 = vmatpush.msra.mxu0 %v335
      %429 = vmatpush.msra.mxu0 %v334
      %430 = vmatpush.msra.mxu0 %v333
      %431 = vmatpush.msra.mxu0 %v332
      %432 = vmatpush.msra.mxu0 %v331
      %433 = vmatpush.msra.mxu0 %v330
      %434 = vmatpush.msra.mxu0 %v329
      %435 = vmatpush.msra.mxu0 %v328
      %436 = vmatpush.msra.mxu0 %v327
      %437 = vmatpush.msra.mxu0 %v326
      %438 = vmatpush.msra.mxu0 %v325
      %439 = vmatpush.msra.mxu0 %v324
      %440 = vmatpush.msra.mxu0 %v323
      %441 = vmatpush.msra.mxu0 %v322
      %442 = vmatpush.msra.mxu0 %v321
      %443 = vmatmul.f32.gmra.mxu0 %v425
      %v444 = vpop.f32.mrf.mxu0
      %v445 = vadd.f32 0.0, %v444
      %446 = vdwg.mxu0
      %v447 = vadd.f32 %v423, %v445
      %v448 = vmul.f32 %v447, %v362
      %v449 = vadd.f32 %v448, %v367
      %v450 = vsub.f32 %v449, %v376
      %v451 = vmul.f32 %v450, 0.5
      %v452 = vadd.f32 %v376, %v451
      %vm453 = vcmp.ge.f32.partialorder %v452, 1.0
      %v454 = vsel %vm453, 1, 0
      %v455 = vcvt.s32.f32 %v454
      %v456 = vsub.f32 1.0, %v455
      %v457 = vmul.f32 %v452, %v456
      %v458 = vadd.f32 %v379, %v455
      %s459 = scalar_lea.vmem %s238, 2
      %v460 = vld [vmem:[%s459] sm:$0x3]
      %v461 = vadd.f32 %v458, %v460
      %s462 = scalar_lea.vmem %s233, 8
      %v463 = vld [vmem:[%s462] sm:$0xf]
      %v465 = vrot.slane %v463, 1
      %467 = vmatpush.msra.mxu0 %v276
      %468 = vmatpush.msra.mxu0 %v275
      %469 = vmatpush.msra.mxu0 %v274
      %470 = vmatpush.msra.mxu0 %v273
      %471 = vmatpush.msra.mxu0 %v272
      %472 = vmatpush.msra.mxu0 %v271
      %473 = vmatpush.msra.mxu0 %v270
      %474 = vmatpush.msra.mxu0 %v269
      %475 = vmatpush.msra.mxu0 %v268
      %476 = vmatpush.msra.mxu0 %v267
      %477 = vmatpush.msra.mxu0 %v266
      %478 = vmatpush.msra.mxu0 %v265
      %479 = vmatpush.msra.mxu0 %v264
      %480 = vmatpush.msra.mxu0 %v263
      %481 = vmatpush.msra.mxu0 %v262
      %482 = vmatpush.msra.mxu0 %v261
      %483 = vmatmul.f32.gmra.mxu0 %v465
      %v484 = vpop.f32.mrf.mxu0
      %v485 = vadd.f32 0.0, %v484
      %486 = vdwg.mxu0
      %487 = vmatpush.msra.mxu0 %v259
      %488 = vmatpush.msra.mxu0 %v258
      %489 = vmatpush.msra.mxu0 %v257
      %490 = vmatpush.msra.mxu0 %v256
      %491 = vmatpush.msra.mxu0 %v255
      %492 = vmatpush.msra.mxu0 %v254
      %493 = vmatpush.msra.mxu0 %v253
      %494 = vmatpush.msra.mxu0 %v252
      %495 = vmatpush.msra.mxu0 %v251
      %496 = vmatpush.msra.mxu0 %v250
      %497 = vmatpush.msra.mxu0 %v249
      %498 = vmatpush.msra.mxu0 %v248
      %499 = vmatpush.msra.mxu0 %v247
      %500 = vmatpush.msra.mxu0 %v246
      %501 = vmatpush.msra.mxu0 %v245
      %502 = vmatpush.msra.mxu0 %v244
      %503 = vmatmul.f32.gmra.mxu0 %v463
      %v504 = vpop.f32.mrf.mxu0
      %v505 = vadd.f32 %v485, %v504
      %506 = vdwg.mxu0
      %v507 = vrot.slane %v463, 2
      %509 = vmatpush.msra.mxu0 %v336
      %510 = vmatpush.msra.mxu0 %v335
      %511 = vmatpush.msra.mxu0 %v334
      %512 = vmatpush.msra.mxu0 %v333
      %513 = vmatpush.msra.mxu0 %v332
      %514 = vmatpush.msra.mxu0 %v331
      %515 = vmatpush.msra.mxu0 %v330
      %516 = vmatpush.msra.mxu0 %v329
      %517 = vmatpush.msra.mxu0 %v328
      %518 = vmatpush.msra.mxu0 %v327
      %519 = vmatpush.msra.mxu0 %v326
      %520 = vmatpush.msra.mxu0 %v325
      %521 = vmatpush.msra.mxu0 %v324
      %522 = vmatpush.msra.mxu0 %v323
      %523 = vmatpush.msra.mxu0 %v322
      %524 = vmatpush.msra.mxu0 %v321
      %525 = vmatmul.f32.gmra.mxu0 %v507
      %v526 = vpop.f32.mrf.mxu0
      %v527 = vadd.f32 0.0, %v526
      %528 = vdwg.mxu0
      %v529 = vadd.f32 %v505, %v527
      %v530 = vmul.f32 %v529, %v362
      %v531 = vadd.f32 %v530, %v367
      %v532 = vsub.f32 %v531, %v457
      %v533 = vmul.f32 %v532, 0.5
      %v534 = vadd.f32 %v457, %v533
      %vm535 = vcmp.ge.f32.partialorder %v534, 1.0
      %v536 = vsel %vm535, 1, 0
      %v537 = vcvt.s32.f32 %v536
      %v538 = vsub.f32 1.0, %v537
      %v539 = vmul.f32 %v534, %v538
      %v540 = vadd.f32 %v461, %v537
      %s541 = scalar_lea.vmem %s238, 4
      %v542 = vld [vmem:[%s541] sm:$0x3]
      %v543 = vadd.f32 %v540, %v542
      %s544 = scalar_lea.vmem %s233, 12
      %v545 = vld [vmem:[%s544] sm:$0xf]
      %v547 = vrot.slane %v545, 1
      %549 = vmatpush.msra.mxu0 %v276
      %550 = vmatpush.msra.mxu0 %v275
      %551 = vmatpush.msra.mxu0 %v274
      %552 = vmatpush.msra.mxu0 %v273
      %553 = vmatpush.msra.mxu0 %v272
      %554 = vmatpush.msra.mxu0 %v271
      %555 = vmatpush.msra.mxu0 %v270
      %556 = vmatpush.msra.mxu0 %v269
      %557 = vmatpush.msra.mxu0 %v268
      %558 = vmatpush.msra.mxu0 %v267
      %559 = vmatpush.msra.mxu0 %v266
      %560 = vmatpush.msra.mxu0 %v265
      %561 = vmatpush.msra.mxu0 %v264
      %562 = vmatpush.msra.mxu0 %v263
      %563 = vmatpush.msra.mxu0 %v262
      %564 = vmatpush.msra.mxu0 %v261
      %565 = vmatmul.f32.gmra.mxu0 %v547
      %v566 = vpop.f32.mrf.mxu0
      %v567 = vadd.f32 0.0, %v566
      %568 = vdwg.mxu0
      %569 = vmatpush.msra.mxu0 %v259
      %570 = vmatpush.msra.mxu0 %v258
      %571 = vmatpush.msra.mxu0 %v257
      %572 = vmatpush.msra.mxu0 %v256
      %573 = vmatpush.msra.mxu0 %v255
      %574 = vmatpush.msra.mxu0 %v254
      %575 = vmatpush.msra.mxu0 %v253
      %576 = vmatpush.msra.mxu0 %v252
      %577 = vmatpush.msra.mxu0 %v251
      %578 = vmatpush.msra.mxu0 %v250
      %579 = vmatpush.msra.mxu0 %v249
      %580 = vmatpush.msra.mxu0 %v248
      %581 = vmatpush.msra.mxu0 %v247
      %582 = vmatpush.msra.mxu0 %v246
      %583 = vmatpush.msra.mxu0 %v245
      %584 = vmatpush.msra.mxu0 %v244
      %585 = vmatmul.f32.gmra.mxu0 %v545
      %v586 = vpop.f32.mrf.mxu0
      %v587 = vadd.f32 %v567, %v586
      %588 = vdwg.mxu0
      %v589 = vrot.slane %v545, 2
      %591 = vmatpush.msra.mxu0 %v336
      %592 = vmatpush.msra.mxu0 %v335
      %593 = vmatpush.msra.mxu0 %v334
      %594 = vmatpush.msra.mxu0 %v333
      %595 = vmatpush.msra.mxu0 %v332
      %596 = vmatpush.msra.mxu0 %v331
      %597 = vmatpush.msra.mxu0 %v330
      %598 = vmatpush.msra.mxu0 %v329
      %599 = vmatpush.msra.mxu0 %v328
      %600 = vmatpush.msra.mxu0 %v327
      %601 = vmatpush.msra.mxu0 %v326
      %602 = vmatpush.msra.mxu0 %v325
      %603 = vmatpush.msra.mxu0 %v324
      %604 = vmatpush.msra.mxu0 %v323
      %605 = vmatpush.msra.mxu0 %v322
      %606 = vmatpush.msra.mxu0 %v321
      %607 = vmatmul.f32.gmra.mxu0 %v589
      %v608 = vpop.f32.mrf.mxu0
      %v609 = vadd.f32 0.0, %v608
      %610 = vdwg.mxu0
      %v611 = vadd.f32 %v587, %v609
      %v612 = vmul.f32 %v611, %v362
      %v613 = vadd.f32 %v612, %v367
      %v614 = vsub.f32 %v613, %v539
      %v615 = vmul.f32 %v614, 0.5
      %v616 = vadd.f32 %v539, %v615
      %vm617 = vcmp.ge.f32.partialorder %v616, 1.0
      %v618 = vsel %vm617, 1, 0
      %v619 = vcvt.s32.f32 %v618
      %v620 = vadd.f32 %v543, %v619
      %s621 = scalar_lea.vmem %s238, 6
      %v622 = vld [vmem:[%s621] sm:$0x3]
      %v623 = vadd.f32 %v620, %v622
      %vm624 = vcmask 517120
      %625 = vst.msk [vmem:[%s242] sm:$0x3] %vm624, %v623
      %p626 = scmp.lt.s32.totalorder %s16, 1
      %s627 = scalar_select %p626, %s16, 1
      %s628 = smul.addr %s627, 2
      %s629 = scalar_lea.vmem %s5, %s628
      // Predicated region
      $region41: #{spikformer_forward.12} parent=39 // pred_check
        %p630 = pneg %p149
      $region42: #{spikformer_forward.12} parent=39 // pred_check_branch
        %632 = sbr.rel (%p630) target = $region44
      $region43: #{spikformer_forward.12} parent=39 // pred_region
        _
      $region44: #{spikformer_forward.12} parent=39 // pred_fallthru
        _
    $region40: #{spikformer_forward.12} parent=5 // pred_fallthru
      _
    %p633 = scmp.le.s32.totalorder 2, %s11
    // Predicated region
    $region45: #{spikformer_forward.12} parent=5 // pred_check
      %p634 = pneg %p633
    $region46: #{spikformer_forward.12} parent=5 // pred_check_branch
      %636 = sbr.rel (%p634) target = $region48
    $region47: #{spikformer_forward.12} parent=5 // pred_region
      %s637 = ssub.s32 %s11, 2
      // Predicated region
      $region49: #{spikformer_forward.12} parent=47 // pred_check
        %p638 = pneg %p155
      $region50: #{spikformer_forward.12} parent=47 // pred_check_branch
        %640 = sbr.rel (%p638) target = $region52
      $region51: #{spikformer_forward.12} parent=47 // pred_region
        %p641 = scmp.lt.s32.totalorder %s17, 1
        %s642 = scalar_select %p641, %s17, 1
        %s643 = smul.addr %s642, 2
        %s644 = scalar_lea.vmem %s5, %s643
      $region52: #{spikformer_forward.12} parent=47 // pred_fallthru
        _
    $region48: #{spikformer_forward.12} parent=5 // pred_fallthru
      _
  $region6: #{spikformer_forward.12} parent=0 // loop_footer
    %s15 = sadd.s32 1, %s11
  $region7: #{spikformer_forward.12} parent=0 // loop_footer_branch
    %10 = sbr.rel target = $region3
  $region8: #{spikformer_forward.12} parent=0 // loop_exit
    _

// kernel: spikformer_forward.13
$region0: #{spikformer_forward.13}
  #allocation0 [shape = 'u32[]', space=smem, size = 0x4, offset = 0x4, fixed_abs, tag = 'smem constant byte address 0x4 - core index']
  #allocation1 [shape = 'u32[72,128]{1,0:T(1,128)}', space=vmem, size = 0x9000, scoped, tag = 'internal scratch']
  %s0 = inlined_call_operand.vmem [shape: f32[2,1,4,32], index: 0, kind: input, shape index: {}]
  %s1 = inlined_call_operand.vmem [shape: f32[32,384], index: 1, kind: input, shape index: {}]
  %s2 = inlined_call_operand.vmem [shape: f32[1,384], index: 2, kind: input, shape index: {}]
  %s3 = inlined_call_operand.vmem [shape: f32[1,384], index: 3, kind: input, shape index: {}]
  %s4 = inlined_call_operand.vmem [shape: f32[128,32], index: 4, kind: input, shape index: {}]
  %s5 = inlined_call_operand.vmem [shape: f32[1,32], index: 5, kind: input, shape index: {}]
  %s6 = inlined_call_operand.vmem [shape: f32[1,32], index: 6, kind: input, shape index: {}]
  %s7 = inlined_call_operand.vmem [shape: f32[32,256], index: 7, kind: input, shape index: {}]
  %s8 = inlined_call_operand.vmem [shape: f32[1,256], index: 8, kind: input, shape index: {}]
  %s9 = inlined_call_operand.vmem [shape: f32[1,256], index: 9, kind: input, shape index: {}]
  %s10 = inlined_call_operand.vmem [shape: f32[128,32], index: 10, kind: input, shape index: {}]
  %s11 = inlined_call_operand.vmem [shape: f32[1,32], index: 11, kind: input, shape index: {}]
  %s12 = inlined_call_operand.vmem [shape: f32[1,32], index: 12, kind: input, shape index: {}]
  %s13 = inlined_call_operand.vmem [shape: f32[2,1,4,32], index: 13, kind: output, shape index: {}]
  %s14 = sld [smem:[#allocation0]]
  $region85: #{spikformer_forward.13} parent=0
    _
  %s16 = ssub.s32 1, %s14
  %s17 = scalar_select 0, %s16, %s14
  loop: start=0, step=1, limit=4
  $region2: #{spikformer_forward.13} parent=0 // loop_pre_header
    _
  $region3: #{spikformer_forward.13} parent=0 // loop_header
    %s19 = sphi 0, %s23
    %p20 = scmp.ge.s32.totalorder %s19, 4
    %s29 = sphi 0, %s31
    %s32 = sphi 0, %s29
    %s33 = sphi 0, %s32
    %s49 = sphi 0, %s33
    %s53 = sphi 0, %s53
    %s55 = sphi 0, %s53
    %s56 = sphi 0, %s55
    %s70 = sphi 0, %s56
    %s74 = sphi 0, %s74
    %s76 = sphi 0, %s74
    %s77 = sphi 0, %s76
    %s91 = sphi 0, %s77
    %s95 = sphi 0, %s95
    %s97 = sphi 0, %s95
    %s98 = sphi 0, %s97
    %s112 = sphi 0, %s98
    %s116 = sphi 0, %s116
    %s118 = sphi 0, %s116
    %s119 = sphi 0, %s118
    %s133 = sphi 0, %s119
    %s137 = sphi 0, %s137
    %s139 = sphi 0, %s137
    %s140 = sphi 0, %s139
    %s154 = sphi 0, %s140
    %s158 = sphi 0, %s158
    %s160 = sphi 0, %s158
    %s161 = sphi 0, %s160
    %s175 = sphi 0, %s161
    %s179 = sphi 0, %s179
    %s181 = sphi 0, %s179
    %s182 = sphi 0, %s181
    %s196 = sphi 0, %s182
    %s200 = sphi 0, %s200
    %s202 = sphi 0, %s200
    %s203 = sphi 0, %s202
    %s217 = sphi 0, %s203
    %s221 = sphi 0, %s221
    %s223 = sphi 0, %s221
    %s224 = sphi 0, %s223
    %s238 = sphi 0, %s224
    %s242 = sphi 0, %s242
    %s244 = sphi 0, %s242
    %s245 = sphi 0, %s244
    %s259 = sphi 0, %s245
    %s263 = sphi 0, %s263
    %s265 = sphi 0, %s263
    %s266 = sphi 0, %s265
    %s280 = sphi 0, %s266
    %s284 = sphi 0, %s284
    %s286 = sphi 0, %s284
    %s287 = sphi 0, %s286
    %s301 = sphi 0, %s287
    %s307 = sphi 0, %s309
    %s310 = sphi 0, %s307
    %s311 = sphi 0, %s310
    %s327 = sphi 0, %s311
  $region4: #{spikformer_forward.13} parent=0 // loop_header_branch
    %22 = sbr.rel (%p20) target = $region8
  $region5: #{spikformer_forward.13} parent=0 // loop_body
    %s24 = ssub.s32 %s19, 1
    %s25 = ssub.s32 %s19, 2
    %s26 = sadd.s32 %s19, 1
    %s27 = ssub.s32 %s19, %s26
    %p28 = scmp.eq.s32.totalorder %s27, 0
    %s30 = sadd.s32 %s29, 1
    %s31 = scalar_select %p28, %s29, %s30
    %p34 = pneg %p28
    %p35 = scmp.eq.s32.totalorder %s19, 1
    %p36 = por %p34, %p35
    %p37 = scmp.ne.s32.totalorder %s29, %s32
    %p38 = scmp.eq.s32.totalorder %s19, 0
    %p39 = por %p37, %p38
    %p40 = scmp.ne.s32.totalorder %s29, %s32
    %p41 = scmp.eq.s32.totalorder %s24, 1
    %p42 = por %p40, %p41
    %p43 = scmp.ne.s32.totalorder %s32, %s33
    %p44 = scmp.eq.s32.totalorder %s24, 0
    %p45 = por %p43, %p44
    %p46 = scmp.ne.s32.totalorder %s32, %s33
    %p47 = scmp.eq.s32.totalorder %s25, 1
    %p48 = por %p46, %p47
    %p50 = scmp.ne.s32.totalorder %s33, %s49
    %p51 = scmp.eq.s32.totalorder %s25, 0
    %p52 = por %p50, %p51
    %s54 = sadd.s32 %s53, 1
    %p57 = scmp.eq.s32.totalorder %s19, 1
    %p58 = scmp.ne.s32.totalorder %s53, %s55
    %p59 = scmp.eq.s32.totalorder %s19, 0
    %p60 = por %p58, %p59
    %p61 = scmp.ne.s32.totalorder %s53, %s55
    %p62 = scmp.eq.s32.totalorder %s24, 1
    %p63 = por %p61, %p62
    %p64 = scmp.ne.s32.totalorder %s55, %s56
    %p65 = scmp.eq.s32.totalorder %s24, 0
    %p66 = por %p64, %p65
    %p67 = scmp.ne.s32.totalorder %s55, %s56
    %p68 = scmp.eq.s32.totalorder %s25, 1
    %p69 = por %p67, %p68
    %p71 = scmp.ne.s32.totalorder %s56, %s70
    %p72 = scmp.eq.s32.totalorder %s25, 0
    %p73 = por %p71, %p72
    %s75 = sadd.s32 %s74, 1
    %p78 = scmp.eq.s32.totalorder %s19, 1
    %p79 = scmp.ne.s32.totalorder %s74, %s76
    %p80 = scmp.eq.s32.totalorder %s19, 0
    %p81 = por %p79, %p80
    %p82 = scmp.ne.s32.totalorder %s74, %s76
    %p83 = scmp.eq.s32.totalorder %s24, 1
    %p84 = por %p82, %p83
    %p85 = scmp.ne.s32.totalorder %s76, %s77
    %p86 = scmp.eq.s32.totalorder %s24, 0
    %p87 = por %p85, %p86
    %p88 = scmp.ne.s32.totalorder %s76, %s77
    %p89 = scmp.eq.s32.totalorder %s25, 1
    %p90 = por %p88, %p89
    %p92 = scmp.ne.s32.totalorder %s77, %s91
    %p93 = scmp.eq.s32.totalorder %s25, 0
    %p94 = por %p92, %p93
    %s96 = sadd.s32 %s95, 1
    %p99 = scmp.eq.s32.totalorder %s19, 1
    %p100 = scmp.ne.s32.totalorder %s95, %s97
    %p101 = scmp.eq.s32.totalorder %s19, 0
    %p102 = por %p100, %p101
    %p103 = scmp.ne.s32.totalorder %s95, %s97
    %p104 = scmp.eq.s32.totalorder %s24, 1
    %p105 = por %p103, %p104
    %p106 = scmp.ne.s32.totalorder %s97, %s98
    %p107 = scmp.eq.s32.totalorder %s24, 0
    %p108 = por %p106, %p107
    %p109 = scmp.ne.s32.totalorder %s97, %s98
    %p110 = scmp.eq.s32.totalorder %s25, 1
    %p111 = por %p109, %p110
    %p113 = scmp.ne.s32.totalorder %s98, %s112
    %p114 = scmp.eq.s32.totalorder %s25, 0
    %p115 = por %p113, %p114
    %s117 = sadd.s32 %s116, 1
    %p120 = scmp.eq.s32.totalorder %s19, 1
    %p121 = scmp.ne.s32.totalorder %s116, %s118
    %p122 = scmp.eq.s32.totalorder %s19, 0
    %p123 = por %p121, %p122
    %p124 = scmp.ne.s32.totalorder %s116, %s118
    %p125 = scmp.eq.s32.totalorder %s24, 1
    %p126 = por %p124, %p125
    %p127 = scmp.ne.s32.totalorder %s118, %s119
    %p128 = scmp.eq.s32.totalorder %s24, 0
    %p129 = por %p127, %p128
    %p130 = scmp.ne.s32.totalorder %s118, %s119
    %p131 = scmp.eq.s32.totalorder %s25, 1
    %p132 = por %p130, %p131
    %p134 = scmp.ne.s32.totalorder %s119, %s133
    %p135 = scmp.eq.s32.totalorder %s25, 0
    %p136 = por %p134, %p135
    %s138 = sadd.s32 %s137, 1
    %p141 = scmp.eq.s32.totalorder %s19, 1
    %p142 = scmp.ne.s32.totalorder %s137, %s139
    %p143 = scmp.eq.s32.totalorder %s19, 0
    %p144 = por %p142, %p143
    %p145 = scmp.ne.s32.totalorder %s137, %s139
    %p146 = scmp.eq.s32.totalorder %s24, 1
    %p147 = por %p145, %p146
    %p148 = scmp.ne.s32.totalorder %s139, %s140
    %p149 = scmp.eq.s32.totalorder %s24, 0
    %p150 = por %p148, %p149
    %p151 = scmp.ne.s32.totalorder %s139, %s140
    %p152 = scmp.eq.s32.totalorder %s25, 1
    %p153 = por %p151, %p152
    %p155 = scmp.ne.s32.totalorder %s140, %s154
    %p156 = scmp.eq.s32.totalorder %s25, 0
    %p157 = por %p155, %p156
    %s159 = sadd.s32 %s158, 1
    %p162 = scmp.eq.s32.totalorder %s19, 1
    %p163 = scmp.ne.s32.totalorder %s158, %s160
    %p164 = scmp.eq.s32.totalorder %s19, 0
    %p165 = por %p163, %p164
    %p166 = scmp.ne.s32.totalorder %s158, %s160
    %p167 = scmp.eq.s32.totalorder %s24, 1
    %p168 = por %p166, %p167
    %p169 = scmp.ne.s32.totalorder %s160, %s161
    %p170 = scmp.eq.s32.totalorder %s24, 0
    %p171 = por %p169, %p170
    %p172 = scmp.ne.s32.totalorder %s160, %s161
    %p173 = scmp.eq.s32.totalorder %s25, 1
    %p174 = por %p172, %p173
    %p176 = scmp.ne.s32.totalorder %s161, %s175
    %p177 = scmp.eq.s32.totalorder %s25, 0
    %p178 = por %p176, %p177
    %s180 = sadd.s32 %s179, 1
    %p183 = scmp.eq.s32.totalorder %s19, 1
    %p184 = scmp.ne.s32.totalorder %s179, %s181
    %p185 = scmp.eq.s32.totalorder %s19, 0
    %p186 = por %p184, %p185
    %p187 = scmp.ne.s32.totalorder %s179, %s181
    %p188 = scmp.eq.s32.totalorder %s24, 1
    %p189 = por %p187, %p188
    %p190 = scmp.ne.s32.totalorder %s181, %s182
    %p191 = scmp.eq.s32.totalorder %s24, 0
    %p192 = por %p190, %p191
    %p193 = scmp.ne.s32.totalorder %s181, %s182
    %p194 = scmp.eq.s32.totalorder %s25, 1
    %p195 = por %p193, %p194
    %p197 = scmp.ne.s32.totalorder %s182, %s196
    %p198 = scmp.eq.s32.totalorder %s25, 0
    %p199 = por %p197, %p198
    %s201 = sadd.s32 %s200, 1
    %p204 = scmp.eq.s32.totalorder %s19, 1
    %p205 = scmp.ne.s32.totalorder %s200, %s202
    %p206 = scmp.eq.s32.totalorder %s19, 0
    %p207 = por %p205, %p206
    %p208 = scmp.ne.s32.totalorder %s200, %s202
    %p209 = scmp.eq.s32.totalorder %s24, 1
    %p210 = por %p208, %p209
    %p211 = scmp.ne.s32.totalorder %s202, %s203
    %p212 = scmp.eq.s32.totalorder %s24, 0
    %p213 = por %p211, %p212
    %p214 = scmp.ne.s32.totalorder %s202, %s203
    %p215 = scmp.eq.s32.totalorder %s25, 1
    %p216 = por %p214, %p215
    %p218 = scmp.ne.s32.totalorder %s203, %s217
    %p219 = scmp.eq.s32.totalorder %s25, 0
    %p220 = por %p218, %p219
    %s222 = sadd.s32 %s221, 1
    %p225 = scmp.eq.s32.totalorder %s19, 1
    %p226 = scmp.ne.s32.totalorder %s221, %s223
    %p227 = scmp.eq.s32.totalorder %s19, 0
    %p228 = por %p226, %p227
    %p229 = scmp.ne.s32.totalorder %s221, %s223
    %p230 = scmp.eq.s32.totalorder %s24, 1
    %p231 = por %p229, %p230
    %p232 = scmp.ne.s32.totalorder %s223, %s224
    %p233 = scmp.eq.s32.totalorder %s24, 0
    %p234 = por %p232, %p233
    %p235 = scmp.ne.s32.totalorder %s223, %s224
    %p236 = scmp.eq.s32.totalorder %s25, 1
    %p237 = por %p235, %p236
    %p239 = scmp.ne.s32.totalorder %s224, %s238
    %p240 = scmp.eq.s32.totalorder %s25, 0
    %p241 = por %p239, %p240
    %s243 = sadd.s32 %s242, 1
    %p246 = scmp.eq.s32.totalorder %s19, 1
    %p247 = scmp.ne.s32.totalorder %s242, %s244
    %p248 = scmp.eq.s32.totalorder %s19, 0
    %p249 = por %p247, %p248
    %p250 = scmp.ne.s32.totalorder %s242, %s244
    %p251 = scmp.eq.s32.totalorder %s24, 1
    %p252 = por %p250, %p251
    %p253 = scmp.ne.s32.totalorder %s244, %s245
    %p254 = scmp.eq.s32.totalorder %s24, 0
    %p255 = por %p253, %p254
    %p256 = scmp.ne.s32.totalorder %s244, %s245
    %p257 = scmp.eq.s32.totalorder %s25, 1
    %p258 = por %p256, %p257
    %p260 = scmp.ne.s32.totalorder %s245, %s259
    %p261 = scmp.eq.s32.totalorder %s25, 0
    %p262 = por %p260, %p261
    %s264 = sadd.s32 %s263, 1
    %p267 = scmp.eq.s32.totalorder %s19, 1
    %p268 = scmp.ne.s32.totalorder %s263, %s265
    %p269 = scmp.eq.s32.totalorder %s19, 0
    %p270 = por %p268, %p269
    %p271 = scmp.ne.s32.totalorder %s263, %s265
    %p272 = scmp.eq.s32.totalorder %s24, 1
    %p273 = por %p271, %p272
    %p274 = scmp.ne.s32.totalorder %s265, %s266
    %p275 = scmp.eq.s32.totalorder %s24, 0
    %p276 = por %p274, %p275
    %p277 = scmp.ne.s32.totalorder %s265, %s266
    %p278 = scmp.eq.s32.totalorder %s25, 1
    %p279 = por %p277, %p278
    %p281 = scmp.ne.s32.totalorder %s266, %s280
    %p282 = scmp.eq.s32.totalorder %s25, 0
    %p283 = por %p281, %p282
    %s285 = sadd.s32 %s284, 1
    %p288 = scmp.eq.s32.totalorder %s19, 1
    %p289 = scmp.ne.s32.totalorder %s284, %s286
    %p290 = scmp.eq.s32.totalorder %s19, 0
    %p291 = por %p289, %p290
    %p292 = scmp.ne.s32.totalorder %s284, %s286
    %p293 = scmp.eq.s32.totalorder %s24, 1
    %p294 = por %p292, %p293
    %p295 = scmp.ne.s32.totalorder %s286, %s287
    %p296 = scmp.eq.s32.totalorder %s24, 0
    %p297 = por %p295, %p296
    %p298 = scmp.ne.s32.totalorder %s286, %s287
    %p299 = scmp.eq.s32.totalorder %s25, 1
    %p300 = por %p298, %p299
    %p302 = scmp.ne.s32.totalorder %s287, %s301
    %p303 = scmp.eq.s32.totalorder %s25, 0
    %p304 = por %p302, %p303
    %s305 = ssub.s32 %s19, %s26
    %p306 = scmp.eq.s32.totalorder %s305, 0
    %s308 = sadd.s32 %s307, 1
    %s309 = scalar_select %p306, %s307, %s308
    %p312 = pneg %p306
    %p313 = scmp.eq.s32.totalorder %s19, 1
    %p314 = por %p312, %p313
    %p315 = scmp.ne.s32.totalorder %s307, %s310
    %p316 = scmp.eq.s32.totalorder %s19, 0
    %p317 = por %p315, %p316
    %p318 = scmp.ne.s32.totalorder %s307, %s310
    %p319 = scmp.eq.s32.totalorder %s24, 1
    %p320 = por %p318, %p319
    %p321 = scmp.ne.s32.totalorder %s310, %s311
    %p322 = scmp.eq.s32.totalorder %s24, 0
    %p323 = por %p321, %p322
    %p324 = scmp.ne.s32.totalorder %s310, %s311
    %p325 = scmp.eq.s32.totalorder %s25, 1
    %p326 = por %p324, %p325
    %p328 = scmp.ne.s32.totalorder %s311, %s327
    %p329 = scmp.eq.s32.totalorder %s25, 0
    %p330 = por %p328, %p329
    %p331 = scmp.le.s32.totalorder 1, %s19
    %p332 = scmp.lt.s32.totalorder %s19, 3
    %p333 = pnand %p331, %p332
    %p334 = pneg %p333
    // Predicated region
    $region9: #{spikformer_forward.13} parent=5 // pred_check
      _
    $region10: #{spikformer_forward.13} parent=5 // pred_check_branch
      %336 = sbr.rel (%p333) target = $region12
    $region11: #{spikformer_forward.13} parent=5 // pred_region
      %s337 = ssub.s32 %s19, 1
      // Predicated region
      $region13: #{spikformer_forward.13} parent=11 // pred_check
        %p338 = pneg %p66
      $region14: #{spikformer_forward.13} parent=11 // pred_check_branch
        %340 = sbr.rel (%p338) target = $region16
      $region15: #{spikformer_forward.13} parent=11 // pred_region
        _
      $region16: #{spikformer_forward.13} parent=11 // pred_fallthru
        _
      // Predicated region
      $region17: #{spikformer_forward.13} parent=11 // pred_check
        %p341 = pneg %p87
      $region18: #{spikformer_forward.13} parent=11 // pred_check_branch
        %343 = sbr.rel (%p341) target = $region20
      $region19: #{spikformer_forward.13} parent=11 // pred_region
        _
      $region20: #{spikformer_forward.13} parent=11 // pred_fallthru
        _
      // Predicated region
      $region21: #{spikformer_forward.13} parent=11 // pred_check
        %p344 = pneg %p108
      $region22: #{spikformer_forward.13} parent=11 // pred_check_branch
        %346 = sbr.rel (%p344) target = $region24
      $region23: #{spikformer_forward.13} parent=11 // pred_region
        _
      $region24: #{spikformer_forward.13} parent=11 // pred_fallthru
        _
      // Predicated region
      $region25: #{spikformer_forward.13} parent=11 // pred_check
        %p347 = pneg %p129
      $region26: #{spikformer_forward.13} parent=11 // pred_check_branch
        %349 = sbr.rel (%p347) target = $region28
      $region27: #{spikformer_forward.13} parent=11 // pred_region
        _
      $region28: #{spikformer_forward.13} parent=11 // pred_fallthru
        _
      // Predicated region
      $region29: #{spikformer_forward.13} parent=11 // pred_check
        %p350 = pneg %p150
      $region30: #{spikformer_forward.13} parent=11 // pred_check_branch
        %352 = sbr.rel (%p350) target = $region32
      $region31: #{spikformer_forward.13} parent=11 // pred_region
        _
      $region32: #{spikformer_forward.13} parent=11 // pred_fallthru
        _
      // Predicated region
      $region33: #{spikformer_forward.13} parent=11 // pred_check
        %p353 = pneg %p171
      $region34: #{spikformer_forward.13} parent=11 // pred_check_branch
        %355 = sbr.rel (%p353) target = $region36
      $region35: #{spikformer_forward.13} parent=11 // pred_region
        _
      $region36: #{spikformer_forward.13} parent=11 // pred_fallthru
        _
      // Predicated region
      $region37: #{spikformer_forward.13} parent=11 // pred_check
        %p356 = pneg %p192
      $region38: #{spikformer_forward.13} parent=11 // pred_check_branch
        %358 = sbr.rel (%p356) target = $region40
      $region39: #{spikformer_forward.13} parent=11 // pred_region
        _
      $region40: #{spikformer_forward.13} parent=11 // pred_fallthru
        _
      // Predicated region
      $region41: #{spikformer_forward.13} parent=11 // pred_check
        %p359 = pneg %p213
      $region42: #{spikformer_forward.13} parent=11 // pred_check_branch
        %361 = sbr.rel (%p359) target = $region44
      $region43: #{spikformer_forward.13} parent=11 // pred_region
        _
      $region44: #{spikformer_forward.13} parent=11 // pred_fallthru
        _
      // Predicated region
      $region45: #{spikformer_forward.13} parent=11 // pred_check
        %p362 = pneg %p234
      $region46: #{spikformer_forward.13} parent=11 // pred_check_branch
        %364 = sbr.rel (%p362) target = $region48
      $region47: #{spikformer_forward.13} parent=11 // pred_region
        _
      $region48: #{spikformer_forward.13} parent=11 // pred_fallthru
        _
      // Predicated region
      $region49: #{spikformer_forward.13} parent=11 // pred_check
        %p365 = pneg %p255
      $region50: #{spikformer_forward.13} parent=11 // pred_check_branch
        %367 = sbr.rel (%p365) target = $region52
      $region51: #{spikformer_forward.13} parent=11 // pred_region
        _
      $region52: #{spikformer_forward.13} parent=11 // pred_fallthru
        _
      // Predicated region
      $region53: #{spikformer_forward.13} parent=11 // pred_check
        %p368 = pneg %p276
      $region54: #{spikformer_forward.13} parent=11 // pred_check_branch
        %370 = sbr.rel (%p368) target = $region56
      $region55: #{spikformer_forward.13} parent=11 // pred_region
        _
      $region56: #{spikformer_forward.13} parent=11 // pred_fallthru
        _
      // Predicated region
      $region57: #{spikformer_forward.13} parent=11 // pred_check
        %p371 = pneg %p297
      $region58: #{spikformer_forward.13} parent=11 // pred_check_branch
        %373 = sbr.rel (%p371) target = $region60
      $region59: #{spikformer_forward.13} parent=11 // pred_region
        _
      $region60: #{spikformer_forward.13} parent=11 // pred_fallthru
        _
    $region12: #{spikformer_forward.13} parent=5 // pred_fallthru
      _
    %p374 = scmp.lt.s32.totalorder %s19, 2
    // Predicated region
    $region61: #{spikformer_forward.13} parent=5 // pred_check
      %p375 = pneg %p374
    $region62: #{spikformer_forward.13} parent=5 // pred_check_branch
      %377 = sbr.rel (%p375) target = $region64
    $region63: #{spikformer_forward.13} parent=5 // pred_region
      // Predicated region
      $region65: #{spikformer_forward.13} parent=63 // pred_check
        %p378 = pneg %p39
      $region66: #{spikformer_forward.13} parent=63 // pred_check_branch
        %380 = sbr.rel (%p378) target = $region68
      $region67: #{spikformer_forward.13} parent=63 // pred_region
        %p381 = scmp.lt.s32.totalorder %s19, 1
        %s382 = scalar_select %p381, %s19, 1
        %s383 = smul.addr %s382, 4
        %s384 = scalar_lea.vmem %s0, %s383
      $region68: #{spikformer_forward.13} parent=63 // pred_fallthru
        _
    $region64: #{spikformer_forward.13} parent=5 // pred_fallthru
      _
    %p385 = scmp.le.s32.totalorder 1, %s19
    %p386 = scmp.lt.s32.totalorder %s19, 3
    %p387 = pnand %p385, %p386
    %p388 = pneg %p387
    // Predicated region
    $region69: #{spikformer_forward.13} parent=5 // pred_check
      _
    $region70: #{spikformer_forward.13} parent=5 // pred_check_branch
      %390 = sbr.rel (%p387) target = $region72
    $region71: #{spikformer_forward.13} parent=5 // pred_region
      %s391 = ssub.s32 %s19, 1
      %p392 = scmp.lt.s32.totalorder %s24, 1
      %s393 = scalar_select %p392, %s24, 1
      %s394 = smul.addr %s393, 4
      %s395 = scalar_lea.vmem %s0, %s394
      %p396 = pneg %p45
      %p397 = pneg %p42
      %p398 = pneg %p66
      %p399 = pneg %p63
      %p400 = pneg %p87
      %p401 = pneg %p84
      %p402 = pneg %p108
      %p403 = pneg %p105
      %p404 = pneg %p129
      %p405 = pneg %p126
      %p406 = pneg %p150
      %p407 = pneg %p147
      %p408 = pneg %p171
      %p409 = pneg %p168
      %p410 = pneg %p192
      %p411 = pneg %p189
      %p412 = pneg %p213
      %p413 = pneg %p210
      %p414 = pneg %p234
      %p415 = pneg %p231
      %p416 = pneg %p255
      %p417 = pneg %p252
      %p418 = pneg %p276
      %p419 = pneg %p273
      %p420 = pneg %p297
      %p421 = pneg %p294
      %p422 = pneg %p323
      %p423 = pneg %p320
      %p424 = scmp.lt.s32.totalorder %s24, 1
      %s425 = scalar_select %p424, %s24, 1
      %s426 = smul.addr %s425, 4
      %s427 = scalar_lea.vmem %s13, %s426
      %p428 = scmp.lt.s32.totalorder %s24, 1
      %s429 = scalar_select %p428, %s24, 1
      %s430 = smul.addr %s429, 4
      %s431 = scalar_lea.vmem %s0, %s430
      %p432 = scmp.lt.s32.totalorder %s24, 1
      %s433 = scalar_select %p432, %s24, 1
      %s434 = smul.addr %s433, 4
      %s435 = scalar_lea.vmem %s13, %s434
      %v436 = vld [vmem:[%s431] sm:$0xf]
      %v437 = vld [vmem:[%s1] sm:$0xff]
      %v438 = vld [vmem:[%s1 + $0x8] sm:$0xff]
      %v439 = vld [vmem:[%s1 + $0x10] sm:$0xff]
      %v440 = vld [vmem:[%s1 + $0x18] sm:$0xff]
      %v441 = vld [vmem:[%s1 + $0x20] sm:$0xff]
      %v442 = vld [vmem:[%s1 + $0x28] sm:$0xff]
      %v443 = vld [vmem:[%s1 + $0x30] sm:$0xff]
      %v444 = vld [vmem:[%s1 + $0x38] sm:$0xff]
      %v445 = vld [vmem:[%s1 + $0x40] sm:$0xff]
      %v446 = vld [vmem:[%s1 + $0x48] sm:$0xff]
      %v447 = vld [vmem:[%s1 + $0x50] sm:$0xff]
      %v448 = vld [vmem:[%s1 + $0x58] sm:$0xff]
      %vm449 = vcmask 261120
      %v451 = vsel %vm449, %v436, 0
      %453 = vmatpush.msra.mxu0 0.0
      %454 = vmatpush.msra.mxu0 0.0
      %455 = vmatpush.msra.mxu0 0.0
      %456 = vmatpush.msra.mxu0 0.0
      %457 = vmatpush.msra.mxu0 0.0
      %458 = vmatpush.msra.mxu0 0.0
      %459 = vmatpush.msra.mxu0 0.0
      %460 = vmatpush.msra.mxu0 0.0
      %461 = vmatpush.msra.mxu0 0.0
      %462 = vmatpush.msra.mxu0 0.0
      %463 = vmatpush.msra.mxu0 0.0
      %464 = vmatpush.msra.mxu0 0.0
      %465 = vmatpush.msra.mxu0 %v446
      %466 = vmatpush.msra.mxu0 %v443
      %467 = vmatpush.msra.mxu0 %v440
      %468 = vmatpush.msra.mxu0 %v437
      %469 = vmatmul.f32.gmra.mxu0 %v451
      %v470 = vpop.f32.mrf.mxu0
      %v471 = vadd.f32 0.0, %v470
      %472 = vdwg.mxu0
      %473 = vmatpush.msra.mxu0 0.0
      %474 = vmatpush.msra.mxu0 0.0
      %475 = vmatpush.msra.mxu0 0.0
      %476 = vmatpush.msra.mxu0 0.0
      %477 = vmatpush.msra.mxu0 0.0
      %478 = vmatpush.msra.mxu0 0.0
      %479 = vmatpush.msra.mxu0 0.0
      %480 = vmatpush.msra.mxu0 0.0
      %481 = vmatpush.msra.mxu0 0.0
      %482 = vmatpush.msra.mxu0 0.0
      %483 = vmatpush.msra.mxu0 0.0
      %484 = vmatpush.msra.mxu0 0.0
      %485 = vmatpush.msra.mxu0 %v447
      %486 = vmatpush.msra.mxu0 %v444
      %487 = vmatpush.msra.mxu0 %v441
      %488 = vmatpush.msra.mxu0 %v438
      %489 = vmatmul.f32.gmra.mxu0 %v451
      %v490 = vpop.f32.mrf.mxu0
      %v491 = vadd.f32 0.0, %v490
      %492 = vdwg.mxu0
      %493 = vmatpush.msra.mxu0 0.0
      %494 = vmatpush.msra.mxu0 0.0
      %495 = vmatpush.msra.mxu0 0.0
      %496 = vmatpush.msra.mxu0 0.0
      %497 = vmatpush.msra.mxu0 0.0
      %498 = vmatpush.msra.mxu0 0.0
      %499 = vmatpush.msra.mxu0 0.0
      %500 = vmatpush.msra.mxu0 0.0
      %501 = vmatpush.msra.mxu0 0.0
      %502 = vmatpush.msra.mxu0 0.0
      %503 = vmatpush.msra.mxu0 0.0
      %504 = vmatpush.msra.mxu0 0.0
      %505 = vmatpush.msra.mxu0 %v448
      %506 = vmatpush.msra.mxu0 %v445
      %507 = vmatpush.msra.mxu0 %v442
      %508 = vmatpush.msra.mxu0 %v439
      %509 = vmatmul.f32.gmra.mxu0 %v451
      %v510 = vpop.f32.mrf.mxu0
      %v511 = vadd.f32 0.0, %v510
      %512 = vdwg.mxu0
      %v513 = vld [vmem:[%s2] sm:$0x7]
      %v515 = vperm.slane %v513, 0
      %v516 = vperm.slane %v513, 1
      %v517 = vperm.slane %v513, 2
      %v521 = vmul.f32 %v471, %v515
      %v522 = vmul.f32 %v491, %v516
      %v523 = vmul.f32 %v511, %v517
      %v524 = vld [vmem:[%s3] sm:$0x7]
      %v526 = vperm.slane %v524, 0
      %v527 = vperm.slane %v524, 1
      %v528 = vperm.slane %v524, 2
      %v532 = vadd.f32 %v521, %v526
      %v533 = vadd.f32 %v522, %v527
      %v534 = vadd.f32 %v523, %v528
      %v535 = vmul.f32 %v533, 0.5
      %v536 = vadd.f32 %v535, 0.0
      %vm537 = vcmp.ge.f32.partialorder %v536, 0.5
      %v538 = vsel %vm537, 1, 0
      %v539 = vcvt.s32.f32 %v538
      %v540 = vmul.f32 %v532, 0.5
      %v541 = vadd.f32 %v540, 0.0
      %vm542 = vcmp.ge.f32.partialorder %v541, 0.5
      %v543 = vsel %vm542, 1, 0
      %v544 = vcvt.s32.f32 %v543
      %v545 = vmul.f32 %v539, %v534
      %vm546 = vcmask 1043456
      %v547 = vsel %vm546, %v545, 0.0
      %v548 = vrot.slane %v547, 4
      %v549 = vadd.f32 %v547, %v548
      %v550 = vrot.slane %v549, 2
      %v551 = vadd.f32 %v549, %v550
      %v552 = vrot.slane %v551, 1
      %v553 = vadd.f32 %v551, %v552
      %v554 = vmul.f32 %v544, %v553
      %v555 = vld [vmem:[%s4] sm:$0xff]
      %v556 = vld [vmem:[%s4 + $0x8] sm:$0xff]
      %v557 = vld [vmem:[%s4 + $0x10] sm:$0xff]
      %v558 = vld [vmem:[%s4 + $0x18] sm:$0xff]
      %v559 = vld [vmem:[%s4 + $0x20] sm:$0xff]
      %v560 = vld [vmem:[%s4 + $0x28] sm:$0xff]
      %v561 = vld [vmem:[%s4 + $0x30] sm:$0xff]
      %v562 = vld [vmem:[%s4 + $0x38] sm:$0xff]
      %v563 = vld [vmem:[%s4 + $0x40] sm:$0xff]
      %v564 = vld [vmem:[%s4 + $0x48] sm:$0xff]
      %v565 = vld [vmem:[%s4 + $0x50] sm:$0xff]
      %v566 = vld [vmem:[%s4 + $0x58] sm:$0xff]
      %v567 = vld [vmem:[%s4 + $0x60] sm:$0xff]
      %v568 = vld [vmem:[%s4 + $0x68] sm:$0xff]
      %v569 = vld [vmem:[%s4 + $0x70] sm:$0xff]
      %v570 = vld [vmem:[%s4 + $0x78] sm:$0xff]
      %571 = vmatpush.msra.mxu0 %v570
      %572 = vmatpush.msra.mxu0 %v569
      %573 = vmatpush.msra.mxu0 %v568
      %574 = vmatpush.msra.mxu0 %v567
      %575 = vmatpush.msra.mxu0 %v566
      %576 = vmatpush.msra.mxu0 %v565
      %577 = vmatpush.msra.mxu0 %v564
      %578 = vmatpush.msra.mxu0 %v563
      %579 = vmatpush.msra.mxu0 %v562
      %580 = vmatpush.msra.mxu0 %v561
      %581 = vmatpush.msra.mxu0 %v560
      %582 = vmatpush.msra.mxu0 %v559
      %583 = vmatpush.msra.mxu0 %v558
      %584 = vmatpush.msra.mxu0 %v557
      %585 = vmatpush.msra.mxu0 %v556
      %586 = vmatpush.msra.mxu0 %v555
      %587 = vmatmul.f32.gmra.mxu0 %v554
      %v588 = vpop.f32.mrf.mxu0
      %v589 = vadd.f32 0.0, %v588
      %590 = vdwg.mxu0
      %v591 = vld [vmem:[%s5] sm:$0x1]
      %v593 = vperm.slane %v591, 0
      %v595 = vmul.f32 %v589, %v593
      %v596 = vld [vmem:[%s6] sm:$0x1]
      %v598 = vperm.slane %v596, 0
      %v600 = vadd.f32 %v595, %v598
      %v601 = vmul.f32 %v600, 0.5
      %v602 = vadd.f32 %v601, 0.0
      %vm603 = vcmp.ge.f32.partialorder %v602, 0.5
      %v604 = vsel %vm603, 1, 0
      %v605 = vcvt.s32.f32 %v604
      %v606 = vadd.f32 %v436, %v605
      %v607 = vld [vmem:[%s7] sm:$0xff]
      %v608 = vld [vmem:[%s7 + $0x8] sm:$0xff]
      %v609 = vld [vmem:[%s7 + $0x10] sm:$0xff]
      %v610 = vld [vmem:[%s7 + $0x18] sm:$0xff]
      %v611 = vld [vmem:[%s7 + $0x20] sm:$0xff]
      %v612 = vld [vmem:[%s7 + $0x28] sm:$0xff]
      %v613 = vld [vmem:[%s7 + $0x30] sm:$0xff]
      %v614 = vld [vmem:[%s7 + $0x38] sm:$0xff]
      %v616 = vsel %vm449, %v606, 0
      %618 = vmatpush.msra.mxu0 0.0
      %619 = vmatpush.msra.mxu0 0.0
      %620 = vmatpush.msra.mxu0 0.0
      %621 = vmatpush.msra.mxu0 0.0
      %622 = vmatpush.msra.mxu0 0.0
      %623 = vmatpush.msra.mxu0 0.0
      %624 = vmatpush.msra.mxu0 0.0
      %625 = vmatpush.msra.mxu0 0.0
      %626 = vmatpush.msra.mxu0 0.0
      %627 = vmatpush.msra.mxu0 0.0
      %628 = vmatpush.msra.mxu0 0.0
      %629 = vmatpush.msra.mxu0 0.0
      %630 = vmatpush.msra.mxu0 %v613
      %631 = vmatpush.msra.mxu0 %v611
      %632 = vmatpush.msra.mxu0 %v609
      %633 = vmatpush.msra.mxu0 %v607
      %634 = vmatmul.f32.gmra.mxu0 %v616
      %v635 = vpop.f32.mrf.mxu0
      %v636 = vadd.f32 0.0, %v635
      %637 = vdwg.mxu0
      %638 = vmatpush.msra.mxu0 0.0
      %639 = vmatpush.msra.mxu0 0.0
      %640 = vmatpush.msra.mxu0 0.0
      %641 = vmatpush.msra.mxu0 0.0
      %642 = vmatpush.msra.mxu0 0.0
      %643 = vmatpush.msra.mxu0 0.0
      %644 = vmatpush.msra.mxu0 0.0
      %645 = vmatpush.msra.mxu0 0.0
      %646 = vmatpush.msra.mxu0 0.0
      %647 = vmatpush.msra.mxu0 0.0
      %648 = vmatpush.msra.mxu0 0.0
      %649 = vmatpush.msra.mxu0 0.0
      %650 = vmatpush.msra.mxu0 %v614
      %651 = vmatpush.msra.mxu0 %v612
      %652 = vmatpush.msra.mxu0 %v610
      %653 = vmatpush.msra.mxu0 %v608
      %654 = vmatmul.f32.gmra.mxu0 %v616
      %v655 = vpop.f32.mrf.mxu0
      %v656 = vadd.f32 0.0, %v655
      %657 = vdwg.mxu0
      %v658 = vld [vmem:[%s8] sm:$0x3]
      %v660 = vperm.slane %v658, 0
      %v661 = vperm.slane %v658, 1
      %v664 = vmul.f32 %v636, %v660
      %v665 = vmul.f32 %v656, %v661
      %v666 = vld [vmem:[%s9] sm:$0x3]
      %v668 = vperm.slane %v666, 0
      %v669 = vperm.slane %v666, 1
      %v672 = vadd.f32 %v664, %v668
      %v673 = vadd.f32 %v665, %v669
      %v674 = vmul.f32 %v672, 0.5
      %v675 = vadd.f32 %v674, 0.0
      %vm676 = vcmp.ge.f32.partialorder %v675, 1.0
      %v677 = vsel %vm676, 1, 0
      %v678 = vcvt.s32.f32 %v677
      %v679 = vmul.f32 %v673, %v678
      %v680 = vld [vmem:[%s10] sm:$0xff]
      %v681 = vld [vmem:[%s10 + $0x8] sm:$0xff]
      %v682 = vld [vmem:[%s10 + $0x10] sm:$0xff]
      %v683 = vld [vmem:[%s10 + $0x18] sm:$0xff]
      %v684 = vld [vmem:[%s10 + $0x20] sm:$0xff]
      %v685 = vld [vmem:[%s10 + $0x28] sm:$0xff]
      %v686 = vld [vmem:[%s10 + $0x30] sm:$0xff]
      %v687 = vld [vmem:[%s10 + $0x38] sm:$0xff]
      %v688 = vld [vmem:[%s10 + $0x40] sm:$0xff]
      %v689 = vld [vmem:[%s10 + $0x48] sm:$0xff]
      %v690 = vld [vmem:[%s10 + $0x50] sm:$0xff]
      %v691 = vld [vmem:[%s10 + $0x58] sm:$0xff]
      %v692 = vld [vmem:[%s10 + $0x60] sm:$0xff]
      %v693 = vld [vmem:[%s10 + $0x68] sm:$0xff]
      %v694 = vld [vmem:[%s10 + $0x70] sm:$0xff]
      %v695 = vld [vmem:[%s10 + $0x78] sm:$0xff]
      %696 = vmatpush.msra.mxu0 %v695
      %697 = vmatpush.msra.mxu0 %v694
      %698 = vmatpush.msra.mxu0 %v693
      %699 = vmatpush.msra.mxu0 %v692
      %700 = vmatpush.msra.mxu0 %v691
      %701 = vmatpush.msra.mxu0 %v690
      %702 = vmatpush.msra.mxu0 %v689
      %703 = vmatpush.msra.mxu0 %v688
      %704 = vmatpush.msra.mxu0 %v687
      %705 = vmatpush.msra.mxu0 %v686
      %706 = vmatpush.msra.mxu0 %v685
      %707 = vmatpush.msra.mxu0 %v684
      %708 = vmatpush.msra.mxu0 %v683
      %709 = vmatpush.msra.mxu0 %v682
      %710 = vmatpush.msra.mxu0 %v681
      %711 = vmatpush.msra.mxu0 %v680
      %712 = vmatmul.f32.gmra.mxu0 %v679
      %v713 = vpop.f32.mrf.mxu0
      %v714 = vadd.f32 0.0, %v713
      %715 = vdwg.mxu0
      %v716 = vld [vmem:[%s11] sm:$0x1]
      %v718 = vperm.slane %v716, 0
      %v720 = vmul.f32 %v714, %v718
      %v721 = vld [vmem:[%s12] sm:$0x1]
      %v723 = vperm.slane %v721, 0
      %v725 = vadd.f32 %v720, %v723
      %v726 = vmul.f32 %v725, 0.5
      %v727 = vadd.f32 %v726, 0.0
      %vm728 = vcmp.ge.f32.partialorder %v727, 1.0
      %v729 = vsel %vm728, 1, 0
      %v730 = vcvt.s32.f32 %v729
      %v731 = vadd.f32 %v606, %v730
      %vm732 = vcmask 257024
      %733 = vst.msk [vmem:[%s435] sm:$0xf] %vm732, %v731
      %p734 = scmp.lt.s32.totalorder %s24, 1
      %s735 = scalar_select %p734, %s24, 1
      %s736 = smul.addr %s735, 4
      %s737 = scalar_lea.vmem %s13, %s736
      // Predicated region
      $region73: #{spikformer_forward.13} parent=71 // pred_check
        %p738 = pneg %p320
      $region74: #{spikformer_forward.13} parent=71 // pred_check_branch
        %740 = sbr.rel (%p738) target = $region76
      $region75: #{spikformer_forward.13} parent=71 // pred_region
        _
      $region76: #{spikformer_forward.13} parent=71 // pred_fallthru
        _
    $region72: #{spikformer_forward.13} parent=5 // pred_fallthru
      _
    %p741 = scmp.le.s32.totalorder 2, %s19
    // Predicated region
    $region77: #{spikformer_forward.13} parent=5 // pred_check
      %p742 = pneg %p741
    $region78: #{spikformer_forward.13} parent=5 // pred_check_branch
      %744 = sbr.rel (%p742) target = $region80
    $region79: #{spikformer_forward.13} parent=5 // pred_region
      %s745 = ssub.s32 %s19, 2
      // Predicated region
      $region81: #{spikformer_forward.13} parent=79 // pred_check
        %p746 = pneg %p326
      $region82: #{spikformer_forward.13} parent=79 // pred_check_branch
        %748 = sbr.rel (%p746) target = $region84
      $region83: #{spikformer_forward.13} parent=79 // pred_region
        %p749 = scmp.lt.s32.totalorder %s25, 1
        %s750 = scalar_select %p749, %s25, 1
        %s751 = smul.addr %s750, 4
        %s752 = scalar_lea.vmem %s13, %s751
      $region84: #{spikformer_forward.13} parent=79 // pred_fallthru
        _
    $region80: #{spikformer_forward.13} parent=5 // pred_fallthru
      _
  $region6: #{spikformer_forward.13} parent=0 // loop_footer
    %s23 = sadd.s32 1, %s19
  $region7: #{spikformer_forward.13} parent=0 // loop_footer_branch
    %18 = sbr.rel target = $region3
  $region8: #{spikformer_forward.13} parent=0 // loop_exit
    _

// kernel: spikformer_forward.15
$region0: #{spikformer_forward.15}
  #allocation0 [shape = 'u32[]', space=smem, size = 0x4, offset = 0x4, fixed_abs, tag = 'smem constant byte address 0x4 - core index']
  #allocation1 [shape = 'u32[72,128]{1,0:T(1,128)}', space=vmem, size = 0x9000, scoped, tag = 'internal scratch']
  %s0 = inlined_call_operand.vmem [shape: f32[4,2,32], index: 0, kind: input, shape index: {}]
  %s1 = inlined_call_operand.vmem [shape: f32[32,11], index: 1, kind: input, shape index: {}]
  %s2 = inlined_call_operand.vmem [shape: f32[1,11], index: 2, kind: input, shape index: {}]
  %s3 = inlined_call_operand.hbm [shape: f32[2,11], index: 3, kind: output, shape index: {}]
  %s4 = sld [smem:[#allocation0]]
  $region22: #{spikformer_forward.15} parent=0
    _
  %s6 = ssub.s32 1, %s4
  %s7 = scalar_select 0, %s6, %s4
  $region1: #{spikformer_forward.15} parent=0
    #allocation2 [shape = 'u8[1024]{0}', space=vmem, size = 0x400, scoped, tag = 'output window, operand 0, single buffered']
    #allocation3 [shape = 's32[1]{0}', space=sflag, size = 0x4, scoped, tag = 'scoped memory for spikformer_forward.15']
    %8 = vsyncpa [#allocation3], 0
    // Predicated region
    $region2: #{spikformer_forward.15} parent=1 // pred_check
      _
    $region3: #{spikformer_forward.15} parent=1 // pred_check_branch
      %10 = sbr.rel (0) target = $region5
    $region4: #{spikformer_forward.15} parent=1 // pred_region
      _
    $region5: #{spikformer_forward.15} parent=1 // pred_fallthru
      _
    // Predicated region
    $region6: #{spikformer_forward.15} parent=1 // pred_check
      _
    $region7: #{spikformer_forward.15} parent=1 // pred_check_branch
      %12 = sbr.rel (0) target = $region9
    $region8: #{spikformer_forward.15} parent=1 // pred_region
      _
    $region9: #{spikformer_forward.15} parent=1 // pred_fallthru
      _
    // Predicated region
    $region10: #{spikformer_forward.15} parent=1 // pred_check
      _
    $region11: #{spikformer_forward.15} parent=1 // pred_check_branch
      %14 = sbr.rel (0) target = $region13
    $region12: #{spikformer_forward.15} parent=1 // pred_region
      _
    $region13: #{spikformer_forward.15} parent=1 // pred_fallthru
      _
    %v15 = vld [vmem:[%s0] sm:$0x3]
    %v16 = vadd.f32 %v15, 0.0
    %s17 = scalar_lea.vmem %s0, 2
    %v18 = vld [vmem:[%s17] sm:$0x3]
    %v19 = vadd.f32 %v16, %v18
    %s20 = scalar_lea.vmem %s0, 4
    %v21 = vld [vmem:[%s20] sm:$0x3]
    %v22 = vadd.f32 %v19, %v21
    %s23 = scalar_lea.vmem %s0, 6
    %v24 = vld [vmem:[%s23] sm:$0x3]
    %v25 = vadd.f32 %v22, %v24
    %v26 = vmul.f32 %v25, 0.25
    %v27 = vld [vmem:[%s1] sm:$0xff]
    %v28 = vld [vmem:[%s1 + $0x8] sm:$0xff]
    %v29 = vld [vmem:[%s1 + $0x10] sm:$0xff]
    %v30 = vld [vmem:[%s1 + $0x18] sm:$0xff]
    %v31 = vld [vmem:[%s2] sm:$0x1]
    %v33 = vperm.slane %v31, 0
    %vm35 = vcmask 261120
    %v37 = vsel %vm35, %v26, 0
    %39 = vmatpush.msra.mxu0 0.0
    %40 = vmatpush.msra.mxu0 0.0
    %41 = vmatpush.msra.mxu0 0.0
    %42 = vmatpush.msra.mxu0 0.0
    %43 = vmatpush.msra.mxu0 0.0
    %44 = vmatpush.msra.mxu0 0.0
    %45 = vmatpush.msra.mxu0 0.0
    %46 = vmatpush.msra.mxu0 0.0
    %47 = vmatpush.msra.mxu0 0.0
    %48 = vmatpush.msra.mxu0 0.0
    %49 = vmatpush.msra.mxu0 0.0
    %50 = vmatpush.msra.mxu0 0.0
    %51 = vmatpush.msra.mxu0 %v30
    %52 = vmatpush.msra.mxu0 %v29
    %53 = vmatpush.msra.mxu0 %v28
    %54 = vmatpush.msra.mxu0 %v27
    %55 = vmatmul.f32.gmra.mxu0 %v37
    %v56 = vpop.f32.mrf.mxu0
    %v57 = vadd.f32 %v33, %v56
    %58 = vdwg.mxu0
    %vm59 = vcmask 82944
    %60 = vst.msk [vmem:[#allocation2] sm:$0x3] %vm59, %v57
    // Predicated region
    $region14: #{spikformer_forward.15} parent=1 // pred_check
      _
    $region15: #{spikformer_forward.15} parent=1 // pred_check_branch
      %62 = sbr.rel (0) target = $region17
    $region16: #{spikformer_forward.15} parent=1 // pred_region
      %64 = vsyncadd [#allocation3], 0
      %s66 = sshll.u32 [#allocation2], 4
      %s67 = int_to_ptr.vmem [resolvable:$true] %s66
      %s68 = sshll.u32 %s3, 4
      %s69 = int_to_ptr.hbm [resolvable:$true] %s68
      %71 = dma.vmem_to_hbm [thread:$0]  %s67, 32, %s69, [#allocation3]
    $region17: #{spikformer_forward.15} parent=1 // pred_fallthru
      _
    // Predicated region
    $region18: #{spikformer_forward.15} parent=1 // pred_check
      _
    $region19: #{spikformer_forward.15} parent=1 // pred_check_branch
      %73 = sbr.rel (0) target = $region21
    $region20: #{spikformer_forward.15} parent=1 // pred_region
      %75 = dma.done [#allocation3], 32
    $region21: #{spikformer_forward.15} parent=1 // pred_fallthru
      _
    %76 = vsyncpa [#allocation3], 1

</llo_original>
